<compile_context>
chip_gen: v5e
topology: v5e:2x2
jax: 0.10.0
libtpu: 0.0.40
codegen_flags: <defaults>
</compile_context>

<pallas_src>
import jax
import jax.numpy as jnp
from jax.experimental import pallas as pl
from jax.experimental.pallas import tpu as pltpu

VOCAB = 256      # multiple of 128 -> lane-dense logits
EMB = 100
HID = 200
SEQ = 8

HID_PAD = 256    # 200 -> 256 (each gate block padded to 256 lanes)
GATES = 3        # PyTorch GRU gate order: r, z, n


def _rnn_gen_kernel(
    ids_ref,       # SMEM (S,) int32 token ids
    e0_ref,        # VMEM (V, 3*HID_PAD) f32  fused emb @ Wih0 + biases
    whh0_ref,      # VMEM (HID_PAD, 3*HID_PAD) bf16
    bhn0_ref,      # VMEM (1, HID_PAD) f32
    h0_ref,        # VMEM (2, HID_PAD) f32 initial hidden (zero-padded lanes)
    wih1_hbm,      # ANY  (HID_PAD, 3*HID_PAD) bf16   (late: DMA'd manually)
    whh1_hbm,      # ANY  (HID_PAD, 3*HID_PAD) bf16   (late: DMA'd manually)
    bi1_ref,       # VMEM (1, 3*HID_PAD) f32
    bhn1_ref,      # VMEM (1, HID_PAD) f32
    mask_ref,      # VMEM (S, HID_PAD) f32 dropout scale mask (0.0 or 2.0)
    wlin_hbm,      # ANY  (HID_PAD, V) bf16           (late: DMA'd manually)
    blin_ref,      # VMEM (1, V) f32
    logits_ref,    # out VMEM (S, V) f32
    hout_ref,      # out VMEM (2, HID_PAD) f32
    wih1_buf,      # scratch VMEM (HID_PAD, 3*HID_PAD) bf16
    whh1_buf,      # scratch VMEM (HID_PAD, 3*HID_PAD) bf16
    wlin_buf,      # scratch VMEM (HID_PAD, V) bf16
    sem,           # scratch DMA semaphores (3,)
):
    seq_len = mask_ref.shape[0]

    # Kick off the HBM->VMEM copies of the layer-1 / output-projection weights
    # immediately; they land while the layer-0 recurrence runs.
    cp_wih1 = pltpu.make_async_copy(wih1_hbm, wih1_buf, sem.at[0])
    cp_whh1 = pltpu.make_async_copy(whh1_hbm, whh1_buf, sem.at[1])
    cp_wlin = pltpu.make_async_copy(wlin_hbm, wlin_buf, sem.at[2])
    cp_wih1.start()
    cp_whh1.start()
    cp_wlin.start()

    def gru_steps(gi_row, h, whh_ref, bhn_ref):
        """Unrolled GRU recurrence.  gi_row(t) -> (1, 3*HID_PAD) precomputed
        input-to-hidden gate pre-activations (r,z biases pre-summed; n: b_ih only).
        Returns (final hidden (1,HID_PAD) f32, all outputs (S,HID_PAD) f32)."""
        bhn = bhn_ref[...]                         # (1, HID_PAD), tiny
        rows = []
        for t in range(seq_len):
            gi = gi_row(t)                          # (1, 3*HID_PAD) f32
            # Per review: source whh_ref[...] inside the dot each step (no
            # 192-vreg hoist); bf16 operands, f32 accumulation.
            gh = jnp.dot(h.astype(jnp.bfloat16), whh_ref[...],
                         preferred_element_type=jnp.float32)
            r = jax.nn.sigmoid(gi[:, 0:HID_PAD] + gh[:, 0:HID_PAD])
            z = jax.nn.sigmoid(gi[:, HID_PAD:2 * HID_PAD]
                               + gh[:, HID_PAD:2 * HID_PAD])
            n = jnp.tanh(gi[:, 2 * HID_PAD:3 * HID_PAD]
                         + r * (gh[:, 2 * HID_PAD:3 * HID_PAD] + bhn))
            h = (1.0 - z) * n + z * h               # f32 elementwise
            rows.append(h)
        return h, jnp.concatenate(rows, axis=0)     # (S, HID_PAD) f32

    # ---- layer 0: gi0[t] is a dynamic-row gather of the fused E0 table.
    h1, l0_all = gru_steps(
        lambda t: e0_ref[pl.ds(ids_ref[t], 1), :],
        h0_ref[0:1, :], whh0_ref, bhn0_ref)

    # ---- layer 1: batched input-to-hidden matmul across all timesteps.
    cp_wih1.wait()
    gi1 = (jnp.dot(l0_all.astype(jnp.bfloat16), wih1_buf[...],
                   preferred_element_type=jnp.float32)
           + bi1_ref[...])                          # (S, 3*HID_PAD) f32
    cp_whh1.wait()
    h2, l1_all = gru_steps(
        lambda t: gi1[t:t + 1, :],
        h0_ref[1:2, :], whh1_buf, bhn1_ref)

    # New hidden state (pre-dropout, as in PyTorch).
    hout_ref[0:1, :] = h1
    hout_ref[1:2, :] = h2

    # Dropout p=0.5 (inverted dropout, mask precomputed: 0.0 / 2.0).
    dropped = l1_all * mask_ref[...]

    # Output projection (padded HID rows of wlin are zero -> padding is inert).
    cp_wlin.wait()
    logits_ref[...] = (jnp.dot(dropped.astype(jnp.bfloat16), wlin_buf[...],
                               preferred_element_type=jnp.float32)
                       + blin_ref[...])


def _pad_cols(a, cols):
    return jnp.pad(a, ((0, 0), (0, cols - a.shape[1])))


def _pad_to(a, rows, cols):
    return jnp.pad(a, ((0, rows - a.shape[0]), (0, cols - a.shape[1])))


def pack_params(p):
    """One-time host-side packing into the kernel layout."""
    pk = {}

    def gate_bias(bih, bhh):
        # r,z: b_ih + b_hh pre-summed; n: b_ih only (b_hh_n stays inside r*(.)).
        return jnp.concatenate(
            [_pad_cols(bih[0] + bhh[0], HID_PAD),
             _pad_cols(bih[1] + bhh[1], HID_PAD),
             _pad_cols(bih[2], HID_PAD)], axis=1)                       # (1, 768)

    # Fused embedding + layer-0 input projection table (f32: feeds gate math
    # directly, never a matmul operand in the kernel).
    e0 = jnp.concatenate(
        [_pad_cols(p["emb"] @ p["wih0"][g], HID_PAD) for g in range(GATES)],
        axis=1) + gate_bias(p["bih0"], p["bhh0"])
    pk["e0"] = e0.astype(jnp.float32)                                   # (V, 768)

    def pack_w(w):
        # w: (3, in, HID) -> (in_pad=HID_PAD, 3*HID_PAD) bf16 (matmul operand).
        return jnp.concatenate(
            [_pad_to(w[g], HID_PAD, HID_PAD) for g in range(GATES)],
            axis=1).astype(jnp.bfloat16)

    pk["whh0"] = pack_w(p["whh0"])                                      # (256, 768) bf16
    pk["bhn0"] = _pad_cols(p["bhh0"][2], HID_PAD)                       # (1, 256) f32
    pk["wih1"] = pack_w(p["wih1"])                                      # (256, 768) bf16
    pk["whh1"] = pack_w(p["whh1"])                                      # (256, 768) bf16
    pk["bi1"] = gate_bias(p["bih1"], p["bhh1"])                         # (1, 768) f32
    pk["bhn1"] = _pad_cols(p["bhh1"][2], HID_PAD)                       # (1, 256) f32
    pk["wlin"] = _pad_to(p["wlin"], HID_PAD,
                         p["wlin"].shape[1]).astype(jnp.bfloat16)       # (256, V) bf16
    pk["blin"] = p["blin"]                                              # (1, V) f32
    return pk


@jax.jit
def rnn_generation_forward(ids, hidden, dropout_key, pk):
    s = ids.shape[0]
    vocab = pk["e0"].shape[0]
    hid_pad = pk["whh0"].shape[0]

    # Guard the in-kernel gather against OOB token ids (VMEM has no bounds check).
    ids = jnp.clip(ids.astype(jnp.int32), 0, vocab - 1)

    # Zero-pad the hidden state to 256 lanes.  Invariant: padded lanes must be
    # exactly zero; they stay zero through the recurrence because all padded
    # weight rows/cols are zero.
    hidden_p = jnp.pad(hidden, ((0, 0), (0, hid_pad - hidden.shape[1])))

    # Dropout mask (inverted dropout: keep w.p. 0.5, scale by 1/(1-p)=2).
    keep = jax.random.bernoulli(dropout_key, 0.5, (s, hid_pad))
    mask = keep.astype(jnp.float32) * 2.0

    smem = pl.BlockSpec(memory_space=pltpu.MemorySpace.SMEM)
    vmem = pl.BlockSpec(memory_space=pltpu.MemorySpace.VMEM)
    hbm = pl.BlockSpec(memory_space=pl.ANY)   # late-used weights: manual DMA

    args = (
        ids,
        pk["e0"], pk["whh0"], pk["bhn0"], hidden_p,
        pk["wih1"], pk["whh1"], pk["bi1"], pk["bhn1"], mask,
        pk["wlin"], pk["blin"],
    )
    in_specs = [smem,
                vmem, vmem, vmem, vmem,
                hbm, hbm, vmem, vmem, vmem,
                hbm, vmem]

    logits, hout_p = pl.pallas_call(
        _rnn_gen_kernel,
        out_shape=(
            jax.ShapeDtypeStruct((s, vocab), jnp.float32),
            jax.ShapeDtypeStruct((2, hid_pad), jnp.float32),
        ),
        in_specs=in_specs,
        out_specs=(vmem, vmem),
        scratch_shapes=[
            pltpu.VMEM((hid_pad, 3 * hid_pad), jnp.bfloat16),   # wih1_buf
            pltpu.VMEM((hid_pad, 3 * hid_pad), jnp.bfloat16),   # whh1_buf
            pltpu.VMEM((hid_pad, vocab), jnp.bfloat16),         # wlin_buf
            pltpu.SemaphoreType.DMA((3,)),
        ],
    )(*args)

    return logits, hout_p[:, :HID]


def init_params(key, vocab=VOCAB, emb=EMB, hid=HID):
    """Deterministic synthetic parameters matching the PyTorch module's shapes.
    GRU weights stored per-gate (r, z, n) on a leading axis, transposed for x@W."""
    ks = jax.random.split(key, 11)
    scale = 0.05
    p = {}
    p["emb"] = scale * jax.random.normal(ks[0], (vocab, emb), jnp.float32)
    p["wih0"] = scale * jax.random.normal(ks[1], (3, emb, hid), jnp.float32)
    p["whh0"] = scale * jax.random.normal(ks[2], (3, hid, hid), jnp.float32)
    p["bih0"] = scale * jax.random.normal(ks[3], (3, 1, hid), jnp.float32)
    p["bhh0"] = scale * jax.random.normal(ks[4], (3, 1, hid), jnp.float32)
    p["wih1"] = scale * jax.random.normal(ks[5], (3, hid, hid), jnp.float32)
    p["whh1"] = scale * jax.random.normal(ks[6], (3, hid, hid), jnp.float32)
    p["bih1"] = scale * jax.random.normal(ks[7], (3, 1, hid), jnp.float32)
    p["bhh1"] = scale * jax.random.normal(ks[8], (3, 1, hid), jnp.float32)
    p["wlin"] = scale * jax.random.normal(ks[9], (hid, vocab), jnp.float32)
    p["blin"] = scale * jax.random.normal(ks[10], (1, vocab), jnp.float32)
    return p


if __name__ == "__main__":
    key = jax.random.PRNGKey(0)
    pkey, ikey, dkey = jax.random.split(key, 3)

    raw_params = init_params(pkey)
    packed = pack_params(raw_params)

    ids = jax.random.randint(ikey, (SEQ,), 0, VOCAB, dtype=jnp.int32)
    hidden0 = jnp.zeros((2, HID), jnp.float32)        # == init_hidden()

    logits, h_out = rnn_generation_forward(ids, hidden0, dkey, packed)
    jax.block_until_ready((logits, h_out))

    assert logits.shape == (SEQ, VOCAB) and h_out.shape == (2, HID)
    assert bool(jnp.all(jnp.isfinite(logits))) and bool(jnp.all(jnp.isfinite(h_out)))
    print("KERNEL_OK")
</pallas_src>

<mosaic_0001>
module attributes {stable_mosaic.version = 11 : i64} {
  func.func @_rnn_gen_kernel(%arg0: memref<8xi32, #tpu.memory_space<smem>>, %arg1: memref<256x768xf32, #tpu.memory_space<vmem>>, %arg2: memref<256x768xbf16, #tpu.memory_space<vmem>>, %arg3: memref<1x256xf32, #tpu.memory_space<vmem>>, %arg4: memref<2x256xf32, #tpu.memory_space<vmem>>, %arg5: memref<256x768xbf16, #tpu.memory_space<any>>, %arg6: memref<256x768xbf16, #tpu.memory_space<any>>, %arg7: memref<1x768xf32, #tpu.memory_space<vmem>>, %arg8: memref<1x256xf32, #tpu.memory_space<vmem>>, %arg9: memref<8x256xf32, #tpu.memory_space<vmem>>, %arg10: memref<256x256xbf16, #tpu.memory_space<any>>, %arg11: memref<1x256xf32, #tpu.memory_space<vmem>>, %arg12: memref<8x256xf32, #tpu.memory_space<vmem>>, %arg13: memref<2x256xf32, #tpu.memory_space<vmem>>, %arg14: memref<256x768xbf16, #tpu.memory_space<vmem>>, %arg15: memref<256x768xbf16, #tpu.memory_space<vmem>>, %arg16: memref<256x256xbf16, #tpu.memory_space<vmem>>, %arg17: memref<3x!tpu.dma_semaphore, #tpu.memory_space<semaphore_mem>>) attributes {dimension_semantics = [], scalar_prefetch = 0 : i64, scratch_operands = 4 : i64, tpu.core_type = #tpu.core_type<tc>} {
    %c0_i32 = arith.constant 0 : i32
    %0 = tpu.memref_slice %arg17[%c0_i32] : memref<3x!tpu.dma_semaphore, #tpu.memory_space<semaphore_mem>> -> memref<1x!tpu.dma_semaphore, #tpu.memory_space<semaphore_mem>>
    %1 = tpu.memref_squeeze %0 : memref<1x!tpu.dma_semaphore, #tpu.memory_space<semaphore_mem>> -> memref<!tpu.dma_semaphore, #tpu.memory_space<semaphore_mem>>
    tpu.enqueue_dma source(%arg5 : memref<256x768xbf16, #tpu.memory_space<any>>) target(%arg14 : memref<256x768xbf16, #tpu.memory_space<vmem>>) target_semaphore(%1 : memref<!tpu.dma_semaphore, #tpu.memory_space<semaphore_mem>>)
    %c1_i32 = arith.constant 1 : i32
    %2 = tpu.memref_slice %arg17[%c1_i32] : memref<3x!tpu.dma_semaphore, #tpu.memory_space<semaphore_mem>> -> memref<1x!tpu.dma_semaphore, #tpu.memory_space<semaphore_mem>>
    %3 = tpu.memref_squeeze %2 : memref<1x!tpu.dma_semaphore, #tpu.memory_space<semaphore_mem>> -> memref<!tpu.dma_semaphore, #tpu.memory_space<semaphore_mem>>
    tpu.enqueue_dma source(%arg6 : memref<256x768xbf16, #tpu.memory_space<any>>) target(%arg15 : memref<256x768xbf16, #tpu.memory_space<vmem>>) target_semaphore(%3 : memref<!tpu.dma_semaphore, #tpu.memory_space<semaphore_mem>>)
    %c2_i32 = arith.constant 2 : i32
    %4 = tpu.memref_slice %arg17[%c2_i32] : memref<3x!tpu.dma_semaphore, #tpu.memory_space<semaphore_mem>> -> memref<1x!tpu.dma_semaphore, #tpu.memory_space<semaphore_mem>>
    %5 = tpu.memref_squeeze %4 : memref<1x!tpu.dma_semaphore, #tpu.memory_space<semaphore_mem>> -> memref<!tpu.dma_semaphore, #tpu.memory_space<semaphore_mem>>
    tpu.enqueue_dma source(%arg10 : memref<256x256xbf16, #tpu.memory_space<any>>) target(%arg16 : memref<256x256xbf16, #tpu.memory_space<vmem>>) target_semaphore(%5 : memref<!tpu.dma_semaphore, #tpu.memory_space<semaphore_mem>>)
    %c0 = arith.constant 0 : index
    %c0_0 = arith.constant 0 : index
    %6 = vector.load %arg4[%c0, %c0_0] : memref<2x256xf32, #tpu.memory_space<vmem>>, vector<1x256xf32>
    %c0_1 = arith.constant 0 : index
    %c0_2 = arith.constant 0 : index
    %7 = vector.load %arg3[%c0_1, %c0_2] : memref<1x256xf32, #tpu.memory_space<vmem>>, vector<1x256xf32>
    %c0_3 = arith.constant 0 : index
    %8 = memref.load %arg0[%c0_3] : memref<8xi32, #tpu.memory_space<smem>>
    %9 = arith.index_cast %8 : i32 to index
    %c0_4 = arith.constant 0 : index
    %10 = vector.load %arg1[%9, %c0_4] : memref<256x768xf32, #tpu.memory_space<vmem>>, vector<1x768xf32>
    %11 = arith.truncf %6 : vector<1x256xf32> to vector<1x256xbf16>
    %c0_5 = arith.constant 0 : index
    %c0_6 = arith.constant 0 : index
    %12 = vector.load %arg2[%c0_5, %c0_6] : memref<256x768xbf16, #tpu.memory_space<vmem>>, vector<256x768xbf16>
    %cst = arith.constant dense<0.000000e+00> : vector<1x768xf32>
    %13 = tpu.matmul %11, %12, %cst {dimension_numbers = #tpu.dot_dimension_numbers<[1], [0], [0], [1], [0, 0, 1, 1], [], []>} : vector<1x256xbf16>, vector<256x768xbf16>, vector<1x768xf32> -> vector<1x768xf32>
    %14 = vector.extract_strided_slice %10 {offsets = [0, 0], sizes = [1, 256], strides = [1, 1]} : vector<1x768xf32> to vector<1x256xf32>
    %15 = vector.extract_strided_slice %13 {offsets = [0, 0], sizes = [1, 256], strides = [1, 1]} : vector<1x768xf32> to vector<1x256xf32>
    %16 = arith.addf %14, %15 : vector<1x256xf32>
    %17 = arith.negf %16 : vector<1x256xf32>
    %18 = math.exp %17 : vector<1x256xf32>
    %cst_7 = arith.constant 1.000000e+00 : f32
    %19 = vector.broadcast %cst_7 : f32 to vector<1x256xf32>
    %20 = arith.addf %19, %18 : vector<1x256xf32>
    %21 = arith.divf %19, %20 : vector<1x256xf32>
    %22 = vector.extract_strided_slice %10 {offsets = [0, 256], sizes = [1, 256], strides = [1, 1]} : vector<1x768xf32> to vector<1x256xf32>
    %23 = vector.extract_strided_slice %13 {offsets = [0, 256], sizes = [1, 256], strides = [1, 1]} : vector<1x768xf32> to vector<1x256xf32>
    %24 = arith.addf %22, %23 : vector<1x256xf32>
    %25 = arith.negf %24 : vector<1x256xf32>
    %26 = math.exp %25 : vector<1x256xf32>
    %cst_8 = arith.constant 1.000000e+00 : f32
    %27 = vector.broadcast %cst_8 : f32 to vector<1x256xf32>
    %28 = arith.addf %27, %26 : vector<1x256xf32>
    %29 = arith.divf %27, %28 : vector<1x256xf32>
    %30 = vector.extract_strided_slice %10 {offsets = [0, 512], sizes = [1, 256], strides = [1, 1]} : vector<1x768xf32> to vector<1x256xf32>
    %31 = vector.extract_strided_slice %13 {offsets = [0, 512], sizes = [1, 256], strides = [1, 1]} : vector<1x768xf32> to vector<1x256xf32>
    %32 = arith.addf %31, %7 : vector<1x256xf32>
    %33 = arith.mulf %21, %32 : vector<1x256xf32>
    %34 = arith.addf %30, %33 : vector<1x256xf32>
    %35 = math.tanh %34 : vector<1x256xf32>
    %cst_9 = arith.constant 1.000000e+00 : f32
    %36 = vector.broadcast %cst_9 : f32 to vector<1x256xf32>
    %37 = arith.subf %36, %29 : vector<1x256xf32>
    %38 = arith.mulf %37, %35 : vector<1x256xf32>
    %39 = arith.mulf %29, %6 : vector<1x256xf32>
    %40 = arith.addf %38, %39 : vector<1x256xf32>
    %c1 = arith.constant 1 : index
    %41 = memref.load %arg0[%c1] : memref<8xi32, #tpu.memory_space<smem>>
    %42 = arith.index_cast %41 : i32 to index
    %c0_10 = arith.constant 0 : index
    %43 = vector.load %arg1[%42, %c0_10] : memref<256x768xf32, #tpu.memory_space<vmem>>, vector<1x768xf32>
    %44 = arith.truncf %40 : vector<1x256xf32> to vector<1x256xbf16>
    %c0_11 = arith.constant 0 : index
    %c0_12 = arith.constant 0 : index
    %45 = vector.load %arg2[%c0_11, %c0_12] : memref<256x768xbf16, #tpu.memory_space<vmem>>, vector<256x768xbf16>
    %cst_13 = arith.constant dense<0.000000e+00> : vector<1x768xf32>
    %46 = tpu.matmul %44, %45, %cst_13 {dimension_numbers = #tpu.dot_dimension_numbers<[1], [0], [0], [1], [0, 0, 1, 1], [], []>} : vector<1x256xbf16>, vector<256x768xbf16>, vector<1x768xf32> -> vector<1x768xf32>
    %47 = vector.extract_strided_slice %43 {offsets = [0, 0], sizes = [1, 256], strides = [1, 1]} : vector<1x768xf32> to vector<1x256xf32>
    %48 = vector.extract_strided_slice %46 {offsets = [0, 0], sizes = [1, 256], strides = [1, 1]} : vector<1x768xf32> to vector<1x256xf32>
    %49 = arith.addf %47, %48 : vector<1x256xf32>
    %50 = arith.negf %49 : vector<1x256xf32>
    %51 = math.exp %50 : vector<1x256xf32>
    %cst_14 = arith.constant 1.000000e+00 : f32
    %52 = vector.broadcast %cst_14 : f32 to vector<1x256xf32>
    %53 = arith.addf %52, %51 : vector<1x256xf32>
    %54 = arith.divf %52, %53 : vector<1x256xf32>
    %55 = vector.extract_strided_slice %43 {offsets = [0, 256], sizes = [1, 256], strides = [1, 1]} : vector<1x768xf32> to vector<1x256xf32>
    %56 = vector.extract_strided_slice %46 {offsets = [0, 256], sizes = [1, 256], strides = [1, 1]} : vector<1x768xf32> to vector<1x256xf32>
    %57 = arith.addf %55, %56 : vector<1x256xf32>
    %58 = arith.negf %57 : vector<1x256xf32>
    %59 = math.exp %58 : vector<1x256xf32>
    %cst_15 = arith.constant 1.000000e+00 : f32
    %60 = vector.broadcast %cst_15 : f32 to vector<1x256xf32>
    %61 = arith.addf %60, %59 : vector<1x256xf32>
    %62 = arith.divf %60, %61 : vector<1x256xf32>
    %63 = vector.extract_strided_slice %43 {offsets = [0, 512], sizes = [1, 256], strides = [1, 1]} : vector<1x768xf32> to vector<1x256xf32>
    %64 = vector.extract_strided_slice %46 {offsets = [0, 512], sizes = [1, 256], strides = [1, 1]} : vector<1x768xf32> to vector<1x256xf32>
    %65 = arith.addf %64, %7 : vector<1x256xf32>
    %66 = arith.mulf %54, %65 : vector<1x256xf32>
    %67 = arith.addf %63, %66 : vector<1x256xf32>
    %68 = math.tanh %67 : vector<1x256xf32>
    %cst_16 = arith.constant 1.000000e+00 : f32
    %69 = vector.broadcast %cst_16 : f32 to vector<1x256xf32>
    %70 = arith.subf %69, %62 : vector<1x256xf32>
    %71 = arith.mulf %70, %68 : vector<1x256xf32>
    %72 = arith.mulf %62, %40 : vector<1x256xf32>
    %73 = arith.addf %71, %72 : vector<1x256xf32>
    %c2 = arith.constant 2 : index
    %74 = memref.load %arg0[%c2] : memref<8xi32, #tpu.memory_space<smem>>
    %75 = arith.index_cast %74 : i32 to index
    %c0_17 = arith.constant 0 : index
    %76 = vector.load %arg1[%75, %c0_17] : memref<256x768xf32, #tpu.memory_space<vmem>>, vector<1x768xf32>
    %77 = arith.truncf %73 : vector<1x256xf32> to vector<1x256xbf16>
    %c0_18 = arith.constant 0 : index
    %c0_19 = arith.constant 0 : index
    %78 = vector.load %arg2[%c0_18, %c0_19] : memref<256x768xbf16, #tpu.memory_space<vmem>>, vector<256x768xbf16>
    %cst_20 = arith.constant dense<0.000000e+00> : vector<1x768xf32>
    %79 = tpu.matmul %77, %78, %cst_20 {dimension_numbers = #tpu.dot_dimension_numbers<[1], [0], [0], [1], [0, 0, 1, 1], [], []>} : vector<1x256xbf16>, vector<256x768xbf16>, vector<1x768xf32> -> vector<1x768xf32>
    %80 = vector.extract_strided_slice %76 {offsets = [0, 0], sizes = [1, 256], strides = [1, 1]} : vector<1x768xf32> to vector<1x256xf32>
    %81 = vector.extract_strided_slice %79 {offsets = [0, 0], sizes = [1, 256], strides = [1, 1]} : vector<1x768xf32> to vector<1x256xf32>
    %82 = arith.addf %80, %81 : vector<1x256xf32>
    %83 = arith.negf %82 : vector<1x256xf32>
    %84 = math.exp %83 : vector<1x256xf32>
    %cst_21 = arith.constant 1.000000e+00 : f32
    %85 = vector.broadcast %cst_21 : f32 to vector<1x256xf32>
    %86 = arith.addf %85, %84 : vector<1x256xf32>
    %87 = arith.divf %85, %86 : vector<1x256xf32>
    %88 = vector.extract_strided_slice %76 {offsets = [0, 256], sizes = [1, 256], strides = [1, 1]} : vector<1x768xf32> to vector<1x256xf32>
    %89 = vector.extract_strided_slice %79 {offsets = [0, 256], sizes = [1, 256], strides = [1, 1]} : vector<1x768xf32> to vector<1x256xf32>
    %90 = arith.addf %88, %89 : vector<1x256xf32>
    %91 = arith.negf %90 : vector<1x256xf32>
    %92 = math.exp %91 : vector<1x256xf32>
    %cst_22 = arith.constant 1.000000e+00 : f32
    %93 = vector.broadcast %cst_22 : f32 to vector<1x256xf32>
    %94 = arith.addf %93, %92 : vector<1x256xf32>
    %95 = arith.divf %93, %94 : vector<1x256xf32>
    %96 = vector.extract_strided_slice %76 {offsets = [0, 512], sizes = [1, 256], strides = [1, 1]} : vector<1x768xf32> to vector<1x256xf32>
    %97 = vector.extract_strided_slice %79 {offsets = [0, 512], sizes = [1, 256], strides = [1, 1]} : vector<1x768xf32> to vector<1x256xf32>
    %98 = arith.addf %97, %7 : vector<1x256xf32>
    %99 = arith.mulf %87, %98 : vector<1x256xf32>
    %100 = arith.addf %96, %99 : vector<1x256xf32>
    %101 = math.tanh %100 : vector<1x256xf32>
    %cst_23 = arith.constant 1.000000e+00 : f32
    %102 = vector.broadcast %cst_23 : f32 to vector<1x256xf32>
    %103 = arith.subf %102, %95 : vector<1x256xf32>
    %104 = arith.mulf %103, %101 : vector<1x256xf32>
    %105 = arith.mulf %95, %73 : vector<1x256xf32>
    %106 = arith.addf %104, %105 : vector<1x256xf32>
    %c3 = arith.constant 3 : index
    %107 = memref.load %arg0[%c3] : memref<8xi32, #tpu.memory_space<smem>>
    %108 = arith.index_cast %107 : i32 to index
    %c0_24 = arith.constant 0 : index
    %109 = vector.load %arg1[%108, %c0_24] : memref<256x768xf32, #tpu.memory_space<vmem>>, vector<1x768xf32>
    %110 = arith.truncf %106 : vector<1x256xf32> to vector<1x256xbf16>
    %c0_25 = arith.constant 0 : index
    %c0_26 = arith.constant 0 : index
    %111 = vector.load %arg2[%c0_25, %c0_26] : memref<256x768xbf16, #tpu.memory_space<vmem>>, vector<256x768xbf16>
    %cst_27 = arith.constant dense<0.000000e+00> : vector<1x768xf32>
    %112 = tpu.matmul %110, %111, %cst_27 {dimension_numbers = #tpu.dot_dimension_numbers<[1], [0], [0], [1], [0, 0, 1, 1], [], []>} : vector<1x256xbf16>, vector<256x768xbf16>, vector<1x768xf32> -> vector<1x768xf32>
    %113 = vector.extract_strided_slice %109 {offsets = [0, 0], sizes = [1, 256], strides = [1, 1]} : vector<1x768xf32> to vector<1x256xf32>
    %114 = vector.extract_strided_slice %112 {offsets = [0, 0], sizes = [1, 256], strides = [1, 1]} : vector<1x768xf32> to vector<1x256xf32>
    %115 = arith.addf %113, %114 : vector<1x256xf32>
    %116 = arith.negf %115 : vector<1x256xf32>
    %117 = math.exp %116 : vector<1x256xf32>
    %cst_28 = arith.constant 1.000000e+00 : f32
    %118 = vector.broadcast %cst_28 : f32 to vector<1x256xf32>
    %119 = arith.addf %118, %117 : vector<1x256xf32>
    %120 = arith.divf %118, %119 : vector<1x256xf32>
    %121 = vector.extract_strided_slice %109 {offsets = [0, 256], sizes = [1, 256], strides = [1, 1]} : vector<1x768xf32> to vector<1x256xf32>
    %122 = vector.extract_strided_slice %112 {offsets = [0, 256], sizes = [1, 256], strides = [1, 1]} : vector<1x768xf32> to vector<1x256xf32>
    %123 = arith.addf %121, %122 : vector<1x256xf32>
    %124 = arith.negf %123 : vector<1x256xf32>
    %125 = math.exp %124 : vector<1x256xf32>
    %cst_29 = arith.constant 1.000000e+00 : f32
    %126 = vector.broadcast %cst_29 : f32 to vector<1x256xf32>
    %127 = arith.addf %126, %125 : vector<1x256xf32>
    %128 = arith.divf %126, %127 : vector<1x256xf32>
    %129 = vector.extract_strided_slice %109 {offsets = [0, 512], sizes = [1, 256], strides = [1, 1]} : vector<1x768xf32> to vector<1x256xf32>
    %130 = vector.extract_strided_slice %112 {offsets = [0, 512], sizes = [1, 256], strides = [1, 1]} : vector<1x768xf32> to vector<1x256xf32>
    %131 = arith.addf %130, %7 : vector<1x256xf32>
    %132 = arith.mulf %120, %131 : vector<1x256xf32>
    %133 = arith.addf %129, %132 : vector<1x256xf32>
    %134 = math.tanh %133 : vector<1x256xf32>
    %cst_30 = arith.constant 1.000000e+00 : f32
    %135 = vector.broadcast %cst_30 : f32 to vector<1x256xf32>
    %136 = arith.subf %135, %128 : vector<1x256xf32>
    %137 = arith.mulf %136, %134 : vector<1x256xf32>
    %138 = arith.mulf %128, %106 : vector<1x256xf32>
    %139 = arith.addf %137, %138 : vector<1x256xf32>
    %c4 = arith.constant 4 : index
    %140 = memref.load %arg0[%c4] : memref<8xi32, #tpu.memory_space<smem>>
    %141 = arith.index_cast %140 : i32 to index
    %c0_31 = arith.constant 0 : index
    %142 = vector.load %arg1[%141, %c0_31] : memref<256x768xf32, #tpu.memory_space<vmem>>, vector<1x768xf32>
    %143 = arith.truncf %139 : vector<1x256xf32> to vector<1x256xbf16>
    %c0_32 = arith.constant 0 : index
    %c0_33 = arith.constant 0 : index
    %144 = vector.load %arg2[%c0_32, %c0_33] : memref<256x768xbf16, #tpu.memory_space<vmem>>, vector<256x768xbf16>
    %cst_34 = arith.constant dense<0.000000e+00> : vector<1x768xf32>
    %145 = tpu.matmul %143, %144, %cst_34 {dimension_numbers = #tpu.dot_dimension_numbers<[1], [0], [0], [1], [0, 0, 1, 1], [], []>} : vector<1x256xbf16>, vector<256x768xbf16>, vector<1x768xf32> -> vector<1x768xf32>
    %146 = vector.extract_strided_slice %142 {offsets = [0, 0], sizes = [1, 256], strides = [1, 1]} : vector<1x768xf32> to vector<1x256xf32>
    %147 = vector.extract_strided_slice %145 {offsets = [0, 0], sizes = [1, 256], strides = [1, 1]} : vector<1x768xf32> to vector<1x256xf32>
    %148 = arith.addf %146, %147 : vector<1x256xf32>
    %149 = arith.negf %148 : vector<1x256xf32>
    %150 = math.exp %149 : vector<1x256xf32>
    %cst_35 = arith.constant 1.000000e+00 : f32
    %151 = vector.broadcast %cst_35 : f32 to vector<1x256xf32>
    %152 = arith.addf %151, %150 : vector<1x256xf32>
    %153 = arith.divf %151, %152 : vector<1x256xf32>
    %154 = vector.extract_strided_slice %142 {offsets = [0, 256], sizes = [1, 256], strides = [1, 1]} : vector<1x768xf32> to vector<1x256xf32>
    %155 = vector.extract_strided_slice %145 {offsets = [0, 256], sizes = [1, 256], strides = [1, 1]} : vector<1x768xf32> to vector<1x256xf32>
    %156 = arith.addf %154, %155 : vector<1x256xf32>
    %157 = arith.negf %156 : vector<1x256xf32>
    %158 = math.exp %157 : vector<1x256xf32>
    %cst_36 = arith.constant 1.000000e+00 : f32
    %159 = vector.broadcast %cst_36 : f32 to vector<1x256xf32>
    %160 = arith.addf %159, %158 : vector<1x256xf32>
    %161 = arith.divf %159, %160 : vector<1x256xf32>
    %162 = vector.extract_strided_slice %142 {offsets = [0, 512], sizes = [1, 256], strides = [1, 1]} : vector<1x768xf32> to vector<1x256xf32>
    %163 = vector.extract_strided_slice %145 {offsets = [0, 512], sizes = [1, 256], strides = [1, 1]} : vector<1x768xf32> to vector<1x256xf32>
    %164 = arith.addf %163, %7 : vector<1x256xf32>
    %165 = arith.mulf %153, %164 : vector<1x256xf32>
    %166 = arith.addf %162, %165 : vector<1x256xf32>
    %167 = math.tanh %166 : vector<1x256xf32>
    %cst_37 = arith.constant 1.000000e+00 : f32
    %168 = vector.broadcast %cst_37 : f32 to vector<1x256xf32>
    %169 = arith.subf %168, %161 : vector<1x256xf32>
    %170 = arith.mulf %169, %167 : vector<1x256xf32>
    %171 = arith.mulf %161, %139 : vector<1x256xf32>
    %172 = arith.addf %170, %171 : vector<1x256xf32>
    %c5 = arith.constant 5 : index
    %173 = memref.load %arg0[%c5] : memref<8xi32, #tpu.memory_space<smem>>
    %174 = arith.index_cast %173 : i32 to index
    %c0_38 = arith.constant 0 : index
    %175 = vector.load %arg1[%174, %c0_38] : memref<256x768xf32, #tpu.memory_space<vmem>>, vector<1x768xf32>
    %176 = arith.truncf %172 : vector<1x256xf32> to vector<1x256xbf16>
    %c0_39 = arith.constant 0 : index
    %c0_40 = arith.constant 0 : index
    %177 = vector.load %arg2[%c0_39, %c0_40] : memref<256x768xbf16, #tpu.memory_space<vmem>>, vector<256x768xbf16>
    %cst_41 = arith.constant dense<0.000000e+00> : vector<1x768xf32>
    %178 = tpu.matmul %176, %177, %cst_41 {dimension_numbers = #tpu.dot_dimension_numbers<[1], [0], [0], [1], [0, 0, 1, 1], [], []>} : vector<1x256xbf16>, vector<256x768xbf16>, vector<1x768xf32> -> vector<1x768xf32>
    %179 = vector.extract_strided_slice %175 {offsets = [0, 0], sizes = [1, 256], strides = [1, 1]} : vector<1x768xf32> to vector<1x256xf32>
    %180 = vector.extract_strided_slice %178 {offsets = [0, 0], sizes = [1, 256], strides = [1, 1]} : vector<1x768xf32> to vector<1x256xf32>
    %181 = arith.addf %179, %180 : vector<1x256xf32>
    %182 = arith.negf %181 : vector<1x256xf32>
    %183 = math.exp %182 : vector<1x256xf32>
    %cst_42 = arith.constant 1.000000e+00 : f32
    %184 = vector.broadcast %cst_42 : f32 to vector<1x256xf32>
    %185 = arith.addf %184, %183 : vector<1x256xf32>
    %186 = arith.divf %184, %185 : vector<1x256xf32>
    %187 = vector.extract_strided_slice %175 {offsets = [0, 256], sizes = [1, 256], strides = [1, 1]} : vector<1x768xf32> to vector<1x256xf32>
    %188 = vector.extract_strided_slice %178 {offsets = [0, 256], sizes = [1, 256], strides = [1, 1]} : vector<1x768xf32> to vector<1x256xf32>
    %189 = arith.addf %187, %188 : vector<1x256xf32>
    %190 = arith.negf %189 : vector<1x256xf32>
    %191 = math.exp %190 : vector<1x256xf32>
    %cst_43 = arith.constant 1.000000e+00 : f32
    %192 = vector.broadcast %cst_43 : f32 to vector<1x256xf32>
    %193 = arith.addf %192, %191 : vector<1x256xf32>
    %194 = arith.divf %192, %193 : vector<1x256xf32>
    %195 = vector.extract_strided_slice %175 {offsets = [0, 512], sizes = [1, 256], strides = [1, 1]} : vector<1x768xf32> to vector<1x256xf32>
    %196 = vector.extract_strided_slice %178 {offsets = [0, 512], sizes = [1, 256], strides = [1, 1]} : vector<1x768xf32> to vector<1x256xf32>
    %197 = arith.addf %196, %7 : vector<1x256xf32>
    %198 = arith.mulf %186, %197 : vector<1x256xf32>
    %199 = arith.addf %195, %198 : vector<1x256xf32>
    %200 = math.tanh %199 : vector<1x256xf32>
    %cst_44 = arith.constant 1.000000e+00 : f32
    %201 = vector.broadcast %cst_44 : f32 to vector<1x256xf32>
    %202 = arith.subf %201, %194 : vector<1x256xf32>
    %203 = arith.mulf %202, %200 : vector<1x256xf32>
    %204 = arith.mulf %194, %172 : vector<1x256xf32>
    %205 = arith.addf %203, %204 : vector<1x256xf32>
    %c6 = arith.constant 6 : index
    %206 = memref.load %arg0[%c6] : memref<8xi32, #tpu.memory_space<smem>>
    %207 = arith.index_cast %206 : i32 to index
    %c0_45 = arith.constant 0 : index
    %208 = vector.load %arg1[%207, %c0_45] : memref<256x768xf32, #tpu.memory_space<vmem>>, vector<1x768xf32>
    %209 = arith.truncf %205 : vector<1x256xf32> to vector<1x256xbf16>
    %c0_46 = arith.constant 0 : index
    %c0_47 = arith.constant 0 : index
    %210 = vector.load %arg2[%c0_46, %c0_47] : memref<256x768xbf16, #tpu.memory_space<vmem>>, vector<256x768xbf16>
    %cst_48 = arith.constant dense<0.000000e+00> : vector<1x768xf32>
    %211 = tpu.matmul %209, %210, %cst_48 {dimension_numbers = #tpu.dot_dimension_numbers<[1], [0], [0], [1], [0, 0, 1, 1], [], []>} : vector<1x256xbf16>, vector<256x768xbf16>, vector<1x768xf32> -> vector<1x768xf32>
    %212 = vector.extract_strided_slice %208 {offsets = [0, 0], sizes = [1, 256], strides = [1, 1]} : vector<1x768xf32> to vector<1x256xf32>
    %213 = vector.extract_strided_slice %211 {offsets = [0, 0], sizes = [1, 256], strides = [1, 1]} : vector<1x768xf32> to vector<1x256xf32>
    %214 = arith.addf %212, %213 : vector<1x256xf32>
    %215 = arith.negf %214 : vector<1x256xf32>
    %216 = math.exp %215 : vector<1x256xf32>
    %cst_49 = arith.constant 1.000000e+00 : f32
    %217 = vector.broadcast %cst_49 : f32 to vector<1x256xf32>
    %218 = arith.addf %217, %216 : vector<1x256xf32>
    %219 = arith.divf %217, %218 : vector<1x256xf32>
    %220 = vector.extract_strided_slice %208 {offsets = [0, 256], sizes = [1, 256], strides = [1, 1]} : vector<1x768xf32> to vector<1x256xf32>
    %221 = vector.extract_strided_slice %211 {offsets = [0, 256], sizes = [1, 256], strides = [1, 1]} : vector<1x768xf32> to vector<1x256xf32>
    %222 = arith.addf %220, %221 : vector<1x256xf32>
    %223 = arith.negf %222 : vector<1x256xf32>
    %224 = math.exp %223 : vector<1x256xf32>
    %cst_50 = arith.constant 1.000000e+00 : f32
    %225 = vector.broadcast %cst_50 : f32 to vector<1x256xf32>
    %226 = arith.addf %225, %224 : vector<1x256xf32>
    %227 = arith.divf %225, %226 : vector<1x256xf32>
    %228 = vector.extract_strided_slice %208 {offsets = [0, 512], sizes = [1, 256], strides = [1, 1]} : vector<1x768xf32> to vector<1x256xf32>
    %229 = vector.extract_strided_slice %211 {offsets = [0, 512], sizes = [1, 256], strides = [1, 1]} : vector<1x768xf32> to vector<1x256xf32>
    %230 = arith.addf %229, %7 : vector<1x256xf32>
    %231 = arith.mulf %219, %230 : vector<1x256xf32>
    %232 = arith.addf %228, %231 : vector<1x256xf32>
    %233 = math.tanh %232 : vector<1x256xf32>
    %cst_51 = arith.constant 1.000000e+00 : f32
    %234 = vector.broadcast %cst_51 : f32 to vector<1x256xf32>
    %235 = arith.subf %234, %227 : vector<1x256xf32>
    %236 = arith.mulf %235, %233 : vector<1x256xf32>
    %237 = arith.mulf %227, %205 : vector<1x256xf32>
    %238 = arith.addf %236, %237 : vector<1x256xf32>
    %c7 = arith.constant 7 : index
    %239 = memref.load %arg0[%c7] : memref<8xi32, #tpu.memory_space<smem>>
    %240 = arith.index_cast %239 : i32 to index
    %c0_52 = arith.constant 0 : index
    %241 = vector.load %arg1[%240, %c0_52] : memref<256x768xf32, #tpu.memory_space<vmem>>, vector<1x768xf32>
    %242 = arith.truncf %238 : vector<1x256xf32> to vector<1x256xbf16>
    %c0_53 = arith.constant 0 : index
    %c0_54 = arith.constant 0 : index
    %243 = vector.load %arg2[%c0_53, %c0_54] : memref<256x768xbf16, #tpu.memory_space<vmem>>, vector<256x768xbf16>
    %cst_55 = arith.constant dense<0.000000e+00> : vector<1x768xf32>
    %244 = tpu.matmul %242, %243, %cst_55 {dimension_numbers = #tpu.dot_dimension_numbers<[1], [0], [0], [1], [0, 0, 1, 1], [], []>} : vector<1x256xbf16>, vector<256x768xbf16>, vector<1x768xf32> -> vector<1x768xf32>
    %245 = vector.extract_strided_slice %241 {offsets = [0, 0], sizes = [1, 256], strides = [1, 1]} : vector<1x768xf32> to vector<1x256xf32>
    %246 = vector.extract_strided_slice %244 {offsets = [0, 0], sizes = [1, 256], strides = [1, 1]} : vector<1x768xf32> to vector<1x256xf32>
    %247 = arith.addf %245, %246 : vector<1x256xf32>
    %248 = arith.negf %247 : vector<1x256xf32>
    %249 = math.exp %248 : vector<1x256xf32>
    %cst_56 = arith.constant 1.000000e+00 : f32
    %250 = vector.broadcast %cst_56 : f32 to vector<1x256xf32>
    %251 = arith.addf %250, %249 : vector<1x256xf32>
    %252 = arith.divf %250, %251 : vector<1x256xf32>
    %253 = vector.extract_strided_slice %241 {offsets = [0, 256], sizes = [1, 256], strides = [1, 1]} : vector<1x768xf32> to vector<1x256xf32>
    %254 = vector.extract_strided_slice %244 {offsets = [0, 256], sizes = [1, 256], strides = [1, 1]} : vector<1x768xf32> to vector<1x256xf32>
    %255 = arith.addf %253, %254 : vector<1x256xf32>
    %256 = arith.negf %255 : vector<1x256xf32>
    %257 = math.exp %256 : vector<1x256xf32>
    %cst_57 = arith.constant 1.000000e+00 : f32
    %258 = vector.broadcast %cst_57 : f32 to vector<1x256xf32>
    %259 = arith.addf %258, %257 : vector<1x256xf32>
    %260 = arith.divf %258, %259 : vector<1x256xf32>
    %261 = vector.extract_strided_slice %241 {offsets = [0, 512], sizes = [1, 256], strides = [1, 1]} : vector<1x768xf32> to vector<1x256xf32>
    %262 = vector.extract_strided_slice %244 {offsets = [0, 512], sizes = [1, 256], strides = [1, 1]} : vector<1x768xf32> to vector<1x256xf32>
    %263 = arith.addf %262, %7 : vector<1x256xf32>
    %264 = arith.mulf %252, %263 : vector<1x256xf32>
    %265 = arith.addf %261, %264 : vector<1x256xf32>
    %266 = math.tanh %265 : vector<1x256xf32>
    %cst_58 = arith.constant 1.000000e+00 : f32
    %267 = vector.broadcast %cst_58 : f32 to vector<1x256xf32>
    %268 = arith.subf %267, %260 : vector<1x256xf32>
    %269 = arith.mulf %268, %266 : vector<1x256xf32>
    %270 = arith.mulf %260, %238 : vector<1x256xf32>
    %271 = arith.addf %269, %270 : vector<1x256xf32>
    %272 = tpu.concatenate %40, %73, %106, %139, %172, %205, %238, %271 in 0 : vector<1x256xf32>, vector<1x256xf32>, vector<1x256xf32>, vector<1x256xf32>, vector<1x256xf32>, vector<1x256xf32>, vector<1x256xf32>, vector<1x256xf32> -> vector<8x256xf32>
    %c0_i32_59 = arith.constant 0 : i32
    %273 = tpu.memref_slice %arg17[%c0_i32_59] : memref<3x!tpu.dma_semaphore, #tpu.memory_space<semaphore_mem>> -> memref<1x!tpu.dma_semaphore, #tpu.memory_space<semaphore_mem>>
    %274 = tpu.memref_squeeze %273 : memref<1x!tpu.dma_semaphore, #tpu.memory_space<semaphore_mem>> -> memref<!tpu.dma_semaphore, #tpu.memory_space<semaphore_mem>>
    tpu.wait_dma2 semaphore(%274 : memref<!tpu.dma_semaphore, #tpu.memory_space<semaphore_mem>>) src(%arg5 : memref<256x768xbf16, #tpu.memory_space<any>>) dst(%arg14 : memref<256x768xbf16, #tpu.memory_space<vmem>>)
    %275 = arith.truncf %272 : vector<8x256xf32> to vector<8x256xbf16>
    %c0_60 = arith.constant 0 : index
    %c0_61 = arith.constant 0 : index
    %276 = vector.load %arg14[%c0_60, %c0_61] : memref<256x768xbf16, #tpu.memory_space<vmem>>, vector<256x768xbf16>
    %cst_62 = arith.constant dense<0.000000e+00> : vector<8x768xf32>
    %277 = tpu.matmul %275, %276, %cst_62 {dimension_numbers = #tpu.dot_dimension_numbers<[1], [0], [0], [1], [0, 0, 1, 1], [], []>} : vector<8x256xbf16>, vector<256x768xbf16>, vector<8x768xf32> -> vector<8x768xf32>
    %c0_63 = arith.constant 0 : index
    %c0_64 = arith.constant 0 : index
    %278 = vector.load %arg7[%c0_63, %c0_64] : memref<1x768xf32, #tpu.memory_space<vmem>>, vector<1x768xf32>
    %279 = vector.broadcast %278 : vector<1x768xf32> to vector<8x768xf32>
    %280 = arith.addf %277, %279 : vector<8x768xf32>
    %c1_i32_65 = arith.constant 1 : i32
    %281 = tpu.memref_slice %arg17[%c1_i32_65] : memref<3x!tpu.dma_semaphore, #tpu.memory_space<semaphore_mem>> -> memref<1x!tpu.dma_semaphore, #tpu.memory_space<semaphore_mem>>
    %282 = tpu.memref_squeeze %281 : memref<1x!tpu.dma_semaphore, #tpu.memory_space<semaphore_mem>> -> memref<!tpu.dma_semaphore, #tpu.memory_space<semaphore_mem>>
    tpu.wait_dma2 semaphore(%282 : memref<!tpu.dma_semaphore, #tpu.memory_space<semaphore_mem>>) src(%arg6 : memref<256x768xbf16, #tpu.memory_space<any>>) dst(%arg15 : memref<256x768xbf16, #tpu.memory_space<vmem>>)
    %c1_66 = arith.constant 1 : index
    %c0_67 = arith.constant 0 : index
    %283 = vector.load %arg4[%c1_66, %c0_67] : memref<2x256xf32, #tpu.memory_space<vmem>>, vector<1x256xf32>
    %c0_68 = arith.constant 0 : index
    %c0_69 = arith.constant 0 : index
    %284 = vector.load %arg8[%c0_68, %c0_69] : memref<1x256xf32, #tpu.memory_space<vmem>>, vector<1x256xf32>
    %285 = vector.extract_strided_slice %280 {offsets = [0, 0], sizes = [1, 768], strides = [1, 1]} : vector<8x768xf32> to vector<1x768xf32>
    %286 = arith.truncf %283 : vector<1x256xf32> to vector<1x256xbf16>
    %c0_70 = arith.constant 0 : index
    %c0_71 = arith.constant 0 : index
    %287 = vector.load %arg15[%c0_70, %c0_71] : memref<256x768xbf16, #tpu.memory_space<vmem>>, vector<256x768xbf16>
    %cst_72 = arith.constant dense<0.000000e+00> : vector<1x768xf32>
    %288 = tpu.matmul %286, %287, %cst_72 {dimension_numbers = #tpu.dot_dimension_numbers<[1], [0], [0], [1], [0, 0, 1, 1], [], []>} : vector<1x256xbf16>, vector<256x768xbf16>, vector<1x768xf32> -> vector<1x768xf32>
    %289 = vector.extract_strided_slice %285 {offsets = [0, 0], sizes = [1, 256], strides = [1, 1]} : vector<1x768xf32> to vector<1x256xf32>
    %290 = vector.extract_strided_slice %288 {offsets = [0, 0], sizes = [1, 256], strides = [1, 1]} : vector<1x768xf32> to vector<1x256xf32>
    %291 = arith.addf %289, %290 : vector<1x256xf32>
    %292 = arith.negf %291 : vector<1x256xf32>
    %293 = math.exp %292 : vector<1x256xf32>
    %cst_73 = arith.constant 1.000000e+00 : f32
    %294 = vector.broadcast %cst_73 : f32 to vector<1x256xf32>
    %295 = arith.addf %294, %293 : vector<1x256xf32>
    %296 = arith.divf %294, %295 : vector<1x256xf32>
    %297 = vector.extract_strided_slice %285 {offsets = [0, 256], sizes = [1, 256], strides = [1, 1]} : vector<1x768xf32> to vector<1x256xf32>
    %298 = vector.extract_strided_slice %288 {offsets = [0, 256], sizes = [1, 256], strides = [1, 1]} : vector<1x768xf32> to vector<1x256xf32>
    %299 = arith.addf %297, %298 : vector<1x256xf32>
    %300 = arith.negf %299 : vector<1x256xf32>
    %301 = math.exp %300 : vector<1x256xf32>
    %cst_74 = arith.constant 1.000000e+00 : f32
    %302 = vector.broadcast %cst_74 : f32 to vector<1x256xf32>
    %303 = arith.addf %302, %301 : vector<1x256xf32>
    %304 = arith.divf %302, %303 : vector<1x256xf32>
    %305 = vector.extract_strided_slice %285 {offsets = [0, 512], sizes = [1, 256], strides = [1, 1]} : vector<1x768xf32> to vector<1x256xf32>
    %306 = vector.extract_strided_slice %288 {offsets = [0, 512], sizes = [1, 256], strides = [1, 1]} : vector<1x768xf32> to vector<1x256xf32>
    %307 = arith.addf %306, %284 : vector<1x256xf32>
    %308 = arith.mulf %296, %307 : vector<1x256xf32>
    %309 = arith.addf %305, %308 : vector<1x256xf32>
    %310 = math.tanh %309 : vector<1x256xf32>
    %cst_75 = arith.constant 1.000000e+00 : f32
    %311 = vector.broadcast %cst_75 : f32 to vector<1x256xf32>
    %312 = arith.subf %311, %304 : vector<1x256xf32>
    %313 = arith.mulf %312, %310 : vector<1x256xf32>
    %314 = arith.mulf %304, %283 : vector<1x256xf32>
    %315 = arith.addf %313, %314 : vector<1x256xf32>
    %316 = vector.extract_strided_slice %280 {offsets = [1, 0], sizes = [1, 768], strides = [1, 1]} : vector<8x768xf32> to vector<1x768xf32>
    %317 = arith.truncf %315 : vector<1x256xf32> to vector<1x256xbf16>
    %c0_76 = arith.constant 0 : index
    %c0_77 = arith.constant 0 : index
    %318 = vector.load %arg15[%c0_76, %c0_77] : memref<256x768xbf16, #tpu.memory_space<vmem>>, vector<256x768xbf16>
    %cst_78 = arith.constant dense<0.000000e+00> : vector<1x768xf32>
    %319 = tpu.matmul %317, %318, %cst_78 {dimension_numbers = #tpu.dot_dimension_numbers<[1], [0], [0], [1], [0, 0, 1, 1], [], []>} : vector<1x256xbf16>, vector<256x768xbf16>, vector<1x768xf32> -> vector<1x768xf32>
    %320 = vector.extract_strided_slice %316 {offsets = [0, 0], sizes = [1, 256], strides = [1, 1]} : vector<1x768xf32> to vector<1x256xf32>
    %321 = vector.extract_strided_slice %319 {offsets = [0, 0], sizes = [1, 256], strides = [1, 1]} : vector<1x768xf32> to vector<1x256xf32>
    %322 = arith.addf %320, %321 : vector<1x256xf32>
    %323 = arith.negf %322 : vector<1x256xf32>
    %324 = math.exp %323 : vector<1x256xf32>
    %cst_79 = arith.constant 1.000000e+00 : f32
    %325 = vector.broadcast %cst_79 : f32 to vector<1x256xf32>
    %326 = arith.addf %325, %324 : vector<1x256xf32>
    %327 = arith.divf %325, %326 : vector<1x256xf32>
    %328 = vector.extract_strided_slice %316 {offsets = [0, 256], sizes = [1, 256], strides = [1, 1]} : vector<1x768xf32> to vector<1x256xf32>
    %329 = vector.extract_strided_slice %319 {offsets = [0, 256], sizes = [1, 256], strides = [1, 1]} : vector<1x768xf32> to vector<1x256xf32>
    %330 = arith.addf %328, %329 : vector<1x256xf32>
    %331 = arith.negf %330 : vector<1x256xf32>
    %332 = math.exp %331 : vector<1x256xf32>
    %cst_80 = arith.constant 1.000000e+00 : f32
    %333 = vector.broadcast %cst_80 : f32 to vector<1x256xf32>
    %334 = arith.addf %333, %332 : vector<1x256xf32>
    %335 = arith.divf %333, %334 : vector<1x256xf32>
    %336 = vector.extract_strided_slice %316 {offsets = [0, 512], sizes = [1, 256], strides = [1, 1]} : vector<1x768xf32> to vector<1x256xf32>
    %337 = vector.extract_strided_slice %319 {offsets = [0, 512], sizes = [1, 256], strides = [1, 1]} : vector<1x768xf32> to vector<1x256xf32>
    %338 = arith.addf %337, %284 : vector<1x256xf32>
    %339 = arith.mulf %327, %338 : vector<1x256xf32>
    %340 = arith.addf %336, %339 : vector<1x256xf32>
    %341 = math.tanh %340 : vector<1x256xf32>
    %cst_81 = arith.constant 1.000000e+00 : f32
    %342 = vector.broadcast %cst_81 : f32 to vector<1x256xf32>
    %343 = arith.subf %342, %335 : vector<1x256xf32>
    %344 = arith.mulf %343, %341 : vector<1x256xf32>
    %345 = arith.mulf %335, %315 : vector<1x256xf32>
    %346 = arith.addf %344, %345 : vector<1x256xf32>
    %347 = vector.extract_strided_slice %280 {offsets = [2, 0], sizes = [1, 768], strides = [1, 1]} : vector<8x768xf32> to vector<1x768xf32>
    %348 = arith.truncf %346 : vector<1x256xf32> to vector<1x256xbf16>
    %c0_82 = arith.constant 0 : index
    %c0_83 = arith.constant 0 : index
    %349 = vector.load %arg15[%c0_82, %c0_83] : memref<256x768xbf16, #tpu.memory_space<vmem>>, vector<256x768xbf16>
    %cst_84 = arith.constant dense<0.000000e+00> : vector<1x768xf32>
    %350 = tpu.matmul %348, %349, %cst_84 {dimension_numbers = #tpu.dot_dimension_numbers<[1], [0], [0], [1], [0, 0, 1, 1], [], []>} : vector<1x256xbf16>, vector<256x768xbf16>, vector<1x768xf32> -> vector<1x768xf32>
    %351 = vector.extract_strided_slice %347 {offsets = [0, 0], sizes = [1, 256], strides = [1, 1]} : vector<1x768xf32> to vector<1x256xf32>
    %352 = vector.extract_strided_slice %350 {offsets = [0, 0], sizes = [1, 256], strides = [1, 1]} : vector<1x768xf32> to vector<1x256xf32>
    %353 = arith.addf %351, %352 : vector<1x256xf32>
    %354 = arith.negf %353 : vector<1x256xf32>
    %355 = math.exp %354 : vector<1x256xf32>
    %cst_85 = arith.constant 1.000000e+00 : f32
    %356 = vector.broadcast %cst_85 : f32 to vector<1x256xf32>
    %357 = arith.addf %356, %355 : vector<1x256xf32>
    %358 = arith.divf %356, %357 : vector<1x256xf32>
    %359 = vector.extract_strided_slice %347 {offsets = [0, 256], sizes = [1, 256], strides = [1, 1]} : vector<1x768xf32> to vector<1x256xf32>
    %360 = vector.extract_strided_slice %350 {offsets = [0, 256], sizes = [1, 256], strides = [1, 1]} : vector<1x768xf32> to vector<1x256xf32>
    %361 = arith.addf %359, %360 : vector<1x256xf32>
    %362 = arith.negf %361 : vector<1x256xf32>
    %363 = math.exp %362 : vector<1x256xf32>
    %cst_86 = arith.constant 1.000000e+00 : f32
    %364 = vector.broadcast %cst_86 : f32 to vector<1x256xf32>
    %365 = arith.addf %364, %363 : vector<1x256xf32>
    %366 = arith.divf %364, %365 : vector<1x256xf32>
    %367 = vector.extract_strided_slice %347 {offsets = [0, 512], sizes = [1, 256], strides = [1, 1]} : vector<1x768xf32> to vector<1x256xf32>
    %368 = vector.extract_strided_slice %350 {offsets = [0, 512], sizes = [1, 256], strides = [1, 1]} : vector<1x768xf32> to vector<1x256xf32>
    %369 = arith.addf %368, %284 : vector<1x256xf32>
    %370 = arith.mulf %358, %369 : vector<1x256xf32>
    %371 = arith.addf %367, %370 : vector<1x256xf32>
    %372 = math.tanh %371 : vector<1x256xf32>
    %cst_87 = arith.constant 1.000000e+00 : f32
    %373 = vector.broadcast %cst_87 : f32 to vector<1x256xf32>
    %374 = arith.subf %373, %366 : vector<1x256xf32>
    %375 = arith.mulf %374, %372 : vector<1x256xf32>
    %376 = arith.mulf %366, %346 : vector<1x256xf32>
    %377 = arith.addf %375, %376 : vector<1x256xf32>
    %378 = vector.extract_strided_slice %280 {offsets = [3, 0], sizes = [1, 768], strides = [1, 1]} : vector<8x768xf32> to vector<1x768xf32>
    %379 = arith.truncf %377 : vector<1x256xf32> to vector<1x256xbf16>
    %c0_88 = arith.constant 0 : index
    %c0_89 = arith.constant 0 : index
    %380 = vector.load %arg15[%c0_88, %c0_89] : memref<256x768xbf16, #tpu.memory_space<vmem>>, vector<256x768xbf16>
    %cst_90 = arith.constant dense<0.000000e+00> : vector<1x768xf32>
    %381 = tpu.matmul %379, %380, %cst_90 {dimension_numbers = #tpu.dot_dimension_numbers<[1], [0], [0], [1], [0, 0, 1, 1], [], []>} : vector<1x256xbf16>, vector<256x768xbf16>, vector<1x768xf32> -> vector<1x768xf32>
    %382 = vector.extract_strided_slice %378 {offsets = [0, 0], sizes = [1, 256], strides = [1, 1]} : vector<1x768xf32> to vector<1x256xf32>
    %383 = vector.extract_strided_slice %381 {offsets = [0, 0], sizes = [1, 256], strides = [1, 1]} : vector<1x768xf32> to vector<1x256xf32>
    %384 = arith.addf %382, %383 : vector<1x256xf32>
    %385 = arith.negf %384 : vector<1x256xf32>
    %386 = math.exp %385 : vector<1x256xf32>
    %cst_91 = arith.constant 1.000000e+00 : f32
    %387 = vector.broadcast %cst_91 : f32 to vector<1x256xf32>
    %388 = arith.addf %387, %386 : vector<1x256xf32>
    %389 = arith.divf %387, %388 : vector<1x256xf32>
    %390 = vector.extract_strided_slice %378 {offsets = [0, 256], sizes = [1, 256], strides = [1, 1]} : vector<1x768xf32> to vector<1x256xf32>
    %391 = vector.extract_strided_slice %381 {offsets = [0, 256], sizes = [1, 256], strides = [1, 1]} : vector<1x768xf32> to vector<1x256xf32>
    %392 = arith.addf %390, %391 : vector<1x256xf32>
    %393 = arith.negf %392 : vector<1x256xf32>
    %394 = math.exp %393 : vector<1x256xf32>
    %cst_92 = arith.constant 1.000000e+00 : f32
    %395 = vector.broadcast %cst_92 : f32 to vector<1x256xf32>
    %396 = arith.addf %395, %394 : vector<1x256xf32>
    %397 = arith.divf %395, %396 : vector<1x256xf32>
    %398 = vector.extract_strided_slice %378 {offsets = [0, 512], sizes = [1, 256], strides = [1, 1]} : vector<1x768xf32> to vector<1x256xf32>
    %399 = vector.extract_strided_slice %381 {offsets = [0, 512], sizes = [1, 256], strides = [1, 1]} : vector<1x768xf32> to vector<1x256xf32>
    %400 = arith.addf %399, %284 : vector<1x256xf32>
    %401 = arith.mulf %389, %400 : vector<1x256xf32>
    %402 = arith.addf %398, %401 : vector<1x256xf32>
    %403 = math.tanh %402 : vector<1x256xf32>
    %cst_93 = arith.constant 1.000000e+00 : f32
    %404 = vector.broadcast %cst_93 : f32 to vector<1x256xf32>
    %405 = arith.subf %404, %397 : vector<1x256xf32>
    %406 = arith.mulf %405, %403 : vector<1x256xf32>
    %407 = arith.mulf %397, %377 : vector<1x256xf32>
    %408 = arith.addf %406, %407 : vector<1x256xf32>
    %409 = vector.extract_strided_slice %280 {offsets = [4, 0], sizes = [1, 768], strides = [1, 1]} : vector<8x768xf32> to vector<1x768xf32>
    %410 = arith.truncf %408 : vector<1x256xf32> to vector<1x256xbf16>
    %c0_94 = arith.constant 0 : index
    %c0_95 = arith.constant 0 : index
    %411 = vector.load %arg15[%c0_94, %c0_95] : memref<256x768xbf16, #tpu.memory_space<vmem>>, vector<256x768xbf16>
    %cst_96 = arith.constant dense<0.000000e+00> : vector<1x768xf32>
    %412 = tpu.matmul %410, %411, %cst_96 {dimension_numbers = #tpu.dot_dimension_numbers<[1], [0], [0], [1], [0, 0, 1, 1], [], []>} : vector<1x256xbf16>, vector<256x768xbf16>, vector<1x768xf32> -> vector<1x768xf32>
    %413 = vector.extract_strided_slice %409 {offsets = [0, 0], sizes = [1, 256], strides = [1, 1]} : vector<1x768xf32> to vector<1x256xf32>
    %414 = vector.extract_strided_slice %412 {offsets = [0, 0], sizes = [1, 256], strides = [1, 1]} : vector<1x768xf32> to vector<1x256xf32>
    %415 = arith.addf %413, %414 : vector<1x256xf32>
    %416 = arith.negf %415 : vector<1x256xf32>
    %417 = math.exp %416 : vector<1x256xf32>
    %cst_97 = arith.constant 1.000000e+00 : f32
    %418 = vector.broadcast %cst_97 : f32 to vector<1x256xf32>
    %419 = arith.addf %418, %417 : vector<1x256xf32>
    %420 = arith.divf %418, %419 : vector<1x256xf32>
    %421 = vector.extract_strided_slice %409 {offsets = [0, 256], sizes = [1, 256], strides = [1, 1]} : vector<1x768xf32> to vector<1x256xf32>
    %422 = vector.extract_strided_slice %412 {offsets = [0, 256], sizes = [1, 256], strides = [1, 1]} : vector<1x768xf32> to vector<1x256xf32>
    %423 = arith.addf %421, %422 : vector<1x256xf32>
    %424 = arith.negf %423 : vector<1x256xf32>
    %425 = math.exp %424 : vector<1x256xf32>
    %cst_98 = arith.constant 1.000000e+00 : f32
    %426 = vector.broadcast %cst_98 : f32 to vector<1x256xf32>
    %427 = arith.addf %426, %425 : vector<1x256xf32>
    %428 = arith.divf %426, %427 : vector<1x256xf32>
    %429 = vector.extract_strided_slice %409 {offsets = [0, 512], sizes = [1, 256], strides = [1, 1]} : vector<1x768xf32> to vector<1x256xf32>
    %430 = vector.extract_strided_slice %412 {offsets = [0, 512], sizes = [1, 256], strides = [1, 1]} : vector<1x768xf32> to vector<1x256xf32>
    %431 = arith.addf %430, %284 : vector<1x256xf32>
    %432 = arith.mulf %420, %431 : vector<1x256xf32>
    %433 = arith.addf %429, %432 : vector<1x256xf32>
    %434 = math.tanh %433 : vector<1x256xf32>
    %cst_99 = arith.constant 1.000000e+00 : f32
    %435 = vector.broadcast %cst_99 : f32 to vector<1x256xf32>
    %436 = arith.subf %435, %428 : vector<1x256xf32>
    %437 = arith.mulf %436, %434 : vector<1x256xf32>
    %438 = arith.mulf %428, %408 : vector<1x256xf32>
    %439 = arith.addf %437, %438 : vector<1x256xf32>
    %440 = vector.extract_strided_slice %280 {offsets = [5, 0], sizes = [1, 768], strides = [1, 1]} : vector<8x768xf32> to vector<1x768xf32>
    %441 = arith.truncf %439 : vector<1x256xf32> to vector<1x256xbf16>
    %c0_100 = arith.constant 0 : index
    %c0_101 = arith.constant 0 : index
    %442 = vector.load %arg15[%c0_100, %c0_101] : memref<256x768xbf16, #tpu.memory_space<vmem>>, vector<256x768xbf16>
    %cst_102 = arith.constant dense<0.000000e+00> : vector<1x768xf32>
    %443 = tpu.matmul %441, %442, %cst_102 {dimension_numbers = #tpu.dot_dimension_numbers<[1], [0], [0], [1], [0, 0, 1, 1], [], []>} : vector<1x256xbf16>, vector<256x768xbf16>, vector<1x768xf32> -> vector<1x768xf32>
    %444 = vector.extract_strided_slice %440 {offsets = [0, 0], sizes = [1, 256], strides = [1, 1]} : vector<1x768xf32> to vector<1x256xf32>
    %445 = vector.extract_strided_slice %443 {offsets = [0, 0], sizes = [1, 256], strides = [1, 1]} : vector<1x768xf32> to vector<1x256xf32>
    %446 = arith.addf %444, %445 : vector<1x256xf32>
    %447 = arith.negf %446 : vector<1x256xf32>
    %448 = math.exp %447 : vector<1x256xf32>
    %cst_103 = arith.constant 1.000000e+00 : f32
    %449 = vector.broadcast %cst_103 : f32 to vector<1x256xf32>
    %450 = arith.addf %449, %448 : vector<1x256xf32>
    %451 = arith.divf %449, %450 : vector<1x256xf32>
    %452 = vector.extract_strided_slice %440 {offsets = [0, 256], sizes = [1, 256], strides = [1, 1]} : vector<1x768xf32> to vector<1x256xf32>
    %453 = vector.extract_strided_slice %443 {offsets = [0, 256], sizes = [1, 256], strides = [1, 1]} : vector<1x768xf32> to vector<1x256xf32>
    %454 = arith.addf %452, %453 : vector<1x256xf32>
    %455 = arith.negf %454 : vector<1x256xf32>
    %456 = math.exp %455 : vector<1x256xf32>
    %cst_104 = arith.constant 1.000000e+00 : f32
    %457 = vector.broadcast %cst_104 : f32 to vector<1x256xf32>
    %458 = arith.addf %457, %456 : vector<1x256xf32>
    %459 = arith.divf %457, %458 : vector<1x256xf32>
    %460 = vector.extract_strided_slice %440 {offsets = [0, 512], sizes = [1, 256], strides = [1, 1]} : vector<1x768xf32> to vector<1x256xf32>
    %461 = vector.extract_strided_slice %443 {offsets = [0, 512], sizes = [1, 256], strides = [1, 1]} : vector<1x768xf32> to vector<1x256xf32>
    %462 = arith.addf %461, %284 : vector<1x256xf32>
    %463 = arith.mulf %451, %462 : vector<1x256xf32>
    %464 = arith.addf %460, %463 : vector<1x256xf32>
    %465 = math.tanh %464 : vector<1x256xf32>
    %cst_105 = arith.constant 1.000000e+00 : f32
    %466 = vector.broadcast %cst_105 : f32 to vector<1x256xf32>
    %467 = arith.subf %466, %459 : vector<1x256xf32>
    %468 = arith.mulf %467, %465 : vector<1x256xf32>
    %469 = arith.mulf %459, %439 : vector<1x256xf32>
    %470 = arith.addf %468, %469 : vector<1x256xf32>
    %471 = vector.extract_strided_slice %280 {offsets = [6, 0], sizes = [1, 768], strides = [1, 1]} : vector<8x768xf32> to vector<1x768xf32>
    %472 = arith.truncf %470 : vector<1x256xf32> to vector<1x256xbf16>
    %c0_106 = arith.constant 0 : index
    %c0_107 = arith.constant 0 : index
    %473 = vector.load %arg15[%c0_106, %c0_107] : memref<256x768xbf16, #tpu.memory_space<vmem>>, vector<256x768xbf16>
    %cst_108 = arith.constant dense<0.000000e+00> : vector<1x768xf32>
    %474 = tpu.matmul %472, %473, %cst_108 {dimension_numbers = #tpu.dot_dimension_numbers<[1], [0], [0], [1], [0, 0, 1, 1], [], []>} : vector<1x256xbf16>, vector<256x768xbf16>, vector<1x768xf32> -> vector<1x768xf32>
    %475 = vector.extract_strided_slice %471 {offsets = [0, 0], sizes = [1, 256], strides = [1, 1]} : vector<1x768xf32> to vector<1x256xf32>
    %476 = vector.extract_strided_slice %474 {offsets = [0, 0], sizes = [1, 256], strides = [1, 1]} : vector<1x768xf32> to vector<1x256xf32>
    %477 = arith.addf %475, %476 : vector<1x256xf32>
    %478 = arith.negf %477 : vector<1x256xf32>
    %479 = math.exp %478 : vector<1x256xf32>
    %cst_109 = arith.constant 1.000000e+00 : f32
    %480 = vector.broadcast %cst_109 : f32 to vector<1x256xf32>
    %481 = arith.addf %480, %479 : vector<1x256xf32>
    %482 = arith.divf %480, %481 : vector<1x256xf32>
    %483 = vector.extract_strided_slice %471 {offsets = [0, 256], sizes = [1, 256], strides = [1, 1]} : vector<1x768xf32> to vector<1x256xf32>
    %484 = vector.extract_strided_slice %474 {offsets = [0, 256], sizes = [1, 256], strides = [1, 1]} : vector<1x768xf32> to vector<1x256xf32>
    %485 = arith.addf %483, %484 : vector<1x256xf32>
    %486 = arith.negf %485 : vector<1x256xf32>
    %487 = math.exp %486 : vector<1x256xf32>
    %cst_110 = arith.constant 1.000000e+00 : f32
    %488 = vector.broadcast %cst_110 : f32 to vector<1x256xf32>
    %489 = arith.addf %488, %487 : vector<1x256xf32>
    %490 = arith.divf %488, %489 : vector<1x256xf32>
    %491 = vector.extract_strided_slice %471 {offsets = [0, 512], sizes = [1, 256], strides = [1, 1]} : vector<1x768xf32> to vector<1x256xf32>
    %492 = vector.extract_strided_slice %474 {offsets = [0, 512], sizes = [1, 256], strides = [1, 1]} : vector<1x768xf32> to vector<1x256xf32>
    %493 = arith.addf %492, %284 : vector<1x256xf32>
    %494 = arith.mulf %482, %493 : vector<1x256xf32>
    %495 = arith.addf %491, %494 : vector<1x256xf32>
    %496 = math.tanh %495 : vector<1x256xf32>
    %cst_111 = arith.constant 1.000000e+00 : f32
    %497 = vector.broadcast %cst_111 : f32 to vector<1x256xf32>
    %498 = arith.subf %497, %490 : vector<1x256xf32>
    %499 = arith.mulf %498, %496 : vector<1x256xf32>
    %500 = arith.mulf %490, %470 : vector<1x256xf32>
    %501 = arith.addf %499, %500 : vector<1x256xf32>
    %502 = vector.extract_strided_slice %280 {offsets = [7, 0], sizes = [1, 768], strides = [1, 1]} : vector<8x768xf32> to vector<1x768xf32>
    %503 = arith.truncf %501 : vector<1x256xf32> to vector<1x256xbf16>
    %c0_112 = arith.constant 0 : index
    %c0_113 = arith.constant 0 : index
    %504 = vector.load %arg15[%c0_112, %c0_113] : memref<256x768xbf16, #tpu.memory_space<vmem>>, vector<256x768xbf16>
    %cst_114 = arith.constant dense<0.000000e+00> : vector<1x768xf32>
    %505 = tpu.matmul %503, %504, %cst_114 {dimension_numbers = #tpu.dot_dimension_numbers<[1], [0], [0], [1], [0, 0, 1, 1], [], []>} : vector<1x256xbf16>, vector<256x768xbf16>, vector<1x768xf32> -> vector<1x768xf32>
    %506 = vector.extract_strided_slice %502 {offsets = [0, 0], sizes = [1, 256], strides = [1, 1]} : vector<1x768xf32> to vector<1x256xf32>
    %507 = vector.extract_strided_slice %505 {offsets = [0, 0], sizes = [1, 256], strides = [1, 1]} : vector<1x768xf32> to vector<1x256xf32>
    %508 = arith.addf %506, %507 : vector<1x256xf32>
    %509 = arith.negf %508 : vector<1x256xf32>
    %510 = math.exp %509 : vector<1x256xf32>
    %cst_115 = arith.constant 1.000000e+00 : f32
    %511 = vector.broadcast %cst_115 : f32 to vector<1x256xf32>
    %512 = arith.addf %511, %510 : vector<1x256xf32>
    %513 = arith.divf %511, %512 : vector<1x256xf32>
    %514 = vector.extract_strided_slice %502 {offsets = [0, 256], sizes = [1, 256], strides = [1, 1]} : vector<1x768xf32> to vector<1x256xf32>
    %515 = vector.extract_strided_slice %505 {offsets = [0, 256], sizes = [1, 256], strides = [1, 1]} : vector<1x768xf32> to vector<1x256xf32>
    %516 = arith.addf %514, %515 : vector<1x256xf32>
    %517 = arith.negf %516 : vector<1x256xf32>
    %518 = math.exp %517 : vector<1x256xf32>
    %cst_116 = arith.constant 1.000000e+00 : f32
    %519 = vector.broadcast %cst_116 : f32 to vector<1x256xf32>
    %520 = arith.addf %519, %518 : vector<1x256xf32>
    %521 = arith.divf %519, %520 : vector<1x256xf32>
    %522 = vector.extract_strided_slice %502 {offsets = [0, 512], sizes = [1, 256], strides = [1, 1]} : vector<1x768xf32> to vector<1x256xf32>
    %523 = vector.extract_strided_slice %505 {offsets = [0, 512], sizes = [1, 256], strides = [1, 1]} : vector<1x768xf32> to vector<1x256xf32>
    %524 = arith.addf %523, %284 : vector<1x256xf32>
    %525 = arith.mulf %513, %524 : vector<1x256xf32>
    %526 = arith.addf %522, %525 : vector<1x256xf32>
    %527 = math.tanh %526 : vector<1x256xf32>
    %cst_117 = arith.constant 1.000000e+00 : f32
    %528 = vector.broadcast %cst_117 : f32 to vector<1x256xf32>
    %529 = arith.subf %528, %521 : vector<1x256xf32>
    %530 = arith.mulf %529, %527 : vector<1x256xf32>
    %531 = arith.mulf %521, %501 : vector<1x256xf32>
    %532 = arith.addf %530, %531 : vector<1x256xf32>
    %533 = tpu.concatenate %315, %346, %377, %408, %439, %470, %501, %532 in 0 : vector<1x256xf32>, vector<1x256xf32>, vector<1x256xf32>, vector<1x256xf32>, vector<1x256xf32>, vector<1x256xf32>, vector<1x256xf32>, vector<1x256xf32> -> vector<8x256xf32>
    %c0_118 = arith.constant 0 : index
    %c0_119 = arith.constant 0 : index
    %534 = vector.load %arg13[%c0_118, %c0_119] : memref<2x256xf32, #tpu.memory_space<vmem>>, vector<1x256xf32>
    tpu.vector_store %arg13[%c0_118, %c0_119], %271 {strides = array<i32>} : memref<2x256xf32, #tpu.memory_space<vmem>>, vector<1x256xf32>,
    %c1_120 = arith.constant 1 : index
    %c0_121 = arith.constant 0 : index
    %535 = vector.load %arg13[%c1_120, %c0_121] : memref<2x256xf32, #tpu.memory_space<vmem>>, vector<1x256xf32>
    tpu.vector_store %arg13[%c1_120, %c0_121], %532 {strides = array<i32>} : memref<2x256xf32, #tpu.memory_space<vmem>>, vector<1x256xf32>,
    %c0_122 = arith.constant 0 : index
    %c0_123 = arith.constant 0 : index
    %536 = vector.load %arg9[%c0_122, %c0_123] : memref<8x256xf32, #tpu.memory_space<vmem>>, vector<8x256xf32>
    %537 = arith.mulf %533, %536 : vector<8x256xf32>
    %c2_i32_124 = arith.constant 2 : i32
    %538 = tpu.memref_slice %arg17[%c2_i32_124] : memref<3x!tpu.dma_semaphore, #tpu.memory_space<semaphore_mem>> -> memref<1x!tpu.dma_semaphore, #tpu.memory_space<semaphore_mem>>
    %539 = tpu.memref_squeeze %538 : memref<1x!tpu.dma_semaphore, #tpu.memory_space<semaphore_mem>> -> memref<!tpu.dma_semaphore, #tpu.memory_space<semaphore_mem>>
    tpu.wait_dma2 semaphore(%539 : memref<!tpu.dma_semaphore, #tpu.memory_space<semaphore_mem>>) src(%arg10 : memref<256x256xbf16, #tpu.memory_space<any>>) dst(%arg16 : memref<256x256xbf16, #tpu.memory_space<vmem>>)
    %540 = arith.truncf %537 : vector<8x256xf32> to vector<8x256xbf16>
    %c0_125 = arith.constant 0 : index
    %c0_126 = arith.constant 0 : index
    %541 = vector.load %arg16[%c0_125, %c0_126] : memref<256x256xbf16, #tpu.memory_space<vmem>>, vector<256x256xbf16>
    %cst_127 = arith.constant dense<0.000000e+00> : vector<8x256xf32>
    %542 = tpu.matmul %540, %541, %cst_127 {dimension_numbers = #tpu.dot_dimension_numbers<[1], [0], [0], [1], [0, 0, 1, 1], [], []>} : vector<8x256xbf16>, vector<256x256xbf16>, vector<8x256xf32> -> vector<8x256xf32>
    %c0_128 = arith.constant 0 : index
    %c0_129 = arith.constant 0 : index
    %543 = vector.load %arg11[%c0_128, %c0_129] : memref<1x256xf32, #tpu.memory_space<vmem>>, vector<1x256xf32>
    %544 = vector.broadcast %543 : vector<1x256xf32> to vector<8x256xf32>
    %545 = arith.addf %542, %544 : vector<8x256xf32>
    %c0_130 = arith.constant 0 : index
    %c0_131 = arith.constant 0 : index
    %546 = vector.load %arg12[%c0_130, %c0_131] : memref<8x256xf32, #tpu.memory_space<vmem>>, vector<8x256xf32>
    tpu.vector_store %arg12[%c0_130, %c0_131], %545 {strides = array<i32>} : memref<8x256xf32, #tpu.memory_space<vmem>>, vector<8x256xf32>,
    return
  }
}

</mosaic_0001>

<llo_original>
// kernel: rnn_generation_forward.1
$region0: #{rnn_generation_forward.1}
  #allocation0 [shape = 'u32[]', space=smem, size = 0x4, offset = 0x4, fixed_abs, tag = 'smem constant byte address 0x4 - core index']
  #allocation1 [shape = 'u32[72,128]{1,0:T(1,128)}', space=vmem, size = 0x9000, scoped, tag = 'internal scratch']
  #allocation2 [shape = 'bf16[256,768]{1,0:T(8,128)(2,1)}', space=vmem, size = 0x60000, scoped, tag = 'scratch operand']
  #allocation3 [shape = 'bf16[256,768]{1,0:T(8,128)(2,1)}', space=vmem, size = 0x60000, scoped, tag = 'scratch operand']
  #allocation4 [shape = 'bf16[256,256]{1,0:T(8,128)(2,1)}', space=vmem, size = 0x20000, scoped, tag = 'scratch operand']
  #allocation5 [shape = 's32[3]{0}', space=sflag, size = 0xc, scoped, tag = 'scratch operand']
  #allocation16 [shape = 's32[]', space=sflag, size = 0x4, offset = 0, fixed_abs, tag = 'sflag constant byte address 0x0 - dummy sync flag']
  #allocation17 [shape = 's32[]', space=sflag, size = 0x4, offset = 0, fixed_abs, tag = 'sflag constant byte address 0x0 - dummy sync flag']
  #allocation18 [shape = 'u32[]', space=smem, size = 0x4, offset = 0x44, fixed_abs, tag = 'smem constant byte address 0x44 - assertion arg 0']
  #allocation19 [shape = 'u32[]', space=smem, size = 0x4, offset = 0x48, fixed_abs, tag = 'smem constant byte address 0x48 - assertion arg 1']
  #allocation20 [shape = 's32[]', space=sflag, size = 0x4, offset = 0, fixed_abs, tag = 'sflag constant byte address 0x0 - dummy sync flag']
  #allocation21 [shape = 's32[]', space=sflag, size = 0x4, offset = 0, fixed_abs, tag = 'sflag constant byte address 0x0 - dummy sync flag']
  #allocation22 [shape = 's32[]', space=sflag, size = 0x4, offset = 0, fixed_abs, tag = 'sflag constant byte address 0x0 - dummy sync flag']
  #allocation23 [shape = 's32[]', space=sflag, size = 0x4, offset = 0, fixed_abs, tag = 'sflag constant byte address 0x0 - dummy sync flag']
  %s0 = inlined_call_operand.vmem [shape: s32[8], index: 0, kind: input, shape index: {}]
  %s1 = inlined_call_operand.hbm [shape: f32[256,768], index: 1, kind: input, shape index: {}]
  %s2 = inlined_call_operand.hbm [shape: bf16[256,768], index: 2, kind: input, shape index: {}]
  %s3 = inlined_call_operand.vmem [shape: f32[1,256], index: 3, kind: input, shape index: {}]
  %s4 = inlined_call_operand.vmem [shape: f32[2,256], index: 4, kind: input, shape index: {}]
  %s5 = inlined_call_operand.hbm [shape: bf16[256,768], index: 5, kind: input, shape index: {}]
  %s6 = inlined_call_operand.hbm [shape: bf16[256,768], index: 6, kind: input, shape index: {}]
  %s7 = inlined_call_operand.vmem [shape: f32[1,768], index: 7, kind: input, shape index: {}]
  %s8 = inlined_call_operand.vmem [shape: f32[1,256], index: 8, kind: input, shape index: {}]
  %s9 = inlined_call_operand.vmem [shape: f32[8,256], index: 9, kind: input, shape index: {}]
  %s10 = inlined_call_operand.hbm [shape: bf16[256,256], index: 10, kind: input, shape index: {}]
  %s11 = inlined_call_operand.vmem [shape: f32[1,256], index: 11, kind: input, shape index: {}]
  %s12 = inlined_call_operand.hbm [shape: f32[8,256], index: 12, kind: output, shape index: {0}]
  %s13 = inlined_call_operand.hbm [shape: f32[2,256], index: 13, kind: output, shape index: {1}]
  %14 = xla_tuple %s12, %s13
  %s15 = sld [smem:[#allocation0]]
  $region78: #{rnn_generation_forward.1} parent=0
    _
  %s17 = ssub.s32 1, %s15
  %s18 = scalar_select 0, %s17, %s15
  $region1: #{rnn_generation_forward.1} parent=0
    #allocation6 [shape = 'u8[512]{0}', space=smem, size = 0x200, scoped, tag = 'input window, operand 0, single buffered']
    #allocation7 [shape = 's32[1]{0}', space=sflag, size = 0x4, scoped, tag = 'scoped memory for rnn_generation_forward.1']
    #allocation8 [shape = 's32[1]{0}', space=sflag, size = 0x4, scoped, tag = 'scoped memory for rnn_generation_forward.1']
    #allocation9 [shape = 's32[1]{0}', space=sflag, size = 0x4, scoped, tag = 'scoped memory for rnn_generation_forward.1']
    #allocation10 [shape = 'u8[786432]{0}', space=vmem, size = 0xc0000, scoped, tag = 'input window, operand 1, single buffered']
    #allocation11 [shape = 'u8[393216]{0}', space=vmem, size = 0x60000, scoped, tag = 'input window, operand 2, single buffered']
    #allocation12 [shape = 's32[1]{0}', space=sflag, size = 0x4, scoped, tag = 'scoped memory for rnn_generation_forward.1']
    #allocation13 [shape = 'u8[8192]{0}', space=vmem, size = 0x2000, scoped, tag = 'output window, operand 0, single buffered']
    #allocation14 [shape = 'u8[2048]{0}', space=vmem, size = 0x800, scoped, tag = 'output window, operand 1, single buffered']
    #allocation15 [shape = 's32[1]{0}', space=sflag, size = 0x4, scoped, tag = 'scoped memory for rnn_generation_forward.1']
    %19 = vsyncpa [#allocation9], 0
    %20 = vsyncpa [#allocation7], 0
    %21 = vsyncpa [#allocation12], 0
    %22 = vsyncpa [#allocation8], 0
    %23 = vsyncpa [#allocation15], 0
    // Predicated region
    $region2: #{rnn_generation_forward.1} parent=1 // pred_check
      _
    $region3: #{rnn_generation_forward.1} parent=1 // pred_check_branch
      %25 = sbr.rel (0) target = $region5
    $region4: #{rnn_generation_forward.1} parent=1 // pred_region
      %27 = vsyncadd [#allocation9], 0
      %s29 = sshll.u32 %s0, 4
      %s30 = int_to_ptr.vmem [resolvable:$true] %s29
      %32 = dma.vmem_to_smem %s30, 16, [#allocation6], [#allocation9]
    $region5: #{rnn_generation_forward.1} parent=1 // pred_fallthru
      _
    // Predicated region
    $region6: #{rnn_generation_forward.1} parent=1 // pred_check
      _
    $region7: #{rnn_generation_forward.1} parent=1 // pred_check_branch
      %34 = sbr.rel (0) target = $region9
    $region8: #{rnn_generation_forward.1} parent=1 // pred_region
      %36 = vsyncadd [#allocation7], 0
      %s37 = sshll.u32 %s1, 4
      %s38 = int_to_ptr.hbm [resolvable:$true] %s37
      %s39 = sshll.u32 [#allocation10], 4
      %s40 = int_to_ptr.vmem [resolvable:$true] %s39
      %45 = dma.hbm_to_vmem [thread:$0]  %s38, 24576, %s40, [#allocation7], 768, 768, 48
    $region9: #{rnn_generation_forward.1} parent=1 // pred_fallthru
      _
    // Predicated region
    $region10: #{rnn_generation_forward.1} parent=1 // pred_check
      _
    $region11: #{rnn_generation_forward.1} parent=1 // pred_check_branch
      %47 = sbr.rel (0) target = $region13
    $region12: #{rnn_generation_forward.1} parent=1 // pred_region
      %49 = vsyncadd [#allocation12], 0
      %s50 = sshll.u32 %s2, 4
      %s51 = int_to_ptr.hbm [resolvable:$true] %s50
      %s52 = sshll.u32 [#allocation11], 4
      %s53 = int_to_ptr.vmem [resolvable:$true] %s52
      %58 = dma.hbm_to_vmem [thread:$0]  %s51, 12288, %s53, [#allocation12], 384, 384, 24
    $region13: #{rnn_generation_forward.1} parent=1 // pred_fallthru
      _
    // Predicated region
    $region14: #{rnn_generation_forward.1} parent=1 // pred_check
      _
    $region15: #{rnn_generation_forward.1} parent=1 // pred_check_branch
      %60 = sbr.rel (0) target = $region17
    $region16: #{rnn_generation_forward.1} parent=1 // pred_region
      _
    $region17: #{rnn_generation_forward.1} parent=1 // pred_fallthru
      _
    // Predicated region
    $region18: #{rnn_generation_forward.1} parent=1 // pred_check
      _
    $region19: #{rnn_generation_forward.1} parent=1 // pred_check_branch
      %62 = sbr.rel (0) target = $region21
    $region20: #{rnn_generation_forward.1} parent=1 // pred_region
      _
    $region21: #{rnn_generation_forward.1} parent=1 // pred_fallthru
      _
    // Predicated region
    $region22: #{rnn_generation_forward.1} parent=1 // pred_check
      _
    $region23: #{rnn_generation_forward.1} parent=1 // pred_check_branch
      %64 = sbr.rel (0) target = $region25
    $region24: #{rnn_generation_forward.1} parent=1 // pred_region
      _
    $region25: #{rnn_generation_forward.1} parent=1 // pred_fallthru
      _
    // Predicated region
    $region26: #{rnn_generation_forward.1} parent=1 // pred_check
      _
    $region27: #{rnn_generation_forward.1} parent=1 // pred_check_branch
      %66 = sbr.rel (0) target = $region29
    $region28: #{rnn_generation_forward.1} parent=1 // pred_region
      _
    $region29: #{rnn_generation_forward.1} parent=1 // pred_fallthru
      _
    // Predicated region
    $region30: #{rnn_generation_forward.1} parent=1 // pred_check
      _
    $region31: #{rnn_generation_forward.1} parent=1 // pred_check_branch
      %68 = sbr.rel (0) target = $region33
    $region32: #{rnn_generation_forward.1} parent=1 // pred_region
      _
    $region33: #{rnn_generation_forward.1} parent=1 // pred_fallthru
      _
    // Predicated region
    $region34: #{rnn_generation_forward.1} parent=1 // pred_check
      _
    $region35: #{rnn_generation_forward.1} parent=1 // pred_check_branch
      %70 = sbr.rel (0) target = $region37
    $region36: #{rnn_generation_forward.1} parent=1 // pred_region
      _
    $region37: #{rnn_generation_forward.1} parent=1 // pred_fallthru
      _
    // Predicated region
    $region38: #{rnn_generation_forward.1} parent=1 // pred_check
      _
    $region39: #{rnn_generation_forward.1} parent=1 // pred_check_branch
      %72 = sbr.rel (0) target = $region41
    $region40: #{rnn_generation_forward.1} parent=1 // pred_region
      %74 = dma.done [#allocation9], 16
    $region41: #{rnn_generation_forward.1} parent=1 // pred_fallthru
      _
    // Predicated region
    $region42: #{rnn_generation_forward.1} parent=1 // pred_check
      _
    $region43: #{rnn_generation_forward.1} parent=1 // pred_check_branch
      %76 = sbr.rel (0) target = $region45
    $region44: #{rnn_generation_forward.1} parent=1 // pred_region
      %78 = dma.done [#allocation7], 24576
    $region45: #{rnn_generation_forward.1} parent=1 // pred_fallthru
      _
    // Predicated region
    $region46: #{rnn_generation_forward.1} parent=1 // pred_check
      _
    $region47: #{rnn_generation_forward.1} parent=1 // pred_check_branch
      %80 = sbr.rel (0) target = $region49
    $region48: #{rnn_generation_forward.1} parent=1 // pred_region
      %82 = dma.done [#allocation12], 12288
    $region49: #{rnn_generation_forward.1} parent=1 // pred_fallthru
      _
    %83 = sfence
    // Predicated region
    $region50: #{rnn_generation_forward.1} parent=1 // pred_check
      _
    $region51: #{rnn_generation_forward.1} parent=1 // pred_check_branch
      %85 = sbr.rel target = $region53
    $region52: #{rnn_generation_forward.1} parent=1 // pred_region
      %86 = sst [smem:[#allocation18]] [#allocation17]
      %87 = sst [smem:[#allocation19]] [#allocation16]
    $region53: #{rnn_generation_forward.1} parent=1 // pred_fallthru
      _
    %89 = shalt.err (0)
    %s91 = sshll.u32 %s5, 4
    %s92 = int_to_ptr.hbm [resolvable:$true] %s91
    %s93 = sshll.u32 [#allocation2], 4
    %s94 = int_to_ptr.vmem [resolvable:$true] %s93
    %96 = dma.hbm_to_vmem [thread:$0]  %s92, 12288, %s94, [#allocation5]
    %s97 = scalar_lea.sflag [#allocation5], 1
    // Predicated region
    $region54: #{rnn_generation_forward.1} parent=1 // pred_check
      _
    $region55: #{rnn_generation_forward.1} parent=1 // pred_check_branch
      %99 = sbr.rel target = $region57
    $region56: #{rnn_generation_forward.1} parent=1 // pred_region
      %100 = sst [smem:[#allocation18]] [#allocation21]
      %101 = sst [smem:[#allocation19]] [#allocation20]
    $region57: #{rnn_generation_forward.1} parent=1 // pred_fallthru
      _
    %103 = shalt.err (0)
    %s105 = sshll.u32 %s6, 4
    %s106 = int_to_ptr.hbm [resolvable:$true] %s105
    %s107 = sshll.u32 [#allocation3], 4
    %s108 = int_to_ptr.vmem [resolvable:$true] %s107
    %110 = dma.hbm_to_vmem [thread:$0]  %s106, 12288, %s108, %s97
    %s111 = scalar_lea.sflag [#allocation5], 2
    // Predicated region
    $region58: #{rnn_generation_forward.1} parent=1 // pred_check
      _
    $region59: #{rnn_generation_forward.1} parent=1 // pred_check_branch
      %113 = sbr.rel target = $region61
    $region60: #{rnn_generation_forward.1} parent=1 // pred_region
      %114 = sst [smem:[#allocation18]] [#allocation23]
      %115 = sst [smem:[#allocation19]] [#allocation22]
    $region61: #{rnn_generation_forward.1} parent=1 // pred_fallthru
      _
    %117 = shalt.err (0)
    %s119 = sshll.u32 %s10, 4
    %s120 = int_to_ptr.hbm [resolvable:$true] %s119
    %s121 = sshll.u32 [#allocation4], 4
    %s122 = int_to_ptr.vmem [resolvable:$true] %s121
    %124 = dma.hbm_to_vmem [thread:$0]  %s120, 4096, %s122, %s111
    %v125 = vld [vmem:[%s4] ss:$2 sm:$0x3]
    %v126 = vld [vmem:[%s3] sm:$0x3]
    %s127 = sld [smem:[#allocation6]]
    %s128 = sshra.s32 %s127, 3
    %s129 = sand.u32 %s127, 7
    %s130 = sshra.s32 %s127, 3
    %s131 = sand.u32 %s127, 7
    %s132 = smul.u32 %s128, 6
    %s133 = smul.u32 %s132, 8
    %s134 = sadd.s32 %s133, %s131
    %s135 = scalar_lea.vmem [#allocation10], %s134
    %v136 = vld [vmem:[%s135] ss:$8 sm:$0xf]
    %v137 = vld [vmem:[%s135] ss:$8 sm:$0x30]
    %v138 = vor.u32 %v136, %v137
    %v140 = vperm.slane %v125, 0
    %v141 = vperm.slane %v125, 1
    %v144 = vpack.c.bf16 %v140, %v140
    %v145 = vpack.c.bf16 %v141, %v141
    %v146 = vld [vmem:[#allocation11] sm:$0xff]
    %v147 = vld [vmem:[#allocation11 + $0x8] sm:$0xff]
    %v148 = vld [vmem:[#allocation11 + $0x10] sm:$0xff]
    %v149 = vld [vmem:[#allocation11 + $0x18] sm:$0xff]
    %v150 = vld [vmem:[#allocation11 + $0x20] sm:$0xff]
    %v151 = vld [vmem:[#allocation11 + $0x28] sm:$0xff]
    %v152 = vld [vmem:[#allocation11 + $0x30] sm:$0xff]
    %v153 = vld [vmem:[#allocation11 + $0x38] sm:$0xff]
    %v154 = vld [vmem:[#allocation11 + $0x40] sm:$0xff]
    %v155 = vld [vmem:[#allocation11 + $0x48] sm:$0xff]
    %v156 = vld [vmem:[#allocation11 + $0x50] sm:$0xff]
    %v157 = vld [vmem:[#allocation11 + $0x58] sm:$0xff]
    %v158 = vld [vmem:[#allocation11 + $0x60] sm:$0xff]
    %v159 = vld [vmem:[#allocation11 + $0x68] sm:$0xff]
    %v160 = vld [vmem:[#allocation11 + $0x70] sm:$0xff]
    %v161 = vld [vmem:[#allocation11 + $0x78] sm:$0xff]
    %v162 = vld [vmem:[#allocation11 + $0x80] sm:$0xff]
    %v163 = vld [vmem:[#allocation11 + $0x88] sm:$0xff]
    %v164 = vld [vmem:[#allocation11 + $0x90] sm:$0xff]
    %v165 = vld [vmem:[#allocation11 + $0x98] sm:$0xff]
    %v166 = vld [vmem:[#allocation11 + $0xa0] sm:$0xff]
    %v167 = vld [vmem:[#allocation11 + $0xa8] sm:$0xff]
    %v168 = vld [vmem:[#allocation11 + $0xb0] sm:$0xff]
    %v169 = vld [vmem:[#allocation11 + $0xb8] sm:$0xff]
    %v170 = vld [vmem:[#allocation11 + $0xc0] sm:$0xff]
    %v171 = vld [vmem:[#allocation11 + $0xc8] sm:$0xff]
    %v172 = vld [vmem:[#allocation11 + $0xd0] sm:$0xff]
    %v173 = vld [vmem:[#allocation11 + $0xd8] sm:$0xff]
    %v174 = vld [vmem:[#allocation11 + $0xe0] sm:$0xff]
    %v175 = vld [vmem:[#allocation11 + $0xe8] sm:$0xff]
    %v176 = vld [vmem:[#allocation11 + $0xf0] sm:$0xff]
    %v177 = vld [vmem:[#allocation11 + $0xf8] sm:$0xff]
    %v178 = vld [vmem:[#allocation11 + $0x100] sm:$0xff]
    %v179 = vld [vmem:[#allocation11 + $0x108] sm:$0xff]
    %v180 = vld [vmem:[#allocation11 + $0x110] sm:$0xff]
    %v181 = vld [vmem:[#allocation11 + $0x118] sm:$0xff]
    %v182 = vld [vmem:[#allocation11 + $0x120] sm:$0xff]
    %v183 = vld [vmem:[#allocation11 + $0x128] sm:$0xff]
    %v184 = vld [vmem:[#allocation11 + $0x130] sm:$0xff]
    %v185 = vld [vmem:[#allocation11 + $0x138] sm:$0xff]
    %v186 = vld [vmem:[#allocation11 + $0x140] sm:$0xff]
    %v187 = vld [vmem:[#allocation11 + $0x148] sm:$0xff]
    %v188 = vld [vmem:[#allocation11 + $0x150] sm:$0xff]
    %v189 = vld [vmem:[#allocation11 + $0x158] sm:$0xff]
    %v190 = vld [vmem:[#allocation11 + $0x160] sm:$0xff]
    %v191 = vld [vmem:[#allocation11 + $0x168] sm:$0xff]
    %v192 = vld [vmem:[#allocation11 + $0x170] sm:$0xff]
    %v193 = vld [vmem:[#allocation11 + $0x178] sm:$0xff]
    %v194 = vld [vmem:[#allocation11 + $0x180] sm:$0xff]
    %v195 = vld [vmem:[#allocation11 + $0x188] sm:$0xff]
    %v196 = vld [vmem:[#allocation11 + $0x190] sm:$0xff]
    %v197 = vld [vmem:[#allocation11 + $0x198] sm:$0xff]
    %v198 = vld [vmem:[#allocation11 + $0x1a0] sm:$0xff]
    %v199 = vld [vmem:[#allocation11 + $0x1a8] sm:$0xff]
    %v200 = vld [vmem:[#allocation11 + $0x1b0] sm:$0xff]
    %v201 = vld [vmem:[#allocation11 + $0x1b8] sm:$0xff]
    %v202 = vld [vmem:[#allocation11 + $0x1c0] sm:$0xff]
    %v203 = vld [vmem:[#allocation11 + $0x1c8] sm:$0xff]
    %v204 = vld [vmem:[#allocation11 + $0x1d0] sm:$0xff]
    %v205 = vld [vmem:[#allocation11 + $0x1d8] sm:$0xff]
    %v206 = vld [vmem:[#allocation11 + $0x1e0] sm:$0xff]
    %v207 = vld [vmem:[#allocation11 + $0x1e8] sm:$0xff]
    %v208 = vld [vmem:[#allocation11 + $0x1f0] sm:$0xff]
    %v209 = vld [vmem:[#allocation11 + $0x1f8] sm:$0xff]
    %v210 = vld [vmem:[#allocation11 + $0x200] sm:$0xff]
    %v211 = vld [vmem:[#allocation11 + $0x208] sm:$0xff]
    %v212 = vld [vmem:[#allocation11 + $0x210] sm:$0xff]
    %v213 = vld [vmem:[#allocation11 + $0x218] sm:$0xff]
    %v214 = vld [vmem:[#allocation11 + $0x220] sm:$0xff]
    %v215 = vld [vmem:[#allocation11 + $0x228] sm:$0xff]
    %v216 = vld [vmem:[#allocation11 + $0x230] sm:$0xff]
    %v217 = vld [vmem:[#allocation11 + $0x238] sm:$0xff]
    %v218 = vld [vmem:[#allocation11 + $0x240] sm:$0xff]
    %v219 = vld [vmem:[#allocation11 + $0x248] sm:$0xff]
    %v220 = vld [vmem:[#allocation11 + $0x250] sm:$0xff]
    %v221 = vld [vmem:[#allocation11 + $0x258] sm:$0xff]
    %v222 = vld [vmem:[#allocation11 + $0x260] sm:$0xff]
    %v223 = vld [vmem:[#allocation11 + $0x268] sm:$0xff]
    %v224 = vld [vmem:[#allocation11 + $0x270] sm:$0xff]
    %v225 = vld [vmem:[#allocation11 + $0x278] sm:$0xff]
    %v226 = vld [vmem:[#allocation11 + $0x280] sm:$0xff]
    %v227 = vld [vmem:[#allocation11 + $0x288] sm:$0xff]
    %v228 = vld [vmem:[#allocation11 + $0x290] sm:$0xff]
    %v229 = vld [vmem:[#allocation11 + $0x298] sm:$0xff]
    %v230 = vld [vmem:[#allocation11 + $0x2a0] sm:$0xff]
    %v231 = vld [vmem:[#allocation11 + $0x2a8] sm:$0xff]
    %v232 = vld [vmem:[#allocation11 + $0x2b0] sm:$0xff]
    %v233 = vld [vmem:[#allocation11 + $0x2b8] sm:$0xff]
    %v234 = vld [vmem:[#allocation11 + $0x2c0] sm:$0xff]
    %v235 = vld [vmem:[#allocation11 + $0x2c8] sm:$0xff]
    %v236 = vld [vmem:[#allocation11 + $0x2d0] sm:$0xff]
    %v237 = vld [vmem:[#allocation11 + $0x2d8] sm:$0xff]
    %v238 = vld [vmem:[#allocation11 + $0x2e0] sm:$0xff]
    %v239 = vld [vmem:[#allocation11 + $0x2e8] sm:$0xff]
    %v240 = vld [vmem:[#allocation11 + $0x2f0] sm:$0xff]
    %v241 = vld [vmem:[#allocation11 + $0x2f8] sm:$0xff]
    %v338 = vunpack.c.l.b16 %v146
    %v339 = vunpack.c.h.b16 %v146
    %v340 = vunpack.c.l.b16 %v147
    %v341 = vunpack.c.h.b16 %v147
    %v342 = vunpack.c.l.b16 %v148
    %v343 = vunpack.c.h.b16 %v148
    %v344 = vunpack.c.l.b16 %v149
    %v345 = vunpack.c.h.b16 %v149
    %v346 = vunpack.c.l.b16 %v150
    %v347 = vunpack.c.h.b16 %v150
    %v348 = vunpack.c.l.b16 %v151
    %v349 = vunpack.c.h.b16 %v151
    %v350 = vunpack.c.l.b16 %v152
    %v351 = vunpack.c.h.b16 %v152
    %v352 = vunpack.c.l.b16 %v153
    %v353 = vunpack.c.h.b16 %v153
    %v354 = vunpack.c.l.b16 %v154
    %v355 = vunpack.c.h.b16 %v154
    %v356 = vunpack.c.l.b16 %v155
    %v357 = vunpack.c.h.b16 %v155
    %v358 = vunpack.c.l.b16 %v156
    %v359 = vunpack.c.h.b16 %v156
    %v360 = vunpack.c.l.b16 %v157
    %v361 = vunpack.c.h.b16 %v157
    %v362 = vunpack.c.l.b16 %v158
    %v363 = vunpack.c.h.b16 %v158
    %v364 = vunpack.c.l.b16 %v159
    %v365 = vunpack.c.h.b16 %v159
    %v366 = vunpack.c.l.b16 %v160
    %v367 = vunpack.c.h.b16 %v160
    %v368 = vunpack.c.l.b16 %v161
    %v369 = vunpack.c.h.b16 %v161
    %v370 = vunpack.c.l.b16 %v162
    %v371 = vunpack.c.h.b16 %v162
    %v372 = vunpack.c.l.b16 %v163
    %v373 = vunpack.c.h.b16 %v163
    %v374 = vunpack.c.l.b16 %v164
    %v375 = vunpack.c.h.b16 %v164
    %v376 = vunpack.c.l.b16 %v165
    %v377 = vunpack.c.h.b16 %v165
    %v378 = vunpack.c.l.b16 %v166
    %v379 = vunpack.c.h.b16 %v166
    %v380 = vunpack.c.l.b16 %v167
    %v381 = vunpack.c.h.b16 %v167
    %v382 = vunpack.c.l.b16 %v168
    %v383 = vunpack.c.h.b16 %v168
    %v384 = vunpack.c.l.b16 %v169
    %v385 = vunpack.c.h.b16 %v169
    %v386 = vunpack.c.l.b16 %v170
    %v387 = vunpack.c.h.b16 %v170
    %v388 = vunpack.c.l.b16 %v171
    %v389 = vunpack.c.h.b16 %v171
    %v390 = vunpack.c.l.b16 %v172
    %v391 = vunpack.c.h.b16 %v172
    %v392 = vunpack.c.l.b16 %v173
    %v393 = vunpack.c.h.b16 %v173
    %v394 = vunpack.c.l.b16 %v174
    %v395 = vunpack.c.h.b16 %v174
    %v396 = vunpack.c.l.b16 %v175
    %v397 = vunpack.c.h.b16 %v175
    %v398 = vunpack.c.l.b16 %v176
    %v399 = vunpack.c.h.b16 %v176
    %v400 = vunpack.c.l.b16 %v177
    %v401 = vunpack.c.h.b16 %v177
    %v402 = vunpack.c.l.b16 %v178
    %v403 = vunpack.c.h.b16 %v178
    %v404 = vunpack.c.l.b16 %v179
    %v405 = vunpack.c.h.b16 %v179
    %v406 = vunpack.c.l.b16 %v180
    %v407 = vunpack.c.h.b16 %v180
    %v408 = vunpack.c.l.b16 %v181
    %v409 = vunpack.c.h.b16 %v181
    %v410 = vunpack.c.l.b16 %v182
    %v411 = vunpack.c.h.b16 %v182
    %v412 = vunpack.c.l.b16 %v183
    %v413 = vunpack.c.h.b16 %v183
    %v414 = vunpack.c.l.b16 %v184
    %v415 = vunpack.c.h.b16 %v184
    %v416 = vunpack.c.l.b16 %v185
    %v417 = vunpack.c.h.b16 %v185
    %v418 = vunpack.c.l.b16 %v186
    %v419 = vunpack.c.h.b16 %v186
    %v420 = vunpack.c.l.b16 %v187
    %v421 = vunpack.c.h.b16 %v187
    %v422 = vunpack.c.l.b16 %v188
    %v423 = vunpack.c.h.b16 %v188
    %v424 = vunpack.c.l.b16 %v189
    %v425 = vunpack.c.h.b16 %v189
    %v426 = vunpack.c.l.b16 %v190
    %v427 = vunpack.c.h.b16 %v190
    %v428 = vunpack.c.l.b16 %v191
    %v429 = vunpack.c.h.b16 %v191
    %v430 = vunpack.c.l.b16 %v192
    %v431 = vunpack.c.h.b16 %v192
    %v432 = vunpack.c.l.b16 %v193
    %v433 = vunpack.c.h.b16 %v193
    %v434 = vunpack.c.l.b16 %v194
    %v435 = vunpack.c.h.b16 %v194
    %v436 = vunpack.c.l.b16 %v195
    %v437 = vunpack.c.h.b16 %v195
    %v438 = vunpack.c.l.b16 %v196
    %v439 = vunpack.c.h.b16 %v196
    %v440 = vunpack.c.l.b16 %v197
    %v441 = vunpack.c.h.b16 %v197
    %v442 = vunpack.c.l.b16 %v198
    %v443 = vunpack.c.h.b16 %v198
    %v444 = vunpack.c.l.b16 %v199
    %v445 = vunpack.c.h.b16 %v199
    %v446 = vunpack.c.l.b16 %v200
    %v447 = vunpack.c.h.b16 %v200
    %v448 = vunpack.c.l.b16 %v201
    %v449 = vunpack.c.h.b16 %v201
    %v450 = vunpack.c.l.b16 %v202
    %v451 = vunpack.c.h.b16 %v202
    %v452 = vunpack.c.l.b16 %v203
    %v453 = vunpack.c.h.b16 %v203
    %v454 = vunpack.c.l.b16 %v204
    %v455 = vunpack.c.h.b16 %v204
    %v456 = vunpack.c.l.b16 %v205
    %v457 = vunpack.c.h.b16 %v205
    %v458 = vunpack.c.l.b16 %v206
    %v459 = vunpack.c.h.b16 %v206
    %v460 = vunpack.c.l.b16 %v207
    %v461 = vunpack.c.h.b16 %v207
    %v462 = vunpack.c.l.b16 %v208
    %v463 = vunpack.c.h.b16 %v208
    %v464 = vunpack.c.l.b16 %v209
    %v465 = vunpack.c.h.b16 %v209
    %v466 = vunpack.c.l.b16 %v210
    %v467 = vunpack.c.h.b16 %v210
    %v468 = vunpack.c.l.b16 %v211
    %v469 = vunpack.c.h.b16 %v211
    %v470 = vunpack.c.l.b16 %v212
    %v471 = vunpack.c.h.b16 %v212
    %v472 = vunpack.c.l.b16 %v213
    %v473 = vunpack.c.h.b16 %v213
    %v474 = vunpack.c.l.b16 %v214
    %v475 = vunpack.c.h.b16 %v214
    %v476 = vunpack.c.l.b16 %v215
    %v477 = vunpack.c.h.b16 %v215
    %v478 = vunpack.c.l.b16 %v216
    %v479 = vunpack.c.h.b16 %v216
    %v480 = vunpack.c.l.b16 %v217
    %v481 = vunpack.c.h.b16 %v217
    %v482 = vunpack.c.l.b16 %v218
    %v483 = vunpack.c.h.b16 %v218
    %v484 = vunpack.c.l.b16 %v219
    %v485 = vunpack.c.h.b16 %v219
    %v486 = vunpack.c.l.b16 %v220
    %v487 = vunpack.c.h.b16 %v220
    %v488 = vunpack.c.l.b16 %v221
    %v489 = vunpack.c.h.b16 %v221
    %v490 = vunpack.c.l.b16 %v222
    %v491 = vunpack.c.h.b16 %v222
    %v492 = vunpack.c.l.b16 %v223
    %v493 = vunpack.c.h.b16 %v223
    %v494 = vunpack.c.l.b16 %v224
    %v495 = vunpack.c.h.b16 %v224
    %v496 = vunpack.c.l.b16 %v225
    %v497 = vunpack.c.h.b16 %v225
    %v498 = vunpack.c.l.b16 %v226
    %v499 = vunpack.c.h.b16 %v226
    %v500 = vunpack.c.l.b16 %v227
    %v501 = vunpack.c.h.b16 %v227
    %v502 = vunpack.c.l.b16 %v228
    %v503 = vunpack.c.h.b16 %v228
    %v504 = vunpack.c.l.b16 %v229
    %v505 = vunpack.c.h.b16 %v229
    %v506 = vunpack.c.l.b16 %v230
    %v507 = vunpack.c.h.b16 %v230
    %v508 = vunpack.c.l.b16 %v231
    %v509 = vunpack.c.h.b16 %v231
    %v510 = vunpack.c.l.b16 %v232
    %v511 = vunpack.c.h.b16 %v232
    %v512 = vunpack.c.l.b16 %v233
    %v513 = vunpack.c.h.b16 %v233
    %v514 = vunpack.c.l.b16 %v234
    %v515 = vunpack.c.h.b16 %v234
    %v516 = vunpack.c.l.b16 %v235
    %v517 = vunpack.c.h.b16 %v235
    %v518 = vunpack.c.l.b16 %v236
    %v519 = vunpack.c.h.b16 %v236
    %v520 = vunpack.c.l.b16 %v237
    %v521 = vunpack.c.h.b16 %v237
    %v522 = vunpack.c.l.b16 %v238
    %v523 = vunpack.c.h.b16 %v238
    %v524 = vunpack.c.l.b16 %v239
    %v525 = vunpack.c.h.b16 %v239
    %v526 = vunpack.c.l.b16 %v240
    %v527 = vunpack.c.h.b16 %v240
    %v528 = vunpack.c.l.b16 %v241
    %v529 = vunpack.c.h.b16 %v241
    %v530 = vpack.c.b16 %v344, %v338
    %v531 = vpack.c.b16 %v345, %v339
    %v532 = vpack.c.b16 %v346, %v340
    %v533 = vpack.c.b16 %v347, %v341
    %v534 = vpack.c.b16 %v348, %v342
    %v535 = vpack.c.b16 %v349, %v343
    %v536 = vpack.c.b16 %v356, %v350
    %v537 = vpack.c.b16 %v357, %v351
    %v538 = vpack.c.b16 %v358, %v352
    %v539 = vpack.c.b16 %v359, %v353
    %v540 = vpack.c.b16 %v360, %v354
    %v541 = vpack.c.b16 %v361, %v355
    %v542 = vpack.c.b16 %v368, %v362
    %v543 = vpack.c.b16 %v369, %v363
    %v544 = vpack.c.b16 %v370, %v364
    %v545 = vpack.c.b16 %v371, %v365
    %v546 = vpack.c.b16 %v372, %v366
    %v547 = vpack.c.b16 %v373, %v367
    %v548 = vpack.c.b16 %v380, %v374
    %v549 = vpack.c.b16 %v381, %v375
    %v550 = vpack.c.b16 %v382, %v376
    %v551 = vpack.c.b16 %v383, %v377
    %v552 = vpack.c.b16 %v384, %v378
    %v553 = vpack.c.b16 %v385, %v379
    %v554 = vpack.c.b16 %v392, %v386
    %v555 = vpack.c.b16 %v393, %v387
    %v556 = vpack.c.b16 %v394, %v388
    %v557 = vpack.c.b16 %v395, %v389
    %v558 = vpack.c.b16 %v396, %v390
    %v559 = vpack.c.b16 %v397, %v391
    %v560 = vpack.c.b16 %v404, %v398
    %v561 = vpack.c.b16 %v405, %v399
    %v562 = vpack.c.b16 %v406, %v400
    %v563 = vpack.c.b16 %v407, %v401
    %v564 = vpack.c.b16 %v408, %v402
    %v565 = vpack.c.b16 %v409, %v403
    %v566 = vpack.c.b16 %v416, %v410
    %v567 = vpack.c.b16 %v417, %v411
    %v568 = vpack.c.b16 %v418, %v412
    %v569 = vpack.c.b16 %v419, %v413
    %v570 = vpack.c.b16 %v420, %v414
    %v571 = vpack.c.b16 %v421, %v415
    %v572 = vpack.c.b16 %v428, %v422
    %v573 = vpack.c.b16 %v429, %v423
    %v574 = vpack.c.b16 %v430, %v424
    %v575 = vpack.c.b16 %v431, %v425
    %v576 = vpack.c.b16 %v432, %v426
    %v577 = vpack.c.b16 %v433, %v427
    %v578 = vpack.c.b16 %v440, %v434
    %v579 = vpack.c.b16 %v441, %v435
    %v580 = vpack.c.b16 %v442, %v436
    %v581 = vpack.c.b16 %v443, %v437
    %v582 = vpack.c.b16 %v444, %v438
    %v583 = vpack.c.b16 %v445, %v439
    %v584 = vpack.c.b16 %v452, %v446
    %v585 = vpack.c.b16 %v453, %v447
    %v586 = vpack.c.b16 %v454, %v448
    %v587 = vpack.c.b16 %v455, %v449
    %v588 = vpack.c.b16 %v456, %v450
    %v589 = vpack.c.b16 %v457, %v451
    %v590 = vpack.c.b16 %v464, %v458
    %v591 = vpack.c.b16 %v465, %v459
    %v592 = vpack.c.b16 %v466, %v460
    %v593 = vpack.c.b16 %v467, %v461
    %v594 = vpack.c.b16 %v468, %v462
    %v595 = vpack.c.b16 %v469, %v463
    %v596 = vpack.c.b16 %v476, %v470
    %v597 = vpack.c.b16 %v477, %v471
    %v598 = vpack.c.b16 %v478, %v472
    %v599 = vpack.c.b16 %v479, %v473
    %v600 = vpack.c.b16 %v480, %v474
    %v601 = vpack.c.b16 %v481, %v475
    %v602 = vpack.c.b16 %v488, %v482
    %v603 = vpack.c.b16 %v489, %v483
    %v604 = vpack.c.b16 %v490, %v484
    %v605 = vpack.c.b16 %v491, %v485
    %v606 = vpack.c.b16 %v492, %v486
    %v607 = vpack.c.b16 %v493, %v487
    %v608 = vpack.c.b16 %v500, %v494
    %v609 = vpack.c.b16 %v501, %v495
    %v610 = vpack.c.b16 %v502, %v496
    %v611 = vpack.c.b16 %v503, %v497
    %v612 = vpack.c.b16 %v504, %v498
    %v613 = vpack.c.b16 %v505, %v499
    %v614 = vpack.c.b16 %v512, %v506
    %v615 = vpack.c.b16 %v513, %v507
    %v616 = vpack.c.b16 %v514, %v508
    %v617 = vpack.c.b16 %v515, %v509
    %v618 = vpack.c.b16 %v516, %v510
    %v619 = vpack.c.b16 %v517, %v511
    %v620 = vpack.c.b16 %v524, %v518
    %v621 = vpack.c.b16 %v525, %v519
    %v622 = vpack.c.b16 %v526, %v520
    %v623 = vpack.c.b16 %v527, %v521
    %v624 = vpack.c.b16 %v528, %v522
    %v625 = vpack.c.b16 %v529, %v523
    %722 = vmatpush.bf16.msra.mxu0 %v572
    %723 = vmatpush.bf16.msra.mxu0 %v566
    %724 = vmatpush.bf16.msra.mxu0 %v560
    %725 = vmatpush.bf16.msra.mxu0 %v554
    %726 = vmatpush.bf16.msra.mxu0 %v548
    %727 = vmatpush.bf16.msra.mxu0 %v542
    %728 = vmatpush.bf16.msra.mxu0 %v536
    %729 = vmatpush.bf16.msra.mxu0 %v530
    %730 = vmatmul.bf16.gmra.mxu0 %v144
    %v731 = vpop.f32.mrf.mxu0
    %v732 = vadd.f32 0.0, %v731
    %v733 = vpop.f32.mrf.mxu0
    %734 = vdwg.mxu0
    %735 = vmatpush.bf16.msra.mxu0 %v620
    %736 = vmatpush.bf16.msra.mxu0 %v614
    %737 = vmatpush.bf16.msra.mxu0 %v608
    %738 = vmatpush.bf16.msra.mxu0 %v602
    %739 = vmatpush.bf16.msra.mxu0 %v596
    %740 = vmatpush.bf16.msra.mxu0 %v590
    %741 = vmatpush.bf16.msra.mxu0 %v584
    %742 = vmatpush.bf16.msra.mxu0 %v578
    %743 = vmatmul.bf16.gmra.mxu0 %v145
    %v744 = vpop.f32.mrf.mxu0
    %v745 = vadd.f32 %v732, %v744
    %v746 = vpop.f32.mrf.mxu0
    %747 = vdwg.mxu0
    %748 = vmatpush.bf16.msra.mxu0 %v573
    %749 = vmatpush.bf16.msra.mxu0 %v567
    %750 = vmatpush.bf16.msra.mxu0 %v561
    %751 = vmatpush.bf16.msra.mxu0 %v555
    %752 = vmatpush.bf16.msra.mxu0 %v549
    %753 = vmatpush.bf16.msra.mxu0 %v543
    %754 = vmatpush.bf16.msra.mxu0 %v537
    %755 = vmatpush.bf16.msra.mxu0 %v531
    %756 = vmatmul.bf16.gmra.mxu0 %v144
    %v757 = vpop.f32.mrf.mxu0
    %v758 = vadd.f32 0.0, %v757
    %v759 = vpop.f32.mrf.mxu0
    %760 = vdwg.mxu0
    %761 = vmatpush.bf16.msra.mxu0 %v621
    %762 = vmatpush.bf16.msra.mxu0 %v615
    %763 = vmatpush.bf16.msra.mxu0 %v609
    %764 = vmatpush.bf16.msra.mxu0 %v603
    %765 = vmatpush.bf16.msra.mxu0 %v597
    %766 = vmatpush.bf16.msra.mxu0 %v591
    %767 = vmatpush.bf16.msra.mxu0 %v585
    %768 = vmatpush.bf16.msra.mxu0 %v579
    %769 = vmatmul.bf16.gmra.mxu0 %v145
    %v770 = vpop.f32.mrf.mxu0
    %v771 = vadd.f32 %v758, %v770
    %v772 = vpop.f32.mrf.mxu0
    %773 = vdwg.mxu0
    %774 = vmatpush.bf16.msra.mxu0 %v574
    %775 = vmatpush.bf16.msra.mxu0 %v568
    %776 = vmatpush.bf16.msra.mxu0 %v562
    %777 = vmatpush.bf16.msra.mxu0 %v556
    %778 = vmatpush.bf16.msra.mxu0 %v550
    %779 = vmatpush.bf16.msra.mxu0 %v544
    %780 = vmatpush.bf16.msra.mxu0 %v538
    %781 = vmatpush.bf16.msra.mxu0 %v532
    %782 = vmatmul.bf16.gmra.mxu0 %v144
    %v783 = vpop.f32.mrf.mxu0
    %v784 = vadd.f32 0.0, %v783
    %v785 = vpop.f32.mrf.mxu0
    %786 = vdwg.mxu0
    %787 = vmatpush.bf16.msra.mxu0 %v622
    %788 = vmatpush.bf16.msra.mxu0 %v616
    %789 = vmatpush.bf16.msra.mxu0 %v610
    %790 = vmatpush.bf16.msra.mxu0 %v604
    %791 = vmatpush.bf16.msra.mxu0 %v598
    %792 = vmatpush.bf16.msra.mxu0 %v592
    %793 = vmatpush.bf16.msra.mxu0 %v586
    %794 = vmatpush.bf16.msra.mxu0 %v580
    %795 = vmatmul.bf16.gmra.mxu0 %v145
    %v796 = vpop.f32.mrf.mxu0
    %v797 = vadd.f32 %v784, %v796
    %v798 = vpop.f32.mrf.mxu0
    %799 = vdwg.mxu0
    %800 = vmatpush.bf16.msra.mxu0 %v575
    %801 = vmatpush.bf16.msra.mxu0 %v569
    %802 = vmatpush.bf16.msra.mxu0 %v563
    %803 = vmatpush.bf16.msra.mxu0 %v557
    %804 = vmatpush.bf16.msra.mxu0 %v551
    %805 = vmatpush.bf16.msra.mxu0 %v545
    %806 = vmatpush.bf16.msra.mxu0 %v539
    %807 = vmatpush.bf16.msra.mxu0 %v533
    %808 = vmatmul.bf16.gmra.mxu0 %v144
    %v809 = vpop.f32.mrf.mxu0
    %v810 = vadd.f32 0.0, %v809
    %v811 = vpop.f32.mrf.mxu0
    %812 = vdwg.mxu0
    %813 = vmatpush.bf16.msra.mxu0 %v623
    %814 = vmatpush.bf16.msra.mxu0 %v617
    %815 = vmatpush.bf16.msra.mxu0 %v611
    %816 = vmatpush.bf16.msra.mxu0 %v605
    %817 = vmatpush.bf16.msra.mxu0 %v599
    %818 = vmatpush.bf16.msra.mxu0 %v593
    %819 = vmatpush.bf16.msra.mxu0 %v587
    %820 = vmatpush.bf16.msra.mxu0 %v581
    %821 = vmatmul.bf16.gmra.mxu0 %v145
    %v822 = vpop.f32.mrf.mxu0
    %v823 = vadd.f32 %v810, %v822
    %v824 = vpop.f32.mrf.mxu0
    %825 = vdwg.mxu0
    %826 = vmatpush.bf16.msra.mxu0 %v576
    %827 = vmatpush.bf16.msra.mxu0 %v570
    %828 = vmatpush.bf16.msra.mxu0 %v564
    %829 = vmatpush.bf16.msra.mxu0 %v558
    %830 = vmatpush.bf16.msra.mxu0 %v552
    %831 = vmatpush.bf16.msra.mxu0 %v546
    %832 = vmatpush.bf16.msra.mxu0 %v540
    %833 = vmatpush.bf16.msra.mxu0 %v534
    %834 = vmatmul.bf16.gmra.mxu0 %v144
    %v835 = vpop.f32.mrf.mxu0
    %v836 = vadd.f32 0.0, %v835
    %v837 = vpop.f32.mrf.mxu0
    %838 = vdwg.mxu0
    %839 = vmatpush.bf16.msra.mxu0 %v624
    %840 = vmatpush.bf16.msra.mxu0 %v618
    %841 = vmatpush.bf16.msra.mxu0 %v612
    %842 = vmatpush.bf16.msra.mxu0 %v606
    %843 = vmatpush.bf16.msra.mxu0 %v600
    %844 = vmatpush.bf16.msra.mxu0 %v594
    %845 = vmatpush.bf16.msra.mxu0 %v588
    %846 = vmatpush.bf16.msra.mxu0 %v582
    %847 = vmatmul.bf16.gmra.mxu0 %v145
    %v848 = vpop.f32.mrf.mxu0
    %v849 = vadd.f32 %v836, %v848
    %v850 = vpop.f32.mrf.mxu0
    %851 = vdwg.mxu0
    %852 = vmatpush.bf16.msra.mxu0 %v577
    %853 = vmatpush.bf16.msra.mxu0 %v571
    %854 = vmatpush.bf16.msra.mxu0 %v565
    %855 = vmatpush.bf16.msra.mxu0 %v559
    %856 = vmatpush.bf16.msra.mxu0 %v553
    %857 = vmatpush.bf16.msra.mxu0 %v547
    %858 = vmatpush.bf16.msra.mxu0 %v541
    %859 = vmatpush.bf16.msra.mxu0 %v535
    %860 = vmatmul.bf16.gmra.mxu0 %v144
    %v861 = vpop.f32.mrf.mxu0
    %v862 = vadd.f32 0.0, %v861
    %v863 = vpop.f32.mrf.mxu0
    %864 = vdwg.mxu0
    %865 = vmatpush.bf16.msra.mxu0 %v625
    %866 = vmatpush.bf16.msra.mxu0 %v619
    %867 = vmatpush.bf16.msra.mxu0 %v613
    %868 = vmatpush.bf16.msra.mxu0 %v607
    %869 = vmatpush.bf16.msra.mxu0 %v601
    %870 = vmatpush.bf16.msra.mxu0 %v595
    %871 = vmatpush.bf16.msra.mxu0 %v589
    %872 = vmatpush.bf16.msra.mxu0 %v583
    %873 = vmatmul.bf16.gmra.mxu0 %v145
    %v874 = vpop.f32.mrf.mxu0
    %v875 = vadd.f32 %v862, %v874
    %v876 = vpop.f32.mrf.mxu0
    %877 = vdwg.mxu0
    %v880 = vrot.slane %v771, 7
    %vm881 = vcmask 1040384
    %v882 = vsel %vm881, %v745, %v880
    %v884 = vadd.f32 %v138, %v882
    %v885 = vxor.u32 %v884, 2147483648
    %v886 = vmul.f32 %v885, 1.442695
    %v887 = vpow.pop %v886
    %v888 = vadd.f32 %v887, 1.0
    %v889 = vrcp.pop %v888
    %v890 = vmul.f32 %v888, %v889
    %v891 = vsub.f32 1.0, %v890
    %v892 = vmul.f32 %v889, %v891
    %v893 = vadd.f32 %v889, %v892
    %vm894 = vweird.f32 %v888
    %vm895 = vweird.f32 %v889
    %vm896 = vmor %vm894, %vm895
    %v897 = vsel %vm896, %v889, %v893
    %v898 = vand.u32 2147483647, %v888
    %vm899 = vcmp.eq.f32.partialorder %v898, 8.507059e+37
    %v900 = vand.u32 %v888, 2147483648
    %v901 = vor.u32 1.1754944e-38, %v900
    %v902 = vsel %vm899, %v901, %v897
    %v903 = vmul.f32 1.0, %v902
    %v905 = vrot.slane %v138, 2
    %v909 = vrot.slane %v823, 7
    %v910 = vsel %vm881, %v797, %v909
    %v912 = vadd.f32 %v905, %v910
    %v913 = vxor.u32 %v912, 2147483648
    %v914 = vmul.f32 %v913, 1.442695
    %v915 = vpow.pop %v914
    %v916 = vadd.f32 %v915, 1.0
    %v917 = vrcp.pop %v916
    %v918 = vmul.f32 %v916, %v917
    %v919 = vsub.f32 1.0, %v918
    %v920 = vmul.f32 %v917, %v919
    %v921 = vadd.f32 %v917, %v920
    %vm922 = vweird.f32 %v916
    %vm923 = vweird.f32 %v917
    %vm924 = vmor %vm922, %vm923
    %v925 = vsel %vm924, %v917, %v921
    %v926 = vand.u32 2147483647, %v916
    %vm927 = vcmp.eq.f32.partialorder %v926, 8.507059e+37
    %v928 = vand.u32 %v916, 2147483648
    %v929 = vor.u32 1.1754944e-38, %v928
    %v930 = vsel %vm927, %v929, %v925
    %v931 = vmul.f32 1.0, %v930
    %v933 = vperm.slane %v126, 0
    %v934 = vperm.slane %v126, 1
    %v937 = vadd.f32 %v849, %v933
    %v938 = vadd.f32 %v875, %v934
    %v941 = vrot.slane %v938, 7
    %v942 = vsel %vm881, %v937, %v941
    %v944 = vmul.f32 %v903, %v942
    %v945 = vrot.slane %v138, 4
    %v947 = vadd.f32 %v945, %v944
    %v948 = vtanh.pop %v947
    %v949 = vsub.f32 1.0, %v931
    %v950 = vmul.f32 %v949, %v948
    %v951 = vmul.f32 %v931, %v125
    %v952 = vadd.f32 %v950, %v951
    %s953 = sld [smem:[#allocation6 + $0x1]]
    %s954 = sshra.s32 %s953, 3
    %s955 = sand.u32 %s953, 7
    %s956 = sshra.s32 %s953, 3
    %s957 = sand.u32 %s953, 7
    %s958 = smul.u32 %s954, 6
    %s959 = smul.u32 %s958, 8
    %s960 = sadd.s32 %s959, %s957
    %s961 = scalar_lea.vmem [#allocation10], %s960
    %v962 = vld [vmem:[%s961] ss:$8 sm:$0xf]
    %v963 = vld [vmem:[%s961] ss:$8 sm:$0x30]
    %v964 = vor.u32 %v962, %v963
    %v966 = vperm.slane %v952, 0
    %v967 = vperm.slane %v952, 1
    %v970 = vpack.c.bf16 %v966, %v966
    %v971 = vpack.c.bf16 %v967, %v967
    %972 = vmatpush.bf16.msra.mxu0 %v572
    %973 = vmatpush.bf16.msra.mxu0 %v566
    %974 = vmatpush.bf16.msra.mxu0 %v560
    %975 = vmatpush.bf16.msra.mxu0 %v554
    %976 = vmatpush.bf16.msra.mxu0 %v548
    %977 = vmatpush.bf16.msra.mxu0 %v542
    %978 = vmatpush.bf16.msra.mxu0 %v536
    %979 = vmatpush.bf16.msra.mxu0 %v530
    %980 = vmatmul.bf16.gmra.mxu0 %v970
    %v981 = vpop.f32.mrf.mxu0
    %v982 = vadd.f32 0.0, %v981
    %v983 = vpop.f32.mrf.mxu0
    %984 = vdwg.mxu0
    %985 = vmatpush.bf16.msra.mxu0 %v620
    %986 = vmatpush.bf16.msra.mxu0 %v614
    %987 = vmatpush.bf16.msra.mxu0 %v608
    %988 = vmatpush.bf16.msra.mxu0 %v602
    %989 = vmatpush.bf16.msra.mxu0 %v596
    %990 = vmatpush.bf16.msra.mxu0 %v590
    %991 = vmatpush.bf16.msra.mxu0 %v584
    %992 = vmatpush.bf16.msra.mxu0 %v578
    %993 = vmatmul.bf16.gmra.mxu0 %v971
    %v994 = vpop.f32.mrf.mxu0
    %v995 = vadd.f32 %v982, %v994
    %v996 = vpop.f32.mrf.mxu0
    %997 = vdwg.mxu0
    %998 = vmatpush.bf16.msra.mxu0 %v573
    %999 = vmatpush.bf16.msra.mxu0 %v567
    %1000 = vmatpush.bf16.msra.mxu0 %v561
    %1001 = vmatpush.bf16.msra.mxu0 %v555
    %1002 = vmatpush.bf16.msra.mxu0 %v549
    %1003 = vmatpush.bf16.msra.mxu0 %v543
    %1004 = vmatpush.bf16.msra.mxu0 %v537
    %1005 = vmatpush.bf16.msra.mxu0 %v531
    %1006 = vmatmul.bf16.gmra.mxu0 %v970
    %v1007 = vpop.f32.mrf.mxu0
    %v1008 = vadd.f32 0.0, %v1007
    %v1009 = vpop.f32.mrf.mxu0
    %1010 = vdwg.mxu0
    %1011 = vmatpush.bf16.msra.mxu0 %v621
    %1012 = vmatpush.bf16.msra.mxu0 %v615
    %1013 = vmatpush.bf16.msra.mxu0 %v609
    %1014 = vmatpush.bf16.msra.mxu0 %v603
    %1015 = vmatpush.bf16.msra.mxu0 %v597
    %1016 = vmatpush.bf16.msra.mxu0 %v591
    %1017 = vmatpush.bf16.msra.mxu0 %v585
    %1018 = vmatpush.bf16.msra.mxu0 %v579
    %1019 = vmatmul.bf16.gmra.mxu0 %v971
    %v1020 = vpop.f32.mrf.mxu0
    %v1021 = vadd.f32 %v1008, %v1020
    %v1022 = vpop.f32.mrf.mxu0
    %1023 = vdwg.mxu0
    %1024 = vmatpush.bf16.msra.mxu0 %v574
    %1025 = vmatpush.bf16.msra.mxu0 %v568
    %1026 = vmatpush.bf16.msra.mxu0 %v562
    %1027 = vmatpush.bf16.msra.mxu0 %v556
    %1028 = vmatpush.bf16.msra.mxu0 %v550
    %1029 = vmatpush.bf16.msra.mxu0 %v544
    %1030 = vmatpush.bf16.msra.mxu0 %v538
    %1031 = vmatpush.bf16.msra.mxu0 %v532
    %1032 = vmatmul.bf16.gmra.mxu0 %v970
    %v1033 = vpop.f32.mrf.mxu0
    %v1034 = vadd.f32 0.0, %v1033
    %v1035 = vpop.f32.mrf.mxu0
    %1036 = vdwg.mxu0
    %1037 = vmatpush.bf16.msra.mxu0 %v622
    %1038 = vmatpush.bf16.msra.mxu0 %v616
    %1039 = vmatpush.bf16.msra.mxu0 %v610
    %1040 = vmatpush.bf16.msra.mxu0 %v604
    %1041 = vmatpush.bf16.msra.mxu0 %v598
    %1042 = vmatpush.bf16.msra.mxu0 %v592
    %1043 = vmatpush.bf16.msra.mxu0 %v586
    %1044 = vmatpush.bf16.msra.mxu0 %v580
    %1045 = vmatmul.bf16.gmra.mxu0 %v971
    %v1046 = vpop.f32.mrf.mxu0
    %v1047 = vadd.f32 %v1034, %v1046
    %v1048 = vpop.f32.mrf.mxu0
    %1049 = vdwg.mxu0
    %1050 = vmatpush.bf16.msra.mxu0 %v575
    %1051 = vmatpush.bf16.msra.mxu0 %v569
    %1052 = vmatpush.bf16.msra.mxu0 %v563
    %1053 = vmatpush.bf16.msra.mxu0 %v557
    %1054 = vmatpush.bf16.msra.mxu0 %v551
    %1055 = vmatpush.bf16.msra.mxu0 %v545
    %1056 = vmatpush.bf16.msra.mxu0 %v539
    %1057 = vmatpush.bf16.msra.mxu0 %v533
    %1058 = vmatmul.bf16.gmra.mxu0 %v970
    %v1059 = vpop.f32.mrf.mxu0
    %v1060 = vadd.f32 0.0, %v1059
    %v1061 = vpop.f32.mrf.mxu0
    %1062 = vdwg.mxu0
    %1063 = vmatpush.bf16.msra.mxu0 %v623
    %1064 = vmatpush.bf16.msra.mxu0 %v617
    %1065 = vmatpush.bf16.msra.mxu0 %v611
    %1066 = vmatpush.bf16.msra.mxu0 %v605
    %1067 = vmatpush.bf16.msra.mxu0 %v599
    %1068 = vmatpush.bf16.msra.mxu0 %v593
    %1069 = vmatpush.bf16.msra.mxu0 %v587
    %1070 = vmatpush.bf16.msra.mxu0 %v581
    %1071 = vmatmul.bf16.gmra.mxu0 %v971
    %v1072 = vpop.f32.mrf.mxu0
    %v1073 = vadd.f32 %v1060, %v1072
    %v1074 = vpop.f32.mrf.mxu0
    %1075 = vdwg.mxu0
    %1076 = vmatpush.bf16.msra.mxu0 %v576
    %1077 = vmatpush.bf16.msra.mxu0 %v570
    %1078 = vmatpush.bf16.msra.mxu0 %v564
    %1079 = vmatpush.bf16.msra.mxu0 %v558
    %1080 = vmatpush.bf16.msra.mxu0 %v552
    %1081 = vmatpush.bf16.msra.mxu0 %v546
    %1082 = vmatpush.bf16.msra.mxu0 %v540
    %1083 = vmatpush.bf16.msra.mxu0 %v534
    %1084 = vmatmul.bf16.gmra.mxu0 %v970
    %v1085 = vpop.f32.mrf.mxu0
    %v1086 = vadd.f32 0.0, %v1085
    %v1087 = vpop.f32.mrf.mxu0
    %1088 = vdwg.mxu0
    %1089 = vmatpush.bf16.msra.mxu0 %v624
    %1090 = vmatpush.bf16.msra.mxu0 %v618
    %1091 = vmatpush.bf16.msra.mxu0 %v612
    %1092 = vmatpush.bf16.msra.mxu0 %v606
    %1093 = vmatpush.bf16.msra.mxu0 %v600
    %1094 = vmatpush.bf16.msra.mxu0 %v594
    %1095 = vmatpush.bf16.msra.mxu0 %v588
    %1096 = vmatpush.bf16.msra.mxu0 %v582
    %1097 = vmatmul.bf16.gmra.mxu0 %v971
    %v1098 = vpop.f32.mrf.mxu0
    %v1099 = vadd.f32 %v1086, %v1098
    %v1100 = vpop.f32.mrf.mxu0
    %1101 = vdwg.mxu0
    %1102 = vmatpush.bf16.msra.mxu0 %v577
    %1103 = vmatpush.bf16.msra.mxu0 %v571
    %1104 = vmatpush.bf16.msra.mxu0 %v565
    %1105 = vmatpush.bf16.msra.mxu0 %v559
    %1106 = vmatpush.bf16.msra.mxu0 %v553
    %1107 = vmatpush.bf16.msra.mxu0 %v547
    %1108 = vmatpush.bf16.msra.mxu0 %v541
    %1109 = vmatpush.bf16.msra.mxu0 %v535
    %1110 = vmatmul.bf16.gmra.mxu0 %v970
    %v1111 = vpop.f32.mrf.mxu0
    %v1112 = vadd.f32 0.0, %v1111
    %v1113 = vpop.f32.mrf.mxu0
    %1114 = vdwg.mxu0
    %1115 = vmatpush.bf16.msra.mxu0 %v625
    %1116 = vmatpush.bf16.msra.mxu0 %v619
    %1117 = vmatpush.bf16.msra.mxu0 %v613
    %1118 = vmatpush.bf16.msra.mxu0 %v607
    %1119 = vmatpush.bf16.msra.mxu0 %v601
    %1120 = vmatpush.bf16.msra.mxu0 %v595
    %1121 = vmatpush.bf16.msra.mxu0 %v589
    %1122 = vmatpush.bf16.msra.mxu0 %v583
    %1123 = vmatmul.bf16.gmra.mxu0 %v971
    %v1124 = vpop.f32.mrf.mxu0
    %v1125 = vadd.f32 %v1112, %v1124
    %v1126 = vpop.f32.mrf.mxu0
    %1127 = vdwg.mxu0
    %v1130 = vrot.slane %v1021, 7
    %v1131 = vsel %vm881, %v995, %v1130
    %v1133 = vadd.f32 %v964, %v1131
    %v1134 = vxor.u32 %v1133, 2147483648
    %v1135 = vmul.f32 %v1134, 1.442695
    %v1136 = vpow.pop %v1135
    %v1137 = vadd.f32 %v1136, 1.0
    %v1138 = vrcp.pop %v1137
    %v1139 = vmul.f32 %v1137, %v1138
    %v1140 = vsub.f32 1.0, %v1139
    %v1141 = vmul.f32 %v1138, %v1140
    %v1142 = vadd.f32 %v1138, %v1141
    %vm1143 = vweird.f32 %v1137
    %vm1144 = vweird.f32 %v1138
    %vm1145 = vmor %vm1143, %vm1144
    %v1146 = vsel %vm1145, %v1138, %v1142
    %v1147 = vand.u32 2147483647, %v1137
    %vm1148 = vcmp.eq.f32.partialorder %v1147, 8.507059e+37
    %v1149 = vand.u32 %v1137, 2147483648
    %v1150 = vor.u32 1.1754944e-38, %v1149
    %v1151 = vsel %vm1148, %v1150, %v1146
    %v1152 = vmul.f32 1.0, %v1151
    %v1154 = vrot.slane %v964, 2
    %v1158 = vrot.slane %v1073, 7
    %v1159 = vsel %vm881, %v1047, %v1158
    %v1161 = vadd.f32 %v1154, %v1159
    %v1162 = vxor.u32 %v1161, 2147483648
    %v1163 = vmul.f32 %v1162, 1.442695
    %v1164 = vpow.pop %v1163
    %v1165 = vadd.f32 %v1164, 1.0
    %v1166 = vrcp.pop %v1165
    %v1167 = vmul.f32 %v1165, %v1166
    %v1168 = vsub.f32 1.0, %v1167
    %v1169 = vmul.f32 %v1166, %v1168
    %v1170 = vadd.f32 %v1166, %v1169
    %vm1171 = vweird.f32 %v1165
    %vm1172 = vweird.f32 %v1166
    %vm1173 = vmor %vm1171, %vm1172
    %v1174 = vsel %vm1173, %v1166, %v1170
    %v1175 = vand.u32 2147483647, %v1165
    %vm1176 = vcmp.eq.f32.partialorder %v1175, 8.507059e+37
    %v1177 = vand.u32 %v1165, 2147483648
    %v1178 = vor.u32 1.1754944e-38, %v1177
    %v1179 = vsel %vm1176, %v1178, %v1174
    %v1180 = vmul.f32 1.0, %v1179
    %v1181 = vadd.f32 %v1099, %v933
    %v1182 = vadd.f32 %v1125, %v934
    %v1185 = vrot.slane %v1182, 7
    %v1186 = vsel %vm881, %v1181, %v1185
    %v1188 = vmul.f32 %v1152, %v1186
    %v1189 = vrot.slane %v964, 4
    %v1191 = vadd.f32 %v1189, %v1188
    %v1192 = vtanh.pop %v1191
    %v1193 = vsub.f32 1.0, %v1180
    %v1194 = vmul.f32 %v1193, %v1192
    %v1195 = vmul.f32 %v1180, %v952
    %v1196 = vadd.f32 %v1194, %v1195
    %s1197 = sld [smem:[#allocation6 + $0x2]]
    %s1198 = sshra.s32 %s1197, 3
    %s1199 = sand.u32 %s1197, 7
    %s1200 = sshra.s32 %s1197, 3
    %s1201 = sand.u32 %s1197, 7
    %s1202 = smul.u32 %s1198, 6
    %s1203 = smul.u32 %s1202, 8
    %s1204 = sadd.s32 %s1203, %s1201
    %s1205 = scalar_lea.vmem [#allocation10], %s1204
    %v1206 = vld [vmem:[%s1205] ss:$8 sm:$0xf]
    %v1207 = vld [vmem:[%s1205] ss:$8 sm:$0x30]
    %v1208 = vor.u32 %v1206, %v1207
    %v1210 = vperm.slane %v1196, 0
    %v1211 = vperm.slane %v1196, 1
    %v1214 = vpack.c.bf16 %v1210, %v1210
    %v1215 = vpack.c.bf16 %v1211, %v1211
    %1216 = vmatpush.bf16.msra.mxu0 %v572
    %1217 = vmatpush.bf16.msra.mxu0 %v566
    %1218 = vmatpush.bf16.msra.mxu0 %v560
    %1219 = vmatpush.bf16.msra.mxu0 %v554
    %1220 = vmatpush.bf16.msra.mxu0 %v548
    %1221 = vmatpush.bf16.msra.mxu0 %v542
    %1222 = vmatpush.bf16.msra.mxu0 %v536
    %1223 = vmatpush.bf16.msra.mxu0 %v530
    %1224 = vmatmul.bf16.gmra.mxu0 %v1214
    %v1225 = vpop.f32.mrf.mxu0
    %v1226 = vadd.f32 0.0, %v1225
    %v1227 = vpop.f32.mrf.mxu0
    %1228 = vdwg.mxu0
    %1229 = vmatpush.bf16.msra.mxu0 %v620
    %1230 = vmatpush.bf16.msra.mxu0 %v614
    %1231 = vmatpush.bf16.msra.mxu0 %v608
    %1232 = vmatpush.bf16.msra.mxu0 %v602
    %1233 = vmatpush.bf16.msra.mxu0 %v596
    %1234 = vmatpush.bf16.msra.mxu0 %v590
    %1235 = vmatpush.bf16.msra.mxu0 %v584
    %1236 = vmatpush.bf16.msra.mxu0 %v578
    %1237 = vmatmul.bf16.gmra.mxu0 %v1215
    %v1238 = vpop.f32.mrf.mxu0
    %v1239 = vadd.f32 %v1226, %v1238
    %v1240 = vpop.f32.mrf.mxu0
    %1241 = vdwg.mxu0
    %1242 = vmatpush.bf16.msra.mxu0 %v573
    %1243 = vmatpush.bf16.msra.mxu0 %v567
    %1244 = vmatpush.bf16.msra.mxu0 %v561
    %1245 = vmatpush.bf16.msra.mxu0 %v555
    %1246 = vmatpush.bf16.msra.mxu0 %v549
    %1247 = vmatpush.bf16.msra.mxu0 %v543
    %1248 = vmatpush.bf16.msra.mxu0 %v537
    %1249 = vmatpush.bf16.msra.mxu0 %v531
    %1250 = vmatmul.bf16.gmra.mxu0 %v1214
    %v1251 = vpop.f32.mrf.mxu0
    %v1252 = vadd.f32 0.0, %v1251
    %v1253 = vpop.f32.mrf.mxu0
    %1254 = vdwg.mxu0
    %1255 = vmatpush.bf16.msra.mxu0 %v621
    %1256 = vmatpush.bf16.msra.mxu0 %v615
    %1257 = vmatpush.bf16.msra.mxu0 %v609
    %1258 = vmatpush.bf16.msra.mxu0 %v603
    %1259 = vmatpush.bf16.msra.mxu0 %v597
    %1260 = vmatpush.bf16.msra.mxu0 %v591
    %1261 = vmatpush.bf16.msra.mxu0 %v585
    %1262 = vmatpush.bf16.msra.mxu0 %v579
    %1263 = vmatmul.bf16.gmra.mxu0 %v1215
    %v1264 = vpop.f32.mrf.mxu0
    %v1265 = vadd.f32 %v1252, %v1264
    %v1266 = vpop.f32.mrf.mxu0
    %1267 = vdwg.mxu0
    %1268 = vmatpush.bf16.msra.mxu0 %v574
    %1269 = vmatpush.bf16.msra.mxu0 %v568
    %1270 = vmatpush.bf16.msra.mxu0 %v562
    %1271 = vmatpush.bf16.msra.mxu0 %v556
    %1272 = vmatpush.bf16.msra.mxu0 %v550
    %1273 = vmatpush.bf16.msra.mxu0 %v544
    %1274 = vmatpush.bf16.msra.mxu0 %v538
    %1275 = vmatpush.bf16.msra.mxu0 %v532
    %1276 = vmatmul.bf16.gmra.mxu0 %v1214
    %v1277 = vpop.f32.mrf.mxu0
    %v1278 = vadd.f32 0.0, %v1277
    %v1279 = vpop.f32.mrf.mxu0
    %1280 = vdwg.mxu0
    %1281 = vmatpush.bf16.msra.mxu0 %v622
    %1282 = vmatpush.bf16.msra.mxu0 %v616
    %1283 = vmatpush.bf16.msra.mxu0 %v610
    %1284 = vmatpush.bf16.msra.mxu0 %v604
    %1285 = vmatpush.bf16.msra.mxu0 %v598
    %1286 = vmatpush.bf16.msra.mxu0 %v592
    %1287 = vmatpush.bf16.msra.mxu0 %v586
    %1288 = vmatpush.bf16.msra.mxu0 %v580
    %1289 = vmatmul.bf16.gmra.mxu0 %v1215
    %v1290 = vpop.f32.mrf.mxu0
    %v1291 = vadd.f32 %v1278, %v1290
    %v1292 = vpop.f32.mrf.mxu0
    %1293 = vdwg.mxu0
    %1294 = vmatpush.bf16.msra.mxu0 %v575
    %1295 = vmatpush.bf16.msra.mxu0 %v569
    %1296 = vmatpush.bf16.msra.mxu0 %v563
    %1297 = vmatpush.bf16.msra.mxu0 %v557
    %1298 = vmatpush.bf16.msra.mxu0 %v551
    %1299 = vmatpush.bf16.msra.mxu0 %v545
    %1300 = vmatpush.bf16.msra.mxu0 %v539
    %1301 = vmatpush.bf16.msra.mxu0 %v533
    %1302 = vmatmul.bf16.gmra.mxu0 %v1214
    %v1303 = vpop.f32.mrf.mxu0
    %v1304 = vadd.f32 0.0, %v1303
    %v1305 = vpop.f32.mrf.mxu0
    %1306 = vdwg.mxu0
    %1307 = vmatpush.bf16.msra.mxu0 %v623
    %1308 = vmatpush.bf16.msra.mxu0 %v617
    %1309 = vmatpush.bf16.msra.mxu0 %v611
    %1310 = vmatpush.bf16.msra.mxu0 %v605
    %1311 = vmatpush.bf16.msra.mxu0 %v599
    %1312 = vmatpush.bf16.msra.mxu0 %v593
    %1313 = vmatpush.bf16.msra.mxu0 %v587
    %1314 = vmatpush.bf16.msra.mxu0 %v581
    %1315 = vmatmul.bf16.gmra.mxu0 %v1215
    %v1316 = vpop.f32.mrf.mxu0
    %v1317 = vadd.f32 %v1304, %v1316
    %v1318 = vpop.f32.mrf.mxu0
    %1319 = vdwg.mxu0
    %1320 = vmatpush.bf16.msra.mxu0 %v576
    %1321 = vmatpush.bf16.msra.mxu0 %v570
    %1322 = vmatpush.bf16.msra.mxu0 %v564
    %1323 = vmatpush.bf16.msra.mxu0 %v558
    %1324 = vmatpush.bf16.msra.mxu0 %v552
    %1325 = vmatpush.bf16.msra.mxu0 %v546
    %1326 = vmatpush.bf16.msra.mxu0 %v540
    %1327 = vmatpush.bf16.msra.mxu0 %v534
    %1328 = vmatmul.bf16.gmra.mxu0 %v1214
    %v1329 = vpop.f32.mrf.mxu0
    %v1330 = vadd.f32 0.0, %v1329
    %v1331 = vpop.f32.mrf.mxu0
    %1332 = vdwg.mxu0
    %1333 = vmatpush.bf16.msra.mxu0 %v624
    %1334 = vmatpush.bf16.msra.mxu0 %v618
    %1335 = vmatpush.bf16.msra.mxu0 %v612
    %1336 = vmatpush.bf16.msra.mxu0 %v606
    %1337 = vmatpush.bf16.msra.mxu0 %v600
    %1338 = vmatpush.bf16.msra.mxu0 %v594
    %1339 = vmatpush.bf16.msra.mxu0 %v588
    %1340 = vmatpush.bf16.msra.mxu0 %v582
    %1341 = vmatmul.bf16.gmra.mxu0 %v1215
    %v1342 = vpop.f32.mrf.mxu0
    %v1343 = vadd.f32 %v1330, %v1342
    %v1344 = vpop.f32.mrf.mxu0
    %1345 = vdwg.mxu0
    %1346 = vmatpush.bf16.msra.mxu0 %v577
    %1347 = vmatpush.bf16.msra.mxu0 %v571
    %1348 = vmatpush.bf16.msra.mxu0 %v565
    %1349 = vmatpush.bf16.msra.mxu0 %v559
    %1350 = vmatpush.bf16.msra.mxu0 %v553
    %1351 = vmatpush.bf16.msra.mxu0 %v547
    %1352 = vmatpush.bf16.msra.mxu0 %v541
    %1353 = vmatpush.bf16.msra.mxu0 %v535
    %1354 = vmatmul.bf16.gmra.mxu0 %v1214
    %v1355 = vpop.f32.mrf.mxu0
    %v1356 = vadd.f32 0.0, %v1355
    %v1357 = vpop.f32.mrf.mxu0
    %1358 = vdwg.mxu0
    %1359 = vmatpush.bf16.msra.mxu0 %v625
    %1360 = vmatpush.bf16.msra.mxu0 %v619
    %1361 = vmatpush.bf16.msra.mxu0 %v613
    %1362 = vmatpush.bf16.msra.mxu0 %v607
    %1363 = vmatpush.bf16.msra.mxu0 %v601
    %1364 = vmatpush.bf16.msra.mxu0 %v595
    %1365 = vmatpush.bf16.msra.mxu0 %v589
    %1366 = vmatpush.bf16.msra.mxu0 %v583
    %1367 = vmatmul.bf16.gmra.mxu0 %v1215
    %v1368 = vpop.f32.mrf.mxu0
    %v1369 = vadd.f32 %v1356, %v1368
    %v1370 = vpop.f32.mrf.mxu0
    %1371 = vdwg.mxu0
    %v1374 = vrot.slane %v1265, 7
    %v1375 = vsel %vm881, %v1239, %v1374
    %v1377 = vadd.f32 %v1208, %v1375
    %v1378 = vxor.u32 %v1377, 2147483648
    %v1379 = vmul.f32 %v1378, 1.442695
    %v1380 = vpow.pop %v1379
    %v1381 = vadd.f32 %v1380, 1.0
    %v1382 = vrcp.pop %v1381
    %v1383 = vmul.f32 %v1381, %v1382
    %v1384 = vsub.f32 1.0, %v1383
    %v1385 = vmul.f32 %v1382, %v1384
    %v1386 = vadd.f32 %v1382, %v1385
    %vm1387 = vweird.f32 %v1381
    %vm1388 = vweird.f32 %v1382
    %vm1389 = vmor %vm1387, %vm1388
    %v1390 = vsel %vm1389, %v1382, %v1386
    %v1391 = vand.u32 2147483647, %v1381
    %vm1392 = vcmp.eq.f32.partialorder %v1391, 8.507059e+37
    %v1393 = vand.u32 %v1381, 2147483648
    %v1394 = vor.u32 1.1754944e-38, %v1393
    %v1395 = vsel %vm1392, %v1394, %v1390
    %v1396 = vmul.f32 1.0, %v1395
    %v1398 = vrot.slane %v1208, 2
    %v1402 = vrot.slane %v1317, 7
    %v1403 = vsel %vm881, %v1291, %v1402
    %v1405 = vadd.f32 %v1398, %v1403
    %v1406 = vxor.u32 %v1405, 2147483648
    %v1407 = vmul.f32 %v1406, 1.442695
    %v1408 = vpow.pop %v1407
    %v1409 = vadd.f32 %v1408, 1.0
    %v1410 = vrcp.pop %v1409
    %v1411 = vmul.f32 %v1409, %v1410
    %v1412 = vsub.f32 1.0, %v1411
    %v1413 = vmul.f32 %v1410, %v1412
    %v1414 = vadd.f32 %v1410, %v1413
    %vm1415 = vweird.f32 %v1409
    %vm1416 = vweird.f32 %v1410
    %vm1417 = vmor %vm1415, %vm1416
    %v1418 = vsel %vm1417, %v1410, %v1414
    %v1419 = vand.u32 2147483647, %v1409
    %vm1420 = vcmp.eq.f32.partialorder %v1419, 8.507059e+37
    %v1421 = vand.u32 %v1409, 2147483648
    %v1422 = vor.u32 1.1754944e-38, %v1421
    %v1423 = vsel %vm1420, %v1422, %v1418
    %v1424 = vmul.f32 1.0, %v1423
    %v1425 = vadd.f32 %v1343, %v933
    %v1426 = vadd.f32 %v1369, %v934
    %v1429 = vrot.slane %v1426, 7
    %v1430 = vsel %vm881, %v1425, %v1429
    %v1432 = vmul.f32 %v1396, %v1430
    %v1433 = vrot.slane %v1208, 4
    %v1435 = vadd.f32 %v1433, %v1432
    %v1436 = vtanh.pop %v1435
    %v1437 = vsub.f32 1.0, %v1424
    %v1438 = vmul.f32 %v1437, %v1436
    %v1439 = vmul.f32 %v1424, %v1196
    %v1440 = vadd.f32 %v1438, %v1439
    %s1441 = sld [smem:[#allocation6 + $0x3]]
    %s1442 = sshra.s32 %s1441, 3
    %s1443 = sand.u32 %s1441, 7
    %s1444 = sshra.s32 %s1441, 3
    %s1445 = sand.u32 %s1441, 7
    %s1446 = smul.u32 %s1442, 6
    %s1447 = smul.u32 %s1446, 8
    %s1448 = sadd.s32 %s1447, %s1445
    %s1449 = scalar_lea.vmem [#allocation10], %s1448
    %v1450 = vld [vmem:[%s1449] ss:$8 sm:$0xf]
    %v1451 = vld [vmem:[%s1449] ss:$8 sm:$0x30]
    %v1452 = vor.u32 %v1450, %v1451
    %v1454 = vperm.slane %v1440, 0
    %v1455 = vperm.slane %v1440, 1
    %v1458 = vpack.c.bf16 %v1454, %v1454
    %v1459 = vpack.c.bf16 %v1455, %v1455
    %1460 = vmatpush.bf16.msra.mxu0 %v572
    %1461 = vmatpush.bf16.msra.mxu0 %v566
    %1462 = vmatpush.bf16.msra.mxu0 %v560
    %1463 = vmatpush.bf16.msra.mxu0 %v554
    %1464 = vmatpush.bf16.msra.mxu0 %v548
    %1465 = vmatpush.bf16.msra.mxu0 %v542
    %1466 = vmatpush.bf16.msra.mxu0 %v536
    %1467 = vmatpush.bf16.msra.mxu0 %v530
    %1468 = vmatmul.bf16.gmra.mxu0 %v1458
    %v1469 = vpop.f32.mrf.mxu0
    %v1470 = vadd.f32 0.0, %v1469
    %v1471 = vpop.f32.mrf.mxu0
    %1472 = vdwg.mxu0
    %1473 = vmatpush.bf16.msra.mxu0 %v620
    %1474 = vmatpush.bf16.msra.mxu0 %v614
    %1475 = vmatpush.bf16.msra.mxu0 %v608
    %1476 = vmatpush.bf16.msra.mxu0 %v602
    %1477 = vmatpush.bf16.msra.mxu0 %v596
    %1478 = vmatpush.bf16.msra.mxu0 %v590
    %1479 = vmatpush.bf16.msra.mxu0 %v584
    %1480 = vmatpush.bf16.msra.mxu0 %v578
    %1481 = vmatmul.bf16.gmra.mxu0 %v1459
    %v1482 = vpop.f32.mrf.mxu0
    %v1483 = vadd.f32 %v1470, %v1482
    %v1484 = vpop.f32.mrf.mxu0
    %1485 = vdwg.mxu0
    %1486 = vmatpush.bf16.msra.mxu0 %v573
    %1487 = vmatpush.bf16.msra.mxu0 %v567
    %1488 = vmatpush.bf16.msra.mxu0 %v561
    %1489 = vmatpush.bf16.msra.mxu0 %v555
    %1490 = vmatpush.bf16.msra.mxu0 %v549
    %1491 = vmatpush.bf16.msra.mxu0 %v543
    %1492 = vmatpush.bf16.msra.mxu0 %v537
    %1493 = vmatpush.bf16.msra.mxu0 %v531
    %1494 = vmatmul.bf16.gmra.mxu0 %v1458
    %v1495 = vpop.f32.mrf.mxu0
    %v1496 = vadd.f32 0.0, %v1495
    %v1497 = vpop.f32.mrf.mxu0
    %1498 = vdwg.mxu0
    %1499 = vmatpush.bf16.msra.mxu0 %v621
    %1500 = vmatpush.bf16.msra.mxu0 %v615
    %1501 = vmatpush.bf16.msra.mxu0 %v609
    %1502 = vmatpush.bf16.msra.mxu0 %v603
    %1503 = vmatpush.bf16.msra.mxu0 %v597
    %1504 = vmatpush.bf16.msra.mxu0 %v591
    %1505 = vmatpush.bf16.msra.mxu0 %v585
    %1506 = vmatpush.bf16.msra.mxu0 %v579
    %1507 = vmatmul.bf16.gmra.mxu0 %v1459
    %v1508 = vpop.f32.mrf.mxu0
    %v1509 = vadd.f32 %v1496, %v1508
    %v1510 = vpop.f32.mrf.mxu0
    %1511 = vdwg.mxu0
    %1512 = vmatpush.bf16.msra.mxu0 %v574
    %1513 = vmatpush.bf16.msra.mxu0 %v568
    %1514 = vmatpush.bf16.msra.mxu0 %v562
    %1515 = vmatpush.bf16.msra.mxu0 %v556
    %1516 = vmatpush.bf16.msra.mxu0 %v550
    %1517 = vmatpush.bf16.msra.mxu0 %v544
    %1518 = vmatpush.bf16.msra.mxu0 %v538
    %1519 = vmatpush.bf16.msra.mxu0 %v532
    %1520 = vmatmul.bf16.gmra.mxu0 %v1458
    %v1521 = vpop.f32.mrf.mxu0
    %v1522 = vadd.f32 0.0, %v1521
    %v1523 = vpop.f32.mrf.mxu0
    %1524 = vdwg.mxu0
    %1525 = vmatpush.bf16.msra.mxu0 %v622
    %1526 = vmatpush.bf16.msra.mxu0 %v616
    %1527 = vmatpush.bf16.msra.mxu0 %v610
    %1528 = vmatpush.bf16.msra.mxu0 %v604
    %1529 = vmatpush.bf16.msra.mxu0 %v598
    %1530 = vmatpush.bf16.msra.mxu0 %v592
    %1531 = vmatpush.bf16.msra.mxu0 %v586
    %1532 = vmatpush.bf16.msra.mxu0 %v580
    %1533 = vmatmul.bf16.gmra.mxu0 %v1459
    %v1534 = vpop.f32.mrf.mxu0
    %v1535 = vadd.f32 %v1522, %v1534
    %v1536 = vpop.f32.mrf.mxu0
    %1537 = vdwg.mxu0
    %1538 = vmatpush.bf16.msra.mxu0 %v575
    %1539 = vmatpush.bf16.msra.mxu0 %v569
    %1540 = vmatpush.bf16.msra.mxu0 %v563
    %1541 = vmatpush.bf16.msra.mxu0 %v557
    %1542 = vmatpush.bf16.msra.mxu0 %v551
    %1543 = vmatpush.bf16.msra.mxu0 %v545
    %1544 = vmatpush.bf16.msra.mxu0 %v539
    %1545 = vmatpush.bf16.msra.mxu0 %v533
    %1546 = vmatmul.bf16.gmra.mxu0 %v1458
    %v1547 = vpop.f32.mrf.mxu0
    %v1548 = vadd.f32 0.0, %v1547
    %v1549 = vpop.f32.mrf.mxu0
    %1550 = vdwg.mxu0
    %1551 = vmatpush.bf16.msra.mxu0 %v623
    %1552 = vmatpush.bf16.msra.mxu0 %v617
    %1553 = vmatpush.bf16.msra.mxu0 %v611
    %1554 = vmatpush.bf16.msra.mxu0 %v605
    %1555 = vmatpush.bf16.msra.mxu0 %v599
    %1556 = vmatpush.bf16.msra.mxu0 %v593
    %1557 = vmatpush.bf16.msra.mxu0 %v587
    %1558 = vmatpush.bf16.msra.mxu0 %v581
    %1559 = vmatmul.bf16.gmra.mxu0 %v1459
    %v1560 = vpop.f32.mrf.mxu0
    %v1561 = vadd.f32 %v1548, %v1560
    %v1562 = vpop.f32.mrf.mxu0
    %1563 = vdwg.mxu0
    %1564 = vmatpush.bf16.msra.mxu0 %v576
    %1565 = vmatpush.bf16.msra.mxu0 %v570
    %1566 = vmatpush.bf16.msra.mxu0 %v564
    %1567 = vmatpush.bf16.msra.mxu0 %v558
    %1568 = vmatpush.bf16.msra.mxu0 %v552
    %1569 = vmatpush.bf16.msra.mxu0 %v546
    %1570 = vmatpush.bf16.msra.mxu0 %v540
    %1571 = vmatpush.bf16.msra.mxu0 %v534
    %1572 = vmatmul.bf16.gmra.mxu0 %v1458
    %v1573 = vpop.f32.mrf.mxu0
    %v1574 = vadd.f32 0.0, %v1573
    %v1575 = vpop.f32.mrf.mxu0
    %1576 = vdwg.mxu0
    %1577 = vmatpush.bf16.msra.mxu0 %v624
    %1578 = vmatpush.bf16.msra.mxu0 %v618
    %1579 = vmatpush.bf16.msra.mxu0 %v612
    %1580 = vmatpush.bf16.msra.mxu0 %v606
    %1581 = vmatpush.bf16.msra.mxu0 %v600
    %1582 = vmatpush.bf16.msra.mxu0 %v594
    %1583 = vmatpush.bf16.msra.mxu0 %v588
    %1584 = vmatpush.bf16.msra.mxu0 %v582
    %1585 = vmatmul.bf16.gmra.mxu0 %v1459
    %v1586 = vpop.f32.mrf.mxu0
    %v1587 = vadd.f32 %v1574, %v1586
    %v1588 = vpop.f32.mrf.mxu0
    %1589 = vdwg.mxu0
    %1590 = vmatpush.bf16.msra.mxu0 %v577
    %1591 = vmatpush.bf16.msra.mxu0 %v571
    %1592 = vmatpush.bf16.msra.mxu0 %v565
    %1593 = vmatpush.bf16.msra.mxu0 %v559
    %1594 = vmatpush.bf16.msra.mxu0 %v553
    %1595 = vmatpush.bf16.msra.mxu0 %v547
    %1596 = vmatpush.bf16.msra.mxu0 %v541
    %1597 = vmatpush.bf16.msra.mxu0 %v535
    %1598 = vmatmul.bf16.gmra.mxu0 %v1458
    %v1599 = vpop.f32.mrf.mxu0
    %v1600 = vadd.f32 0.0, %v1599
    %v1601 = vpop.f32.mrf.mxu0
    %1602 = vdwg.mxu0
    %1603 = vmatpush.bf16.msra.mxu0 %v625
    %1604 = vmatpush.bf16.msra.mxu0 %v619
    %1605 = vmatpush.bf16.msra.mxu0 %v613
    %1606 = vmatpush.bf16.msra.mxu0 %v607
    %1607 = vmatpush.bf16.msra.mxu0 %v601
    %1608 = vmatpush.bf16.msra.mxu0 %v595
    %1609 = vmatpush.bf16.msra.mxu0 %v589
    %1610 = vmatpush.bf16.msra.mxu0 %v583
    %1611 = vmatmul.bf16.gmra.mxu0 %v1459
    %v1612 = vpop.f32.mrf.mxu0
    %v1613 = vadd.f32 %v1600, %v1612
    %v1614 = vpop.f32.mrf.mxu0
    %1615 = vdwg.mxu0
    %v1618 = vrot.slane %v1509, 7
    %v1619 = vsel %vm881, %v1483, %v1618
    %v1621 = vadd.f32 %v1452, %v1619
    %v1622 = vxor.u32 %v1621, 2147483648
    %v1623 = vmul.f32 %v1622, 1.442695
    %v1624 = vpow.pop %v1623
    %v1625 = vadd.f32 %v1624, 1.0
    %v1626 = vrcp.pop %v1625
    %v1627 = vmul.f32 %v1625, %v1626
    %v1628 = vsub.f32 1.0, %v1627
    %v1629 = vmul.f32 %v1626, %v1628
    %v1630 = vadd.f32 %v1626, %v1629
    %vm1631 = vweird.f32 %v1625
    %vm1632 = vweird.f32 %v1626
    %vm1633 = vmor %vm1631, %vm1632
    %v1634 = vsel %vm1633, %v1626, %v1630
    %v1635 = vand.u32 2147483647, %v1625
    %vm1636 = vcmp.eq.f32.partialorder %v1635, 8.507059e+37
    %v1637 = vand.u32 %v1625, 2147483648
    %v1638 = vor.u32 1.1754944e-38, %v1637
    %v1639 = vsel %vm1636, %v1638, %v1634
    %v1640 = vmul.f32 1.0, %v1639
    %v1642 = vrot.slane %v1452, 2
    %v1646 = vrot.slane %v1561, 7
    %v1647 = vsel %vm881, %v1535, %v1646
    %v1649 = vadd.f32 %v1642, %v1647
    %v1650 = vxor.u32 %v1649, 2147483648
    %v1651 = vmul.f32 %v1650, 1.442695
    %v1652 = vpow.pop %v1651
    %v1653 = vadd.f32 %v1652, 1.0
    %v1654 = vrcp.pop %v1653
    %v1655 = vmul.f32 %v1653, %v1654
    %v1656 = vsub.f32 1.0, %v1655
    %v1657 = vmul.f32 %v1654, %v1656
    %v1658 = vadd.f32 %v1654, %v1657
    %vm1659 = vweird.f32 %v1653
    %vm1660 = vweird.f32 %v1654
    %vm1661 = vmor %vm1659, %vm1660
    %v1662 = vsel %vm1661, %v1654, %v1658
    %v1663 = vand.u32 2147483647, %v1653
    %vm1664 = vcmp.eq.f32.partialorder %v1663, 8.507059e+37
    %v1665 = vand.u32 %v1653, 2147483648
    %v1666 = vor.u32 1.1754944e-38, %v1665
    %v1667 = vsel %vm1664, %v1666, %v1662
    %v1668 = vmul.f32 1.0, %v1667
    %v1669 = vadd.f32 %v1587, %v933
    %v1670 = vadd.f32 %v1613, %v934
    %v1673 = vrot.slane %v1670, 7
    %v1674 = vsel %vm881, %v1669, %v1673
    %v1676 = vmul.f32 %v1640, %v1674
    %v1677 = vrot.slane %v1452, 4
    %v1679 = vadd.f32 %v1677, %v1676
    %v1680 = vtanh.pop %v1679
    %v1681 = vsub.f32 1.0, %v1668
    %v1682 = vmul.f32 %v1681, %v1680
    %v1683 = vmul.f32 %v1668, %v1440
    %v1684 = vadd.f32 %v1682, %v1683
    %s1685 = sld [smem:[#allocation6 + $0x4]]
    %s1686 = sshra.s32 %s1685, 3
    %s1687 = sand.u32 %s1685, 7
    %s1688 = sshra.s32 %s1685, 3
    %s1689 = sand.u32 %s1685, 7
    %s1690 = smul.u32 %s1686, 6
    %s1691 = smul.u32 %s1690, 8
    %s1692 = sadd.s32 %s1691, %s1689
    %s1693 = scalar_lea.vmem [#allocation10], %s1692
    %v1694 = vld [vmem:[%s1693] ss:$8 sm:$0xf]
    %v1695 = vld [vmem:[%s1693] ss:$8 sm:$0x30]
    %v1696 = vor.u32 %v1694, %v1695
    %v1698 = vperm.slane %v1684, 0
    %v1699 = vperm.slane %v1684, 1
    %v1702 = vpack.c.bf16 %v1698, %v1698
    %v1703 = vpack.c.bf16 %v1699, %v1699
    %1704 = vmatpush.bf16.msra.mxu0 %v572
    %1705 = vmatpush.bf16.msra.mxu0 %v566
    %1706 = vmatpush.bf16.msra.mxu0 %v560
    %1707 = vmatpush.bf16.msra.mxu0 %v554
    %1708 = vmatpush.bf16.msra.mxu0 %v548
    %1709 = vmatpush.bf16.msra.mxu0 %v542
    %1710 = vmatpush.bf16.msra.mxu0 %v536
    %1711 = vmatpush.bf16.msra.mxu0 %v530
    %1712 = vmatmul.bf16.gmra.mxu0 %v1702
    %v1713 = vpop.f32.mrf.mxu0
    %v1714 = vadd.f32 0.0, %v1713
    %v1715 = vpop.f32.mrf.mxu0
    %1716 = vdwg.mxu0
    %1717 = vmatpush.bf16.msra.mxu0 %v620
    %1718 = vmatpush.bf16.msra.mxu0 %v614
    %1719 = vmatpush.bf16.msra.mxu0 %v608
    %1720 = vmatpush.bf16.msra.mxu0 %v602
    %1721 = vmatpush.bf16.msra.mxu0 %v596
    %1722 = vmatpush.bf16.msra.mxu0 %v590
    %1723 = vmatpush.bf16.msra.mxu0 %v584
    %1724 = vmatpush.bf16.msra.mxu0 %v578
    %1725 = vmatmul.bf16.gmra.mxu0 %v1703
    %v1726 = vpop.f32.mrf.mxu0
    %v1727 = vadd.f32 %v1714, %v1726
    %v1728 = vpop.f32.mrf.mxu0
    %1729 = vdwg.mxu0
    %1730 = vmatpush.bf16.msra.mxu0 %v573
    %1731 = vmatpush.bf16.msra.mxu0 %v567
    %1732 = vmatpush.bf16.msra.mxu0 %v561
    %1733 = vmatpush.bf16.msra.mxu0 %v555
    %1734 = vmatpush.bf16.msra.mxu0 %v549
    %1735 = vmatpush.bf16.msra.mxu0 %v543
    %1736 = vmatpush.bf16.msra.mxu0 %v537
    %1737 = vmatpush.bf16.msra.mxu0 %v531
    %1738 = vmatmul.bf16.gmra.mxu0 %v1702
    %v1739 = vpop.f32.mrf.mxu0
    %v1740 = vadd.f32 0.0, %v1739
    %v1741 = vpop.f32.mrf.mxu0
    %1742 = vdwg.mxu0
    %1743 = vmatpush.bf16.msra.mxu0 %v621
    %1744 = vmatpush.bf16.msra.mxu0 %v615
    %1745 = vmatpush.bf16.msra.mxu0 %v609
    %1746 = vmatpush.bf16.msra.mxu0 %v603
    %1747 = vmatpush.bf16.msra.mxu0 %v597
    %1748 = vmatpush.bf16.msra.mxu0 %v591
    %1749 = vmatpush.bf16.msra.mxu0 %v585
    %1750 = vmatpush.bf16.msra.mxu0 %v579
    %1751 = vmatmul.bf16.gmra.mxu0 %v1703
    %v1752 = vpop.f32.mrf.mxu0
    %v1753 = vadd.f32 %v1740, %v1752
    %v1754 = vpop.f32.mrf.mxu0
    %1755 = vdwg.mxu0
    %1756 = vmatpush.bf16.msra.mxu0 %v574
    %1757 = vmatpush.bf16.msra.mxu0 %v568
    %1758 = vmatpush.bf16.msra.mxu0 %v562
    %1759 = vmatpush.bf16.msra.mxu0 %v556
    %1760 = vmatpush.bf16.msra.mxu0 %v550
    %1761 = vmatpush.bf16.msra.mxu0 %v544
    %1762 = vmatpush.bf16.msra.mxu0 %v538
    %1763 = vmatpush.bf16.msra.mxu0 %v532
    %1764 = vmatmul.bf16.gmra.mxu0 %v1702
    %v1765 = vpop.f32.mrf.mxu0
    %v1766 = vadd.f32 0.0, %v1765
    %v1767 = vpop.f32.mrf.mxu0
    %1768 = vdwg.mxu0
    %1769 = vmatpush.bf16.msra.mxu0 %v622
    %1770 = vmatpush.bf16.msra.mxu0 %v616
    %1771 = vmatpush.bf16.msra.mxu0 %v610
    %1772 = vmatpush.bf16.msra.mxu0 %v604
    %1773 = vmatpush.bf16.msra.mxu0 %v598
    %1774 = vmatpush.bf16.msra.mxu0 %v592
    %1775 = vmatpush.bf16.msra.mxu0 %v586
    %1776 = vmatpush.bf16.msra.mxu0 %v580
    %1777 = vmatmul.bf16.gmra.mxu0 %v1703
    %v1778 = vpop.f32.mrf.mxu0
    %v1779 = vadd.f32 %v1766, %v1778
    %v1780 = vpop.f32.mrf.mxu0
    %1781 = vdwg.mxu0
    %1782 = vmatpush.bf16.msra.mxu0 %v575
    %1783 = vmatpush.bf16.msra.mxu0 %v569
    %1784 = vmatpush.bf16.msra.mxu0 %v563
    %1785 = vmatpush.bf16.msra.mxu0 %v557
    %1786 = vmatpush.bf16.msra.mxu0 %v551
    %1787 = vmatpush.bf16.msra.mxu0 %v545
    %1788 = vmatpush.bf16.msra.mxu0 %v539
    %1789 = vmatpush.bf16.msra.mxu0 %v533
    %1790 = vmatmul.bf16.gmra.mxu0 %v1702
    %v1791 = vpop.f32.mrf.mxu0
    %v1792 = vadd.f32 0.0, %v1791
    %v1793 = vpop.f32.mrf.mxu0
    %1794 = vdwg.mxu0
    %1795 = vmatpush.bf16.msra.mxu0 %v623
    %1796 = vmatpush.bf16.msra.mxu0 %v617
    %1797 = vmatpush.bf16.msra.mxu0 %v611
    %1798 = vmatpush.bf16.msra.mxu0 %v605
    %1799 = vmatpush.bf16.msra.mxu0 %v599
    %1800 = vmatpush.bf16.msra.mxu0 %v593
    %1801 = vmatpush.bf16.msra.mxu0 %v587
    %1802 = vmatpush.bf16.msra.mxu0 %v581
    %1803 = vmatmul.bf16.gmra.mxu0 %v1703
    %v1804 = vpop.f32.mrf.mxu0
    %v1805 = vadd.f32 %v1792, %v1804
    %v1806 = vpop.f32.mrf.mxu0
    %1807 = vdwg.mxu0
    %1808 = vmatpush.bf16.msra.mxu0 %v576
    %1809 = vmatpush.bf16.msra.mxu0 %v570
    %1810 = vmatpush.bf16.msra.mxu0 %v564
    %1811 = vmatpush.bf16.msra.mxu0 %v558
    %1812 = vmatpush.bf16.msra.mxu0 %v552
    %1813 = vmatpush.bf16.msra.mxu0 %v546
    %1814 = vmatpush.bf16.msra.mxu0 %v540
    %1815 = vmatpush.bf16.msra.mxu0 %v534
    %1816 = vmatmul.bf16.gmra.mxu0 %v1702
    %v1817 = vpop.f32.mrf.mxu0
    %v1818 = vadd.f32 0.0, %v1817
    %v1819 = vpop.f32.mrf.mxu0
    %1820 = vdwg.mxu0
    %1821 = vmatpush.bf16.msra.mxu0 %v624
    %1822 = vmatpush.bf16.msra.mxu0 %v618
    %1823 = vmatpush.bf16.msra.mxu0 %v612
    %1824 = vmatpush.bf16.msra.mxu0 %v606
    %1825 = vmatpush.bf16.msra.mxu0 %v600
    %1826 = vmatpush.bf16.msra.mxu0 %v594
    %1827 = vmatpush.bf16.msra.mxu0 %v588
    %1828 = vmatpush.bf16.msra.mxu0 %v582
    %1829 = vmatmul.bf16.gmra.mxu0 %v1703
    %v1830 = vpop.f32.mrf.mxu0
    %v1831 = vadd.f32 %v1818, %v1830
    %v1832 = vpop.f32.mrf.mxu0
    %1833 = vdwg.mxu0
    %1834 = vmatpush.bf16.msra.mxu0 %v577
    %1835 = vmatpush.bf16.msra.mxu0 %v571
    %1836 = vmatpush.bf16.msra.mxu0 %v565
    %1837 = vmatpush.bf16.msra.mxu0 %v559
    %1838 = vmatpush.bf16.msra.mxu0 %v553
    %1839 = vmatpush.bf16.msra.mxu0 %v547
    %1840 = vmatpush.bf16.msra.mxu0 %v541
    %1841 = vmatpush.bf16.msra.mxu0 %v535
    %1842 = vmatmul.bf16.gmra.mxu0 %v1702
    %v1843 = vpop.f32.mrf.mxu0
    %v1844 = vadd.f32 0.0, %v1843
    %v1845 = vpop.f32.mrf.mxu0
    %1846 = vdwg.mxu0
    %1847 = vmatpush.bf16.msra.mxu0 %v625
    %1848 = vmatpush.bf16.msra.mxu0 %v619
    %1849 = vmatpush.bf16.msra.mxu0 %v613
    %1850 = vmatpush.bf16.msra.mxu0 %v607
    %1851 = vmatpush.bf16.msra.mxu0 %v601
    %1852 = vmatpush.bf16.msra.mxu0 %v595
    %1853 = vmatpush.bf16.msra.mxu0 %v589
    %1854 = vmatpush.bf16.msra.mxu0 %v583
    %1855 = vmatmul.bf16.gmra.mxu0 %v1703
    %v1856 = vpop.f32.mrf.mxu0
    %v1857 = vadd.f32 %v1844, %v1856
    %v1858 = vpop.f32.mrf.mxu0
    %1859 = vdwg.mxu0
    %v1862 = vrot.slane %v1753, 7
    %v1863 = vsel %vm881, %v1727, %v1862
    %v1865 = vadd.f32 %v1696, %v1863
    %v1866 = vxor.u32 %v1865, 2147483648
    %v1867 = vmul.f32 %v1866, 1.442695
    %v1868 = vpow.pop %v1867
    %v1869 = vadd.f32 %v1868, 1.0
    %v1870 = vrcp.pop %v1869
    %v1871 = vmul.f32 %v1869, %v1870
    %v1872 = vsub.f32 1.0, %v1871
    %v1873 = vmul.f32 %v1870, %v1872
    %v1874 = vadd.f32 %v1870, %v1873
    %vm1875 = vweird.f32 %v1869
    %vm1876 = vweird.f32 %v1870
    %vm1877 = vmor %vm1875, %vm1876
    %v1878 = vsel %vm1877, %v1870, %v1874
    %v1879 = vand.u32 2147483647, %v1869
    %vm1880 = vcmp.eq.f32.partialorder %v1879, 8.507059e+37
    %v1881 = vand.u32 %v1869, 2147483648
    %v1882 = vor.u32 1.1754944e-38, %v1881
    %v1883 = vsel %vm1880, %v1882, %v1878
    %v1884 = vmul.f32 1.0, %v1883
    %v1886 = vrot.slane %v1696, 2
    %v1890 = vrot.slane %v1805, 7
    %v1891 = vsel %vm881, %v1779, %v1890
    %v1893 = vadd.f32 %v1886, %v1891
    %v1894 = vxor.u32 %v1893, 2147483648
    %v1895 = vmul.f32 %v1894, 1.442695
    %v1896 = vpow.pop %v1895
    %v1897 = vadd.f32 %v1896, 1.0
    %v1898 = vrcp.pop %v1897
    %v1899 = vmul.f32 %v1897, %v1898
    %v1900 = vsub.f32 1.0, %v1899
    %v1901 = vmul.f32 %v1898, %v1900
    %v1902 = vadd.f32 %v1898, %v1901
    %vm1903 = vweird.f32 %v1897
    %vm1904 = vweird.f32 %v1898
    %vm1905 = vmor %vm1903, %vm1904
    %v1906 = vsel %vm1905, %v1898, %v1902
    %v1907 = vand.u32 2147483647, %v1897
    %vm1908 = vcmp.eq.f32.partialorder %v1907, 8.507059e+37
    %v1909 = vand.u32 %v1897, 2147483648
    %v1910 = vor.u32 1.1754944e-38, %v1909
    %v1911 = vsel %vm1908, %v1910, %v1906
    %v1912 = vmul.f32 1.0, %v1911
    %v1913 = vadd.f32 %v1831, %v933
    %v1914 = vadd.f32 %v1857, %v934
    %v1917 = vrot.slane %v1914, 7
    %v1918 = vsel %vm881, %v1913, %v1917
    %v1920 = vmul.f32 %v1884, %v1918
    %v1921 = vrot.slane %v1696, 4
    %v1923 = vadd.f32 %v1921, %v1920
    %v1924 = vtanh.pop %v1923
    %v1925 = vsub.f32 1.0, %v1912
    %v1926 = vmul.f32 %v1925, %v1924
    %v1927 = vmul.f32 %v1912, %v1684
    %v1928 = vadd.f32 %v1926, %v1927
    %s1929 = sld [smem:[#allocation6 + $0x5]]
    %s1930 = sshra.s32 %s1929, 3
    %s1931 = sand.u32 %s1929, 7
    %s1932 = sshra.s32 %s1929, 3
    %s1933 = sand.u32 %s1929, 7
    %s1934 = smul.u32 %s1930, 6
    %s1935 = smul.u32 %s1934, 8
    %s1936 = sadd.s32 %s1935, %s1933
    %s1937 = scalar_lea.vmem [#allocation10], %s1936
    %v1938 = vld [vmem:[%s1937] ss:$8 sm:$0xf]
    %v1939 = vld [vmem:[%s1937] ss:$8 sm:$0x30]
    %v1940 = vor.u32 %v1938, %v1939
    %v1942 = vperm.slane %v1928, 0
    %v1943 = vperm.slane %v1928, 1
    %v1946 = vpack.c.bf16 %v1942, %v1942
    %v1947 = vpack.c.bf16 %v1943, %v1943
    %1948 = vmatpush.bf16.msra.mxu0 %v572
    %1949 = vmatpush.bf16.msra.mxu0 %v566
    %1950 = vmatpush.bf16.msra.mxu0 %v560
    %1951 = vmatpush.bf16.msra.mxu0 %v554
    %1952 = vmatpush.bf16.msra.mxu0 %v548
    %1953 = vmatpush.bf16.msra.mxu0 %v542
    %1954 = vmatpush.bf16.msra.mxu0 %v536
    %1955 = vmatpush.bf16.msra.mxu0 %v530
    %1956 = vmatmul.bf16.gmra.mxu0 %v1946
    %v1957 = vpop.f32.mrf.mxu0
    %v1958 = vadd.f32 0.0, %v1957
    %v1959 = vpop.f32.mrf.mxu0
    %1960 = vdwg.mxu0
    %1961 = vmatpush.bf16.msra.mxu0 %v620
    %1962 = vmatpush.bf16.msra.mxu0 %v614
    %1963 = vmatpush.bf16.msra.mxu0 %v608
    %1964 = vmatpush.bf16.msra.mxu0 %v602
    %1965 = vmatpush.bf16.msra.mxu0 %v596
    %1966 = vmatpush.bf16.msra.mxu0 %v590
    %1967 = vmatpush.bf16.msra.mxu0 %v584
    %1968 = vmatpush.bf16.msra.mxu0 %v578
    %1969 = vmatmul.bf16.gmra.mxu0 %v1947
    %v1970 = vpop.f32.mrf.mxu0
    %v1971 = vadd.f32 %v1958, %v1970
    %v1972 = vpop.f32.mrf.mxu0
    %1973 = vdwg.mxu0
    %1974 = vmatpush.bf16.msra.mxu0 %v573
    %1975 = vmatpush.bf16.msra.mxu0 %v567
    %1976 = vmatpush.bf16.msra.mxu0 %v561
    %1977 = vmatpush.bf16.msra.mxu0 %v555
    %1978 = vmatpush.bf16.msra.mxu0 %v549
    %1979 = vmatpush.bf16.msra.mxu0 %v543
    %1980 = vmatpush.bf16.msra.mxu0 %v537
    %1981 = vmatpush.bf16.msra.mxu0 %v531
    %1982 = vmatmul.bf16.gmra.mxu0 %v1946
    %v1983 = vpop.f32.mrf.mxu0
    %v1984 = vadd.f32 0.0, %v1983
    %v1985 = vpop.f32.mrf.mxu0
    %1986 = vdwg.mxu0
    %1987 = vmatpush.bf16.msra.mxu0 %v621
    %1988 = vmatpush.bf16.msra.mxu0 %v615
    %1989 = vmatpush.bf16.msra.mxu0 %v609
    %1990 = vmatpush.bf16.msra.mxu0 %v603
    %1991 = vmatpush.bf16.msra.mxu0 %v597
    %1992 = vmatpush.bf16.msra.mxu0 %v591
    %1993 = vmatpush.bf16.msra.mxu0 %v585
    %1994 = vmatpush.bf16.msra.mxu0 %v579
    %1995 = vmatmul.bf16.gmra.mxu0 %v1947
    %v1996 = vpop.f32.mrf.mxu0
    %v1997 = vadd.f32 %v1984, %v1996
    %v1998 = vpop.f32.mrf.mxu0
    %1999 = vdwg.mxu0
    %2000 = vmatpush.bf16.msra.mxu0 %v574
    %2001 = vmatpush.bf16.msra.mxu0 %v568
    %2002 = vmatpush.bf16.msra.mxu0 %v562
    %2003 = vmatpush.bf16.msra.mxu0 %v556
    %2004 = vmatpush.bf16.msra.mxu0 %v550
    %2005 = vmatpush.bf16.msra.mxu0 %v544
    %2006 = vmatpush.bf16.msra.mxu0 %v538
    %2007 = vmatpush.bf16.msra.mxu0 %v532
    %2008 = vmatmul.bf16.gmra.mxu0 %v1946
    %v2009 = vpop.f32.mrf.mxu0
    %v2010 = vadd.f32 0.0, %v2009
    %v2011 = vpop.f32.mrf.mxu0
    %2012 = vdwg.mxu0
    %2013 = vmatpush.bf16.msra.mxu0 %v622
    %2014 = vmatpush.bf16.msra.mxu0 %v616
    %2015 = vmatpush.bf16.msra.mxu0 %v610
    %2016 = vmatpush.bf16.msra.mxu0 %v604
    %2017 = vmatpush.bf16.msra.mxu0 %v598
    %2018 = vmatpush.bf16.msra.mxu0 %v592
    %2019 = vmatpush.bf16.msra.mxu0 %v586
    %2020 = vmatpush.bf16.msra.mxu0 %v580
    %2021 = vmatmul.bf16.gmra.mxu0 %v1947
    %v2022 = vpop.f32.mrf.mxu0
    %v2023 = vadd.f32 %v2010, %v2022
    %v2024 = vpop.f32.mrf.mxu0
    %2025 = vdwg.mxu0
    %2026 = vmatpush.bf16.msra.mxu0 %v575
    %2027 = vmatpush.bf16.msra.mxu0 %v569
    %2028 = vmatpush.bf16.msra.mxu0 %v563
    %2029 = vmatpush.bf16.msra.mxu0 %v557
    %2030 = vmatpush.bf16.msra.mxu0 %v551
    %2031 = vmatpush.bf16.msra.mxu0 %v545
    %2032 = vmatpush.bf16.msra.mxu0 %v539
    %2033 = vmatpush.bf16.msra.mxu0 %v533
    %2034 = vmatmul.bf16.gmra.mxu0 %v1946
    %v2035 = vpop.f32.mrf.mxu0
    %v2036 = vadd.f32 0.0, %v2035
    %v2037 = vpop.f32.mrf.mxu0
    %2038 = vdwg.mxu0
    %2039 = vmatpush.bf16.msra.mxu0 %v623
    %2040 = vmatpush.bf16.msra.mxu0 %v617
    %2041 = vmatpush.bf16.msra.mxu0 %v611
    %2042 = vmatpush.bf16.msra.mxu0 %v605
    %2043 = vmatpush.bf16.msra.mxu0 %v599
    %2044 = vmatpush.bf16.msra.mxu0 %v593
    %2045 = vmatpush.bf16.msra.mxu0 %v587
    %2046 = vmatpush.bf16.msra.mxu0 %v581
    %2047 = vmatmul.bf16.gmra.mxu0 %v1947
    %v2048 = vpop.f32.mrf.mxu0
    %v2049 = vadd.f32 %v2036, %v2048
    %v2050 = vpop.f32.mrf.mxu0
    %2051 = vdwg.mxu0
    %2052 = vmatpush.bf16.msra.mxu0 %v576
    %2053 = vmatpush.bf16.msra.mxu0 %v570
    %2054 = vmatpush.bf16.msra.mxu0 %v564
    %2055 = vmatpush.bf16.msra.mxu0 %v558
    %2056 = vmatpush.bf16.msra.mxu0 %v552
    %2057 = vmatpush.bf16.msra.mxu0 %v546
    %2058 = vmatpush.bf16.msra.mxu0 %v540
    %2059 = vmatpush.bf16.msra.mxu0 %v534
    %2060 = vmatmul.bf16.gmra.mxu0 %v1946
    %v2061 = vpop.f32.mrf.mxu0
    %v2062 = vadd.f32 0.0, %v2061
    %v2063 = vpop.f32.mrf.mxu0
    %2064 = vdwg.mxu0
    %2065 = vmatpush.bf16.msra.mxu0 %v624
    %2066 = vmatpush.bf16.msra.mxu0 %v618
    %2067 = vmatpush.bf16.msra.mxu0 %v612
    %2068 = vmatpush.bf16.msra.mxu0 %v606
    %2069 = vmatpush.bf16.msra.mxu0 %v600
    %2070 = vmatpush.bf16.msra.mxu0 %v594
    %2071 = vmatpush.bf16.msra.mxu0 %v588
    %2072 = vmatpush.bf16.msra.mxu0 %v582
    %2073 = vmatmul.bf16.gmra.mxu0 %v1947
    %v2074 = vpop.f32.mrf.mxu0
    %v2075 = vadd.f32 %v2062, %v2074
    %v2076 = vpop.f32.mrf.mxu0
    %2077 = vdwg.mxu0
    %2078 = vmatpush.bf16.msra.mxu0 %v577
    %2079 = vmatpush.bf16.msra.mxu0 %v571
    %2080 = vmatpush.bf16.msra.mxu0 %v565
    %2081 = vmatpush.bf16.msra.mxu0 %v559
    %2082 = vmatpush.bf16.msra.mxu0 %v553
    %2083 = vmatpush.bf16.msra.mxu0 %v547
    %2084 = vmatpush.bf16.msra.mxu0 %v541
    %2085 = vmatpush.bf16.msra.mxu0 %v535
    %2086 = vmatmul.bf16.gmra.mxu0 %v1946
    %v2087 = vpop.f32.mrf.mxu0
    %v2088 = vadd.f32 0.0, %v2087
    %v2089 = vpop.f32.mrf.mxu0
    %2090 = vdwg.mxu0
    %2091 = vmatpush.bf16.msra.mxu0 %v625
    %2092 = vmatpush.bf16.msra.mxu0 %v619
    %2093 = vmatpush.bf16.msra.mxu0 %v613
    %2094 = vmatpush.bf16.msra.mxu0 %v607
    %2095 = vmatpush.bf16.msra.mxu0 %v601
    %2096 = vmatpush.bf16.msra.mxu0 %v595
    %2097 = vmatpush.bf16.msra.mxu0 %v589
    %2098 = vmatpush.bf16.msra.mxu0 %v583
    %2099 = vmatmul.bf16.gmra.mxu0 %v1947
    %v2100 = vpop.f32.mrf.mxu0
    %v2101 = vadd.f32 %v2088, %v2100
    %v2102 = vpop.f32.mrf.mxu0
    %2103 = vdwg.mxu0
    %v2106 = vrot.slane %v1997, 7
    %v2107 = vsel %vm881, %v1971, %v2106
    %v2109 = vadd.f32 %v1940, %v2107
    %v2110 = vxor.u32 %v2109, 2147483648
    %v2111 = vmul.f32 %v2110, 1.442695
    %v2112 = vpow.pop %v2111
    %v2113 = vadd.f32 %v2112, 1.0
    %v2114 = vrcp.pop %v2113
    %v2115 = vmul.f32 %v2113, %v2114
    %v2116 = vsub.f32 1.0, %v2115
    %v2117 = vmul.f32 %v2114, %v2116
    %v2118 = vadd.f32 %v2114, %v2117
    %vm2119 = vweird.f32 %v2113
    %vm2120 = vweird.f32 %v2114
    %vm2121 = vmor %vm2119, %vm2120
    %v2122 = vsel %vm2121, %v2114, %v2118
    %v2123 = vand.u32 2147483647, %v2113
    %vm2124 = vcmp.eq.f32.partialorder %v2123, 8.507059e+37
    %v2125 = vand.u32 %v2113, 2147483648
    %v2126 = vor.u32 1.1754944e-38, %v2125
    %v2127 = vsel %vm2124, %v2126, %v2122
    %v2128 = vmul.f32 1.0, %v2127
    %v2130 = vrot.slane %v1940, 2
    %v2134 = vrot.slane %v2049, 7
    %v2135 = vsel %vm881, %v2023, %v2134
    %v2137 = vadd.f32 %v2130, %v2135
    %v2138 = vxor.u32 %v2137, 2147483648
    %v2139 = vmul.f32 %v2138, 1.442695
    %v2140 = vpow.pop %v2139
    %v2141 = vadd.f32 %v2140, 1.0
    %v2142 = vrcp.pop %v2141
    %v2143 = vmul.f32 %v2141, %v2142
    %v2144 = vsub.f32 1.0, %v2143
    %v2145 = vmul.f32 %v2142, %v2144
    %v2146 = vadd.f32 %v2142, %v2145
    %vm2147 = vweird.f32 %v2141
    %vm2148 = vweird.f32 %v2142
    %vm2149 = vmor %vm2147, %vm2148
    %v2150 = vsel %vm2149, %v2142, %v2146
    %v2151 = vand.u32 2147483647, %v2141
    %vm2152 = vcmp.eq.f32.partialorder %v2151, 8.507059e+37
    %v2153 = vand.u32 %v2141, 2147483648
    %v2154 = vor.u32 1.1754944e-38, %v2153
    %v2155 = vsel %vm2152, %v2154, %v2150
    %v2156 = vmul.f32 1.0, %v2155
    %v2157 = vadd.f32 %v2075, %v933
    %v2158 = vadd.f32 %v2101, %v934
    %v2161 = vrot.slane %v2158, 7
    %v2162 = vsel %vm881, %v2157, %v2161
    %v2164 = vmul.f32 %v2128, %v2162
    %v2165 = vrot.slane %v1940, 4
    %v2167 = vadd.f32 %v2165, %v2164
    %v2168 = vtanh.pop %v2167
    %v2169 = vsub.f32 1.0, %v2156
    %v2170 = vmul.f32 %v2169, %v2168
    %v2171 = vmul.f32 %v2156, %v1928
    %v2172 = vadd.f32 %v2170, %v2171
    %s2173 = sld [smem:[#allocation6 + $0x6]]
    %s2174 = sshra.s32 %s2173, 3
    %s2175 = sand.u32 %s2173, 7
    %s2176 = sshra.s32 %s2173, 3
    %s2177 = sand.u32 %s2173, 7
    %s2178 = smul.u32 %s2174, 6
    %s2179 = smul.u32 %s2178, 8
    %s2180 = sadd.s32 %s2179, %s2177
    %s2181 = scalar_lea.vmem [#allocation10], %s2180
    %v2182 = vld [vmem:[%s2181] ss:$8 sm:$0xf]
    %v2183 = vld [vmem:[%s2181] ss:$8 sm:$0x30]
    %v2184 = vor.u32 %v2182, %v2183
    %v2186 = vperm.slane %v2172, 0
    %v2187 = vperm.slane %v2172, 1
    %v2190 = vpack.c.bf16 %v2186, %v2186
    %v2191 = vpack.c.bf16 %v2187, %v2187
    %2192 = vmatpush.bf16.msra.mxu0 %v572
    %2193 = vmatpush.bf16.msra.mxu0 %v566
    %2194 = vmatpush.bf16.msra.mxu0 %v560
    %2195 = vmatpush.bf16.msra.mxu0 %v554
    %2196 = vmatpush.bf16.msra.mxu0 %v548
    %2197 = vmatpush.bf16.msra.mxu0 %v542
    %2198 = vmatpush.bf16.msra.mxu0 %v536
    %2199 = vmatpush.bf16.msra.mxu0 %v530
    %2200 = vmatmul.bf16.gmra.mxu0 %v2190
    %v2201 = vpop.f32.mrf.mxu0
    %v2202 = vadd.f32 0.0, %v2201
    %v2203 = vpop.f32.mrf.mxu0
    %2204 = vdwg.mxu0
    %2205 = vmatpush.bf16.msra.mxu0 %v620
    %2206 = vmatpush.bf16.msra.mxu0 %v614
    %2207 = vmatpush.bf16.msra.mxu0 %v608
    %2208 = vmatpush.bf16.msra.mxu0 %v602
    %2209 = vmatpush.bf16.msra.mxu0 %v596
    %2210 = vmatpush.bf16.msra.mxu0 %v590
    %2211 = vmatpush.bf16.msra.mxu0 %v584
    %2212 = vmatpush.bf16.msra.mxu0 %v578
    %2213 = vmatmul.bf16.gmra.mxu0 %v2191
    %v2214 = vpop.f32.mrf.mxu0
    %v2215 = vadd.f32 %v2202, %v2214
    %v2216 = vpop.f32.mrf.mxu0
    %2217 = vdwg.mxu0
    %2218 = vmatpush.bf16.msra.mxu0 %v573
    %2219 = vmatpush.bf16.msra.mxu0 %v567
    %2220 = vmatpush.bf16.msra.mxu0 %v561
    %2221 = vmatpush.bf16.msra.mxu0 %v555
    %2222 = vmatpush.bf16.msra.mxu0 %v549
    %2223 = vmatpush.bf16.msra.mxu0 %v543
    %2224 = vmatpush.bf16.msra.mxu0 %v537
    %2225 = vmatpush.bf16.msra.mxu0 %v531
    %2226 = vmatmul.bf16.gmra.mxu0 %v2190
    %v2227 = vpop.f32.mrf.mxu0
    %v2228 = vadd.f32 0.0, %v2227
    %v2229 = vpop.f32.mrf.mxu0
    %2230 = vdwg.mxu0
    %2231 = vmatpush.bf16.msra.mxu0 %v621
    %2232 = vmatpush.bf16.msra.mxu0 %v615
    %2233 = vmatpush.bf16.msra.mxu0 %v609
    %2234 = vmatpush.bf16.msra.mxu0 %v603
    %2235 = vmatpush.bf16.msra.mxu0 %v597
    %2236 = vmatpush.bf16.msra.mxu0 %v591
    %2237 = vmatpush.bf16.msra.mxu0 %v585
    %2238 = vmatpush.bf16.msra.mxu0 %v579
    %2239 = vmatmul.bf16.gmra.mxu0 %v2191
    %v2240 = vpop.f32.mrf.mxu0
    %v2241 = vadd.f32 %v2228, %v2240
    %v2242 = vpop.f32.mrf.mxu0
    %2243 = vdwg.mxu0
    %2244 = vmatpush.bf16.msra.mxu0 %v574
    %2245 = vmatpush.bf16.msra.mxu0 %v568
    %2246 = vmatpush.bf16.msra.mxu0 %v562
    %2247 = vmatpush.bf16.msra.mxu0 %v556
    %2248 = vmatpush.bf16.msra.mxu0 %v550
    %2249 = vmatpush.bf16.msra.mxu0 %v544
    %2250 = vmatpush.bf16.msra.mxu0 %v538
    %2251 = vmatpush.bf16.msra.mxu0 %v532
    %2252 = vmatmul.bf16.gmra.mxu0 %v2190
    %v2253 = vpop.f32.mrf.mxu0
    %v2254 = vadd.f32 0.0, %v2253
    %v2255 = vpop.f32.mrf.mxu0
    %2256 = vdwg.mxu0
    %2257 = vmatpush.bf16.msra.mxu0 %v622
    %2258 = vmatpush.bf16.msra.mxu0 %v616
    %2259 = vmatpush.bf16.msra.mxu0 %v610
    %2260 = vmatpush.bf16.msra.mxu0 %v604
    %2261 = vmatpush.bf16.msra.mxu0 %v598
    %2262 = vmatpush.bf16.msra.mxu0 %v592
    %2263 = vmatpush.bf16.msra.mxu0 %v586
    %2264 = vmatpush.bf16.msra.mxu0 %v580
    %2265 = vmatmul.bf16.gmra.mxu0 %v2191
    %v2266 = vpop.f32.mrf.mxu0
    %v2267 = vadd.f32 %v2254, %v2266
    %v2268 = vpop.f32.mrf.mxu0
    %2269 = vdwg.mxu0
    %2270 = vmatpush.bf16.msra.mxu0 %v575
    %2271 = vmatpush.bf16.msra.mxu0 %v569
    %2272 = vmatpush.bf16.msra.mxu0 %v563
    %2273 = vmatpush.bf16.msra.mxu0 %v557
    %2274 = vmatpush.bf16.msra.mxu0 %v551
    %2275 = vmatpush.bf16.msra.mxu0 %v545
    %2276 = vmatpush.bf16.msra.mxu0 %v539
    %2277 = vmatpush.bf16.msra.mxu0 %v533
    %2278 = vmatmul.bf16.gmra.mxu0 %v2190
    %v2279 = vpop.f32.mrf.mxu0
    %v2280 = vadd.f32 0.0, %v2279
    %v2281 = vpop.f32.mrf.mxu0
    %2282 = vdwg.mxu0
    %2283 = vmatpush.bf16.msra.mxu0 %v623
    %2284 = vmatpush.bf16.msra.mxu0 %v617
    %2285 = vmatpush.bf16.msra.mxu0 %v611
    %2286 = vmatpush.bf16.msra.mxu0 %v605
    %2287 = vmatpush.bf16.msra.mxu0 %v599
    %2288 = vmatpush.bf16.msra.mxu0 %v593
    %2289 = vmatpush.bf16.msra.mxu0 %v587
    %2290 = vmatpush.bf16.msra.mxu0 %v581
    %2291 = vmatmul.bf16.gmra.mxu0 %v2191
    %v2292 = vpop.f32.mrf.mxu0
    %v2293 = vadd.f32 %v2280, %v2292
    %v2294 = vpop.f32.mrf.mxu0
    %2295 = vdwg.mxu0
    %2296 = vmatpush.bf16.msra.mxu0 %v576
    %2297 = vmatpush.bf16.msra.mxu0 %v570
    %2298 = vmatpush.bf16.msra.mxu0 %v564
    %2299 = vmatpush.bf16.msra.mxu0 %v558
    %2300 = vmatpush.bf16.msra.mxu0 %v552
    %2301 = vmatpush.bf16.msra.mxu0 %v546
    %2302 = vmatpush.bf16.msra.mxu0 %v540
    %2303 = vmatpush.bf16.msra.mxu0 %v534
    %2304 = vmatmul.bf16.gmra.mxu0 %v2190
    %v2305 = vpop.f32.mrf.mxu0
    %v2306 = vadd.f32 0.0, %v2305
    %v2307 = vpop.f32.mrf.mxu0
    %2308 = vdwg.mxu0
    %2309 = vmatpush.bf16.msra.mxu0 %v624
    %2310 = vmatpush.bf16.msra.mxu0 %v618
    %2311 = vmatpush.bf16.msra.mxu0 %v612
    %2312 = vmatpush.bf16.msra.mxu0 %v606
    %2313 = vmatpush.bf16.msra.mxu0 %v600
    %2314 = vmatpush.bf16.msra.mxu0 %v594
    %2315 = vmatpush.bf16.msra.mxu0 %v588
    %2316 = vmatpush.bf16.msra.mxu0 %v582
    %2317 = vmatmul.bf16.gmra.mxu0 %v2191
    %v2318 = vpop.f32.mrf.mxu0
    %v2319 = vadd.f32 %v2306, %v2318
    %v2320 = vpop.f32.mrf.mxu0
    %2321 = vdwg.mxu0
    %2322 = vmatpush.bf16.msra.mxu0 %v577
    %2323 = vmatpush.bf16.msra.mxu0 %v571
    %2324 = vmatpush.bf16.msra.mxu0 %v565
    %2325 = vmatpush.bf16.msra.mxu0 %v559
    %2326 = vmatpush.bf16.msra.mxu0 %v553
    %2327 = vmatpush.bf16.msra.mxu0 %v547
    %2328 = vmatpush.bf16.msra.mxu0 %v541
    %2329 = vmatpush.bf16.msra.mxu0 %v535
    %2330 = vmatmul.bf16.gmra.mxu0 %v2190
    %v2331 = vpop.f32.mrf.mxu0
    %v2332 = vadd.f32 0.0, %v2331
    %v2333 = vpop.f32.mrf.mxu0
    %2334 = vdwg.mxu0
    %2335 = vmatpush.bf16.msra.mxu0 %v625
    %2336 = vmatpush.bf16.msra.mxu0 %v619
    %2337 = vmatpush.bf16.msra.mxu0 %v613
    %2338 = vmatpush.bf16.msra.mxu0 %v607
    %2339 = vmatpush.bf16.msra.mxu0 %v601
    %2340 = vmatpush.bf16.msra.mxu0 %v595
    %2341 = vmatpush.bf16.msra.mxu0 %v589
    %2342 = vmatpush.bf16.msra.mxu0 %v583
    %2343 = vmatmul.bf16.gmra.mxu0 %v2191
    %v2344 = vpop.f32.mrf.mxu0
    %v2345 = vadd.f32 %v2332, %v2344
    %v2346 = vpop.f32.mrf.mxu0
    %2347 = vdwg.mxu0
    %v2350 = vrot.slane %v2241, 7
    %v2351 = vsel %vm881, %v2215, %v2350
    %v2353 = vadd.f32 %v2184, %v2351
    %v2354 = vxor.u32 %v2353, 2147483648
    %v2355 = vmul.f32 %v2354, 1.442695
    %v2356 = vpow.pop %v2355
    %v2357 = vadd.f32 %v2356, 1.0
    %v2358 = vrcp.pop %v2357
    %v2359 = vmul.f32 %v2357, %v2358
    %v2360 = vsub.f32 1.0, %v2359
    %v2361 = vmul.f32 %v2358, %v2360
    %v2362 = vadd.f32 %v2358, %v2361
    %vm2363 = vweird.f32 %v2357
    %vm2364 = vweird.f32 %v2358
    %vm2365 = vmor %vm2363, %vm2364
    %v2366 = vsel %vm2365, %v2358, %v2362
    %v2367 = vand.u32 2147483647, %v2357
    %vm2368 = vcmp.eq.f32.partialorder %v2367, 8.507059e+37
    %v2369 = vand.u32 %v2357, 2147483648
    %v2370 = vor.u32 1.1754944e-38, %v2369
    %v2371 = vsel %vm2368, %v2370, %v2366
    %v2372 = vmul.f32 1.0, %v2371
    %v2374 = vrot.slane %v2184, 2
    %v2378 = vrot.slane %v2293, 7
    %v2379 = vsel %vm881, %v2267, %v2378
    %v2381 = vadd.f32 %v2374, %v2379
    %v2382 = vxor.u32 %v2381, 2147483648
    %v2383 = vmul.f32 %v2382, 1.442695
    %v2384 = vpow.pop %v2383
    %v2385 = vadd.f32 %v2384, 1.0
    %v2386 = vrcp.pop %v2385
    %v2387 = vmul.f32 %v2385, %v2386
    %v2388 = vsub.f32 1.0, %v2387
    %v2389 = vmul.f32 %v2386, %v2388
    %v2390 = vadd.f32 %v2386, %v2389
    %vm2391 = vweird.f32 %v2385
    %vm2392 = vweird.f32 %v2386
    %vm2393 = vmor %vm2391, %vm2392
    %v2394 = vsel %vm2393, %v2386, %v2390
    %v2395 = vand.u32 2147483647, %v2385
    %vm2396 = vcmp.eq.f32.partialorder %v2395, 8.507059e+37
    %v2397 = vand.u32 %v2385, 2147483648
    %v2398 = vor.u32 1.1754944e-38, %v2397
    %v2399 = vsel %vm2396, %v2398, %v2394
    %v2400 = vmul.f32 1.0, %v2399
    %v2401 = vadd.f32 %v2319, %v933
    %v2402 = vadd.f32 %v2345, %v934
    %v2405 = vrot.slane %v2402, 7
    %v2406 = vsel %vm881, %v2401, %v2405
    %v2408 = vmul.f32 %v2372, %v2406
    %v2409 = vrot.slane %v2184, 4
    %v2411 = vadd.f32 %v2409, %v2408
    %v2412 = vtanh.pop %v2411
    %v2413 = vsub.f32 1.0, %v2400
    %v2414 = vmul.f32 %v2413, %v2412
    %v2415 = vmul.f32 %v2400, %v2172
    %v2416 = vadd.f32 %v2414, %v2415
    %s2417 = sld [smem:[#allocation6 + $0x7]]
    %s2418 = sshra.s32 %s2417, 3
    %s2419 = sand.u32 %s2417, 7
    %s2420 = sshra.s32 %s2417, 3
    %s2421 = sand.u32 %s2417, 7
    %s2422 = smul.u32 %s2418, 6
    %s2423 = smul.u32 %s2422, 8
    %s2424 = sadd.s32 %s2423, %s2421
    %s2425 = scalar_lea.vmem [#allocation10], %s2424
    %v2426 = vld [vmem:[%s2425] ss:$8 sm:$0xf]
    %v2427 = vld [vmem:[%s2425] ss:$8 sm:$0x30]
    %v2428 = vor.u32 %v2426, %v2427
    %v2430 = vperm.slane %v2416, 0
    %v2431 = vperm.slane %v2416, 1
    %v2434 = vpack.c.bf16 %v2430, %v2430
    %v2435 = vpack.c.bf16 %v2431, %v2431
    %2436 = vmatpush.bf16.msra.mxu0 %v572
    %2437 = vmatpush.bf16.msra.mxu0 %v566
    %2438 = vmatpush.bf16.msra.mxu0 %v560
    %2439 = vmatpush.bf16.msra.mxu0 %v554
    %2440 = vmatpush.bf16.msra.mxu0 %v548
    %2441 = vmatpush.bf16.msra.mxu0 %v542
    %2442 = vmatpush.bf16.msra.mxu0 %v536
    %2443 = vmatpush.bf16.msra.mxu0 %v530
    %2444 = vmatmul.bf16.gmra.mxu0 %v2434
    %v2445 = vpop.f32.mrf.mxu0
    %v2446 = vadd.f32 0.0, %v2445
    %v2447 = vpop.f32.mrf.mxu0
    %2448 = vdwg.mxu0
    %2449 = vmatpush.bf16.msra.mxu0 %v620
    %2450 = vmatpush.bf16.msra.mxu0 %v614
    %2451 = vmatpush.bf16.msra.mxu0 %v608
    %2452 = vmatpush.bf16.msra.mxu0 %v602
    %2453 = vmatpush.bf16.msra.mxu0 %v596
    %2454 = vmatpush.bf16.msra.mxu0 %v590
    %2455 = vmatpush.bf16.msra.mxu0 %v584
    %2456 = vmatpush.bf16.msra.mxu0 %v578
    %2457 = vmatmul.bf16.gmra.mxu0 %v2435
    %v2458 = vpop.f32.mrf.mxu0
    %v2459 = vadd.f32 %v2446, %v2458
    %v2460 = vpop.f32.mrf.mxu0
    %2461 = vdwg.mxu0
    %2462 = vmatpush.bf16.msra.mxu0 %v573
    %2463 = vmatpush.bf16.msra.mxu0 %v567
    %2464 = vmatpush.bf16.msra.mxu0 %v561
    %2465 = vmatpush.bf16.msra.mxu0 %v555
    %2466 = vmatpush.bf16.msra.mxu0 %v549
    %2467 = vmatpush.bf16.msra.mxu0 %v543
    %2468 = vmatpush.bf16.msra.mxu0 %v537
    %2469 = vmatpush.bf16.msra.mxu0 %v531
    %2470 = vmatmul.bf16.gmra.mxu0 %v2434
    %v2471 = vpop.f32.mrf.mxu0
    %v2472 = vadd.f32 0.0, %v2471
    %v2473 = vpop.f32.mrf.mxu0
    %2474 = vdwg.mxu0
    %2475 = vmatpush.bf16.msra.mxu0 %v621
    %2476 = vmatpush.bf16.msra.mxu0 %v615
    %2477 = vmatpush.bf16.msra.mxu0 %v609
    %2478 = vmatpush.bf16.msra.mxu0 %v603
    %2479 = vmatpush.bf16.msra.mxu0 %v597
    %2480 = vmatpush.bf16.msra.mxu0 %v591
    %2481 = vmatpush.bf16.msra.mxu0 %v585
    %2482 = vmatpush.bf16.msra.mxu0 %v579
    %2483 = vmatmul.bf16.gmra.mxu0 %v2435
    %v2484 = vpop.f32.mrf.mxu0
    %v2485 = vadd.f32 %v2472, %v2484
    %v2486 = vpop.f32.mrf.mxu0
    %2487 = vdwg.mxu0
    %2488 = vmatpush.bf16.msra.mxu0 %v574
    %2489 = vmatpush.bf16.msra.mxu0 %v568
    %2490 = vmatpush.bf16.msra.mxu0 %v562
    %2491 = vmatpush.bf16.msra.mxu0 %v556
    %2492 = vmatpush.bf16.msra.mxu0 %v550
    %2493 = vmatpush.bf16.msra.mxu0 %v544
    %2494 = vmatpush.bf16.msra.mxu0 %v538
    %2495 = vmatpush.bf16.msra.mxu0 %v532
    %2496 = vmatmul.bf16.gmra.mxu0 %v2434
    %v2497 = vpop.f32.mrf.mxu0
    %v2498 = vadd.f32 0.0, %v2497
    %v2499 = vpop.f32.mrf.mxu0
    %2500 = vdwg.mxu0
    %2501 = vmatpush.bf16.msra.mxu0 %v622
    %2502 = vmatpush.bf16.msra.mxu0 %v616
    %2503 = vmatpush.bf16.msra.mxu0 %v610
    %2504 = vmatpush.bf16.msra.mxu0 %v604
    %2505 = vmatpush.bf16.msra.mxu0 %v598
    %2506 = vmatpush.bf16.msra.mxu0 %v592
    %2507 = vmatpush.bf16.msra.mxu0 %v586
    %2508 = vmatpush.bf16.msra.mxu0 %v580
    %2509 = vmatmul.bf16.gmra.mxu0 %v2435
    %v2510 = vpop.f32.mrf.mxu0
    %v2511 = vadd.f32 %v2498, %v2510
    %v2512 = vpop.f32.mrf.mxu0
    %2513 = vdwg.mxu0
    %2514 = vmatpush.bf16.msra.mxu0 %v575
    %2515 = vmatpush.bf16.msra.mxu0 %v569
    %2516 = vmatpush.bf16.msra.mxu0 %v563
    %2517 = vmatpush.bf16.msra.mxu0 %v557
    %2518 = vmatpush.bf16.msra.mxu0 %v551
    %2519 = vmatpush.bf16.msra.mxu0 %v545
    %2520 = vmatpush.bf16.msra.mxu0 %v539
    %2521 = vmatpush.bf16.msra.mxu0 %v533
    %2522 = vmatmul.bf16.gmra.mxu0 %v2434
    %v2523 = vpop.f32.mrf.mxu0
    %v2524 = vadd.f32 0.0, %v2523
    %v2525 = vpop.f32.mrf.mxu0
    %2526 = vdwg.mxu0
    %2527 = vmatpush.bf16.msra.mxu0 %v623
    %2528 = vmatpush.bf16.msra.mxu0 %v617
    %2529 = vmatpush.bf16.msra.mxu0 %v611
    %2530 = vmatpush.bf16.msra.mxu0 %v605
    %2531 = vmatpush.bf16.msra.mxu0 %v599
    %2532 = vmatpush.bf16.msra.mxu0 %v593
    %2533 = vmatpush.bf16.msra.mxu0 %v587
    %2534 = vmatpush.bf16.msra.mxu0 %v581
    %2535 = vmatmul.bf16.gmra.mxu0 %v2435
    %v2536 = vpop.f32.mrf.mxu0
    %v2537 = vadd.f32 %v2524, %v2536
    %v2538 = vpop.f32.mrf.mxu0
    %2539 = vdwg.mxu0
    %2540 = vmatpush.bf16.msra.mxu0 %v576
    %2541 = vmatpush.bf16.msra.mxu0 %v570
    %2542 = vmatpush.bf16.msra.mxu0 %v564
    %2543 = vmatpush.bf16.msra.mxu0 %v558
    %2544 = vmatpush.bf16.msra.mxu0 %v552
    %2545 = vmatpush.bf16.msra.mxu0 %v546
    %2546 = vmatpush.bf16.msra.mxu0 %v540
    %2547 = vmatpush.bf16.msra.mxu0 %v534
    %2548 = vmatmul.bf16.gmra.mxu0 %v2434
    %v2549 = vpop.f32.mrf.mxu0
    %v2550 = vadd.f32 0.0, %v2549
    %v2551 = vpop.f32.mrf.mxu0
    %2552 = vdwg.mxu0
    %2553 = vmatpush.bf16.msra.mxu0 %v624
    %2554 = vmatpush.bf16.msra.mxu0 %v618
    %2555 = vmatpush.bf16.msra.mxu0 %v612
    %2556 = vmatpush.bf16.msra.mxu0 %v606
    %2557 = vmatpush.bf16.msra.mxu0 %v600
    %2558 = vmatpush.bf16.msra.mxu0 %v594
    %2559 = vmatpush.bf16.msra.mxu0 %v588
    %2560 = vmatpush.bf16.msra.mxu0 %v582
    %2561 = vmatmul.bf16.gmra.mxu0 %v2435
    %v2562 = vpop.f32.mrf.mxu0
    %v2563 = vadd.f32 %v2550, %v2562
    %v2564 = vpop.f32.mrf.mxu0
    %2565 = vdwg.mxu0
    %2566 = vmatpush.bf16.msra.mxu0 %v577
    %2567 = vmatpush.bf16.msra.mxu0 %v571
    %2568 = vmatpush.bf16.msra.mxu0 %v565
    %2569 = vmatpush.bf16.msra.mxu0 %v559
    %2570 = vmatpush.bf16.msra.mxu0 %v553
    %2571 = vmatpush.bf16.msra.mxu0 %v547
    %2572 = vmatpush.bf16.msra.mxu0 %v541
    %2573 = vmatpush.bf16.msra.mxu0 %v535
    %2574 = vmatmul.bf16.gmra.mxu0 %v2434
    %v2575 = vpop.f32.mrf.mxu0
    %v2576 = vadd.f32 0.0, %v2575
    %v2577 = vpop.f32.mrf.mxu0
    %2578 = vdwg.mxu0
    %2579 = vmatpush.bf16.msra.mxu0 %v625
    %2580 = vmatpush.bf16.msra.mxu0 %v619
    %2581 = vmatpush.bf16.msra.mxu0 %v613
    %2582 = vmatpush.bf16.msra.mxu0 %v607
    %2583 = vmatpush.bf16.msra.mxu0 %v601
    %2584 = vmatpush.bf16.msra.mxu0 %v595
    %2585 = vmatpush.bf16.msra.mxu0 %v589
    %2586 = vmatpush.bf16.msra.mxu0 %v583
    %2587 = vmatmul.bf16.gmra.mxu0 %v2435
    %v2588 = vpop.f32.mrf.mxu0
    %v2589 = vadd.f32 %v2576, %v2588
    %v2590 = vpop.f32.mrf.mxu0
    %2591 = vdwg.mxu0
    %v2594 = vrot.slane %v2485, 7
    %v2595 = vsel %vm881, %v2459, %v2594
    %v2597 = vadd.f32 %v2428, %v2595
    %v2598 = vxor.u32 %v2597, 2147483648
    %v2599 = vmul.f32 %v2598, 1.442695
    %v2600 = vpow.pop %v2599
    %v2601 = vadd.f32 %v2600, 1.0
    %v2602 = vrcp.pop %v2601
    %v2603 = vmul.f32 %v2601, %v2602
    %v2604 = vsub.f32 1.0, %v2603
    %v2605 = vmul.f32 %v2602, %v2604
    %v2606 = vadd.f32 %v2602, %v2605
    %vm2607 = vweird.f32 %v2601
    %vm2608 = vweird.f32 %v2602
    %vm2609 = vmor %vm2607, %vm2608
    %v2610 = vsel %vm2609, %v2602, %v2606
    %v2611 = vand.u32 2147483647, %v2601
    %vm2612 = vcmp.eq.f32.partialorder %v2611, 8.507059e+37
    %v2613 = vand.u32 %v2601, 2147483648
    %v2614 = vor.u32 1.1754944e-38, %v2613
    %v2615 = vsel %vm2612, %v2614, %v2610
    %v2616 = vmul.f32 1.0, %v2615
    %v2618 = vrot.slane %v2428, 2
    %v2622 = vrot.slane %v2537, 7
    %v2623 = vsel %vm881, %v2511, %v2622
    %v2625 = vadd.f32 %v2618, %v2623
    %v2626 = vxor.u32 %v2625, 2147483648
    %v2627 = vmul.f32 %v2626, 1.442695
    %v2628 = vpow.pop %v2627
    %v2629 = vadd.f32 %v2628, 1.0
    %v2630 = vrcp.pop %v2629
    %v2631 = vmul.f32 %v2629, %v2630
    %v2632 = vsub.f32 1.0, %v2631
    %v2633 = vmul.f32 %v2630, %v2632
    %v2634 = vadd.f32 %v2630, %v2633
    %vm2635 = vweird.f32 %v2629
    %vm2636 = vweird.f32 %v2630
    %vm2637 = vmor %vm2635, %vm2636
    %v2638 = vsel %vm2637, %v2630, %v2634
    %v2639 = vand.u32 2147483647, %v2629
    %vm2640 = vcmp.eq.f32.partialorder %v2639, 8.507059e+37
    %v2641 = vand.u32 %v2629, 2147483648
    %v2642 = vor.u32 1.1754944e-38, %v2641
    %v2643 = vsel %vm2640, %v2642, %v2638
    %v2644 = vmul.f32 1.0, %v2643
    %v2645 = vadd.f32 %v2563, %v933
    %v2646 = vadd.f32 %v2589, %v934
    %v2649 = vrot.slane %v2646, 7
    %v2650 = vsel %vm881, %v2645, %v2649
    %v2652 = vmul.f32 %v2616, %v2650
    %v2653 = vrot.slane %v2428, 4
    %v2655 = vadd.f32 %v2653, %v2652
    %v2656 = vtanh.pop %v2655
    %v2657 = vsub.f32 1.0, %v2644
    %v2658 = vmul.f32 %v2657, %v2656
    %v2659 = vmul.f32 %v2644, %v2416
    %v2660 = vadd.f32 %v2658, %v2659
    %v2662 = vperm.slane %v2660, 0
    %v2663 = vperm.slane %v2660, 1
    %v2666 = vsel %vm881, %v966, %v1210
    %v2667 = vsel %vm881, %v967, %v1211
    %vm2668 = vcmask 1041408
    %v2669 = vsel %vm2668, %v2666, %v1454
    %v2670 = vsel %vm2668, %v2667, %v1455
    %vm2671 = vcmask 1042432
    %v2672 = vsel %vm2671, %v2669, %v1698
    %v2673 = vsel %vm2671, %v2670, %v1699
    %vm2674 = vcmask 1043456
    %v2675 = vsel %vm2674, %v2672, %v1942
    %v2676 = vsel %vm2674, %v2673, %v1943
    %vm2677 = vcmask 1044480
    %v2678 = vsel %vm2677, %v2675, %v2186
    %v2679 = vsel %vm2677, %v2676, %v2187
    %vm2680 = vcmask 1045504
    %v2681 = vsel %vm2680, %v2678, %v2430
    %v2682 = vsel %vm2680, %v2679, %v2431
    %vm2683 = vcmask 1046528
    %v2684 = vsel %vm2683, %v2681, %v2662
    %v2685 = vsel %vm2683, %v2682, %v2663
    %s2686 = smul.u32 4, 32
    %s2687 = smul.u32 %s2686, 6
    %s2688 = sshll.u32 %s2687, 4
    %2689 = dma.done [#allocation5], %s2688
    %v2690 = vpack.c.bf16 %v2684, %v2684
    %v2691 = vpack.c.bf16 %v2685, %v2685
    %v2692 = vld [vmem:[#allocation2] sm:$0xff]
    %v2693 = vld [vmem:[#allocation2 + $0x8] sm:$0xff]
    %v2694 = vld [vmem:[#allocation2 + $0x10] sm:$0xff]
    %v2695 = vld [vmem:[#allocation2 + $0x18] sm:$0xff]
    %v2696 = vld [vmem:[#allocation2 + $0x20] sm:$0xff]
    %v2697 = vld [vmem:[#allocation2 + $0x28] sm:$0xff]
    %v2698 = vld [vmem:[#allocation2 + $0x30] sm:$0xff]
    %v2699 = vld [vmem:[#allocation2 + $0x38] sm:$0xff]
    %v2700 = vld [vmem:[#allocation2 + $0x40] sm:$0xff]
    %v2701 = vld [vmem:[#allocation2 + $0x48] sm:$0xff]
    %v2702 = vld [vmem:[#allocation2 + $0x50] sm:$0xff]
    %v2703 = vld [vmem:[#allocation2 + $0x58] sm:$0xff]
    %v2704 = vld [vmem:[#allocation2 + $0x60] sm:$0xff]
    %v2705 = vld [vmem:[#allocation2 + $0x68] sm:$0xff]
    %v2706 = vld [vmem:[#allocation2 + $0x70] sm:$0xff]
    %v2707 = vld [vmem:[#allocation2 + $0x78] sm:$0xff]
    %v2708 = vld [vmem:[#allocation2 + $0x80] sm:$0xff]
    %v2709 = vld [vmem:[#allocation2 + $0x88] sm:$0xff]
    %v2710 = vld [vmem:[#allocation2 + $0x90] sm:$0xff]
    %v2711 = vld [vmem:[#allocation2 + $0x98] sm:$0xff]
    %v2712 = vld [vmem:[#allocation2 + $0xa0] sm:$0xff]
    %v2713 = vld [vmem:[#allocation2 + $0xa8] sm:$0xff]
    %v2714 = vld [vmem:[#allocation2 + $0xb0] sm:$0xff]
    %v2715 = vld [vmem:[#allocation2 + $0xb8] sm:$0xff]
    %v2716 = vld [vmem:[#allocation2 + $0xc0] sm:$0xff]
    %v2717 = vld [vmem:[#allocation2 + $0xc8] sm:$0xff]
    %v2718 = vld [vmem:[#allocation2 + $0xd0] sm:$0xff]
    %v2719 = vld [vmem:[#allocation2 + $0xd8] sm:$0xff]
    %v2720 = vld [vmem:[#allocation2 + $0xe0] sm:$0xff]
    %v2721 = vld [vmem:[#allocation2 + $0xe8] sm:$0xff]
    %v2722 = vld [vmem:[#allocation2 + $0xf0] sm:$0xff]
    %v2723 = vld [vmem:[#allocation2 + $0xf8] sm:$0xff]
    %v2724 = vld [vmem:[#allocation2 + $0x100] sm:$0xff]
    %v2725 = vld [vmem:[#allocation2 + $0x108] sm:$0xff]
    %v2726 = vld [vmem:[#allocation2 + $0x110] sm:$0xff]
    %v2727 = vld [vmem:[#allocation2 + $0x118] sm:$0xff]
    %v2728 = vld [vmem:[#allocation2 + $0x120] sm:$0xff]
    %v2729 = vld [vmem:[#allocation2 + $0x128] sm:$0xff]
    %v2730 = vld [vmem:[#allocation2 + $0x130] sm:$0xff]
    %v2731 = vld [vmem:[#allocation2 + $0x138] sm:$0xff]
    %v2732 = vld [vmem:[#allocation2 + $0x140] sm:$0xff]
    %v2733 = vld [vmem:[#allocation2 + $0x148] sm:$0xff]
    %v2734 = vld [vmem:[#allocation2 + $0x150] sm:$0xff]
    %v2735 = vld [vmem:[#allocation2 + $0x158] sm:$0xff]
    %v2736 = vld [vmem:[#allocation2 + $0x160] sm:$0xff]
    %v2737 = vld [vmem:[#allocation2 + $0x168] sm:$0xff]
    %v2738 = vld [vmem:[#allocation2 + $0x170] sm:$0xff]
    %v2739 = vld [vmem:[#allocation2 + $0x178] sm:$0xff]
    %v2740 = vld [vmem:[#allocation2 + $0x180] sm:$0xff]
    %v2741 = vld [vmem:[#allocation2 + $0x188] sm:$0xff]
    %v2742 = vld [vmem:[#allocation2 + $0x190] sm:$0xff]
    %v2743 = vld [vmem:[#allocation2 + $0x198] sm:$0xff]
    %v2744 = vld [vmem:[#allocation2 + $0x1a0] sm:$0xff]
    %v2745 = vld [vmem:[#allocation2 + $0x1a8] sm:$0xff]
    %v2746 = vld [vmem:[#allocation2 + $0x1b0] sm:$0xff]
    %v2747 = vld [vmem:[#allocation2 + $0x1b8] sm:$0xff]
    %v2748 = vld [vmem:[#allocation2 + $0x1c0] sm:$0xff]
    %v2749 = vld [vmem:[#allocation2 + $0x1c8] sm:$0xff]
    %v2750 = vld [vmem:[#allocation2 + $0x1d0] sm:$0xff]
    %v2751 = vld [vmem:[#allocation2 + $0x1d8] sm:$0xff]
    %v2752 = vld [vmem:[#allocation2 + $0x1e0] sm:$0xff]
    %v2753 = vld [vmem:[#allocation2 + $0x1e8] sm:$0xff]
    %v2754 = vld [vmem:[#allocation2 + $0x1f0] sm:$0xff]
    %v2755 = vld [vmem:[#allocation2 + $0x1f8] sm:$0xff]
    %v2756 = vld [vmem:[#allocation2 + $0x200] sm:$0xff]
    %v2757 = vld [vmem:[#allocation2 + $0x208] sm:$0xff]
    %v2758 = vld [vmem:[#allocation2 + $0x210] sm:$0xff]
    %v2759 = vld [vmem:[#allocation2 + $0x218] sm:$0xff]
    %v2760 = vld [vmem:[#allocation2 + $0x220] sm:$0xff]
    %v2761 = vld [vmem:[#allocation2 + $0x228] sm:$0xff]
    %v2762 = vld [vmem:[#allocation2 + $0x230] sm:$0xff]
    %v2763 = vld [vmem:[#allocation2 + $0x238] sm:$0xff]
    %v2764 = vld [vmem:[#allocation2 + $0x240] sm:$0xff]
    %v2765 = vld [vmem:[#allocation2 + $0x248] sm:$0xff]
    %v2766 = vld [vmem:[#allocation2 + $0x250] sm:$0xff]
    %v2767 = vld [vmem:[#allocation2 + $0x258] sm:$0xff]
    %v2768 = vld [vmem:[#allocation2 + $0x260] sm:$0xff]
    %v2769 = vld [vmem:[#allocation2 + $0x268] sm:$0xff]
    %v2770 = vld [vmem:[#allocation2 + $0x270] sm:$0xff]
    %v2771 = vld [vmem:[#allocation2 + $0x278] sm:$0xff]
    %v2772 = vld [vmem:[#allocation2 + $0x280] sm:$0xff]
    %v2773 = vld [vmem:[#allocation2 + $0x288] sm:$0xff]
    %v2774 = vld [vmem:[#allocation2 + $0x290] sm:$0xff]
    %v2775 = vld [vmem:[#allocation2 + $0x298] sm:$0xff]
    %v2776 = vld [vmem:[#allocation2 + $0x2a0] sm:$0xff]
    %v2777 = vld [vmem:[#allocation2 + $0x2a8] sm:$0xff]
    %v2778 = vld [vmem:[#allocation2 + $0x2b0] sm:$0xff]
    %v2779 = vld [vmem:[#allocation2 + $0x2b8] sm:$0xff]
    %v2780 = vld [vmem:[#allocation2 + $0x2c0] sm:$0xff]
    %v2781 = vld [vmem:[#allocation2 + $0x2c8] sm:$0xff]
    %v2782 = vld [vmem:[#allocation2 + $0x2d0] sm:$0xff]
    %v2783 = vld [vmem:[#allocation2 + $0x2d8] sm:$0xff]
    %v2784 = vld [vmem:[#allocation2 + $0x2e0] sm:$0xff]
    %v2785 = vld [vmem:[#allocation2 + $0x2e8] sm:$0xff]
    %v2786 = vld [vmem:[#allocation2 + $0x2f0] sm:$0xff]
    %v2787 = vld [vmem:[#allocation2 + $0x2f8] sm:$0xff]
    %v2788 = vld [vmem:[%s7] sm:$0x3f]
    %v2790 = vperm.slane %v2788, 0
    %v2791 = vperm.slane %v2788, 1
    %v2792 = vperm.slane %v2788, 2
    %v2793 = vperm.slane %v2788, 3
    %v2794 = vperm.slane %v2788, 4
    %v2795 = vperm.slane %v2788, 5
    %v2898 = vunpack.c.l.b16 %v2692
    %v2899 = vunpack.c.h.b16 %v2692
    %v2900 = vunpack.c.l.b16 %v2693
    %v2901 = vunpack.c.h.b16 %v2693
    %v2902 = vunpack.c.l.b16 %v2694
    %v2903 = vunpack.c.h.b16 %v2694
    %v2904 = vunpack.c.l.b16 %v2695
    %v2905 = vunpack.c.h.b16 %v2695
    %v2906 = vunpack.c.l.b16 %v2696
    %v2907 = vunpack.c.h.b16 %v2696
    %v2908 = vunpack.c.l.b16 %v2697
    %v2909 = vunpack.c.h.b16 %v2697
    %v2910 = vunpack.c.l.b16 %v2698
    %v2911 = vunpack.c.h.b16 %v2698
    %v2912 = vunpack.c.l.b16 %v2699
    %v2913 = vunpack.c.h.b16 %v2699
    %v2914 = vunpack.c.l.b16 %v2700
    %v2915 = vunpack.c.h.b16 %v2700
    %v2916 = vunpack.c.l.b16 %v2701
    %v2917 = vunpack.c.h.b16 %v2701
    %v2918 = vunpack.c.l.b16 %v2702
    %v2919 = vunpack.c.h.b16 %v2702
    %v2920 = vunpack.c.l.b16 %v2703
    %v2921 = vunpack.c.h.b16 %v2703
    %v2922 = vunpack.c.l.b16 %v2704
    %v2923 = vunpack.c.h.b16 %v2704
    %v2924 = vunpack.c.l.b16 %v2705
    %v2925 = vunpack.c.h.b16 %v2705
    %v2926 = vunpack.c.l.b16 %v2706
    %v2927 = vunpack.c.h.b16 %v2706
    %v2928 = vunpack.c.l.b16 %v2707
    %v2929 = vunpack.c.h.b16 %v2707
    %v2930 = vunpack.c.l.b16 %v2708
    %v2931 = vunpack.c.h.b16 %v2708
    %v2932 = vunpack.c.l.b16 %v2709
    %v2933 = vunpack.c.h.b16 %v2709
    %v2934 = vunpack.c.l.b16 %v2710
    %v2935 = vunpack.c.h.b16 %v2710
    %v2936 = vunpack.c.l.b16 %v2711
    %v2937 = vunpack.c.h.b16 %v2711
    %v2938 = vunpack.c.l.b16 %v2712
    %v2939 = vunpack.c.h.b16 %v2712
    %v2940 = vunpack.c.l.b16 %v2713
    %v2941 = vunpack.c.h.b16 %v2713
    %v2942 = vunpack.c.l.b16 %v2714
    %v2943 = vunpack.c.h.b16 %v2714
    %v2944 = vunpack.c.l.b16 %v2715
    %v2945 = vunpack.c.h.b16 %v2715
    %v2946 = vunpack.c.l.b16 %v2716
    %v2947 = vunpack.c.h.b16 %v2716
    %v2948 = vunpack.c.l.b16 %v2717
    %v2949 = vunpack.c.h.b16 %v2717
    %v2950 = vunpack.c.l.b16 %v2718
    %v2951 = vunpack.c.h.b16 %v2718
    %v2952 = vunpack.c.l.b16 %v2719
    %v2953 = vunpack.c.h.b16 %v2719
    %v2954 = vunpack.c.l.b16 %v2720
    %v2955 = vunpack.c.h.b16 %v2720
    %v2956 = vunpack.c.l.b16 %v2721
    %v2957 = vunpack.c.h.b16 %v2721
    %v2958 = vunpack.c.l.b16 %v2722
    %v2959 = vunpack.c.h.b16 %v2722
    %v2960 = vunpack.c.l.b16 %v2723
    %v2961 = vunpack.c.h.b16 %v2723
    %v2962 = vunpack.c.l.b16 %v2724
    %v2963 = vunpack.c.h.b16 %v2724
    %v2964 = vunpack.c.l.b16 %v2725
    %v2965 = vunpack.c.h.b16 %v2725
    %v2966 = vunpack.c.l.b16 %v2726
    %v2967 = vunpack.c.h.b16 %v2726
    %v2968 = vunpack.c.l.b16 %v2727
    %v2969 = vunpack.c.h.b16 %v2727
    %v2970 = vunpack.c.l.b16 %v2728
    %v2971 = vunpack.c.h.b16 %v2728
    %v2972 = vunpack.c.l.b16 %v2729
    %v2973 = vunpack.c.h.b16 %v2729
    %v2974 = vunpack.c.l.b16 %v2730
    %v2975 = vunpack.c.h.b16 %v2730
    %v2976 = vunpack.c.l.b16 %v2731
    %v2977 = vunpack.c.h.b16 %v2731
    %v2978 = vunpack.c.l.b16 %v2732
    %v2979 = vunpack.c.h.b16 %v2732
    %v2980 = vunpack.c.l.b16 %v2733
    %v2981 = vunpack.c.h.b16 %v2733
    %v2982 = vunpack.c.l.b16 %v2734
    %v2983 = vunpack.c.h.b16 %v2734
    %v2984 = vunpack.c.l.b16 %v2735
    %v2985 = vunpack.c.h.b16 %v2735
    %v2986 = vunpack.c.l.b16 %v2736
    %v2987 = vunpack.c.h.b16 %v2736
    %v2988 = vunpack.c.l.b16 %v2737
    %v2989 = vunpack.c.h.b16 %v2737
    %v2990 = vunpack.c.l.b16 %v2738
    %v2991 = vunpack.c.h.b16 %v2738
    %v2992 = vunpack.c.l.b16 %v2739
    %v2993 = vunpack.c.h.b16 %v2739
    %v2994 = vunpack.c.l.b16 %v2740
    %v2995 = vunpack.c.h.b16 %v2740
    %v2996 = vunpack.c.l.b16 %v2741
    %v2997 = vunpack.c.h.b16 %v2741
    %v2998 = vunpack.c.l.b16 %v2742
    %v2999 = vunpack.c.h.b16 %v2742
    %v3000 = vunpack.c.l.b16 %v2743
    %v3001 = vunpack.c.h.b16 %v2743
    %v3002 = vunpack.c.l.b16 %v2744
    %v3003 = vunpack.c.h.b16 %v2744
    %v3004 = vunpack.c.l.b16 %v2745
    %v3005 = vunpack.c.h.b16 %v2745
    %v3006 = vunpack.c.l.b16 %v2746
    %v3007 = vunpack.c.h.b16 %v2746
    %v3008 = vunpack.c.l.b16 %v2747
    %v3009 = vunpack.c.h.b16 %v2747
    %v3010 = vunpack.c.l.b16 %v2748
    %v3011 = vunpack.c.h.b16 %v2748
    %v3012 = vunpack.c.l.b16 %v2749
    %v3013 = vunpack.c.h.b16 %v2749
    %v3014 = vunpack.c.l.b16 %v2750
    %v3015 = vunpack.c.h.b16 %v2750
    %v3016 = vunpack.c.l.b16 %v2751
    %v3017 = vunpack.c.h.b16 %v2751
    %v3018 = vunpack.c.l.b16 %v2752
    %v3019 = vunpack.c.h.b16 %v2752
    %v3020 = vunpack.c.l.b16 %v2753
    %v3021 = vunpack.c.h.b16 %v2753
    %v3022 = vunpack.c.l.b16 %v2754
    %v3023 = vunpack.c.h.b16 %v2754
    %v3024 = vunpack.c.l.b16 %v2755
    %v3025 = vunpack.c.h.b16 %v2755
    %v3026 = vunpack.c.l.b16 %v2756
    %v3027 = vunpack.c.h.b16 %v2756
    %v3028 = vunpack.c.l.b16 %v2757
    %v3029 = vunpack.c.h.b16 %v2757
    %v3030 = vunpack.c.l.b16 %v2758
    %v3031 = vunpack.c.h.b16 %v2758
    %v3032 = vunpack.c.l.b16 %v2759
    %v3033 = vunpack.c.h.b16 %v2759
    %v3034 = vunpack.c.l.b16 %v2760
    %v3035 = vunpack.c.h.b16 %v2760
    %v3036 = vunpack.c.l.b16 %v2761
    %v3037 = vunpack.c.h.b16 %v2761
    %v3038 = vunpack.c.l.b16 %v2762
    %v3039 = vunpack.c.h.b16 %v2762
    %v3040 = vunpack.c.l.b16 %v2763
    %v3041 = vunpack.c.h.b16 %v2763
    %v3042 = vunpack.c.l.b16 %v2764
    %v3043 = vunpack.c.h.b16 %v2764
    %v3044 = vunpack.c.l.b16 %v2765
    %v3045 = vunpack.c.h.b16 %v2765
    %v3046 = vunpack.c.l.b16 %v2766
    %v3047 = vunpack.c.h.b16 %v2766
    %v3048 = vunpack.c.l.b16 %v2767
    %v3049 = vunpack.c.h.b16 %v2767
    %v3050 = vunpack.c.l.b16 %v2768
    %v3051 = vunpack.c.h.b16 %v2768
    %v3052 = vunpack.c.l.b16 %v2769
    %v3053 = vunpack.c.h.b16 %v2769
    %v3054 = vunpack.c.l.b16 %v2770
    %v3055 = vunpack.c.h.b16 %v2770
    %v3056 = vunpack.c.l.b16 %v2771
    %v3057 = vunpack.c.h.b16 %v2771
    %v3058 = vunpack.c.l.b16 %v2772
    %v3059 = vunpack.c.h.b16 %v2772
    %v3060 = vunpack.c.l.b16 %v2773
    %v3061 = vunpack.c.h.b16 %v2773
    %v3062 = vunpack.c.l.b16 %v2774
    %v3063 = vunpack.c.h.b16 %v2774
    %v3064 = vunpack.c.l.b16 %v2775
    %v3065 = vunpack.c.h.b16 %v2775
    %v3066 = vunpack.c.l.b16 %v2776
    %v3067 = vunpack.c.h.b16 %v2776
    %v3068 = vunpack.c.l.b16 %v2777
    %v3069 = vunpack.c.h.b16 %v2777
    %v3070 = vunpack.c.l.b16 %v2778
    %v3071 = vunpack.c.h.b16 %v2778
    %v3072 = vunpack.c.l.b16 %v2779
    %v3073 = vunpack.c.h.b16 %v2779
    %v3074 = vunpack.c.l.b16 %v2780
    %v3075 = vunpack.c.h.b16 %v2780
    %v3076 = vunpack.c.l.b16 %v2781
    %v3077 = vunpack.c.h.b16 %v2781
    %v3078 = vunpack.c.l.b16 %v2782
    %v3079 = vunpack.c.h.b16 %v2782
    %v3080 = vunpack.c.l.b16 %v2783
    %v3081 = vunpack.c.h.b16 %v2783
    %v3082 = vunpack.c.l.b16 %v2784
    %v3083 = vunpack.c.h.b16 %v2784
    %v3084 = vunpack.c.l.b16 %v2785
    %v3085 = vunpack.c.h.b16 %v2785
    %v3086 = vunpack.c.l.b16 %v2786
    %v3087 = vunpack.c.h.b16 %v2786
    %v3088 = vunpack.c.l.b16 %v2787
    %v3089 = vunpack.c.h.b16 %v2787
    %v3090 = vpack.c.b16 %v2904, %v2898
    %v3091 = vpack.c.b16 %v2905, %v2899
    %v3092 = vpack.c.b16 %v2906, %v2900
    %v3093 = vpack.c.b16 %v2907, %v2901
    %v3094 = vpack.c.b16 %v2908, %v2902
    %v3095 = vpack.c.b16 %v2909, %v2903
    %v3096 = vpack.c.b16 %v2916, %v2910
    %v3097 = vpack.c.b16 %v2917, %v2911
    %v3098 = vpack.c.b16 %v2918, %v2912
    %v3099 = vpack.c.b16 %v2919, %v2913
    %v3100 = vpack.c.b16 %v2920, %v2914
    %v3101 = vpack.c.b16 %v2921, %v2915
    %v3102 = vpack.c.b16 %v2928, %v2922
    %v3103 = vpack.c.b16 %v2929, %v2923
    %v3104 = vpack.c.b16 %v2930, %v2924
    %v3105 = vpack.c.b16 %v2931, %v2925
    %v3106 = vpack.c.b16 %v2932, %v2926
    %v3107 = vpack.c.b16 %v2933, %v2927
    %v3108 = vpack.c.b16 %v2940, %v2934
    %v3109 = vpack.c.b16 %v2941, %v2935
    %v3110 = vpack.c.b16 %v2942, %v2936
    %v3111 = vpack.c.b16 %v2943, %v2937
    %v3112 = vpack.c.b16 %v2944, %v2938
    %v3113 = vpack.c.b16 %v2945, %v2939
    %v3114 = vpack.c.b16 %v2952, %v2946
    %v3115 = vpack.c.b16 %v2953, %v2947
    %v3116 = vpack.c.b16 %v2954, %v2948
    %v3117 = vpack.c.b16 %v2955, %v2949
    %v3118 = vpack.c.b16 %v2956, %v2950
    %v3119 = vpack.c.b16 %v2957, %v2951
    %v3120 = vpack.c.b16 %v2964, %v2958
    %v3121 = vpack.c.b16 %v2965, %v2959
    %v3122 = vpack.c.b16 %v2966, %v2960
    %v3123 = vpack.c.b16 %v2967, %v2961
    %v3124 = vpack.c.b16 %v2968, %v2962
    %v3125 = vpack.c.b16 %v2969, %v2963
    %v3126 = vpack.c.b16 %v2976, %v2970
    %v3127 = vpack.c.b16 %v2977, %v2971
    %v3128 = vpack.c.b16 %v2978, %v2972
    %v3129 = vpack.c.b16 %v2979, %v2973
    %v3130 = vpack.c.b16 %v2980, %v2974
    %v3131 = vpack.c.b16 %v2981, %v2975
    %v3132 = vpack.c.b16 %v2988, %v2982
    %v3133 = vpack.c.b16 %v2989, %v2983
    %v3134 = vpack.c.b16 %v2990, %v2984
    %v3135 = vpack.c.b16 %v2991, %v2985
    %v3136 = vpack.c.b16 %v2992, %v2986
    %v3137 = vpack.c.b16 %v2993, %v2987
    %v3138 = vpack.c.b16 %v3000, %v2994
    %v3139 = vpack.c.b16 %v3001, %v2995
    %v3140 = vpack.c.b16 %v3002, %v2996
    %v3141 = vpack.c.b16 %v3003, %v2997
    %v3142 = vpack.c.b16 %v3004, %v2998
    %v3143 = vpack.c.b16 %v3005, %v2999
    %v3144 = vpack.c.b16 %v3012, %v3006
    %v3145 = vpack.c.b16 %v3013, %v3007
    %v3146 = vpack.c.b16 %v3014, %v3008
    %v3147 = vpack.c.b16 %v3015, %v3009
    %v3148 = vpack.c.b16 %v3016, %v3010
    %v3149 = vpack.c.b16 %v3017, %v3011
    %v3150 = vpack.c.b16 %v3024, %v3018
    %v3151 = vpack.c.b16 %v3025, %v3019
    %v3152 = vpack.c.b16 %v3026, %v3020
    %v3153 = vpack.c.b16 %v3027, %v3021
    %v3154 = vpack.c.b16 %v3028, %v3022
    %v3155 = vpack.c.b16 %v3029, %v3023
    %v3156 = vpack.c.b16 %v3036, %v3030
    %v3157 = vpack.c.b16 %v3037, %v3031
    %v3158 = vpack.c.b16 %v3038, %v3032
    %v3159 = vpack.c.b16 %v3039, %v3033
    %v3160 = vpack.c.b16 %v3040, %v3034
    %v3161 = vpack.c.b16 %v3041, %v3035
    %v3162 = vpack.c.b16 %v3048, %v3042
    %v3163 = vpack.c.b16 %v3049, %v3043
    %v3164 = vpack.c.b16 %v3050, %v3044
    %v3165 = vpack.c.b16 %v3051, %v3045
    %v3166 = vpack.c.b16 %v3052, %v3046
    %v3167 = vpack.c.b16 %v3053, %v3047
    %v3168 = vpack.c.b16 %v3060, %v3054
    %v3169 = vpack.c.b16 %v3061, %v3055
    %v3170 = vpack.c.b16 %v3062, %v3056
    %v3171 = vpack.c.b16 %v3063, %v3057
    %v3172 = vpack.c.b16 %v3064, %v3058
    %v3173 = vpack.c.b16 %v3065, %v3059
    %v3174 = vpack.c.b16 %v3072, %v3066
    %v3175 = vpack.c.b16 %v3073, %v3067
    %v3176 = vpack.c.b16 %v3074, %v3068
    %v3177 = vpack.c.b16 %v3075, %v3069
    %v3178 = vpack.c.b16 %v3076, %v3070
    %v3179 = vpack.c.b16 %v3077, %v3071
    %v3180 = vpack.c.b16 %v3084, %v3078
    %v3181 = vpack.c.b16 %v3085, %v3079
    %v3182 = vpack.c.b16 %v3086, %v3080
    %v3183 = vpack.c.b16 %v3087, %v3081
    %v3184 = vpack.c.b16 %v3088, %v3082
    %v3185 = vpack.c.b16 %v3089, %v3083
    %3282 = vmatpush.bf16.msra.mxu0 %v3132
    %3283 = vmatpush.bf16.msra.mxu0 %v3126
    %3284 = vmatpush.bf16.msra.mxu0 %v3120
    %3285 = vmatpush.bf16.msra.mxu0 %v3114
    %3286 = vmatpush.bf16.msra.mxu0 %v3108
    %3287 = vmatpush.bf16.msra.mxu0 %v3102
    %3288 = vmatpush.bf16.msra.mxu0 %v3096
    %3289 = vmatpush.bf16.msra.mxu0 %v3090
    %3290 = vmatmul.bf16.gmra.mxu0 %v2690
    %v3291 = vpop.f32.mrf.mxu0
    %v3292 = vadd.f32 %v2790, %v3291
    %v3293 = vpop.f32.mrf.mxu0
    %3294 = vdwg.mxu0
    %3295 = vmatpush.bf16.msra.mxu0 %v3180
    %3296 = vmatpush.bf16.msra.mxu0 %v3174
    %3297 = vmatpush.bf16.msra.mxu0 %v3168
    %3298 = vmatpush.bf16.msra.mxu0 %v3162
    %3299 = vmatpush.bf16.msra.mxu0 %v3156
    %3300 = vmatpush.bf16.msra.mxu0 %v3150
    %3301 = vmatpush.bf16.msra.mxu0 %v3144
    %3302 = vmatpush.bf16.msra.mxu0 %v3138
    %3303 = vmatmul.bf16.gmra.mxu0 %v2691
    %v3304 = vpop.f32.mrf.mxu0
    %v3305 = vadd.f32 %v3292, %v3304
    %v3306 = vpop.f32.mrf.mxu0
    %3307 = vdwg.mxu0
    %3308 = vmatpush.bf16.msra.mxu0 %v3133
    %3309 = vmatpush.bf16.msra.mxu0 %v3127
    %3310 = vmatpush.bf16.msra.mxu0 %v3121
    %3311 = vmatpush.bf16.msra.mxu0 %v3115
    %3312 = vmatpush.bf16.msra.mxu0 %v3109
    %3313 = vmatpush.bf16.msra.mxu0 %v3103
    %3314 = vmatpush.bf16.msra.mxu0 %v3097
    %3315 = vmatpush.bf16.msra.mxu0 %v3091
    %3316 = vmatmul.bf16.gmra.mxu0 %v2690
    %v3317 = vpop.f32.mrf.mxu0
    %v3318 = vadd.f32 %v2791, %v3317
    %v3319 = vpop.f32.mrf.mxu0
    %3320 = vdwg.mxu0
    %3321 = vmatpush.bf16.msra.mxu0 %v3181
    %3322 = vmatpush.bf16.msra.mxu0 %v3175
    %3323 = vmatpush.bf16.msra.mxu0 %v3169
    %3324 = vmatpush.bf16.msra.mxu0 %v3163
    %3325 = vmatpush.bf16.msra.mxu0 %v3157
    %3326 = vmatpush.bf16.msra.mxu0 %v3151
    %3327 = vmatpush.bf16.msra.mxu0 %v3145
    %3328 = vmatpush.bf16.msra.mxu0 %v3139
    %3329 = vmatmul.bf16.gmra.mxu0 %v2691
    %v3330 = vpop.f32.mrf.mxu0
    %v3331 = vadd.f32 %v3318, %v3330
    %v3332 = vpop.f32.mrf.mxu0
    %3333 = vdwg.mxu0
    %3334 = vmatpush.bf16.msra.mxu0 %v3134
    %3335 = vmatpush.bf16.msra.mxu0 %v3128
    %3336 = vmatpush.bf16.msra.mxu0 %v3122
    %3337 = vmatpush.bf16.msra.mxu0 %v3116
    %3338 = vmatpush.bf16.msra.mxu0 %v3110
    %3339 = vmatpush.bf16.msra.mxu0 %v3104
    %3340 = vmatpush.bf16.msra.mxu0 %v3098
    %3341 = vmatpush.bf16.msra.mxu0 %v3092
    %3342 = vmatmul.bf16.gmra.mxu0 %v2690
    %v3343 = vpop.f32.mrf.mxu0
    %v3344 = vadd.f32 %v2792, %v3343
    %v3345 = vpop.f32.mrf.mxu0
    %3346 = vdwg.mxu0
    %3347 = vmatpush.bf16.msra.mxu0 %v3182
    %3348 = vmatpush.bf16.msra.mxu0 %v3176
    %3349 = vmatpush.bf16.msra.mxu0 %v3170
    %3350 = vmatpush.bf16.msra.mxu0 %v3164
    %3351 = vmatpush.bf16.msra.mxu0 %v3158
    %3352 = vmatpush.bf16.msra.mxu0 %v3152
    %3353 = vmatpush.bf16.msra.mxu0 %v3146
    %3354 = vmatpush.bf16.msra.mxu0 %v3140
    %3355 = vmatmul.bf16.gmra.mxu0 %v2691
    %v3356 = vpop.f32.mrf.mxu0
    %v3357 = vadd.f32 %v3344, %v3356
    %v3358 = vpop.f32.mrf.mxu0
    %3359 = vdwg.mxu0
    %3360 = vmatpush.bf16.msra.mxu0 %v3135
    %3361 = vmatpush.bf16.msra.mxu0 %v3129
    %3362 = vmatpush.bf16.msra.mxu0 %v3123
    %3363 = vmatpush.bf16.msra.mxu0 %v3117
    %3364 = vmatpush.bf16.msra.mxu0 %v3111
    %3365 = vmatpush.bf16.msra.mxu0 %v3105
    %3366 = vmatpush.bf16.msra.mxu0 %v3099
    %3367 = vmatpush.bf16.msra.mxu0 %v3093
    %3368 = vmatmul.bf16.gmra.mxu0 %v2690
    %v3369 = vpop.f32.mrf.mxu0
    %v3370 = vadd.f32 %v2793, %v3369
    %v3371 = vpop.f32.mrf.mxu0
    %3372 = vdwg.mxu0
    %3373 = vmatpush.bf16.msra.mxu0 %v3183
    %3374 = vmatpush.bf16.msra.mxu0 %v3177
    %3375 = vmatpush.bf16.msra.mxu0 %v3171
    %3376 = vmatpush.bf16.msra.mxu0 %v3165
    %3377 = vmatpush.bf16.msra.mxu0 %v3159
    %3378 = vmatpush.bf16.msra.mxu0 %v3153
    %3379 = vmatpush.bf16.msra.mxu0 %v3147
    %3380 = vmatpush.bf16.msra.mxu0 %v3141
    %3381 = vmatmul.bf16.gmra.mxu0 %v2691
    %v3382 = vpop.f32.mrf.mxu0
    %v3383 = vadd.f32 %v3370, %v3382
    %v3384 = vpop.f32.mrf.mxu0
    %3385 = vdwg.mxu0
    %3386 = vmatpush.bf16.msra.mxu0 %v3136
    %3387 = vmatpush.bf16.msra.mxu0 %v3130
    %3388 = vmatpush.bf16.msra.mxu0 %v3124
    %3389 = vmatpush.bf16.msra.mxu0 %v3118
    %3390 = vmatpush.bf16.msra.mxu0 %v3112
    %3391 = vmatpush.bf16.msra.mxu0 %v3106
    %3392 = vmatpush.bf16.msra.mxu0 %v3100
    %3393 = vmatpush.bf16.msra.mxu0 %v3094
    %3394 = vmatmul.bf16.gmra.mxu0 %v2690
    %v3395 = vpop.f32.mrf.mxu0
    %v3396 = vadd.f32 %v2794, %v3395
    %v3397 = vpop.f32.mrf.mxu0
    %3398 = vdwg.mxu0
    %3399 = vmatpush.bf16.msra.mxu0 %v3184
    %3400 = vmatpush.bf16.msra.mxu0 %v3178
    %3401 = vmatpush.bf16.msra.mxu0 %v3172
    %3402 = vmatpush.bf16.msra.mxu0 %v3166
    %3403 = vmatpush.bf16.msra.mxu0 %v3160
    %3404 = vmatpush.bf16.msra.mxu0 %v3154
    %3405 = vmatpush.bf16.msra.mxu0 %v3148
    %3406 = vmatpush.bf16.msra.mxu0 %v3142
    %3407 = vmatmul.bf16.gmra.mxu0 %v2691
    %v3408 = vpop.f32.mrf.mxu0
    %v3409 = vadd.f32 %v3396, %v3408
    %v3410 = vpop.f32.mrf.mxu0
    %3411 = vdwg.mxu0
    %3412 = vmatpush.bf16.msra.mxu0 %v3137
    %3413 = vmatpush.bf16.msra.mxu0 %v3131
    %3414 = vmatpush.bf16.msra.mxu0 %v3125
    %3415 = vmatpush.bf16.msra.mxu0 %v3119
    %3416 = vmatpush.bf16.msra.mxu0 %v3113
    %3417 = vmatpush.bf16.msra.mxu0 %v3107
    %3418 = vmatpush.bf16.msra.mxu0 %v3101
    %3419 = vmatpush.bf16.msra.mxu0 %v3095
    %3420 = vmatmul.bf16.gmra.mxu0 %v2690
    %v3421 = vpop.f32.mrf.mxu0
    %v3422 = vadd.f32 %v2795, %v3421
    %v3423 = vpop.f32.mrf.mxu0
    %3424 = vdwg.mxu0
    %3425 = vmatpush.bf16.msra.mxu0 %v3185
    %3426 = vmatpush.bf16.msra.mxu0 %v3179
    %3427 = vmatpush.bf16.msra.mxu0 %v3173
    %3428 = vmatpush.bf16.msra.mxu0 %v3167
    %3429 = vmatpush.bf16.msra.mxu0 %v3161
    %3430 = vmatpush.bf16.msra.mxu0 %v3155
    %3431 = vmatpush.bf16.msra.mxu0 %v3149
    %3432 = vmatpush.bf16.msra.mxu0 %v3143
    %3433 = vmatmul.bf16.gmra.mxu0 %v2691
    %v3434 = vpop.f32.mrf.mxu0
    %v3435 = vadd.f32 %v3422, %v3434
    %v3436 = vpop.f32.mrf.mxu0
    %3437 = vdwg.mxu0
    %s3438 = sshll.u32 %s2687, 4
    %3439 = dma.done %s97, %s3438
    %s3440 = scalar_lea.vmem %s4, 1
    %v3441 = vld [vmem:[%s3440] ss:$2 sm:$0x3]
    %v3442 = vld [vmem:[%s8] sm:$0x3]
    %v3444 = vperm.slane %v3441, 0
    %v3445 = vperm.slane %v3441, 1
    %v3448 = vpack.c.bf16 %v3444, %v3444
    %v3449 = vpack.c.bf16 %v3445, %v3445
    %v3450 = vld [vmem:[#allocation3] sm:$0xff]
    %v3451 = vld [vmem:[#allocation3 + $0x8] sm:$0xff]
    %v3452 = vld [vmem:[#allocation3 + $0x10] sm:$0xff]
    %v3453 = vld [vmem:[#allocation3 + $0x18] sm:$0xff]
    %v3454 = vld [vmem:[#allocation3 + $0x20] sm:$0xff]
    %v3455 = vld [vmem:[#allocation3 + $0x28] sm:$0xff]
    %v3456 = vld [vmem:[#allocation3 + $0x30] sm:$0xff]
    %v3457 = vld [vmem:[#allocation3 + $0x38] sm:$0xff]
    %v3458 = vld [vmem:[#allocation3 + $0x40] sm:$0xff]
    %v3459 = vld [vmem:[#allocation3 + $0x48] sm:$0xff]
    %v3460 = vld [vmem:[#allocation3 + $0x50] sm:$0xff]
    %v3461 = vld [vmem:[#allocation3 + $0x58] sm:$0xff]
    %v3462 = vld [vmem:[#allocation3 + $0x60] sm:$0xff]
    %v3463 = vld [vmem:[#allocation3 + $0x68] sm:$0xff]
    %v3464 = vld [vmem:[#allocation3 + $0x70] sm:$0xff]
    %v3465 = vld [vmem:[#allocation3 + $0x78] sm:$0xff]
    %v3466 = vld [vmem:[#allocation3 + $0x80] sm:$0xff]
    %v3467 = vld [vmem:[#allocation3 + $0x88] sm:$0xff]
    %v3468 = vld [vmem:[#allocation3 + $0x90] sm:$0xff]
    %v3469 = vld [vmem:[#allocation3 + $0x98] sm:$0xff]
    %v3470 = vld [vmem:[#allocation3 + $0xa0] sm:$0xff]
    %v3471 = vld [vmem:[#allocation3 + $0xa8] sm:$0xff]
    %v3472 = vld [vmem:[#allocation3 + $0xb0] sm:$0xff]
    %v3473 = vld [vmem:[#allocation3 + $0xb8] sm:$0xff]
    %v3474 = vld [vmem:[#allocation3 + $0xc0] sm:$0xff]
    %v3475 = vld [vmem:[#allocation3 + $0xc8] sm:$0xff]
    %v3476 = vld [vmem:[#allocation3 + $0xd0] sm:$0xff]
    %v3477 = vld [vmem:[#allocation3 + $0xd8] sm:$0xff]
    %v3478 = vld [vmem:[#allocation3 + $0xe0] sm:$0xff]
    %v3479 = vld [vmem:[#allocation3 + $0xe8] sm:$0xff]
    %v3480 = vld [vmem:[#allocation3 + $0xf0] sm:$0xff]
    %v3481 = vld [vmem:[#allocation3 + $0xf8] sm:$0xff]
    %v3482 = vld [vmem:[#allocation3 + $0x100] sm:$0xff]
    %v3483 = vld [vmem:[#allocation3 + $0x108] sm:$0xff]
    %v3484 = vld [vmem:[#allocation3 + $0x110] sm:$0xff]
    %v3485 = vld [vmem:[#allocation3 + $0x118] sm:$0xff]
    %v3486 = vld [vmem:[#allocation3 + $0x120] sm:$0xff]
    %v3487 = vld [vmem:[#allocation3 + $0x128] sm:$0xff]
    %v3488 = vld [vmem:[#allocation3 + $0x130] sm:$0xff]
    %v3489 = vld [vmem:[#allocation3 + $0x138] sm:$0xff]
    %v3490 = vld [vmem:[#allocation3 + $0x140] sm:$0xff]
    %v3491 = vld [vmem:[#allocation3 + $0x148] sm:$0xff]
    %v3492 = vld [vmem:[#allocation3 + $0x150] sm:$0xff]
    %v3493 = vld [vmem:[#allocation3 + $0x158] sm:$0xff]
    %v3494 = vld [vmem:[#allocation3 + $0x160] sm:$0xff]
    %v3495 = vld [vmem:[#allocation3 + $0x168] sm:$0xff]
    %v3496 = vld [vmem:[#allocation3 + $0x170] sm:$0xff]
    %v3497 = vld [vmem:[#allocation3 + $0x178] sm:$0xff]
    %v3498 = vld [vmem:[#allocation3 + $0x180] sm:$0xff]
    %v3499 = vld [vmem:[#allocation3 + $0x188] sm:$0xff]
    %v3500 = vld [vmem:[#allocation3 + $0x190] sm:$0xff]
    %v3501 = vld [vmem:[#allocation3 + $0x198] sm:$0xff]
    %v3502 = vld [vmem:[#allocation3 + $0x1a0] sm:$0xff]
    %v3503 = vld [vmem:[#allocation3 + $0x1a8] sm:$0xff]
    %v3504 = vld [vmem:[#allocation3 + $0x1b0] sm:$0xff]
    %v3505 = vld [vmem:[#allocation3 + $0x1b8] sm:$0xff]
    %v3506 = vld [vmem:[#allocation3 + $0x1c0] sm:$0xff]
    %v3507 = vld [vmem:[#allocation3 + $0x1c8] sm:$0xff]
    %v3508 = vld [vmem:[#allocation3 + $0x1d0] sm:$0xff]
    %v3509 = vld [vmem:[#allocation3 + $0x1d8] sm:$0xff]
    %v3510 = vld [vmem:[#allocation3 + $0x1e0] sm:$0xff]
    %v3511 = vld [vmem:[#allocation3 + $0x1e8] sm:$0xff]
    %v3512 = vld [vmem:[#allocation3 + $0x1f0] sm:$0xff]
    %v3513 = vld [vmem:[#allocation3 + $0x1f8] sm:$0xff]
    %v3514 = vld [vmem:[#allocation3 + $0x200] sm:$0xff]
    %v3515 = vld [vmem:[#allocation3 + $0x208] sm:$0xff]
    %v3516 = vld [vmem:[#allocation3 + $0x210] sm:$0xff]
    %v3517 = vld [vmem:[#allocation3 + $0x218] sm:$0xff]
    %v3518 = vld [vmem:[#allocation3 + $0x220] sm:$0xff]
    %v3519 = vld [vmem:[#allocation3 + $0x228] sm:$0xff]
    %v3520 = vld [vmem:[#allocation3 + $0x230] sm:$0xff]
    %v3521 = vld [vmem:[#allocation3 + $0x238] sm:$0xff]
    %v3522 = vld [vmem:[#allocation3 + $0x240] sm:$0xff]
    %v3523 = vld [vmem:[#allocation3 + $0x248] sm:$0xff]
    %v3524 = vld [vmem:[#allocation3 + $0x250] sm:$0xff]
    %v3525 = vld [vmem:[#allocation3 + $0x258] sm:$0xff]
    %v3526 = vld [vmem:[#allocation3 + $0x260] sm:$0xff]
    %v3527 = vld [vmem:[#allocation3 + $0x268] sm:$0xff]
    %v3528 = vld [vmem:[#allocation3 + $0x270] sm:$0xff]
    %v3529 = vld [vmem:[#allocation3 + $0x278] sm:$0xff]
    %v3530 = vld [vmem:[#allocation3 + $0x280] sm:$0xff]
    %v3531 = vld [vmem:[#allocation3 + $0x288] sm:$0xff]
    %v3532 = vld [vmem:[#allocation3 + $0x290] sm:$0xff]
    %v3533 = vld [vmem:[#allocation3 + $0x298] sm:$0xff]
    %v3534 = vld [vmem:[#allocation3 + $0x2a0] sm:$0xff]
    %v3535 = vld [vmem:[#allocation3 + $0x2a8] sm:$0xff]
    %v3536 = vld [vmem:[#allocation3 + $0x2b0] sm:$0xff]
    %v3537 = vld [vmem:[#allocation3 + $0x2b8] sm:$0xff]
    %v3538 = vld [vmem:[#allocation3 + $0x2c0] sm:$0xff]
    %v3539 = vld [vmem:[#allocation3 + $0x2c8] sm:$0xff]
    %v3540 = vld [vmem:[#allocation3 + $0x2d0] sm:$0xff]
    %v3541 = vld [vmem:[#allocation3 + $0x2d8] sm:$0xff]
    %v3542 = vld [vmem:[#allocation3 + $0x2e0] sm:$0xff]
    %v3543 = vld [vmem:[#allocation3 + $0x2e8] sm:$0xff]
    %v3544 = vld [vmem:[#allocation3 + $0x2f0] sm:$0xff]
    %v3545 = vld [vmem:[#allocation3 + $0x2f8] sm:$0xff]
    %v3642 = vunpack.c.l.b16 %v3450
    %v3643 = vunpack.c.h.b16 %v3450
    %v3644 = vunpack.c.l.b16 %v3451
    %v3645 = vunpack.c.h.b16 %v3451
    %v3646 = vunpack.c.l.b16 %v3452
    %v3647 = vunpack.c.h.b16 %v3452
    %v3648 = vunpack.c.l.b16 %v3453
    %v3649 = vunpack.c.h.b16 %v3453
    %v3650 = vunpack.c.l.b16 %v3454
    %v3651 = vunpack.c.h.b16 %v3454
    %v3652 = vunpack.c.l.b16 %v3455
    %v3653 = vunpack.c.h.b16 %v3455
    %v3654 = vunpack.c.l.b16 %v3456
    %v3655 = vunpack.c.h.b16 %v3456
    %v3656 = vunpack.c.l.b16 %v3457
    %v3657 = vunpack.c.h.b16 %v3457
    %v3658 = vunpack.c.l.b16 %v3458
    %v3659 = vunpack.c.h.b16 %v3458
    %v3660 = vunpack.c.l.b16 %v3459
    %v3661 = vunpack.c.h.b16 %v3459
    %v3662 = vunpack.c.l.b16 %v3460
    %v3663 = vunpack.c.h.b16 %v3460
    %v3664 = vunpack.c.l.b16 %v3461
    %v3665 = vunpack.c.h.b16 %v3461
    %v3666 = vunpack.c.l.b16 %v3462
    %v3667 = vunpack.c.h.b16 %v3462
    %v3668 = vunpack.c.l.b16 %v3463
    %v3669 = vunpack.c.h.b16 %v3463
    %v3670 = vunpack.c.l.b16 %v3464
    %v3671 = vunpack.c.h.b16 %v3464
    %v3672 = vunpack.c.l.b16 %v3465
    %v3673 = vunpack.c.h.b16 %v3465
    %v3674 = vunpack.c.l.b16 %v3466
    %v3675 = vunpack.c.h.b16 %v3466
    %v3676 = vunpack.c.l.b16 %v3467
    %v3677 = vunpack.c.h.b16 %v3467
    %v3678 = vunpack.c.l.b16 %v3468
    %v3679 = vunpack.c.h.b16 %v3468
    %v3680 = vunpack.c.l.b16 %v3469
    %v3681 = vunpack.c.h.b16 %v3469
    %v3682 = vunpack.c.l.b16 %v3470
    %v3683 = vunpack.c.h.b16 %v3470
    %v3684 = vunpack.c.l.b16 %v3471
    %v3685 = vunpack.c.h.b16 %v3471
    %v3686 = vunpack.c.l.b16 %v3472
    %v3687 = vunpack.c.h.b16 %v3472
    %v3688 = vunpack.c.l.b16 %v3473
    %v3689 = vunpack.c.h.b16 %v3473
    %v3690 = vunpack.c.l.b16 %v3474
    %v3691 = vunpack.c.h.b16 %v3474
    %v3692 = vunpack.c.l.b16 %v3475
    %v3693 = vunpack.c.h.b16 %v3475
    %v3694 = vunpack.c.l.b16 %v3476
    %v3695 = vunpack.c.h.b16 %v3476
    %v3696 = vunpack.c.l.b16 %v3477
    %v3697 = vunpack.c.h.b16 %v3477
    %v3698 = vunpack.c.l.b16 %v3478
    %v3699 = vunpack.c.h.b16 %v3478
    %v3700 = vunpack.c.l.b16 %v3479
    %v3701 = vunpack.c.h.b16 %v3479
    %v3702 = vunpack.c.l.b16 %v3480
    %v3703 = vunpack.c.h.b16 %v3480
    %v3704 = vunpack.c.l.b16 %v3481
    %v3705 = vunpack.c.h.b16 %v3481
    %v3706 = vunpack.c.l.b16 %v3482
    %v3707 = vunpack.c.h.b16 %v3482
    %v3708 = vunpack.c.l.b16 %v3483
    %v3709 = vunpack.c.h.b16 %v3483
    %v3710 = vunpack.c.l.b16 %v3484
    %v3711 = vunpack.c.h.b16 %v3484
    %v3712 = vunpack.c.l.b16 %v3485
    %v3713 = vunpack.c.h.b16 %v3485
    %v3714 = vunpack.c.l.b16 %v3486
    %v3715 = vunpack.c.h.b16 %v3486
    %v3716 = vunpack.c.l.b16 %v3487
    %v3717 = vunpack.c.h.b16 %v3487
    %v3718 = vunpack.c.l.b16 %v3488
    %v3719 = vunpack.c.h.b16 %v3488
    %v3720 = vunpack.c.l.b16 %v3489
    %v3721 = vunpack.c.h.b16 %v3489
    %v3722 = vunpack.c.l.b16 %v3490
    %v3723 = vunpack.c.h.b16 %v3490
    %v3724 = vunpack.c.l.b16 %v3491
    %v3725 = vunpack.c.h.b16 %v3491
    %v3726 = vunpack.c.l.b16 %v3492
    %v3727 = vunpack.c.h.b16 %v3492
    %v3728 = vunpack.c.l.b16 %v3493
    %v3729 = vunpack.c.h.b16 %v3493
    %v3730 = vunpack.c.l.b16 %v3494
    %v3731 = vunpack.c.h.b16 %v3494
    %v3732 = vunpack.c.l.b16 %v3495
    %v3733 = vunpack.c.h.b16 %v3495
    %v3734 = vunpack.c.l.b16 %v3496
    %v3735 = vunpack.c.h.b16 %v3496
    %v3736 = vunpack.c.l.b16 %v3497
    %v3737 = vunpack.c.h.b16 %v3497
    %v3738 = vunpack.c.l.b16 %v3498
    %v3739 = vunpack.c.h.b16 %v3498
    %v3740 = vunpack.c.l.b16 %v3499
    %v3741 = vunpack.c.h.b16 %v3499
    %v3742 = vunpack.c.l.b16 %v3500
    %v3743 = vunpack.c.h.b16 %v3500
    %v3744 = vunpack.c.l.b16 %v3501
    %v3745 = vunpack.c.h.b16 %v3501
    %v3746 = vunpack.c.l.b16 %v3502
    %v3747 = vunpack.c.h.b16 %v3502
    %v3748 = vunpack.c.l.b16 %v3503
    %v3749 = vunpack.c.h.b16 %v3503
    %v3750 = vunpack.c.l.b16 %v3504
    %v3751 = vunpack.c.h.b16 %v3504
    %v3752 = vunpack.c.l.b16 %v3505
    %v3753 = vunpack.c.h.b16 %v3505
    %v3754 = vunpack.c.l.b16 %v3506
    %v3755 = vunpack.c.h.b16 %v3506
    %v3756 = vunpack.c.l.b16 %v3507
    %v3757 = vunpack.c.h.b16 %v3507
    %v3758 = vunpack.c.l.b16 %v3508
    %v3759 = vunpack.c.h.b16 %v3508
    %v3760 = vunpack.c.l.b16 %v3509
    %v3761 = vunpack.c.h.b16 %v3509
    %v3762 = vunpack.c.l.b16 %v3510
    %v3763 = vunpack.c.h.b16 %v3510
    %v3764 = vunpack.c.l.b16 %v3511
    %v3765 = vunpack.c.h.b16 %v3511
    %v3766 = vunpack.c.l.b16 %v3512
    %v3767 = vunpack.c.h.b16 %v3512
    %v3768 = vunpack.c.l.b16 %v3513
    %v3769 = vunpack.c.h.b16 %v3513
    %v3770 = vunpack.c.l.b16 %v3514
    %v3771 = vunpack.c.h.b16 %v3514
    %v3772 = vunpack.c.l.b16 %v3515
    %v3773 = vunpack.c.h.b16 %v3515
    %v3774 = vunpack.c.l.b16 %v3516
    %v3775 = vunpack.c.h.b16 %v3516
    %v3776 = vunpack.c.l.b16 %v3517
    %v3777 = vunpack.c.h.b16 %v3517
    %v3778 = vunpack.c.l.b16 %v3518
    %v3779 = vunpack.c.h.b16 %v3518
    %v3780 = vunpack.c.l.b16 %v3519
    %v3781 = vunpack.c.h.b16 %v3519
    %v3782 = vunpack.c.l.b16 %v3520
    %v3783 = vunpack.c.h.b16 %v3520
    %v3784 = vunpack.c.l.b16 %v3521
    %v3785 = vunpack.c.h.b16 %v3521
    %v3786 = vunpack.c.l.b16 %v3522
    %v3787 = vunpack.c.h.b16 %v3522
    %v3788 = vunpack.c.l.b16 %v3523
    %v3789 = vunpack.c.h.b16 %v3523
    %v3790 = vunpack.c.l.b16 %v3524
    %v3791 = vunpack.c.h.b16 %v3524
    %v3792 = vunpack.c.l.b16 %v3525
    %v3793 = vunpack.c.h.b16 %v3525
    %v3794 = vunpack.c.l.b16 %v3526
    %v3795 = vunpack.c.h.b16 %v3526
    %v3796 = vunpack.c.l.b16 %v3527
    %v3797 = vunpack.c.h.b16 %v3527
    %v3798 = vunpack.c.l.b16 %v3528
    %v3799 = vunpack.c.h.b16 %v3528
    %v3800 = vunpack.c.l.b16 %v3529
    %v3801 = vunpack.c.h.b16 %v3529
    %v3802 = vunpack.c.l.b16 %v3530
    %v3803 = vunpack.c.h.b16 %v3530
    %v3804 = vunpack.c.l.b16 %v3531
    %v3805 = vunpack.c.h.b16 %v3531
    %v3806 = vunpack.c.l.b16 %v3532
    %v3807 = vunpack.c.h.b16 %v3532
    %v3808 = vunpack.c.l.b16 %v3533
    %v3809 = vunpack.c.h.b16 %v3533
    %v3810 = vunpack.c.l.b16 %v3534
    %v3811 = vunpack.c.h.b16 %v3534
    %v3812 = vunpack.c.l.b16 %v3535
    %v3813 = vunpack.c.h.b16 %v3535
    %v3814 = vunpack.c.l.b16 %v3536
    %v3815 = vunpack.c.h.b16 %v3536
    %v3816 = vunpack.c.l.b16 %v3537
    %v3817 = vunpack.c.h.b16 %v3537
    %v3818 = vunpack.c.l.b16 %v3538
    %v3819 = vunpack.c.h.b16 %v3538
    %v3820 = vunpack.c.l.b16 %v3539
    %v3821 = vunpack.c.h.b16 %v3539
    %v3822 = vunpack.c.l.b16 %v3540
    %v3823 = vunpack.c.h.b16 %v3540
    %v3824 = vunpack.c.l.b16 %v3541
    %v3825 = vunpack.c.h.b16 %v3541
    %v3826 = vunpack.c.l.b16 %v3542
    %v3827 = vunpack.c.h.b16 %v3542
    %v3828 = vunpack.c.l.b16 %v3543
    %v3829 = vunpack.c.h.b16 %v3543
    %v3830 = vunpack.c.l.b16 %v3544
    %v3831 = vunpack.c.h.b16 %v3544
    %v3832 = vunpack.c.l.b16 %v3545
    %v3833 = vunpack.c.h.b16 %v3545
    %v3834 = vpack.c.b16 %v3648, %v3642
    %v3835 = vpack.c.b16 %v3649, %v3643
    %v3836 = vpack.c.b16 %v3650, %v3644
    %v3837 = vpack.c.b16 %v3651, %v3645
    %v3838 = vpack.c.b16 %v3652, %v3646
    %v3839 = vpack.c.b16 %v3653, %v3647
    %v3840 = vpack.c.b16 %v3660, %v3654
    %v3841 = vpack.c.b16 %v3661, %v3655
    %v3842 = vpack.c.b16 %v3662, %v3656
    %v3843 = vpack.c.b16 %v3663, %v3657
    %v3844 = vpack.c.b16 %v3664, %v3658
    %v3845 = vpack.c.b16 %v3665, %v3659
    %v3846 = vpack.c.b16 %v3672, %v3666
    %v3847 = vpack.c.b16 %v3673, %v3667
    %v3848 = vpack.c.b16 %v3674, %v3668
    %v3849 = vpack.c.b16 %v3675, %v3669
    %v3850 = vpack.c.b16 %v3676, %v3670
    %v3851 = vpack.c.b16 %v3677, %v3671
    %v3852 = vpack.c.b16 %v3684, %v3678
    %v3853 = vpack.c.b16 %v3685, %v3679
    %v3854 = vpack.c.b16 %v3686, %v3680
    %v3855 = vpack.c.b16 %v3687, %v3681
    %v3856 = vpack.c.b16 %v3688, %v3682
    %v3857 = vpack.c.b16 %v3689, %v3683
    %v3858 = vpack.c.b16 %v3696, %v3690
    %v3859 = vpack.c.b16 %v3697, %v3691
    %v3860 = vpack.c.b16 %v3698, %v3692
    %v3861 = vpack.c.b16 %v3699, %v3693
    %v3862 = vpack.c.b16 %v3700, %v3694
    %v3863 = vpack.c.b16 %v3701, %v3695
    %v3864 = vpack.c.b16 %v3708, %v3702
    %v3865 = vpack.c.b16 %v3709, %v3703
    %v3866 = vpack.c.b16 %v3710, %v3704
    %v3867 = vpack.c.b16 %v3711, %v3705
    %v3868 = vpack.c.b16 %v3712, %v3706
    %v3869 = vpack.c.b16 %v3713, %v3707
    %v3870 = vpack.c.b16 %v3720, %v3714
    %v3871 = vpack.c.b16 %v3721, %v3715
    %v3872 = vpack.c.b16 %v3722, %v3716
    %v3873 = vpack.c.b16 %v3723, %v3717
    %v3874 = vpack.c.b16 %v3724, %v3718
    %v3875 = vpack.c.b16 %v3725, %v3719
    %v3876 = vpack.c.b16 %v3732, %v3726
    %v3877 = vpack.c.b16 %v3733, %v3727
    %v3878 = vpack.c.b16 %v3734, %v3728
    %v3879 = vpack.c.b16 %v3735, %v3729
    %v3880 = vpack.c.b16 %v3736, %v3730
    %v3881 = vpack.c.b16 %v3737, %v3731
    %v3882 = vpack.c.b16 %v3744, %v3738
    %v3883 = vpack.c.b16 %v3745, %v3739
    %v3884 = vpack.c.b16 %v3746, %v3740
    %v3885 = vpack.c.b16 %v3747, %v3741
    %v3886 = vpack.c.b16 %v3748, %v3742
    %v3887 = vpack.c.b16 %v3749, %v3743
    %v3888 = vpack.c.b16 %v3756, %v3750
    %v3889 = vpack.c.b16 %v3757, %v3751
    %v3890 = vpack.c.b16 %v3758, %v3752
    %v3891 = vpack.c.b16 %v3759, %v3753
    %v3892 = vpack.c.b16 %v3760, %v3754
    %v3893 = vpack.c.b16 %v3761, %v3755
    %v3894 = vpack.c.b16 %v3768, %v3762
    %v3895 = vpack.c.b16 %v3769, %v3763
    %v3896 = vpack.c.b16 %v3770, %v3764
    %v3897 = vpack.c.b16 %v3771, %v3765
    %v3898 = vpack.c.b16 %v3772, %v3766
    %v3899 = vpack.c.b16 %v3773, %v3767
    %v3900 = vpack.c.b16 %v3780, %v3774
    %v3901 = vpack.c.b16 %v3781, %v3775
    %v3902 = vpack.c.b16 %v3782, %v3776
    %v3903 = vpack.c.b16 %v3783, %v3777
    %v3904 = vpack.c.b16 %v3784, %v3778
    %v3905 = vpack.c.b16 %v3785, %v3779
    %v3906 = vpack.c.b16 %v3792, %v3786
    %v3907 = vpack.c.b16 %v3793, %v3787
    %v3908 = vpack.c.b16 %v3794, %v3788
    %v3909 = vpack.c.b16 %v3795, %v3789
    %v3910 = vpack.c.b16 %v3796, %v3790
    %v3911 = vpack.c.b16 %v3797, %v3791
    %v3912 = vpack.c.b16 %v3804, %v3798
    %v3913 = vpack.c.b16 %v3805, %v3799
    %v3914 = vpack.c.b16 %v3806, %v3800
    %v3915 = vpack.c.b16 %v3807, %v3801
    %v3916 = vpack.c.b16 %v3808, %v3802
    %v3917 = vpack.c.b16 %v3809, %v3803
    %v3918 = vpack.c.b16 %v3816, %v3810
    %v3919 = vpack.c.b16 %v3817, %v3811
    %v3920 = vpack.c.b16 %v3818, %v3812
    %v3921 = vpack.c.b16 %v3819, %v3813
    %v3922 = vpack.c.b16 %v3820, %v3814
    %v3923 = vpack.c.b16 %v3821, %v3815
    %v3924 = vpack.c.b16 %v3828, %v3822
    %v3925 = vpack.c.b16 %v3829, %v3823
    %v3926 = vpack.c.b16 %v3830, %v3824
    %v3927 = vpack.c.b16 %v3831, %v3825
    %v3928 = vpack.c.b16 %v3832, %v3826
    %v3929 = vpack.c.b16 %v3833, %v3827
    %4026 = vmatpush.bf16.msra.mxu0 %v3876
    %4027 = vmatpush.bf16.msra.mxu0 %v3870
    %4028 = vmatpush.bf16.msra.mxu0 %v3864
    %4029 = vmatpush.bf16.msra.mxu0 %v3858
    %4030 = vmatpush.bf16.msra.mxu0 %v3852
    %4031 = vmatpush.bf16.msra.mxu0 %v3846
    %4032 = vmatpush.bf16.msra.mxu0 %v3840
    %4033 = vmatpush.bf16.msra.mxu0 %v3834
    %4034 = vmatmul.bf16.gmra.mxu0 %v3448
    %v4035 = vpop.f32.mrf.mxu0
    %v4036 = vadd.f32 0.0, %v4035
    %v4037 = vpop.f32.mrf.mxu0
    %4038 = vdwg.mxu0
    %4039 = vmatpush.bf16.msra.mxu0 %v3924
    %4040 = vmatpush.bf16.msra.mxu0 %v3918
    %4041 = vmatpush.bf16.msra.mxu0 %v3912
    %4042 = vmatpush.bf16.msra.mxu0 %v3906
    %4043 = vmatpush.bf16.msra.mxu0 %v3900
    %4044 = vmatpush.bf16.msra.mxu0 %v3894
    %4045 = vmatpush.bf16.msra.mxu0 %v3888
    %4046 = vmatpush.bf16.msra.mxu0 %v3882
    %4047 = vmatmul.bf16.gmra.mxu0 %v3449
    %v4048 = vpop.f32.mrf.mxu0
    %v4049 = vadd.f32 %v4036, %v4048
    %v4050 = vpop.f32.mrf.mxu0
    %4051 = vdwg.mxu0
    %4052 = vmatpush.bf16.msra.mxu0 %v3877
    %4053 = vmatpush.bf16.msra.mxu0 %v3871
    %4054 = vmatpush.bf16.msra.mxu0 %v3865
    %4055 = vmatpush.bf16.msra.mxu0 %v3859
    %4056 = vmatpush.bf16.msra.mxu0 %v3853
    %4057 = vmatpush.bf16.msra.mxu0 %v3847
    %4058 = vmatpush.bf16.msra.mxu0 %v3841
    %4059 = vmatpush.bf16.msra.mxu0 %v3835
    %4060 = vmatmul.bf16.gmra.mxu0 %v3448
    %v4061 = vpop.f32.mrf.mxu0
    %v4062 = vadd.f32 0.0, %v4061
    %v4063 = vpop.f32.mrf.mxu0
    %4064 = vdwg.mxu0
    %4065 = vmatpush.bf16.msra.mxu0 %v3925
    %4066 = vmatpush.bf16.msra.mxu0 %v3919
    %4067 = vmatpush.bf16.msra.mxu0 %v3913
    %4068 = vmatpush.bf16.msra.mxu0 %v3907
    %4069 = vmatpush.bf16.msra.mxu0 %v3901
    %4070 = vmatpush.bf16.msra.mxu0 %v3895
    %4071 = vmatpush.bf16.msra.mxu0 %v3889
    %4072 = vmatpush.bf16.msra.mxu0 %v3883
    %4073 = vmatmul.bf16.gmra.mxu0 %v3449
    %v4074 = vpop.f32.mrf.mxu0
    %v4075 = vadd.f32 %v4062, %v4074
    %v4076 = vpop.f32.mrf.mxu0
    %4077 = vdwg.mxu0
    %4078 = vmatpush.bf16.msra.mxu0 %v3878
    %4079 = vmatpush.bf16.msra.mxu0 %v3872
    %4080 = vmatpush.bf16.msra.mxu0 %v3866
    %4081 = vmatpush.bf16.msra.mxu0 %v3860
    %4082 = vmatpush.bf16.msra.mxu0 %v3854
    %4083 = vmatpush.bf16.msra.mxu0 %v3848
    %4084 = vmatpush.bf16.msra.mxu0 %v3842
    %4085 = vmatpush.bf16.msra.mxu0 %v3836
    %4086 = vmatmul.bf16.gmra.mxu0 %v3448
    %v4087 = vpop.f32.mrf.mxu0
    %v4088 = vadd.f32 0.0, %v4087
    %v4089 = vpop.f32.mrf.mxu0
    %4090 = vdwg.mxu0
    %4091 = vmatpush.bf16.msra.mxu0 %v3926
    %4092 = vmatpush.bf16.msra.mxu0 %v3920
    %4093 = vmatpush.bf16.msra.mxu0 %v3914
    %4094 = vmatpush.bf16.msra.mxu0 %v3908
    %4095 = vmatpush.bf16.msra.mxu0 %v3902
    %4096 = vmatpush.bf16.msra.mxu0 %v3896
    %4097 = vmatpush.bf16.msra.mxu0 %v3890
    %4098 = vmatpush.bf16.msra.mxu0 %v3884
    %4099 = vmatmul.bf16.gmra.mxu0 %v3449
    %v4100 = vpop.f32.mrf.mxu0
    %v4101 = vadd.f32 %v4088, %v4100
    %v4102 = vpop.f32.mrf.mxu0
    %4103 = vdwg.mxu0
    %4104 = vmatpush.bf16.msra.mxu0 %v3879
    %4105 = vmatpush.bf16.msra.mxu0 %v3873
    %4106 = vmatpush.bf16.msra.mxu0 %v3867
    %4107 = vmatpush.bf16.msra.mxu0 %v3861
    %4108 = vmatpush.bf16.msra.mxu0 %v3855
    %4109 = vmatpush.bf16.msra.mxu0 %v3849
    %4110 = vmatpush.bf16.msra.mxu0 %v3843
    %4111 = vmatpush.bf16.msra.mxu0 %v3837
    %4112 = vmatmul.bf16.gmra.mxu0 %v3448
    %v4113 = vpop.f32.mrf.mxu0
    %v4114 = vadd.f32 0.0, %v4113
    %v4115 = vpop.f32.mrf.mxu0
    %4116 = vdwg.mxu0
    %4117 = vmatpush.bf16.msra.mxu0 %v3927
    %4118 = vmatpush.bf16.msra.mxu0 %v3921
    %4119 = vmatpush.bf16.msra.mxu0 %v3915
    %4120 = vmatpush.bf16.msra.mxu0 %v3909
    %4121 = vmatpush.bf16.msra.mxu0 %v3903
    %4122 = vmatpush.bf16.msra.mxu0 %v3897
    %4123 = vmatpush.bf16.msra.mxu0 %v3891
    %4124 = vmatpush.bf16.msra.mxu0 %v3885
    %4125 = vmatmul.bf16.gmra.mxu0 %v3449
    %v4126 = vpop.f32.mrf.mxu0
    %v4127 = vadd.f32 %v4114, %v4126
    %v4128 = vpop.f32.mrf.mxu0
    %4129 = vdwg.mxu0
    %4130 = vmatpush.bf16.msra.mxu0 %v3880
    %4131 = vmatpush.bf16.msra.mxu0 %v3874
    %4132 = vmatpush.bf16.msra.mxu0 %v3868
    %4133 = vmatpush.bf16.msra.mxu0 %v3862
    %4134 = vmatpush.bf16.msra.mxu0 %v3856
    %4135 = vmatpush.bf16.msra.mxu0 %v3850
    %4136 = vmatpush.bf16.msra.mxu0 %v3844
    %4137 = vmatpush.bf16.msra.mxu0 %v3838
    %4138 = vmatmul.bf16.gmra.mxu0 %v3448
    %v4139 = vpop.f32.mrf.mxu0
    %v4140 = vadd.f32 0.0, %v4139
    %v4141 = vpop.f32.mrf.mxu0
    %4142 = vdwg.mxu0
    %4143 = vmatpush.bf16.msra.mxu0 %v3928
    %4144 = vmatpush.bf16.msra.mxu0 %v3922
    %4145 = vmatpush.bf16.msra.mxu0 %v3916
    %4146 = vmatpush.bf16.msra.mxu0 %v3910
    %4147 = vmatpush.bf16.msra.mxu0 %v3904
    %4148 = vmatpush.bf16.msra.mxu0 %v3898
    %4149 = vmatpush.bf16.msra.mxu0 %v3892
    %4150 = vmatpush.bf16.msra.mxu0 %v3886
    %4151 = vmatmul.bf16.gmra.mxu0 %v3449
    %v4152 = vpop.f32.mrf.mxu0
    %v4153 = vadd.f32 %v4140, %v4152
    %v4154 = vpop.f32.mrf.mxu0
    %4155 = vdwg.mxu0
    %4156 = vmatpush.bf16.msra.mxu0 %v3881
    %4157 = vmatpush.bf16.msra.mxu0 %v3875
    %4158 = vmatpush.bf16.msra.mxu0 %v3869
    %4159 = vmatpush.bf16.msra.mxu0 %v3863
    %4160 = vmatpush.bf16.msra.mxu0 %v3857
    %4161 = vmatpush.bf16.msra.mxu0 %v3851
    %4162 = vmatpush.bf16.msra.mxu0 %v3845
    %4163 = vmatpush.bf16.msra.mxu0 %v3839
    %4164 = vmatmul.bf16.gmra.mxu0 %v3448
    %v4165 = vpop.f32.mrf.mxu0
    %v4166 = vadd.f32 0.0, %v4165
    %v4167 = vpop.f32.mrf.mxu0
    %4168 = vdwg.mxu0
    %4169 = vmatpush.bf16.msra.mxu0 %v3929
    %4170 = vmatpush.bf16.msra.mxu0 %v3923
    %4171 = vmatpush.bf16.msra.mxu0 %v3917
    %4172 = vmatpush.bf16.msra.mxu0 %v3911
    %4173 = vmatpush.bf16.msra.mxu0 %v3905
    %4174 = vmatpush.bf16.msra.mxu0 %v3899
    %4175 = vmatpush.bf16.msra.mxu0 %v3893
    %4176 = vmatpush.bf16.msra.mxu0 %v3887
    %4177 = vmatmul.bf16.gmra.mxu0 %v3449
    %v4178 = vpop.f32.mrf.mxu0
    %v4179 = vadd.f32 %v4166, %v4178
    %v4180 = vpop.f32.mrf.mxu0
    %4181 = vdwg.mxu0
    %v4182 = vadd.f32 %v3305, %v4049
    %v4183 = vadd.f32 %v3331, %v4075
    %v4184 = vxor.u32 %v4182, 2147483648
    %v4185 = vxor.u32 %v4183, 2147483648
    %v4186 = vmul.f32 %v4184, 1.442695
    %v4187 = vpow.pop %v4186
    %v4188 = vmul.f32 %v4185, 1.442695
    %v4189 = vpow.pop %v4188
    %v4190 = vadd.f32 %v4187, 1.0
    %v4191 = vadd.f32 %v4189, 1.0
    %v4192 = vrcp.pop %v4190
    %v4193 = vmul.f32 %v4190, %v4192
    %v4194 = vsub.f32 1.0, %v4193
    %v4195 = vmul.f32 %v4192, %v4194
    %v4196 = vadd.f32 %v4192, %v4195
    %vm4197 = vweird.f32 %v4190
    %vm4198 = vweird.f32 %v4192
    %vm4199 = vmor %vm4197, %vm4198
    %v4200 = vsel %vm4199, %v4192, %v4196
    %v4201 = vand.u32 2147483647, %v4190
    %vm4202 = vcmp.eq.f32.partialorder %v4201, 8.507059e+37
    %v4203 = vand.u32 %v4190, 2147483648
    %v4204 = vor.u32 1.1754944e-38, %v4203
    %v4205 = vsel %vm4202, %v4204, %v4200
    %v4206 = vmul.f32 1.0, %v4205
    %v4207 = vrcp.pop %v4191
    %v4208 = vmul.f32 %v4191, %v4207
    %v4209 = vsub.f32 1.0, %v4208
    %v4210 = vmul.f32 %v4207, %v4209
    %v4211 = vadd.f32 %v4207, %v4210
    %vm4212 = vweird.f32 %v4191
    %vm4213 = vweird.f32 %v4207
    %vm4214 = vmor %vm4212, %vm4213
    %v4215 = vsel %vm4214, %v4207, %v4211
    %v4216 = vand.u32 2147483647, %v4191
    %vm4217 = vcmp.eq.f32.partialorder %v4216, 8.507059e+37
    %v4218 = vand.u32 %v4191, 2147483648
    %v4219 = vor.u32 1.1754944e-38, %v4218
    %v4220 = vsel %vm4217, %v4219, %v4215
    %v4221 = vmul.f32 1.0, %v4220
    %v4222 = vadd.f32 %v3357, %v4101
    %v4223 = vadd.f32 %v3383, %v4127
    %v4224 = vxor.u32 %v4222, 2147483648
    %v4225 = vxor.u32 %v4223, 2147483648
    %v4226 = vmul.f32 %v4224, 1.442695
    %v4227 = vpow.pop %v4226
    %v4228 = vmul.f32 %v4225, 1.442695
    %v4229 = vpow.pop %v4228
    %v4230 = vadd.f32 %v4227, 1.0
    %v4231 = vadd.f32 %v4229, 1.0
    %v4232 = vrcp.pop %v4230
    %v4233 = vmul.f32 %v4230, %v4232
    %v4234 = vsub.f32 1.0, %v4233
    %v4235 = vmul.f32 %v4232, %v4234
    %v4236 = vadd.f32 %v4232, %v4235
    %vm4237 = vweird.f32 %v4230
    %vm4238 = vweird.f32 %v4232
    %vm4239 = vmor %vm4237, %vm4238
    %v4240 = vsel %vm4239, %v4232, %v4236
    %v4241 = vand.u32 2147483647, %v4230
    %vm4242 = vcmp.eq.f32.partialorder %v4241, 8.507059e+37
    %v4243 = vand.u32 %v4230, 2147483648
    %v4244 = vor.u32 1.1754944e-38, %v4243
    %v4245 = vsel %vm4242, %v4244, %v4240
    %v4246 = vmul.f32 1.0, %v4245
    %v4247 = vrcp.pop %v4231
    %v4248 = vmul.f32 %v4231, %v4247
    %v4249 = vsub.f32 1.0, %v4248
    %v4250 = vmul.f32 %v4247, %v4249
    %v4251 = vadd.f32 %v4247, %v4250
    %vm4252 = vweird.f32 %v4231
    %vm4253 = vweird.f32 %v4247
    %vm4254 = vmor %vm4252, %vm4253
    %v4255 = vsel %vm4254, %v4247, %v4251
    %v4256 = vand.u32 2147483647, %v4231
    %vm4257 = vcmp.eq.f32.partialorder %v4256, 8.507059e+37
    %v4258 = vand.u32 %v4231, 2147483648
    %v4259 = vor.u32 1.1754944e-38, %v4258
    %v4260 = vsel %vm4257, %v4259, %v4255
    %v4261 = vmul.f32 1.0, %v4260
    %v4263 = vperm.slane %v3442, 0
    %v4264 = vperm.slane %v3442, 1
    %v4267 = vadd.f32 %v4153, %v4263
    %v4268 = vadd.f32 %v4179, %v4264
    %v4269 = vmul.f32 %v4206, %v4267
    %v4270 = vmul.f32 %v4221, %v4268
    %v4271 = vadd.f32 %v3409, %v4269
    %v4272 = vadd.f32 %v3435, %v4270
    %v4273 = vtanh.pop %v4271
    %v4274 = vtanh.pop %v4272
    %v4275 = vsub.f32 1.0, %v4246
    %v4276 = vsub.f32 1.0, %v4261
    %v4277 = vmul.f32 %v4275, %v4273
    %v4278 = vmul.f32 %v4276, %v4274
    %v4279 = vmul.f32 %v4246, %v3444
    %v4280 = vmul.f32 %v4261, %v3445
    %v4281 = vadd.f32 %v4277, %v4279
    %v4282 = vadd.f32 %v4278, %v4280
    %v4283 = vpack.c.bf16 %v4281, %v4281
    %v4284 = vpack.c.bf16 %v4282, %v4282
    %4285 = vmatpush.bf16.msra.mxu0 %v3876
    %4286 = vmatpush.bf16.msra.mxu0 %v3870
    %4287 = vmatpush.bf16.msra.mxu0 %v3864
    %4288 = vmatpush.bf16.msra.mxu0 %v3858
    %4289 = vmatpush.bf16.msra.mxu0 %v3852
    %4290 = vmatpush.bf16.msra.mxu0 %v3846
    %4291 = vmatpush.bf16.msra.mxu0 %v3840
    %4292 = vmatpush.bf16.msra.mxu0 %v3834
    %4293 = vmatmul.bf16.gmra.mxu0 %v4283
    %v4294 = vpop.f32.mrf.mxu0
    %v4295 = vadd.f32 0.0, %v4294
    %v4296 = vpop.f32.mrf.mxu0
    %4297 = vdwg.mxu0
    %4298 = vmatpush.bf16.msra.mxu0 %v3924
    %4299 = vmatpush.bf16.msra.mxu0 %v3918
    %4300 = vmatpush.bf16.msra.mxu0 %v3912
    %4301 = vmatpush.bf16.msra.mxu0 %v3906
    %4302 = vmatpush.bf16.msra.mxu0 %v3900
    %4303 = vmatpush.bf16.msra.mxu0 %v3894
    %4304 = vmatpush.bf16.msra.mxu0 %v3888
    %4305 = vmatpush.bf16.msra.mxu0 %v3882
    %4306 = vmatmul.bf16.gmra.mxu0 %v4284
    %v4307 = vpop.f32.mrf.mxu0
    %v4308 = vadd.f32 %v4295, %v4307
    %v4309 = vpop.f32.mrf.mxu0
    %4310 = vdwg.mxu0
    %4311 = vmatpush.bf16.msra.mxu0 %v3877
    %4312 = vmatpush.bf16.msra.mxu0 %v3871
    %4313 = vmatpush.bf16.msra.mxu0 %v3865
    %4314 = vmatpush.bf16.msra.mxu0 %v3859
    %4315 = vmatpush.bf16.msra.mxu0 %v3853
    %4316 = vmatpush.bf16.msra.mxu0 %v3847
    %4317 = vmatpush.bf16.msra.mxu0 %v3841
    %4318 = vmatpush.bf16.msra.mxu0 %v3835
    %4319 = vmatmul.bf16.gmra.mxu0 %v4283
    %v4320 = vpop.f32.mrf.mxu0
    %v4321 = vadd.f32 0.0, %v4320
    %v4322 = vpop.f32.mrf.mxu0
    %4323 = vdwg.mxu0
    %4324 = vmatpush.bf16.msra.mxu0 %v3925
    %4325 = vmatpush.bf16.msra.mxu0 %v3919
    %4326 = vmatpush.bf16.msra.mxu0 %v3913
    %4327 = vmatpush.bf16.msra.mxu0 %v3907
    %4328 = vmatpush.bf16.msra.mxu0 %v3901
    %4329 = vmatpush.bf16.msra.mxu0 %v3895
    %4330 = vmatpush.bf16.msra.mxu0 %v3889
    %4331 = vmatpush.bf16.msra.mxu0 %v3883
    %4332 = vmatmul.bf16.gmra.mxu0 %v4284
    %v4333 = vpop.f32.mrf.mxu0
    %v4334 = vadd.f32 %v4321, %v4333
    %v4335 = vpop.f32.mrf.mxu0
    %4336 = vdwg.mxu0
    %4337 = vmatpush.bf16.msra.mxu0 %v3878
    %4338 = vmatpush.bf16.msra.mxu0 %v3872
    %4339 = vmatpush.bf16.msra.mxu0 %v3866
    %4340 = vmatpush.bf16.msra.mxu0 %v3860
    %4341 = vmatpush.bf16.msra.mxu0 %v3854
    %4342 = vmatpush.bf16.msra.mxu0 %v3848
    %4343 = vmatpush.bf16.msra.mxu0 %v3842
    %4344 = vmatpush.bf16.msra.mxu0 %v3836
    %4345 = vmatmul.bf16.gmra.mxu0 %v4283
    %v4346 = vpop.f32.mrf.mxu0
    %v4347 = vadd.f32 0.0, %v4346
    %v4348 = vpop.f32.mrf.mxu0
    %4349 = vdwg.mxu0
    %4350 = vmatpush.bf16.msra.mxu0 %v3926
    %4351 = vmatpush.bf16.msra.mxu0 %v3920
    %4352 = vmatpush.bf16.msra.mxu0 %v3914
    %4353 = vmatpush.bf16.msra.mxu0 %v3908
    %4354 = vmatpush.bf16.msra.mxu0 %v3902
    %4355 = vmatpush.bf16.msra.mxu0 %v3896
    %4356 = vmatpush.bf16.msra.mxu0 %v3890
    %4357 = vmatpush.bf16.msra.mxu0 %v3884
    %4358 = vmatmul.bf16.gmra.mxu0 %v4284
    %v4359 = vpop.f32.mrf.mxu0
    %v4360 = vadd.f32 %v4347, %v4359
    %v4361 = vpop.f32.mrf.mxu0
    %4362 = vdwg.mxu0
    %4363 = vmatpush.bf16.msra.mxu0 %v3879
    %4364 = vmatpush.bf16.msra.mxu0 %v3873
    %4365 = vmatpush.bf16.msra.mxu0 %v3867
    %4366 = vmatpush.bf16.msra.mxu0 %v3861
    %4367 = vmatpush.bf16.msra.mxu0 %v3855
    %4368 = vmatpush.bf16.msra.mxu0 %v3849
    %4369 = vmatpush.bf16.msra.mxu0 %v3843
    %4370 = vmatpush.bf16.msra.mxu0 %v3837
    %4371 = vmatmul.bf16.gmra.mxu0 %v4283
    %v4372 = vpop.f32.mrf.mxu0
    %v4373 = vadd.f32 0.0, %v4372
    %v4374 = vpop.f32.mrf.mxu0
    %4375 = vdwg.mxu0
    %4376 = vmatpush.bf16.msra.mxu0 %v3927
    %4377 = vmatpush.bf16.msra.mxu0 %v3921
    %4378 = vmatpush.bf16.msra.mxu0 %v3915
    %4379 = vmatpush.bf16.msra.mxu0 %v3909
    %4380 = vmatpush.bf16.msra.mxu0 %v3903
    %4381 = vmatpush.bf16.msra.mxu0 %v3897
    %4382 = vmatpush.bf16.msra.mxu0 %v3891
    %4383 = vmatpush.bf16.msra.mxu0 %v3885
    %4384 = vmatmul.bf16.gmra.mxu0 %v4284
    %v4385 = vpop.f32.mrf.mxu0
    %v4386 = vadd.f32 %v4373, %v4385
    %v4387 = vpop.f32.mrf.mxu0
    %4388 = vdwg.mxu0
    %4389 = vmatpush.bf16.msra.mxu0 %v3880
    %4390 = vmatpush.bf16.msra.mxu0 %v3874
    %4391 = vmatpush.bf16.msra.mxu0 %v3868
    %4392 = vmatpush.bf16.msra.mxu0 %v3862
    %4393 = vmatpush.bf16.msra.mxu0 %v3856
    %4394 = vmatpush.bf16.msra.mxu0 %v3850
    %4395 = vmatpush.bf16.msra.mxu0 %v3844
    %4396 = vmatpush.bf16.msra.mxu0 %v3838
    %4397 = vmatmul.bf16.gmra.mxu0 %v4283
    %v4398 = vpop.f32.mrf.mxu0
    %v4399 = vadd.f32 0.0, %v4398
    %v4400 = vpop.f32.mrf.mxu0
    %4401 = vdwg.mxu0
    %4402 = vmatpush.bf16.msra.mxu0 %v3928
    %4403 = vmatpush.bf16.msra.mxu0 %v3922
    %4404 = vmatpush.bf16.msra.mxu0 %v3916
    %4405 = vmatpush.bf16.msra.mxu0 %v3910
    %4406 = vmatpush.bf16.msra.mxu0 %v3904
    %4407 = vmatpush.bf16.msra.mxu0 %v3898
    %4408 = vmatpush.bf16.msra.mxu0 %v3892
    %4409 = vmatpush.bf16.msra.mxu0 %v3886
    %4410 = vmatmul.bf16.gmra.mxu0 %v4284
    %v4411 = vpop.f32.mrf.mxu0
    %v4412 = vadd.f32 %v4399, %v4411
    %v4413 = vpop.f32.mrf.mxu0
    %4414 = vdwg.mxu0
    %4415 = vmatpush.bf16.msra.mxu0 %v3881
    %4416 = vmatpush.bf16.msra.mxu0 %v3875
    %4417 = vmatpush.bf16.msra.mxu0 %v3869
    %4418 = vmatpush.bf16.msra.mxu0 %v3863
    %4419 = vmatpush.bf16.msra.mxu0 %v3857
    %4420 = vmatpush.bf16.msra.mxu0 %v3851
    %4421 = vmatpush.bf16.msra.mxu0 %v3845
    %4422 = vmatpush.bf16.msra.mxu0 %v3839
    %4423 = vmatmul.bf16.gmra.mxu0 %v4283
    %v4424 = vpop.f32.mrf.mxu0
    %v4425 = vadd.f32 0.0, %v4424
    %v4426 = vpop.f32.mrf.mxu0
    %4427 = vdwg.mxu0
    %4428 = vmatpush.bf16.msra.mxu0 %v3929
    %4429 = vmatpush.bf16.msra.mxu0 %v3923
    %4430 = vmatpush.bf16.msra.mxu0 %v3917
    %4431 = vmatpush.bf16.msra.mxu0 %v3911
    %4432 = vmatpush.bf16.msra.mxu0 %v3905
    %4433 = vmatpush.bf16.msra.mxu0 %v3899
    %4434 = vmatpush.bf16.msra.mxu0 %v3893
    %4435 = vmatpush.bf16.msra.mxu0 %v3887
    %4436 = vmatmul.bf16.gmra.mxu0 %v4284
    %v4437 = vpop.f32.mrf.mxu0
    %v4438 = vadd.f32 %v4425, %v4437
    %v4439 = vpop.f32.mrf.mxu0
    %4440 = vdwg.mxu0
    %v4443 = vrot.slane %v4308, 7
    %v4444 = vrot.slane %v4334, 7
    %v4447 = vadd.f32 %v3305, %v4443
    %v4448 = vadd.f32 %v3331, %v4444
    %v4449 = vxor.u32 %v4447, 2147483648
    %v4450 = vxor.u32 %v4448, 2147483648
    %v4451 = vmul.f32 %v4449, 1.442695
    %v4452 = vpow.pop %v4451
    %v4453 = vmul.f32 %v4450, 1.442695
    %v4454 = vpow.pop %v4453
    %v4455 = vadd.f32 %v4452, 1.0
    %v4456 = vadd.f32 %v4454, 1.0
    %v4457 = vrcp.pop %v4455
    %v4458 = vmul.f32 %v4455, %v4457
    %v4459 = vsub.f32 1.0, %v4458
    %v4460 = vmul.f32 %v4457, %v4459
    %v4461 = vadd.f32 %v4457, %v4460
    %vm4462 = vweird.f32 %v4455
    %vm4463 = vweird.f32 %v4457
    %vm4464 = vmor %vm4462, %vm4463
    %v4465 = vsel %vm4464, %v4457, %v4461
    %v4466 = vand.u32 2147483647, %v4455
    %vm4467 = vcmp.eq.f32.partialorder %v4466, 8.507059e+37
    %v4468 = vand.u32 %v4455, 2147483648
    %v4469 = vor.u32 1.1754944e-38, %v4468
    %v4470 = vsel %vm4467, %v4469, %v4465
    %v4471 = vmul.f32 1.0, %v4470
    %v4472 = vrcp.pop %v4456
    %v4473 = vmul.f32 %v4456, %v4472
    %v4474 = vsub.f32 1.0, %v4473
    %v4475 = vmul.f32 %v4472, %v4474
    %v4476 = vadd.f32 %v4472, %v4475
    %vm4477 = vweird.f32 %v4456
    %vm4478 = vweird.f32 %v4472
    %vm4479 = vmor %vm4477, %vm4478
    %v4480 = vsel %vm4479, %v4472, %v4476
    %v4481 = vand.u32 2147483647, %v4456
    %vm4482 = vcmp.eq.f32.partialorder %v4481, 8.507059e+37
    %v4483 = vand.u32 %v4456, 2147483648
    %v4484 = vor.u32 1.1754944e-38, %v4483
    %v4485 = vsel %vm4482, %v4484, %v4480
    %v4486 = vmul.f32 1.0, %v4485
    %v4489 = vrot.slane %v4360, 7
    %v4490 = vrot.slane %v4386, 7
    %v4493 = vadd.f32 %v3357, %v4489
    %v4494 = vadd.f32 %v3383, %v4490
    %v4495 = vxor.u32 %v4493, 2147483648
    %v4496 = vxor.u32 %v4494, 2147483648
    %v4497 = vmul.f32 %v4495, 1.442695
    %v4498 = vpow.pop %v4497
    %v4499 = vmul.f32 %v4496, 1.442695
    %v4500 = vpow.pop %v4499
    %v4501 = vadd.f32 %v4498, 1.0
    %v4502 = vadd.f32 %v4500, 1.0
    %v4503 = vrcp.pop %v4501
    %v4504 = vmul.f32 %v4501, %v4503
    %v4505 = vsub.f32 1.0, %v4504
    %v4506 = vmul.f32 %v4503, %v4505
    %v4507 = vadd.f32 %v4503, %v4506
    %vm4508 = vweird.f32 %v4501
    %vm4509 = vweird.f32 %v4503
    %vm4510 = vmor %vm4508, %vm4509
    %v4511 = vsel %vm4510, %v4503, %v4507
    %v4512 = vand.u32 2147483647, %v4501
    %vm4513 = vcmp.eq.f32.partialorder %v4512, 8.507059e+37
    %v4514 = vand.u32 %v4501, 2147483648
    %v4515 = vor.u32 1.1754944e-38, %v4514
    %v4516 = vsel %vm4513, %v4515, %v4511
    %v4517 = vmul.f32 1.0, %v4516
    %v4518 = vrcp.pop %v4502
    %v4519 = vmul.f32 %v4502, %v4518
    %v4520 = vsub.f32 1.0, %v4519
    %v4521 = vmul.f32 %v4518, %v4520
    %v4522 = vadd.f32 %v4518, %v4521
    %vm4523 = vweird.f32 %v4502
    %vm4524 = vweird.f32 %v4518
    %vm4525 = vmor %vm4523, %vm4524
    %v4526 = vsel %vm4525, %v4518, %v4522
    %v4527 = vand.u32 2147483647, %v4502
    %vm4528 = vcmp.eq.f32.partialorder %v4527, 8.507059e+37
    %v4529 = vand.u32 %v4502, 2147483648
    %v4530 = vor.u32 1.1754944e-38, %v4529
    %v4531 = vsel %vm4528, %v4530, %v4526
    %v4532 = vmul.f32 1.0, %v4531
    %v4533 = vadd.f32 %v4412, %v4263
    %v4534 = vadd.f32 %v4438, %v4264
    %v4537 = vrot.slane %v4533, 7
    %v4538 = vrot.slane %v4534, 7
    %v4541 = vmul.f32 %v4471, %v4537
    %v4542 = vmul.f32 %v4486, %v4538
    %v4543 = vadd.f32 %v3409, %v4541
    %v4544 = vadd.f32 %v3435, %v4542
    %v4545 = vtanh.pop %v4543
    %v4546 = vtanh.pop %v4544
    %v4547 = vsub.f32 1.0, %v4517
    %v4548 = vsub.f32 1.0, %v4532
    %v4549 = vmul.f32 %v4547, %v4545
    %v4550 = vmul.f32 %v4548, %v4546
    %v4553 = vrot.slane %v4281, 7
    %v4554 = vrot.slane %v4282, 7
    %v4557 = vmul.f32 %v4517, %v4553
    %v4558 = vmul.f32 %v4532, %v4554
    %v4559 = vadd.f32 %v4549, %v4557
    %v4560 = vadd.f32 %v4550, %v4558
    %v4561 = vpack.c.bf16 %v4559, %v4559
    %v4562 = vpack.c.bf16 %v4560, %v4560
    %v4564 = vshrl.u32 %v4561, 16
    %v4567 = vshrl.u32 %v4562, 16
    %4571 = vmatpush.bf16.msra.mxu0 %v3876
    %4572 = vmatpush.bf16.msra.mxu0 %v3870
    %4573 = vmatpush.bf16.msra.mxu0 %v3864
    %4574 = vmatpush.bf16.msra.mxu0 %v3858
    %4575 = vmatpush.bf16.msra.mxu0 %v3852
    %4576 = vmatpush.bf16.msra.mxu0 %v3846
    %4577 = vmatpush.bf16.msra.mxu0 %v3840
    %4578 = vmatpush.bf16.msra.mxu0 %v3834
    %4579 = vmatmul.bf16.gmra.mxu0 %v4564
    %v4580 = vpop.f32.mrf.mxu0
    %v4581 = vadd.f32 0.0, %v4580
    %v4582 = vpop.f32.mrf.mxu0
    %4583 = vdwg.mxu0
    %4584 = vmatpush.bf16.msra.mxu0 %v3924
    %4585 = vmatpush.bf16.msra.mxu0 %v3918
    %4586 = vmatpush.bf16.msra.mxu0 %v3912
    %4587 = vmatpush.bf16.msra.mxu0 %v3906
    %4588 = vmatpush.bf16.msra.mxu0 %v3900
    %4589 = vmatpush.bf16.msra.mxu0 %v3894
    %4590 = vmatpush.bf16.msra.mxu0 %v3888
    %4591 = vmatpush.bf16.msra.mxu0 %v3882
    %4592 = vmatmul.bf16.gmra.mxu0 %v4567
    %v4593 = vpop.f32.mrf.mxu0
    %v4594 = vadd.f32 %v4581, %v4593
    %v4595 = vpop.f32.mrf.mxu0
    %4596 = vdwg.mxu0
    %4597 = vmatpush.bf16.msra.mxu0 %v3877
    %4598 = vmatpush.bf16.msra.mxu0 %v3871
    %4599 = vmatpush.bf16.msra.mxu0 %v3865
    %4600 = vmatpush.bf16.msra.mxu0 %v3859
    %4601 = vmatpush.bf16.msra.mxu0 %v3853
    %4602 = vmatpush.bf16.msra.mxu0 %v3847
    %4603 = vmatpush.bf16.msra.mxu0 %v3841
    %4604 = vmatpush.bf16.msra.mxu0 %v3835
    %4605 = vmatmul.bf16.gmra.mxu0 %v4564
    %v4606 = vpop.f32.mrf.mxu0
    %v4607 = vadd.f32 0.0, %v4606
    %v4608 = vpop.f32.mrf.mxu0
    %4609 = vdwg.mxu0
    %4610 = vmatpush.bf16.msra.mxu0 %v3925
    %4611 = vmatpush.bf16.msra.mxu0 %v3919
    %4612 = vmatpush.bf16.msra.mxu0 %v3913
    %4613 = vmatpush.bf16.msra.mxu0 %v3907
    %4614 = vmatpush.bf16.msra.mxu0 %v3901
    %4615 = vmatpush.bf16.msra.mxu0 %v3895
    %4616 = vmatpush.bf16.msra.mxu0 %v3889
    %4617 = vmatpush.bf16.msra.mxu0 %v3883
    %4618 = vmatmul.bf16.gmra.mxu0 %v4567
    %v4619 = vpop.f32.mrf.mxu0
    %v4620 = vadd.f32 %v4607, %v4619
    %v4621 = vpop.f32.mrf.mxu0
    %4622 = vdwg.mxu0
    %4623 = vmatpush.bf16.msra.mxu0 %v3878
    %4624 = vmatpush.bf16.msra.mxu0 %v3872
    %4625 = vmatpush.bf16.msra.mxu0 %v3866
    %4626 = vmatpush.bf16.msra.mxu0 %v3860
    %4627 = vmatpush.bf16.msra.mxu0 %v3854
    %4628 = vmatpush.bf16.msra.mxu0 %v3848
    %4629 = vmatpush.bf16.msra.mxu0 %v3842
    %4630 = vmatpush.bf16.msra.mxu0 %v3836
    %4631 = vmatmul.bf16.gmra.mxu0 %v4564
    %v4632 = vpop.f32.mrf.mxu0
    %v4633 = vadd.f32 0.0, %v4632
    %v4634 = vpop.f32.mrf.mxu0
    %4635 = vdwg.mxu0
    %4636 = vmatpush.bf16.msra.mxu0 %v3926
    %4637 = vmatpush.bf16.msra.mxu0 %v3920
    %4638 = vmatpush.bf16.msra.mxu0 %v3914
    %4639 = vmatpush.bf16.msra.mxu0 %v3908
    %4640 = vmatpush.bf16.msra.mxu0 %v3902
    %4641 = vmatpush.bf16.msra.mxu0 %v3896
    %4642 = vmatpush.bf16.msra.mxu0 %v3890
    %4643 = vmatpush.bf16.msra.mxu0 %v3884
    %4644 = vmatmul.bf16.gmra.mxu0 %v4567
    %v4645 = vpop.f32.mrf.mxu0
    %v4646 = vadd.f32 %v4633, %v4645
    %v4647 = vpop.f32.mrf.mxu0
    %4648 = vdwg.mxu0
    %4649 = vmatpush.bf16.msra.mxu0 %v3879
    %4650 = vmatpush.bf16.msra.mxu0 %v3873
    %4651 = vmatpush.bf16.msra.mxu0 %v3867
    %4652 = vmatpush.bf16.msra.mxu0 %v3861
    %4653 = vmatpush.bf16.msra.mxu0 %v3855
    %4654 = vmatpush.bf16.msra.mxu0 %v3849
    %4655 = vmatpush.bf16.msra.mxu0 %v3843
    %4656 = vmatpush.bf16.msra.mxu0 %v3837
    %4657 = vmatmul.bf16.gmra.mxu0 %v4564
    %v4658 = vpop.f32.mrf.mxu0
    %v4659 = vadd.f32 0.0, %v4658
    %v4660 = vpop.f32.mrf.mxu0
    %4661 = vdwg.mxu0
    %4662 = vmatpush.bf16.msra.mxu0 %v3927
    %4663 = vmatpush.bf16.msra.mxu0 %v3921
    %4664 = vmatpush.bf16.msra.mxu0 %v3915
    %4665 = vmatpush.bf16.msra.mxu0 %v3909
    %4666 = vmatpush.bf16.msra.mxu0 %v3903
    %4667 = vmatpush.bf16.msra.mxu0 %v3897
    %4668 = vmatpush.bf16.msra.mxu0 %v3891
    %4669 = vmatpush.bf16.msra.mxu0 %v3885
    %4670 = vmatmul.bf16.gmra.mxu0 %v4567
    %v4671 = vpop.f32.mrf.mxu0
    %v4672 = vadd.f32 %v4659, %v4671
    %v4673 = vpop.f32.mrf.mxu0
    %4674 = vdwg.mxu0
    %4675 = vmatpush.bf16.msra.mxu0 %v3880
    %4676 = vmatpush.bf16.msra.mxu0 %v3874
    %4677 = vmatpush.bf16.msra.mxu0 %v3868
    %4678 = vmatpush.bf16.msra.mxu0 %v3862
    %4679 = vmatpush.bf16.msra.mxu0 %v3856
    %4680 = vmatpush.bf16.msra.mxu0 %v3850
    %4681 = vmatpush.bf16.msra.mxu0 %v3844
    %4682 = vmatpush.bf16.msra.mxu0 %v3838
    %4683 = vmatmul.bf16.gmra.mxu0 %v4564
    %v4684 = vpop.f32.mrf.mxu0
    %v4685 = vadd.f32 0.0, %v4684
    %v4686 = vpop.f32.mrf.mxu0
    %4687 = vdwg.mxu0
    %4688 = vmatpush.bf16.msra.mxu0 %v3928
    %4689 = vmatpush.bf16.msra.mxu0 %v3922
    %4690 = vmatpush.bf16.msra.mxu0 %v3916
    %4691 = vmatpush.bf16.msra.mxu0 %v3910
    %4692 = vmatpush.bf16.msra.mxu0 %v3904
    %4693 = vmatpush.bf16.msra.mxu0 %v3898
    %4694 = vmatpush.bf16.msra.mxu0 %v3892
    %4695 = vmatpush.bf16.msra.mxu0 %v3886
    %4696 = vmatmul.bf16.gmra.mxu0 %v4567
    %v4697 = vpop.f32.mrf.mxu0
    %v4698 = vadd.f32 %v4685, %v4697
    %v4699 = vpop.f32.mrf.mxu0
    %4700 = vdwg.mxu0
    %4701 = vmatpush.bf16.msra.mxu0 %v3881
    %4702 = vmatpush.bf16.msra.mxu0 %v3875
    %4703 = vmatpush.bf16.msra.mxu0 %v3869
    %4704 = vmatpush.bf16.msra.mxu0 %v3863
    %4705 = vmatpush.bf16.msra.mxu0 %v3857
    %4706 = vmatpush.bf16.msra.mxu0 %v3851
    %4707 = vmatpush.bf16.msra.mxu0 %v3845
    %4708 = vmatpush.bf16.msra.mxu0 %v3839
    %4709 = vmatmul.bf16.gmra.mxu0 %v4564
    %v4710 = vpop.f32.mrf.mxu0
    %v4711 = vadd.f32 0.0, %v4710
    %v4712 = vpop.f32.mrf.mxu0
    %4713 = vdwg.mxu0
    %4714 = vmatpush.bf16.msra.mxu0 %v3929
    %4715 = vmatpush.bf16.msra.mxu0 %v3923
    %4716 = vmatpush.bf16.msra.mxu0 %v3917
    %4717 = vmatpush.bf16.msra.mxu0 %v3911
    %4718 = vmatpush.bf16.msra.mxu0 %v3905
    %4719 = vmatpush.bf16.msra.mxu0 %v3899
    %4720 = vmatpush.bf16.msra.mxu0 %v3893
    %4721 = vmatpush.bf16.msra.mxu0 %v3887
    %4722 = vmatmul.bf16.gmra.mxu0 %v4567
    %v4723 = vpop.f32.mrf.mxu0
    %v4724 = vadd.f32 %v4711, %v4723
    %v4725 = vpop.f32.mrf.mxu0
    %4726 = vdwg.mxu0
    %v4729 = vrot.slane %v4594, 6
    %v4730 = vrot.slane %v4620, 6
    %v4733 = vadd.f32 %v3305, %v4729
    %v4734 = vadd.f32 %v3331, %v4730
    %v4735 = vxor.u32 %v4733, 2147483648
    %v4736 = vxor.u32 %v4734, 2147483648
    %v4737 = vmul.f32 %v4735, 1.442695
    %v4738 = vpow.pop %v4737
    %v4739 = vmul.f32 %v4736, 1.442695
    %v4740 = vpow.pop %v4739
    %v4741 = vadd.f32 %v4738, 1.0
    %v4742 = vadd.f32 %v4740, 1.0
    %v4743 = vrcp.pop %v4741
    %v4744 = vmul.f32 %v4741, %v4743
    %v4745 = vsub.f32 1.0, %v4744
    %v4746 = vmul.f32 %v4743, %v4745
    %v4747 = vadd.f32 %v4743, %v4746
    %vm4748 = vweird.f32 %v4741
    %vm4749 = vweird.f32 %v4743
    %vm4750 = vmor %vm4748, %vm4749
    %v4751 = vsel %vm4750, %v4743, %v4747
    %v4752 = vand.u32 2147483647, %v4741
    %vm4753 = vcmp.eq.f32.partialorder %v4752, 8.507059e+37
    %v4754 = vand.u32 %v4741, 2147483648
    %v4755 = vor.u32 1.1754944e-38, %v4754
    %v4756 = vsel %vm4753, %v4755, %v4751
    %v4757 = vmul.f32 1.0, %v4756
    %v4758 = vrcp.pop %v4742
    %v4759 = vmul.f32 %v4742, %v4758
    %v4760 = vsub.f32 1.0, %v4759
    %v4761 = vmul.f32 %v4758, %v4760
    %v4762 = vadd.f32 %v4758, %v4761
    %vm4763 = vweird.f32 %v4742
    %vm4764 = vweird.f32 %v4758
    %vm4765 = vmor %vm4763, %vm4764
    %v4766 = vsel %vm4765, %v4758, %v4762
    %v4767 = vand.u32 2147483647, %v4742
    %vm4768 = vcmp.eq.f32.partialorder %v4767, 8.507059e+37
    %v4769 = vand.u32 %v4742, 2147483648
    %v4770 = vor.u32 1.1754944e-38, %v4769
    %v4771 = vsel %vm4768, %v4770, %v4766
    %v4772 = vmul.f32 1.0, %v4771
    %v4775 = vrot.slane %v4646, 6
    %v4776 = vrot.slane %v4672, 6
    %v4779 = vadd.f32 %v3357, %v4775
    %v4780 = vadd.f32 %v3383, %v4776
    %v4781 = vxor.u32 %v4779, 2147483648
    %v4782 = vxor.u32 %v4780, 2147483648
    %v4783 = vmul.f32 %v4781, 1.442695
    %v4784 = vpow.pop %v4783
    %v4785 = vmul.f32 %v4782, 1.442695
    %v4786 = vpow.pop %v4785
    %v4787 = vadd.f32 %v4784, 1.0
    %v4788 = vadd.f32 %v4786, 1.0
    %v4789 = vrcp.pop %v4787
    %v4790 = vmul.f32 %v4787, %v4789
    %v4791 = vsub.f32 1.0, %v4790
    %v4792 = vmul.f32 %v4789, %v4791
    %v4793 = vadd.f32 %v4789, %v4792
    %vm4794 = vweird.f32 %v4787
    %vm4795 = vweird.f32 %v4789
    %vm4796 = vmor %vm4794, %vm4795
    %v4797 = vsel %vm4796, %v4789, %v4793
    %v4798 = vand.u32 2147483647, %v4787
    %vm4799 = vcmp.eq.f32.partialorder %v4798, 8.507059e+37
    %v4800 = vand.u32 %v4787, 2147483648
    %v4801 = vor.u32 1.1754944e-38, %v4800
    %v4802 = vsel %vm4799, %v4801, %v4797
    %v4803 = vmul.f32 1.0, %v4802
    %v4804 = vrcp.pop %v4788
    %v4805 = vmul.f32 %v4788, %v4804
    %v4806 = vsub.f32 1.0, %v4805
    %v4807 = vmul.f32 %v4804, %v4806
    %v4808 = vadd.f32 %v4804, %v4807
    %vm4809 = vweird.f32 %v4788
    %vm4810 = vweird.f32 %v4804
    %vm4811 = vmor %vm4809, %vm4810
    %v4812 = vsel %vm4811, %v4804, %v4808
    %v4813 = vand.u32 2147483647, %v4788
    %vm4814 = vcmp.eq.f32.partialorder %v4813, 8.507059e+37
    %v4815 = vand.u32 %v4788, 2147483648
    %v4816 = vor.u32 1.1754944e-38, %v4815
    %v4817 = vsel %vm4814, %v4816, %v4812
    %v4818 = vmul.f32 1.0, %v4817
    %v4819 = vadd.f32 %v4698, %v4263
    %v4820 = vadd.f32 %v4724, %v4264
    %v4823 = vrot.slane %v4819, 6
    %v4824 = vrot.slane %v4820, 6
    %v4827 = vmul.f32 %v4757, %v4823
    %v4828 = vmul.f32 %v4772, %v4824
    %v4829 = vadd.f32 %v3409, %v4827
    %v4830 = vadd.f32 %v3435, %v4828
    %v4831 = vtanh.pop %v4829
    %v4832 = vtanh.pop %v4830
    %v4833 = vsub.f32 1.0, %v4803
    %v4834 = vsub.f32 1.0, %v4818
    %v4835 = vmul.f32 %v4833, %v4831
    %v4836 = vmul.f32 %v4834, %v4832
    %v4839 = vrot.slane %v4559, 7
    %v4840 = vrot.slane %v4560, 7
    %v4843 = vmul.f32 %v4803, %v4839
    %v4844 = vmul.f32 %v4818, %v4840
    %v4845 = vadd.f32 %v4835, %v4843
    %v4846 = vadd.f32 %v4836, %v4844
    %v4847 = vpack.c.bf16 %v4845, %v4845
    %v4848 = vpack.c.bf16 %v4846, %v4846
    %v4851 = vrot.slane %v4847, 1
    %v4852 = vrot.slane %v4848, 1
    %4855 = vmatpush.bf16.msra.mxu0 %v3876
    %4856 = vmatpush.bf16.msra.mxu0 %v3870
    %4857 = vmatpush.bf16.msra.mxu0 %v3864
    %4858 = vmatpush.bf16.msra.mxu0 %v3858
    %4859 = vmatpush.bf16.msra.mxu0 %v3852
    %4860 = vmatpush.bf16.msra.mxu0 %v3846
    %4861 = vmatpush.bf16.msra.mxu0 %v3840
    %4862 = vmatpush.bf16.msra.mxu0 %v3834
    %4863 = vmatmul.bf16.gmra.mxu0 %v4851
    %v4864 = vpop.f32.mrf.mxu0
    %v4865 = vadd.f32 0.0, %v4864
    %v4866 = vpop.f32.mrf.mxu0
    %4867 = vdwg.mxu0
    %4868 = vmatpush.bf16.msra.mxu0 %v3924
    %4869 = vmatpush.bf16.msra.mxu0 %v3918
    %4870 = vmatpush.bf16.msra.mxu0 %v3912
    %4871 = vmatpush.bf16.msra.mxu0 %v3906
    %4872 = vmatpush.bf16.msra.mxu0 %v3900
    %4873 = vmatpush.bf16.msra.mxu0 %v3894
    %4874 = vmatpush.bf16.msra.mxu0 %v3888
    %4875 = vmatpush.bf16.msra.mxu0 %v3882
    %4876 = vmatmul.bf16.gmra.mxu0 %v4852
    %v4877 = vpop.f32.mrf.mxu0
    %v4878 = vadd.f32 %v4865, %v4877
    %v4879 = vpop.f32.mrf.mxu0
    %4880 = vdwg.mxu0
    %4881 = vmatpush.bf16.msra.mxu0 %v3877
    %4882 = vmatpush.bf16.msra.mxu0 %v3871
    %4883 = vmatpush.bf16.msra.mxu0 %v3865
    %4884 = vmatpush.bf16.msra.mxu0 %v3859
    %4885 = vmatpush.bf16.msra.mxu0 %v3853
    %4886 = vmatpush.bf16.msra.mxu0 %v3847
    %4887 = vmatpush.bf16.msra.mxu0 %v3841
    %4888 = vmatpush.bf16.msra.mxu0 %v3835
    %4889 = vmatmul.bf16.gmra.mxu0 %v4851
    %v4890 = vpop.f32.mrf.mxu0
    %v4891 = vadd.f32 0.0, %v4890
    %v4892 = vpop.f32.mrf.mxu0
    %4893 = vdwg.mxu0
    %4894 = vmatpush.bf16.msra.mxu0 %v3925
    %4895 = vmatpush.bf16.msra.mxu0 %v3919
    %4896 = vmatpush.bf16.msra.mxu0 %v3913
    %4897 = vmatpush.bf16.msra.mxu0 %v3907
    %4898 = vmatpush.bf16.msra.mxu0 %v3901
    %4899 = vmatpush.bf16.msra.mxu0 %v3895
    %4900 = vmatpush.bf16.msra.mxu0 %v3889
    %4901 = vmatpush.bf16.msra.mxu0 %v3883
    %4902 = vmatmul.bf16.gmra.mxu0 %v4852
    %v4903 = vpop.f32.mrf.mxu0
    %v4904 = vadd.f32 %v4891, %v4903
    %v4905 = vpop.f32.mrf.mxu0
    %4906 = vdwg.mxu0
    %4907 = vmatpush.bf16.msra.mxu0 %v3878
    %4908 = vmatpush.bf16.msra.mxu0 %v3872
    %4909 = vmatpush.bf16.msra.mxu0 %v3866
    %4910 = vmatpush.bf16.msra.mxu0 %v3860
    %4911 = vmatpush.bf16.msra.mxu0 %v3854
    %4912 = vmatpush.bf16.msra.mxu0 %v3848
    %4913 = vmatpush.bf16.msra.mxu0 %v3842
    %4914 = vmatpush.bf16.msra.mxu0 %v3836
    %4915 = vmatmul.bf16.gmra.mxu0 %v4851
    %v4916 = vpop.f32.mrf.mxu0
    %v4917 = vadd.f32 0.0, %v4916
    %v4918 = vpop.f32.mrf.mxu0
    %4919 = vdwg.mxu0
    %4920 = vmatpush.bf16.msra.mxu0 %v3926
    %4921 = vmatpush.bf16.msra.mxu0 %v3920
    %4922 = vmatpush.bf16.msra.mxu0 %v3914
    %4923 = vmatpush.bf16.msra.mxu0 %v3908
    %4924 = vmatpush.bf16.msra.mxu0 %v3902
    %4925 = vmatpush.bf16.msra.mxu0 %v3896
    %4926 = vmatpush.bf16.msra.mxu0 %v3890
    %4927 = vmatpush.bf16.msra.mxu0 %v3884
    %4928 = vmatmul.bf16.gmra.mxu0 %v4852
    %v4929 = vpop.f32.mrf.mxu0
    %v4930 = vadd.f32 %v4917, %v4929
    %v4931 = vpop.f32.mrf.mxu0
    %4932 = vdwg.mxu0
    %4933 = vmatpush.bf16.msra.mxu0 %v3879
    %4934 = vmatpush.bf16.msra.mxu0 %v3873
    %4935 = vmatpush.bf16.msra.mxu0 %v3867
    %4936 = vmatpush.bf16.msra.mxu0 %v3861
    %4937 = vmatpush.bf16.msra.mxu0 %v3855
    %4938 = vmatpush.bf16.msra.mxu0 %v3849
    %4939 = vmatpush.bf16.msra.mxu0 %v3843
    %4940 = vmatpush.bf16.msra.mxu0 %v3837
    %4941 = vmatmul.bf16.gmra.mxu0 %v4851
    %v4942 = vpop.f32.mrf.mxu0
    %v4943 = vadd.f32 0.0, %v4942
    %v4944 = vpop.f32.mrf.mxu0
    %4945 = vdwg.mxu0
    %4946 = vmatpush.bf16.msra.mxu0 %v3927
    %4947 = vmatpush.bf16.msra.mxu0 %v3921
    %4948 = vmatpush.bf16.msra.mxu0 %v3915
    %4949 = vmatpush.bf16.msra.mxu0 %v3909
    %4950 = vmatpush.bf16.msra.mxu0 %v3903
    %4951 = vmatpush.bf16.msra.mxu0 %v3897
    %4952 = vmatpush.bf16.msra.mxu0 %v3891
    %4953 = vmatpush.bf16.msra.mxu0 %v3885
    %4954 = vmatmul.bf16.gmra.mxu0 %v4852
    %v4955 = vpop.f32.mrf.mxu0
    %v4956 = vadd.f32 %v4943, %v4955
    %v4957 = vpop.f32.mrf.mxu0
    %4958 = vdwg.mxu0
    %4959 = vmatpush.bf16.msra.mxu0 %v3880
    %4960 = vmatpush.bf16.msra.mxu0 %v3874
    %4961 = vmatpush.bf16.msra.mxu0 %v3868
    %4962 = vmatpush.bf16.msra.mxu0 %v3862
    %4963 = vmatpush.bf16.msra.mxu0 %v3856
    %4964 = vmatpush.bf16.msra.mxu0 %v3850
    %4965 = vmatpush.bf16.msra.mxu0 %v3844
    %4966 = vmatpush.bf16.msra.mxu0 %v3838
    %4967 = vmatmul.bf16.gmra.mxu0 %v4851
    %v4968 = vpop.f32.mrf.mxu0
    %v4969 = vadd.f32 0.0, %v4968
    %v4970 = vpop.f32.mrf.mxu0
    %4971 = vdwg.mxu0
    %4972 = vmatpush.bf16.msra.mxu0 %v3928
    %4973 = vmatpush.bf16.msra.mxu0 %v3922
    %4974 = vmatpush.bf16.msra.mxu0 %v3916
    %4975 = vmatpush.bf16.msra.mxu0 %v3910
    %4976 = vmatpush.bf16.msra.mxu0 %v3904
    %4977 = vmatpush.bf16.msra.mxu0 %v3898
    %4978 = vmatpush.bf16.msra.mxu0 %v3892
    %4979 = vmatpush.bf16.msra.mxu0 %v3886
    %4980 = vmatmul.bf16.gmra.mxu0 %v4852
    %v4981 = vpop.f32.mrf.mxu0
    %v4982 = vadd.f32 %v4969, %v4981
    %v4983 = vpop.f32.mrf.mxu0
    %4984 = vdwg.mxu0
    %4985 = vmatpush.bf16.msra.mxu0 %v3881
    %4986 = vmatpush.bf16.msra.mxu0 %v3875
    %4987 = vmatpush.bf16.msra.mxu0 %v3869
    %4988 = vmatpush.bf16.msra.mxu0 %v3863
    %4989 = vmatpush.bf16.msra.mxu0 %v3857
    %4990 = vmatpush.bf16.msra.mxu0 %v3851
    %4991 = vmatpush.bf16.msra.mxu0 %v3845
    %4992 = vmatpush.bf16.msra.mxu0 %v3839
    %4993 = vmatmul.bf16.gmra.mxu0 %v4851
    %v4994 = vpop.f32.mrf.mxu0
    %v4995 = vadd.f32 0.0, %v4994
    %v4996 = vpop.f32.mrf.mxu0
    %4997 = vdwg.mxu0
    %4998 = vmatpush.bf16.msra.mxu0 %v3929
    %4999 = vmatpush.bf16.msra.mxu0 %v3923
    %5000 = vmatpush.bf16.msra.mxu0 %v3917
    %5001 = vmatpush.bf16.msra.mxu0 %v3911
    %5002 = vmatpush.bf16.msra.mxu0 %v3905
    %5003 = vmatpush.bf16.msra.mxu0 %v3899
    %5004 = vmatpush.bf16.msra.mxu0 %v3893
    %5005 = vmatpush.bf16.msra.mxu0 %v3887
    %5006 = vmatmul.bf16.gmra.mxu0 %v4852
    %v5007 = vpop.f32.mrf.mxu0
    %v5008 = vadd.f32 %v4995, %v5007
    %v5009 = vpop.f32.mrf.mxu0
    %5010 = vdwg.mxu0
    %v5013 = vrot.slane %v4878, 5
    %v5014 = vrot.slane %v4904, 5
    %v5017 = vadd.f32 %v3305, %v5013
    %v5018 = vadd.f32 %v3331, %v5014
    %v5019 = vxor.u32 %v5017, 2147483648
    %v5020 = vxor.u32 %v5018, 2147483648
    %v5021 = vmul.f32 %v5019, 1.442695
    %v5022 = vpow.pop %v5021
    %v5023 = vmul.f32 %v5020, 1.442695
    %v5024 = vpow.pop %v5023
    %v5025 = vadd.f32 %v5022, 1.0
    %v5026 = vadd.f32 %v5024, 1.0
    %v5027 = vrcp.pop %v5025
    %v5028 = vmul.f32 %v5025, %v5027
    %v5029 = vsub.f32 1.0, %v5028
    %v5030 = vmul.f32 %v5027, %v5029
    %v5031 = vadd.f32 %v5027, %v5030
    %vm5032 = vweird.f32 %v5025
    %vm5033 = vweird.f32 %v5027
    %vm5034 = vmor %vm5032, %vm5033
    %v5035 = vsel %vm5034, %v5027, %v5031
    %v5036 = vand.u32 2147483647, %v5025
    %vm5037 = vcmp.eq.f32.partialorder %v5036, 8.507059e+37
    %v5038 = vand.u32 %v5025, 2147483648
    %v5039 = vor.u32 1.1754944e-38, %v5038
    %v5040 = vsel %vm5037, %v5039, %v5035
    %v5041 = vmul.f32 1.0, %v5040
    %v5042 = vrcp.pop %v5026
    %v5043 = vmul.f32 %v5026, %v5042
    %v5044 = vsub.f32 1.0, %v5043
    %v5045 = vmul.f32 %v5042, %v5044
    %v5046 = vadd.f32 %v5042, %v5045
    %vm5047 = vweird.f32 %v5026
    %vm5048 = vweird.f32 %v5042
    %vm5049 = vmor %vm5047, %vm5048
    %v5050 = vsel %vm5049, %v5042, %v5046
    %v5051 = vand.u32 2147483647, %v5026
    %vm5052 = vcmp.eq.f32.partialorder %v5051, 8.507059e+37
    %v5053 = vand.u32 %v5026, 2147483648
    %v5054 = vor.u32 1.1754944e-38, %v5053
    %v5055 = vsel %vm5052, %v5054, %v5050
    %v5056 = vmul.f32 1.0, %v5055
    %v5059 = vrot.slane %v4930, 5
    %v5060 = vrot.slane %v4956, 5
    %v5063 = vadd.f32 %v3357, %v5059
    %v5064 = vadd.f32 %v3383, %v5060
    %v5065 = vxor.u32 %v5063, 2147483648
    %v5066 = vxor.u32 %v5064, 2147483648
    %v5067 = vmul.f32 %v5065, 1.442695
    %v5068 = vpow.pop %v5067
    %v5069 = vmul.f32 %v5066, 1.442695
    %v5070 = vpow.pop %v5069
    %v5071 = vadd.f32 %v5068, 1.0
    %v5072 = vadd.f32 %v5070, 1.0
    %v5073 = vrcp.pop %v5071
    %v5074 = vmul.f32 %v5071, %v5073
    %v5075 = vsub.f32 1.0, %v5074
    %v5076 = vmul.f32 %v5073, %v5075
    %v5077 = vadd.f32 %v5073, %v5076
    %vm5078 = vweird.f32 %v5071
    %vm5079 = vweird.f32 %v5073
    %vm5080 = vmor %vm5078, %vm5079
    %v5081 = vsel %vm5080, %v5073, %v5077
    %v5082 = vand.u32 2147483647, %v5071
    %vm5083 = vcmp.eq.f32.partialorder %v5082, 8.507059e+37
    %v5084 = vand.u32 %v5071, 2147483648
    %v5085 = vor.u32 1.1754944e-38, %v5084
    %v5086 = vsel %vm5083, %v5085, %v5081
    %v5087 = vmul.f32 1.0, %v5086
    %v5088 = vrcp.pop %v5072
    %v5089 = vmul.f32 %v5072, %v5088
    %v5090 = vsub.f32 1.0, %v5089
    %v5091 = vmul.f32 %v5088, %v5090
    %v5092 = vadd.f32 %v5088, %v5091
    %vm5093 = vweird.f32 %v5072
    %vm5094 = vweird.f32 %v5088
    %vm5095 = vmor %vm5093, %vm5094
    %v5096 = vsel %vm5095, %v5088, %v5092
    %v5097 = vand.u32 2147483647, %v5072
    %vm5098 = vcmp.eq.f32.partialorder %v5097, 8.507059e+37
    %v5099 = vand.u32 %v5072, 2147483648
    %v5100 = vor.u32 1.1754944e-38, %v5099
    %v5101 = vsel %vm5098, %v5100, %v5096
    %v5102 = vmul.f32 1.0, %v5101
    %v5103 = vadd.f32 %v4982, %v4263
    %v5104 = vadd.f32 %v5008, %v4264
    %v5107 = vrot.slane %v5103, 5
    %v5108 = vrot.slane %v5104, 5
    %v5111 = vmul.f32 %v5041, %v5107
    %v5112 = vmul.f32 %v5056, %v5108
    %v5113 = vadd.f32 %v3409, %v5111
    %v5114 = vadd.f32 %v3435, %v5112
    %v5115 = vtanh.pop %v5113
    %v5116 = vtanh.pop %v5114
    %v5117 = vsub.f32 1.0, %v5087
    %v5118 = vsub.f32 1.0, %v5102
    %v5119 = vmul.f32 %v5117, %v5115
    %v5120 = vmul.f32 %v5118, %v5116
    %v5123 = vrot.slane %v4845, 7
    %v5124 = vrot.slane %v4846, 7
    %v5127 = vmul.f32 %v5087, %v5123
    %v5128 = vmul.f32 %v5102, %v5124
    %v5129 = vadd.f32 %v5119, %v5127
    %v5130 = vadd.f32 %v5120, %v5128
    %v5131 = vpack.c.bf16 %v5129, %v5129
    %v5132 = vpack.c.bf16 %v5130, %v5130
    %v5134 = vshrl.u32 %v5131, 16
    %v5136 = vrot.slane %v5134, 1
    %v5138 = vshrl.u32 %v5132, 16
    %v5140 = vrot.slane %v5138, 1
    %5143 = vmatpush.bf16.msra.mxu0 %v3876
    %5144 = vmatpush.bf16.msra.mxu0 %v3870
    %5145 = vmatpush.bf16.msra.mxu0 %v3864
    %5146 = vmatpush.bf16.msra.mxu0 %v3858
    %5147 = vmatpush.bf16.msra.mxu0 %v3852
    %5148 = vmatpush.bf16.msra.mxu0 %v3846
    %5149 = vmatpush.bf16.msra.mxu0 %v3840
    %5150 = vmatpush.bf16.msra.mxu0 %v3834
    %5151 = vmatmul.bf16.gmra.mxu0 %v5136
    %v5152 = vpop.f32.mrf.mxu0
    %v5153 = vadd.f32 0.0, %v5152
    %v5154 = vpop.f32.mrf.mxu0
    %5155 = vdwg.mxu0
    %5156 = vmatpush.bf16.msra.mxu0 %v3924
    %5157 = vmatpush.bf16.msra.mxu0 %v3918
    %5158 = vmatpush.bf16.msra.mxu0 %v3912
    %5159 = vmatpush.bf16.msra.mxu0 %v3906
    %5160 = vmatpush.bf16.msra.mxu0 %v3900
    %5161 = vmatpush.bf16.msra.mxu0 %v3894
    %5162 = vmatpush.bf16.msra.mxu0 %v3888
    %5163 = vmatpush.bf16.msra.mxu0 %v3882
    %5164 = vmatmul.bf16.gmra.mxu0 %v5140
    %v5165 = vpop.f32.mrf.mxu0
    %v5166 = vadd.f32 %v5153, %v5165
    %v5167 = vpop.f32.mrf.mxu0
    %5168 = vdwg.mxu0
    %5169 = vmatpush.bf16.msra.mxu0 %v3877
    %5170 = vmatpush.bf16.msra.mxu0 %v3871
    %5171 = vmatpush.bf16.msra.mxu0 %v3865
    %5172 = vmatpush.bf16.msra.mxu0 %v3859
    %5173 = vmatpush.bf16.msra.mxu0 %v3853
    %5174 = vmatpush.bf16.msra.mxu0 %v3847
    %5175 = vmatpush.bf16.msra.mxu0 %v3841
    %5176 = vmatpush.bf16.msra.mxu0 %v3835
    %5177 = vmatmul.bf16.gmra.mxu0 %v5136
    %v5178 = vpop.f32.mrf.mxu0
    %v5179 = vadd.f32 0.0, %v5178
    %v5180 = vpop.f32.mrf.mxu0
    %5181 = vdwg.mxu0
    %5182 = vmatpush.bf16.msra.mxu0 %v3925
    %5183 = vmatpush.bf16.msra.mxu0 %v3919
    %5184 = vmatpush.bf16.msra.mxu0 %v3913
    %5185 = vmatpush.bf16.msra.mxu0 %v3907
    %5186 = vmatpush.bf16.msra.mxu0 %v3901
    %5187 = vmatpush.bf16.msra.mxu0 %v3895
    %5188 = vmatpush.bf16.msra.mxu0 %v3889
    %5189 = vmatpush.bf16.msra.mxu0 %v3883
    %5190 = vmatmul.bf16.gmra.mxu0 %v5140
    %v5191 = vpop.f32.mrf.mxu0
    %v5192 = vadd.f32 %v5179, %v5191
    %v5193 = vpop.f32.mrf.mxu0
    %5194 = vdwg.mxu0
    %5195 = vmatpush.bf16.msra.mxu0 %v3878
    %5196 = vmatpush.bf16.msra.mxu0 %v3872
    %5197 = vmatpush.bf16.msra.mxu0 %v3866
    %5198 = vmatpush.bf16.msra.mxu0 %v3860
    %5199 = vmatpush.bf16.msra.mxu0 %v3854
    %5200 = vmatpush.bf16.msra.mxu0 %v3848
    %5201 = vmatpush.bf16.msra.mxu0 %v3842
    %5202 = vmatpush.bf16.msra.mxu0 %v3836
    %5203 = vmatmul.bf16.gmra.mxu0 %v5136
    %v5204 = vpop.f32.mrf.mxu0
    %v5205 = vadd.f32 0.0, %v5204
    %v5206 = vpop.f32.mrf.mxu0
    %5207 = vdwg.mxu0
    %5208 = vmatpush.bf16.msra.mxu0 %v3926
    %5209 = vmatpush.bf16.msra.mxu0 %v3920
    %5210 = vmatpush.bf16.msra.mxu0 %v3914
    %5211 = vmatpush.bf16.msra.mxu0 %v3908
    %5212 = vmatpush.bf16.msra.mxu0 %v3902
    %5213 = vmatpush.bf16.msra.mxu0 %v3896
    %5214 = vmatpush.bf16.msra.mxu0 %v3890
    %5215 = vmatpush.bf16.msra.mxu0 %v3884
    %5216 = vmatmul.bf16.gmra.mxu0 %v5140
    %v5217 = vpop.f32.mrf.mxu0
    %v5218 = vadd.f32 %v5205, %v5217
    %v5219 = vpop.f32.mrf.mxu0
    %5220 = vdwg.mxu0
    %5221 = vmatpush.bf16.msra.mxu0 %v3879
    %5222 = vmatpush.bf16.msra.mxu0 %v3873
    %5223 = vmatpush.bf16.msra.mxu0 %v3867
    %5224 = vmatpush.bf16.msra.mxu0 %v3861
    %5225 = vmatpush.bf16.msra.mxu0 %v3855
    %5226 = vmatpush.bf16.msra.mxu0 %v3849
    %5227 = vmatpush.bf16.msra.mxu0 %v3843
    %5228 = vmatpush.bf16.msra.mxu0 %v3837
    %5229 = vmatmul.bf16.gmra.mxu0 %v5136
    %v5230 = vpop.f32.mrf.mxu0
    %v5231 = vadd.f32 0.0, %v5230
    %v5232 = vpop.f32.mrf.mxu0
    %5233 = vdwg.mxu0
    %5234 = vmatpush.bf16.msra.mxu0 %v3927
    %5235 = vmatpush.bf16.msra.mxu0 %v3921
    %5236 = vmatpush.bf16.msra.mxu0 %v3915
    %5237 = vmatpush.bf16.msra.mxu0 %v3909
    %5238 = vmatpush.bf16.msra.mxu0 %v3903
    %5239 = vmatpush.bf16.msra.mxu0 %v3897
    %5240 = vmatpush.bf16.msra.mxu0 %v3891
    %5241 = vmatpush.bf16.msra.mxu0 %v3885
    %5242 = vmatmul.bf16.gmra.mxu0 %v5140
    %v5243 = vpop.f32.mrf.mxu0
    %v5244 = vadd.f32 %v5231, %v5243
    %v5245 = vpop.f32.mrf.mxu0
    %5246 = vdwg.mxu0
    %5247 = vmatpush.bf16.msra.mxu0 %v3880
    %5248 = vmatpush.bf16.msra.mxu0 %v3874
    %5249 = vmatpush.bf16.msra.mxu0 %v3868
    %5250 = vmatpush.bf16.msra.mxu0 %v3862
    %5251 = vmatpush.bf16.msra.mxu0 %v3856
    %5252 = vmatpush.bf16.msra.mxu0 %v3850
    %5253 = vmatpush.bf16.msra.mxu0 %v3844
    %5254 = vmatpush.bf16.msra.mxu0 %v3838
    %5255 = vmatmul.bf16.gmra.mxu0 %v5136
    %v5256 = vpop.f32.mrf.mxu0
    %v5257 = vadd.f32 0.0, %v5256
    %v5258 = vpop.f32.mrf.mxu0
    %5259 = vdwg.mxu0
    %5260 = vmatpush.bf16.msra.mxu0 %v3928
    %5261 = vmatpush.bf16.msra.mxu0 %v3922
    %5262 = vmatpush.bf16.msra.mxu0 %v3916
    %5263 = vmatpush.bf16.msra.mxu0 %v3910
    %5264 = vmatpush.bf16.msra.mxu0 %v3904
    %5265 = vmatpush.bf16.msra.mxu0 %v3898
    %5266 = vmatpush.bf16.msra.mxu0 %v3892
    %5267 = vmatpush.bf16.msra.mxu0 %v3886
    %5268 = vmatmul.bf16.gmra.mxu0 %v5140
    %v5269 = vpop.f32.mrf.mxu0
    %v5270 = vadd.f32 %v5257, %v5269
    %v5271 = vpop.f32.mrf.mxu0
    %5272 = vdwg.mxu0
    %5273 = vmatpush.bf16.msra.mxu0 %v3881
    %5274 = vmatpush.bf16.msra.mxu0 %v3875
    %5275 = vmatpush.bf16.msra.mxu0 %v3869
    %5276 = vmatpush.bf16.msra.mxu0 %v3863
    %5277 = vmatpush.bf16.msra.mxu0 %v3857
    %5278 = vmatpush.bf16.msra.mxu0 %v3851
    %5279 = vmatpush.bf16.msra.mxu0 %v3845
    %5280 = vmatpush.bf16.msra.mxu0 %v3839
    %5281 = vmatmul.bf16.gmra.mxu0 %v5136
    %v5282 = vpop.f32.mrf.mxu0
    %v5283 = vadd.f32 0.0, %v5282
    %v5284 = vpop.f32.mrf.mxu0
    %5285 = vdwg.mxu0
    %5286 = vmatpush.bf16.msra.mxu0 %v3929
    %5287 = vmatpush.bf16.msra.mxu0 %v3923
    %5288 = vmatpush.bf16.msra.mxu0 %v3917
    %5289 = vmatpush.bf16.msra.mxu0 %v3911
    %5290 = vmatpush.bf16.msra.mxu0 %v3905
    %5291 = vmatpush.bf16.msra.mxu0 %v3899
    %5292 = vmatpush.bf16.msra.mxu0 %v3893
    %5293 = vmatpush.bf16.msra.mxu0 %v3887
    %5294 = vmatmul.bf16.gmra.mxu0 %v5140
    %v5295 = vpop.f32.mrf.mxu0
    %v5296 = vadd.f32 %v5283, %v5295
    %v5297 = vpop.f32.mrf.mxu0
    %5298 = vdwg.mxu0
    %v5301 = vrot.slane %v5166, 4
    %v5302 = vrot.slane %v5192, 4
    %v5305 = vadd.f32 %v3305, %v5301
    %v5306 = vadd.f32 %v3331, %v5302
    %v5307 = vxor.u32 %v5305, 2147483648
    %v5308 = vxor.u32 %v5306, 2147483648
    %v5309 = vmul.f32 %v5307, 1.442695
    %v5310 = vpow.pop %v5309
    %v5311 = vmul.f32 %v5308, 1.442695
    %v5312 = vpow.pop %v5311
    %v5313 = vadd.f32 %v5310, 1.0
    %v5314 = vadd.f32 %v5312, 1.0
    %v5315 = vrcp.pop %v5313
    %v5316 = vmul.f32 %v5313, %v5315
    %v5317 = vsub.f32 1.0, %v5316
    %v5318 = vmul.f32 %v5315, %v5317
    %v5319 = vadd.f32 %v5315, %v5318
    %vm5320 = vweird.f32 %v5313
    %vm5321 = vweird.f32 %v5315
    %vm5322 = vmor %vm5320, %vm5321
    %v5323 = vsel %vm5322, %v5315, %v5319
    %v5324 = vand.u32 2147483647, %v5313
    %vm5325 = vcmp.eq.f32.partialorder %v5324, 8.507059e+37
    %v5326 = vand.u32 %v5313, 2147483648
    %v5327 = vor.u32 1.1754944e-38, %v5326
    %v5328 = vsel %vm5325, %v5327, %v5323
    %v5329 = vmul.f32 1.0, %v5328
    %v5330 = vrcp.pop %v5314
    %v5331 = vmul.f32 %v5314, %v5330
    %v5332 = vsub.f32 1.0, %v5331
    %v5333 = vmul.f32 %v5330, %v5332
    %v5334 = vadd.f32 %v5330, %v5333
    %vm5335 = vweird.f32 %v5314
    %vm5336 = vweird.f32 %v5330
    %vm5337 = vmor %vm5335, %vm5336
    %v5338 = vsel %vm5337, %v5330, %v5334
    %v5339 = vand.u32 2147483647, %v5314
    %vm5340 = vcmp.eq.f32.partialorder %v5339, 8.507059e+37
    %v5341 = vand.u32 %v5314, 2147483648
    %v5342 = vor.u32 1.1754944e-38, %v5341
    %v5343 = vsel %vm5340, %v5342, %v5338
    %v5344 = vmul.f32 1.0, %v5343
    %v5347 = vrot.slane %v5218, 4
    %v5348 = vrot.slane %v5244, 4
    %v5351 = vadd.f32 %v3357, %v5347
    %v5352 = vadd.f32 %v3383, %v5348
    %v5353 = vxor.u32 %v5351, 2147483648
    %v5354 = vxor.u32 %v5352, 2147483648
    %v5355 = vmul.f32 %v5353, 1.442695
    %v5356 = vpow.pop %v5355
    %v5357 = vmul.f32 %v5354, 1.442695
    %v5358 = vpow.pop %v5357
    %v5359 = vadd.f32 %v5356, 1.0
    %v5360 = vadd.f32 %v5358, 1.0
    %v5361 = vrcp.pop %v5359
    %v5362 = vmul.f32 %v5359, %v5361
    %v5363 = vsub.f32 1.0, %v5362
    %v5364 = vmul.f32 %v5361, %v5363
    %v5365 = vadd.f32 %v5361, %v5364
    %vm5366 = vweird.f32 %v5359
    %vm5367 = vweird.f32 %v5361
    %vm5368 = vmor %vm5366, %vm5367
    %v5369 = vsel %vm5368, %v5361, %v5365
    %v5370 = vand.u32 2147483647, %v5359
    %vm5371 = vcmp.eq.f32.partialorder %v5370, 8.507059e+37
    %v5372 = vand.u32 %v5359, 2147483648
    %v5373 = vor.u32 1.1754944e-38, %v5372
    %v5374 = vsel %vm5371, %v5373, %v5369
    %v5375 = vmul.f32 1.0, %v5374
    %v5376 = vrcp.pop %v5360
    %v5377 = vmul.f32 %v5360, %v5376
    %v5378 = vsub.f32 1.0, %v5377
    %v5379 = vmul.f32 %v5376, %v5378
    %v5380 = vadd.f32 %v5376, %v5379
    %vm5381 = vweird.f32 %v5360
    %vm5382 = vweird.f32 %v5376
    %vm5383 = vmor %vm5381, %vm5382
    %v5384 = vsel %vm5383, %v5376, %v5380
    %v5385 = vand.u32 2147483647, %v5360
    %vm5386 = vcmp.eq.f32.partialorder %v5385, 8.507059e+37
    %v5387 = vand.u32 %v5360, 2147483648
    %v5388 = vor.u32 1.1754944e-38, %v5387
    %v5389 = vsel %vm5386, %v5388, %v5384
    %v5390 = vmul.f32 1.0, %v5389
    %v5391 = vadd.f32 %v5270, %v4263
    %v5392 = vadd.f32 %v5296, %v4264
    %v5395 = vrot.slane %v5391, 4
    %v5396 = vrot.slane %v5392, 4
    %v5399 = vmul.f32 %v5329, %v5395
    %v5400 = vmul.f32 %v5344, %v5396
    %v5401 = vadd.f32 %v3409, %v5399
    %v5402 = vadd.f32 %v3435, %v5400
    %v5403 = vtanh.pop %v5401
    %v5404 = vtanh.pop %v5402
    %v5405 = vsub.f32 1.0, %v5375
    %v5406 = vsub.f32 1.0, %v5390
    %v5407 = vmul.f32 %v5405, %v5403
    %v5408 = vmul.f32 %v5406, %v5404
    %v5411 = vrot.slane %v5129, 7
    %v5412 = vrot.slane %v5130, 7
    %v5415 = vmul.f32 %v5375, %v5411
    %v5416 = vmul.f32 %v5390, %v5412
    %v5417 = vadd.f32 %v5407, %v5415
    %v5418 = vadd.f32 %v5408, %v5416
    %v5419 = vpack.c.bf16 %v5417, %v5417
    %v5420 = vpack.c.bf16 %v5418, %v5418
    %v5423 = vrot.slane %v5419, 2
    %v5424 = vrot.slane %v5420, 2
    %5427 = vmatpush.bf16.msra.mxu0 %v3876
    %5428 = vmatpush.bf16.msra.mxu0 %v3870
    %5429 = vmatpush.bf16.msra.mxu0 %v3864
    %5430 = vmatpush.bf16.msra.mxu0 %v3858
    %5431 = vmatpush.bf16.msra.mxu0 %v3852
    %5432 = vmatpush.bf16.msra.mxu0 %v3846
    %5433 = vmatpush.bf16.msra.mxu0 %v3840
    %5434 = vmatpush.bf16.msra.mxu0 %v3834
    %5435 = vmatmul.bf16.gmra.mxu0 %v5423
    %v5436 = vpop.f32.mrf.mxu0
    %v5437 = vadd.f32 0.0, %v5436
    %v5438 = vpop.f32.mrf.mxu0
    %5439 = vdwg.mxu0
    %5440 = vmatpush.bf16.msra.mxu0 %v3924
    %5441 = vmatpush.bf16.msra.mxu0 %v3918
    %5442 = vmatpush.bf16.msra.mxu0 %v3912
    %5443 = vmatpush.bf16.msra.mxu0 %v3906
    %5444 = vmatpush.bf16.msra.mxu0 %v3900
    %5445 = vmatpush.bf16.msra.mxu0 %v3894
    %5446 = vmatpush.bf16.msra.mxu0 %v3888
    %5447 = vmatpush.bf16.msra.mxu0 %v3882
    %5448 = vmatmul.bf16.gmra.mxu0 %v5424
    %v5449 = vpop.f32.mrf.mxu0
    %v5450 = vadd.f32 %v5437, %v5449
    %v5451 = vpop.f32.mrf.mxu0
    %5452 = vdwg.mxu0
    %5453 = vmatpush.bf16.msra.mxu0 %v3877
    %5454 = vmatpush.bf16.msra.mxu0 %v3871
    %5455 = vmatpush.bf16.msra.mxu0 %v3865
    %5456 = vmatpush.bf16.msra.mxu0 %v3859
    %5457 = vmatpush.bf16.msra.mxu0 %v3853
    %5458 = vmatpush.bf16.msra.mxu0 %v3847
    %5459 = vmatpush.bf16.msra.mxu0 %v3841
    %5460 = vmatpush.bf16.msra.mxu0 %v3835
    %5461 = vmatmul.bf16.gmra.mxu0 %v5423
    %v5462 = vpop.f32.mrf.mxu0
    %v5463 = vadd.f32 0.0, %v5462
    %v5464 = vpop.f32.mrf.mxu0
    %5465 = vdwg.mxu0
    %5466 = vmatpush.bf16.msra.mxu0 %v3925
    %5467 = vmatpush.bf16.msra.mxu0 %v3919
    %5468 = vmatpush.bf16.msra.mxu0 %v3913
    %5469 = vmatpush.bf16.msra.mxu0 %v3907
    %5470 = vmatpush.bf16.msra.mxu0 %v3901
    %5471 = vmatpush.bf16.msra.mxu0 %v3895
    %5472 = vmatpush.bf16.msra.mxu0 %v3889
    %5473 = vmatpush.bf16.msra.mxu0 %v3883
    %5474 = vmatmul.bf16.gmra.mxu0 %v5424
    %v5475 = vpop.f32.mrf.mxu0
    %v5476 = vadd.f32 %v5463, %v5475
    %v5477 = vpop.f32.mrf.mxu0
    %5478 = vdwg.mxu0
    %5479 = vmatpush.bf16.msra.mxu0 %v3878
    %5480 = vmatpush.bf16.msra.mxu0 %v3872
    %5481 = vmatpush.bf16.msra.mxu0 %v3866
    %5482 = vmatpush.bf16.msra.mxu0 %v3860
    %5483 = vmatpush.bf16.msra.mxu0 %v3854
    %5484 = vmatpush.bf16.msra.mxu0 %v3848
    %5485 = vmatpush.bf16.msra.mxu0 %v3842
    %5486 = vmatpush.bf16.msra.mxu0 %v3836
    %5487 = vmatmul.bf16.gmra.mxu0 %v5423
    %v5488 = vpop.f32.mrf.mxu0
    %v5489 = vadd.f32 0.0, %v5488
    %v5490 = vpop.f32.mrf.mxu0
    %5491 = vdwg.mxu0
    %5492 = vmatpush.bf16.msra.mxu0 %v3926
    %5493 = vmatpush.bf16.msra.mxu0 %v3920
    %5494 = vmatpush.bf16.msra.mxu0 %v3914
    %5495 = vmatpush.bf16.msra.mxu0 %v3908
    %5496 = vmatpush.bf16.msra.mxu0 %v3902
    %5497 = vmatpush.bf16.msra.mxu0 %v3896
    %5498 = vmatpush.bf16.msra.mxu0 %v3890
    %5499 = vmatpush.bf16.msra.mxu0 %v3884
    %5500 = vmatmul.bf16.gmra.mxu0 %v5424
    %v5501 = vpop.f32.mrf.mxu0
    %v5502 = vadd.f32 %v5489, %v5501
    %v5503 = vpop.f32.mrf.mxu0
    %5504 = vdwg.mxu0
    %5505 = vmatpush.bf16.msra.mxu0 %v3879
    %5506 = vmatpush.bf16.msra.mxu0 %v3873
    %5507 = vmatpush.bf16.msra.mxu0 %v3867
    %5508 = vmatpush.bf16.msra.mxu0 %v3861
    %5509 = vmatpush.bf16.msra.mxu0 %v3855
    %5510 = vmatpush.bf16.msra.mxu0 %v3849
    %5511 = vmatpush.bf16.msra.mxu0 %v3843
    %5512 = vmatpush.bf16.msra.mxu0 %v3837
    %5513 = vmatmul.bf16.gmra.mxu0 %v5423
    %v5514 = vpop.f32.mrf.mxu0
    %v5515 = vadd.f32 0.0, %v5514
    %v5516 = vpop.f32.mrf.mxu0
    %5517 = vdwg.mxu0
    %5518 = vmatpush.bf16.msra.mxu0 %v3927
    %5519 = vmatpush.bf16.msra.mxu0 %v3921
    %5520 = vmatpush.bf16.msra.mxu0 %v3915
    %5521 = vmatpush.bf16.msra.mxu0 %v3909
    %5522 = vmatpush.bf16.msra.mxu0 %v3903
    %5523 = vmatpush.bf16.msra.mxu0 %v3897
    %5524 = vmatpush.bf16.msra.mxu0 %v3891
    %5525 = vmatpush.bf16.msra.mxu0 %v3885
    %5526 = vmatmul.bf16.gmra.mxu0 %v5424
    %v5527 = vpop.f32.mrf.mxu0
    %v5528 = vadd.f32 %v5515, %v5527
    %v5529 = vpop.f32.mrf.mxu0
    %5530 = vdwg.mxu0
    %5531 = vmatpush.bf16.msra.mxu0 %v3880
    %5532 = vmatpush.bf16.msra.mxu0 %v3874
    %5533 = vmatpush.bf16.msra.mxu0 %v3868
    %5534 = vmatpush.bf16.msra.mxu0 %v3862
    %5535 = vmatpush.bf16.msra.mxu0 %v3856
    %5536 = vmatpush.bf16.msra.mxu0 %v3850
    %5537 = vmatpush.bf16.msra.mxu0 %v3844
    %5538 = vmatpush.bf16.msra.mxu0 %v3838
    %5539 = vmatmul.bf16.gmra.mxu0 %v5423
    %v5540 = vpop.f32.mrf.mxu0
    %v5541 = vadd.f32 0.0, %v5540
    %v5542 = vpop.f32.mrf.mxu0
    %5543 = vdwg.mxu0
    %5544 = vmatpush.bf16.msra.mxu0 %v3928
    %5545 = vmatpush.bf16.msra.mxu0 %v3922
    %5546 = vmatpush.bf16.msra.mxu0 %v3916
    %5547 = vmatpush.bf16.msra.mxu0 %v3910
    %5548 = vmatpush.bf16.msra.mxu0 %v3904
    %5549 = vmatpush.bf16.msra.mxu0 %v3898
    %5550 = vmatpush.bf16.msra.mxu0 %v3892
    %5551 = vmatpush.bf16.msra.mxu0 %v3886
    %5552 = vmatmul.bf16.gmra.mxu0 %v5424
    %v5553 = vpop.f32.mrf.mxu0
    %v5554 = vadd.f32 %v5541, %v5553
    %v5555 = vpop.f32.mrf.mxu0
    %5556 = vdwg.mxu0
    %5557 = vmatpush.bf16.msra.mxu0 %v3881
    %5558 = vmatpush.bf16.msra.mxu0 %v3875
    %5559 = vmatpush.bf16.msra.mxu0 %v3869
    %5560 = vmatpush.bf16.msra.mxu0 %v3863
    %5561 = vmatpush.bf16.msra.mxu0 %v3857
    %5562 = vmatpush.bf16.msra.mxu0 %v3851
    %5563 = vmatpush.bf16.msra.mxu0 %v3845
    %5564 = vmatpush.bf16.msra.mxu0 %v3839
    %5565 = vmatmul.bf16.gmra.mxu0 %v5423
    %v5566 = vpop.f32.mrf.mxu0
    %v5567 = vadd.f32 0.0, %v5566
    %v5568 = vpop.f32.mrf.mxu0
    %5569 = vdwg.mxu0
    %5570 = vmatpush.bf16.msra.mxu0 %v3929
    %5571 = vmatpush.bf16.msra.mxu0 %v3923
    %5572 = vmatpush.bf16.msra.mxu0 %v3917
    %5573 = vmatpush.bf16.msra.mxu0 %v3911
    %5574 = vmatpush.bf16.msra.mxu0 %v3905
    %5575 = vmatpush.bf16.msra.mxu0 %v3899
    %5576 = vmatpush.bf16.msra.mxu0 %v3893
    %5577 = vmatpush.bf16.msra.mxu0 %v3887
    %5578 = vmatmul.bf16.gmra.mxu0 %v5424
    %v5579 = vpop.f32.mrf.mxu0
    %v5580 = vadd.f32 %v5567, %v5579
    %v5581 = vpop.f32.mrf.mxu0
    %5582 = vdwg.mxu0
    %v5585 = vrot.slane %v5450, 3
    %v5586 = vrot.slane %v5476, 3
    %v5589 = vadd.f32 %v3305, %v5585
    %v5590 = vadd.f32 %v3331, %v5586
    %v5591 = vxor.u32 %v5589, 2147483648
    %v5592 = vxor.u32 %v5590, 2147483648
    %v5593 = vmul.f32 %v5591, 1.442695
    %v5594 = vpow.pop %v5593
    %v5595 = vmul.f32 %v5592, 1.442695
    %v5596 = vpow.pop %v5595
    %v5597 = vadd.f32 %v5594, 1.0
    %v5598 = vadd.f32 %v5596, 1.0
    %v5599 = vrcp.pop %v5597
    %v5600 = vmul.f32 %v5597, %v5599
    %v5601 = vsub.f32 1.0, %v5600
    %v5602 = vmul.f32 %v5599, %v5601
    %v5603 = vadd.f32 %v5599, %v5602
    %vm5604 = vweird.f32 %v5597
    %vm5605 = vweird.f32 %v5599
    %vm5606 = vmor %vm5604, %vm5605
    %v5607 = vsel %vm5606, %v5599, %v5603
    %v5608 = vand.u32 2147483647, %v5597
    %vm5609 = vcmp.eq.f32.partialorder %v5608, 8.507059e+37
    %v5610 = vand.u32 %v5597, 2147483648
    %v5611 = vor.u32 1.1754944e-38, %v5610
    %v5612 = vsel %vm5609, %v5611, %v5607
    %v5613 = vmul.f32 1.0, %v5612
    %v5614 = vrcp.pop %v5598
    %v5615 = vmul.f32 %v5598, %v5614
    %v5616 = vsub.f32 1.0, %v5615
    %v5617 = vmul.f32 %v5614, %v5616
    %v5618 = vadd.f32 %v5614, %v5617
    %vm5619 = vweird.f32 %v5598
    %vm5620 = vweird.f32 %v5614
    %vm5621 = vmor %vm5619, %vm5620
    %v5622 = vsel %vm5621, %v5614, %v5618
    %v5623 = vand.u32 2147483647, %v5598
    %vm5624 = vcmp.eq.f32.partialorder %v5623, 8.507059e+37
    %v5625 = vand.u32 %v5598, 2147483648
    %v5626 = vor.u32 1.1754944e-38, %v5625
    %v5627 = vsel %vm5624, %v5626, %v5622
    %v5628 = vmul.f32 1.0, %v5627
    %v5631 = vrot.slane %v5502, 3
    %v5632 = vrot.slane %v5528, 3
    %v5635 = vadd.f32 %v3357, %v5631
    %v5636 = vadd.f32 %v3383, %v5632
    %v5637 = vxor.u32 %v5635, 2147483648
    %v5638 = vxor.u32 %v5636, 2147483648
    %v5639 = vmul.f32 %v5637, 1.442695
    %v5640 = vpow.pop %v5639
    %v5641 = vmul.f32 %v5638, 1.442695
    %v5642 = vpow.pop %v5641
    %v5643 = vadd.f32 %v5640, 1.0
    %v5644 = vadd.f32 %v5642, 1.0
    %v5645 = vrcp.pop %v5643
    %v5646 = vmul.f32 %v5643, %v5645
    %v5647 = vsub.f32 1.0, %v5646
    %v5648 = vmul.f32 %v5645, %v5647
    %v5649 = vadd.f32 %v5645, %v5648
    %vm5650 = vweird.f32 %v5643
    %vm5651 = vweird.f32 %v5645
    %vm5652 = vmor %vm5650, %vm5651
    %v5653 = vsel %vm5652, %v5645, %v5649
    %v5654 = vand.u32 2147483647, %v5643
    %vm5655 = vcmp.eq.f32.partialorder %v5654, 8.507059e+37
    %v5656 = vand.u32 %v5643, 2147483648
    %v5657 = vor.u32 1.1754944e-38, %v5656
    %v5658 = vsel %vm5655, %v5657, %v5653
    %v5659 = vmul.f32 1.0, %v5658
    %v5660 = vrcp.pop %v5644
    %v5661 = vmul.f32 %v5644, %v5660
    %v5662 = vsub.f32 1.0, %v5661
    %v5663 = vmul.f32 %v5660, %v5662
    %v5664 = vadd.f32 %v5660, %v5663
    %vm5665 = vweird.f32 %v5644
    %vm5666 = vweird.f32 %v5660
    %vm5667 = vmor %vm5665, %vm5666
    %v5668 = vsel %vm5667, %v5660, %v5664
    %v5669 = vand.u32 2147483647, %v5644
    %vm5670 = vcmp.eq.f32.partialorder %v5669, 8.507059e+37
    %v5671 = vand.u32 %v5644, 2147483648
    %v5672 = vor.u32 1.1754944e-38, %v5671
    %v5673 = vsel %vm5670, %v5672, %v5668
    %v5674 = vmul.f32 1.0, %v5673
    %v5675 = vadd.f32 %v5554, %v4263
    %v5676 = vadd.f32 %v5580, %v4264
    %v5679 = vrot.slane %v5675, 3
    %v5680 = vrot.slane %v5676, 3
    %v5683 = vmul.f32 %v5613, %v5679
    %v5684 = vmul.f32 %v5628, %v5680
    %v5685 = vadd.f32 %v3409, %v5683
    %v5686 = vadd.f32 %v3435, %v5684
    %v5687 = vtanh.pop %v5685
    %v5688 = vtanh.pop %v5686
    %v5689 = vsub.f32 1.0, %v5659
    %v5690 = vsub.f32 1.0, %v5674
    %v5691 = vmul.f32 %v5689, %v5687
    %v5692 = vmul.f32 %v5690, %v5688
    %v5695 = vrot.slane %v5417, 7
    %v5696 = vrot.slane %v5418, 7
    %v5699 = vmul.f32 %v5659, %v5695
    %v5700 = vmul.f32 %v5674, %v5696
    %v5701 = vadd.f32 %v5691, %v5699
    %v5702 = vadd.f32 %v5692, %v5700
    %v5703 = vpack.c.bf16 %v5701, %v5701
    %v5704 = vpack.c.bf16 %v5702, %v5702
    %v5706 = vshrl.u32 %v5703, 16
    %v5708 = vrot.slane %v5706, 2
    %v5710 = vshrl.u32 %v5704, 16
    %v5712 = vrot.slane %v5710, 2
    %5715 = vmatpush.bf16.msra.mxu0 %v3876
    %5716 = vmatpush.bf16.msra.mxu0 %v3870
    %5717 = vmatpush.bf16.msra.mxu0 %v3864
    %5718 = vmatpush.bf16.msra.mxu0 %v3858
    %5719 = vmatpush.bf16.msra.mxu0 %v3852
    %5720 = vmatpush.bf16.msra.mxu0 %v3846
    %5721 = vmatpush.bf16.msra.mxu0 %v3840
    %5722 = vmatpush.bf16.msra.mxu0 %v3834
    %5723 = vmatmul.bf16.gmra.mxu0 %v5708
    %v5724 = vpop.f32.mrf.mxu0
    %v5725 = vadd.f32 0.0, %v5724
    %v5726 = vpop.f32.mrf.mxu0
    %5727 = vdwg.mxu0
    %5728 = vmatpush.bf16.msra.mxu0 %v3924
    %5729 = vmatpush.bf16.msra.mxu0 %v3918
    %5730 = vmatpush.bf16.msra.mxu0 %v3912
    %5731 = vmatpush.bf16.msra.mxu0 %v3906
    %5732 = vmatpush.bf16.msra.mxu0 %v3900
    %5733 = vmatpush.bf16.msra.mxu0 %v3894
    %5734 = vmatpush.bf16.msra.mxu0 %v3888
    %5735 = vmatpush.bf16.msra.mxu0 %v3882
    %5736 = vmatmul.bf16.gmra.mxu0 %v5712
    %v5737 = vpop.f32.mrf.mxu0
    %v5738 = vadd.f32 %v5725, %v5737
    %v5739 = vpop.f32.mrf.mxu0
    %5740 = vdwg.mxu0
    %5741 = vmatpush.bf16.msra.mxu0 %v3877
    %5742 = vmatpush.bf16.msra.mxu0 %v3871
    %5743 = vmatpush.bf16.msra.mxu0 %v3865
    %5744 = vmatpush.bf16.msra.mxu0 %v3859
    %5745 = vmatpush.bf16.msra.mxu0 %v3853
    %5746 = vmatpush.bf16.msra.mxu0 %v3847
    %5747 = vmatpush.bf16.msra.mxu0 %v3841
    %5748 = vmatpush.bf16.msra.mxu0 %v3835
    %5749 = vmatmul.bf16.gmra.mxu0 %v5708
    %v5750 = vpop.f32.mrf.mxu0
    %v5751 = vadd.f32 0.0, %v5750
    %v5752 = vpop.f32.mrf.mxu0
    %5753 = vdwg.mxu0
    %5754 = vmatpush.bf16.msra.mxu0 %v3925
    %5755 = vmatpush.bf16.msra.mxu0 %v3919
    %5756 = vmatpush.bf16.msra.mxu0 %v3913
    %5757 = vmatpush.bf16.msra.mxu0 %v3907
    %5758 = vmatpush.bf16.msra.mxu0 %v3901
    %5759 = vmatpush.bf16.msra.mxu0 %v3895
    %5760 = vmatpush.bf16.msra.mxu0 %v3889
    %5761 = vmatpush.bf16.msra.mxu0 %v3883
    %5762 = vmatmul.bf16.gmra.mxu0 %v5712
    %v5763 = vpop.f32.mrf.mxu0
    %v5764 = vadd.f32 %v5751, %v5763
    %v5765 = vpop.f32.mrf.mxu0
    %5766 = vdwg.mxu0
    %5767 = vmatpush.bf16.msra.mxu0 %v3878
    %5768 = vmatpush.bf16.msra.mxu0 %v3872
    %5769 = vmatpush.bf16.msra.mxu0 %v3866
    %5770 = vmatpush.bf16.msra.mxu0 %v3860
    %5771 = vmatpush.bf16.msra.mxu0 %v3854
    %5772 = vmatpush.bf16.msra.mxu0 %v3848
    %5773 = vmatpush.bf16.msra.mxu0 %v3842
    %5774 = vmatpush.bf16.msra.mxu0 %v3836
    %5775 = vmatmul.bf16.gmra.mxu0 %v5708
    %v5776 = vpop.f32.mrf.mxu0
    %v5777 = vadd.f32 0.0, %v5776
    %v5778 = vpop.f32.mrf.mxu0
    %5779 = vdwg.mxu0
    %5780 = vmatpush.bf16.msra.mxu0 %v3926
    %5781 = vmatpush.bf16.msra.mxu0 %v3920
    %5782 = vmatpush.bf16.msra.mxu0 %v3914
    %5783 = vmatpush.bf16.msra.mxu0 %v3908
    %5784 = vmatpush.bf16.msra.mxu0 %v3902
    %5785 = vmatpush.bf16.msra.mxu0 %v3896
    %5786 = vmatpush.bf16.msra.mxu0 %v3890
    %5787 = vmatpush.bf16.msra.mxu0 %v3884
    %5788 = vmatmul.bf16.gmra.mxu0 %v5712
    %v5789 = vpop.f32.mrf.mxu0
    %v5790 = vadd.f32 %v5777, %v5789
    %v5791 = vpop.f32.mrf.mxu0
    %5792 = vdwg.mxu0
    %5793 = vmatpush.bf16.msra.mxu0 %v3879
    %5794 = vmatpush.bf16.msra.mxu0 %v3873
    %5795 = vmatpush.bf16.msra.mxu0 %v3867
    %5796 = vmatpush.bf16.msra.mxu0 %v3861
    %5797 = vmatpush.bf16.msra.mxu0 %v3855
    %5798 = vmatpush.bf16.msra.mxu0 %v3849
    %5799 = vmatpush.bf16.msra.mxu0 %v3843
    %5800 = vmatpush.bf16.msra.mxu0 %v3837
    %5801 = vmatmul.bf16.gmra.mxu0 %v5708
    %v5802 = vpop.f32.mrf.mxu0
    %v5803 = vadd.f32 0.0, %v5802
    %v5804 = vpop.f32.mrf.mxu0
    %5805 = vdwg.mxu0
    %5806 = vmatpush.bf16.msra.mxu0 %v3927
    %5807 = vmatpush.bf16.msra.mxu0 %v3921
    %5808 = vmatpush.bf16.msra.mxu0 %v3915
    %5809 = vmatpush.bf16.msra.mxu0 %v3909
    %5810 = vmatpush.bf16.msra.mxu0 %v3903
    %5811 = vmatpush.bf16.msra.mxu0 %v3897
    %5812 = vmatpush.bf16.msra.mxu0 %v3891
    %5813 = vmatpush.bf16.msra.mxu0 %v3885
    %5814 = vmatmul.bf16.gmra.mxu0 %v5712
    %v5815 = vpop.f32.mrf.mxu0
    %v5816 = vadd.f32 %v5803, %v5815
    %v5817 = vpop.f32.mrf.mxu0
    %5818 = vdwg.mxu0
    %5819 = vmatpush.bf16.msra.mxu0 %v3880
    %5820 = vmatpush.bf16.msra.mxu0 %v3874
    %5821 = vmatpush.bf16.msra.mxu0 %v3868
    %5822 = vmatpush.bf16.msra.mxu0 %v3862
    %5823 = vmatpush.bf16.msra.mxu0 %v3856
    %5824 = vmatpush.bf16.msra.mxu0 %v3850
    %5825 = vmatpush.bf16.msra.mxu0 %v3844
    %5826 = vmatpush.bf16.msra.mxu0 %v3838
    %5827 = vmatmul.bf16.gmra.mxu0 %v5708
    %v5828 = vpop.f32.mrf.mxu0
    %v5829 = vadd.f32 0.0, %v5828
    %v5830 = vpop.f32.mrf.mxu0
    %5831 = vdwg.mxu0
    %5832 = vmatpush.bf16.msra.mxu0 %v3928
    %5833 = vmatpush.bf16.msra.mxu0 %v3922
    %5834 = vmatpush.bf16.msra.mxu0 %v3916
    %5835 = vmatpush.bf16.msra.mxu0 %v3910
    %5836 = vmatpush.bf16.msra.mxu0 %v3904
    %5837 = vmatpush.bf16.msra.mxu0 %v3898
    %5838 = vmatpush.bf16.msra.mxu0 %v3892
    %5839 = vmatpush.bf16.msra.mxu0 %v3886
    %5840 = vmatmul.bf16.gmra.mxu0 %v5712
    %v5841 = vpop.f32.mrf.mxu0
    %v5842 = vadd.f32 %v5829, %v5841
    %v5843 = vpop.f32.mrf.mxu0
    %5844 = vdwg.mxu0
    %5845 = vmatpush.bf16.msra.mxu0 %v3881
    %5846 = vmatpush.bf16.msra.mxu0 %v3875
    %5847 = vmatpush.bf16.msra.mxu0 %v3869
    %5848 = vmatpush.bf16.msra.mxu0 %v3863
    %5849 = vmatpush.bf16.msra.mxu0 %v3857
    %5850 = vmatpush.bf16.msra.mxu0 %v3851
    %5851 = vmatpush.bf16.msra.mxu0 %v3845
    %5852 = vmatpush.bf16.msra.mxu0 %v3839
    %5853 = vmatmul.bf16.gmra.mxu0 %v5708
    %v5854 = vpop.f32.mrf.mxu0
    %v5855 = vadd.f32 0.0, %v5854
    %v5856 = vpop.f32.mrf.mxu0
    %5857 = vdwg.mxu0
    %5858 = vmatpush.bf16.msra.mxu0 %v3929
    %5859 = vmatpush.bf16.msra.mxu0 %v3923
    %5860 = vmatpush.bf16.msra.mxu0 %v3917
    %5861 = vmatpush.bf16.msra.mxu0 %v3911
    %5862 = vmatpush.bf16.msra.mxu0 %v3905
    %5863 = vmatpush.bf16.msra.mxu0 %v3899
    %5864 = vmatpush.bf16.msra.mxu0 %v3893
    %5865 = vmatpush.bf16.msra.mxu0 %v3887
    %5866 = vmatmul.bf16.gmra.mxu0 %v5712
    %v5867 = vpop.f32.mrf.mxu0
    %v5868 = vadd.f32 %v5855, %v5867
    %v5869 = vpop.f32.mrf.mxu0
    %5870 = vdwg.mxu0
    %v5873 = vrot.slane %v5738, 2
    %v5874 = vrot.slane %v5764, 2
    %v5877 = vadd.f32 %v3305, %v5873
    %v5878 = vadd.f32 %v3331, %v5874
    %v5879 = vxor.u32 %v5877, 2147483648
    %v5880 = vxor.u32 %v5878, 2147483648
    %v5881 = vmul.f32 %v5879, 1.442695
    %v5882 = vpow.pop %v5881
    %v5883 = vmul.f32 %v5880, 1.442695
    %v5884 = vpow.pop %v5883
    %v5885 = vadd.f32 %v5882, 1.0
    %v5886 = vadd.f32 %v5884, 1.0
    %v5887 = vrcp.pop %v5885
    %v5888 = vmul.f32 %v5885, %v5887
    %v5889 = vsub.f32 1.0, %v5888
    %v5890 = vmul.f32 %v5887, %v5889
    %v5891 = vadd.f32 %v5887, %v5890
    %vm5892 = vweird.f32 %v5885
    %vm5893 = vweird.f32 %v5887
    %vm5894 = vmor %vm5892, %vm5893
    %v5895 = vsel %vm5894, %v5887, %v5891
    %v5896 = vand.u32 2147483647, %v5885
    %vm5897 = vcmp.eq.f32.partialorder %v5896, 8.507059e+37
    %v5898 = vand.u32 %v5885, 2147483648
    %v5899 = vor.u32 1.1754944e-38, %v5898
    %v5900 = vsel %vm5897, %v5899, %v5895
    %v5901 = vmul.f32 1.0, %v5900
    %v5902 = vrcp.pop %v5886
    %v5903 = vmul.f32 %v5886, %v5902
    %v5904 = vsub.f32 1.0, %v5903
    %v5905 = vmul.f32 %v5902, %v5904
    %v5906 = vadd.f32 %v5902, %v5905
    %vm5907 = vweird.f32 %v5886
    %vm5908 = vweird.f32 %v5902
    %vm5909 = vmor %vm5907, %vm5908
    %v5910 = vsel %vm5909, %v5902, %v5906
    %v5911 = vand.u32 2147483647, %v5886
    %vm5912 = vcmp.eq.f32.partialorder %v5911, 8.507059e+37
    %v5913 = vand.u32 %v5886, 2147483648
    %v5914 = vor.u32 1.1754944e-38, %v5913
    %v5915 = vsel %vm5912, %v5914, %v5910
    %v5916 = vmul.f32 1.0, %v5915
    %v5919 = vrot.slane %v5790, 2
    %v5920 = vrot.slane %v5816, 2
    %v5923 = vadd.f32 %v3357, %v5919
    %v5924 = vadd.f32 %v3383, %v5920
    %v5925 = vxor.u32 %v5923, 2147483648
    %v5926 = vxor.u32 %v5924, 2147483648
    %v5927 = vmul.f32 %v5925, 1.442695
    %v5928 = vpow.pop %v5927
    %v5929 = vmul.f32 %v5926, 1.442695
    %v5930 = vpow.pop %v5929
    %v5931 = vadd.f32 %v5928, 1.0
    %v5932 = vadd.f32 %v5930, 1.0
    %v5933 = vrcp.pop %v5931
    %v5934 = vmul.f32 %v5931, %v5933
    %v5935 = vsub.f32 1.0, %v5934
    %v5936 = vmul.f32 %v5933, %v5935
    %v5937 = vadd.f32 %v5933, %v5936
    %vm5938 = vweird.f32 %v5931
    %vm5939 = vweird.f32 %v5933
    %vm5940 = vmor %vm5938, %vm5939
    %v5941 = vsel %vm5940, %v5933, %v5937
    %v5942 = vand.u32 2147483647, %v5931
    %vm5943 = vcmp.eq.f32.partialorder %v5942, 8.507059e+37
    %v5944 = vand.u32 %v5931, 2147483648
    %v5945 = vor.u32 1.1754944e-38, %v5944
    %v5946 = vsel %vm5943, %v5945, %v5941
    %v5947 = vmul.f32 1.0, %v5946
    %v5948 = vrcp.pop %v5932
    %v5949 = vmul.f32 %v5932, %v5948
    %v5950 = vsub.f32 1.0, %v5949
    %v5951 = vmul.f32 %v5948, %v5950
    %v5952 = vadd.f32 %v5948, %v5951
    %vm5953 = vweird.f32 %v5932
    %vm5954 = vweird.f32 %v5948
    %vm5955 = vmor %vm5953, %vm5954
    %v5956 = vsel %vm5955, %v5948, %v5952
    %v5957 = vand.u32 2147483647, %v5932
    %vm5958 = vcmp.eq.f32.partialorder %v5957, 8.507059e+37
    %v5959 = vand.u32 %v5932, 2147483648
    %v5960 = vor.u32 1.1754944e-38, %v5959
    %v5961 = vsel %vm5958, %v5960, %v5956
    %v5962 = vmul.f32 1.0, %v5961
    %v5963 = vadd.f32 %v5842, %v4263
    %v5964 = vadd.f32 %v5868, %v4264
    %v5967 = vrot.slane %v5963, 2
    %v5968 = vrot.slane %v5964, 2
    %v5971 = vmul.f32 %v5901, %v5967
    %v5972 = vmul.f32 %v5916, %v5968
    %v5973 = vadd.f32 %v3409, %v5971
    %v5974 = vadd.f32 %v3435, %v5972
    %v5975 = vtanh.pop %v5973
    %v5976 = vtanh.pop %v5974
    %v5977 = vsub.f32 1.0, %v5947
    %v5978 = vsub.f32 1.0, %v5962
    %v5979 = vmul.f32 %v5977, %v5975
    %v5980 = vmul.f32 %v5978, %v5976
    %v5983 = vrot.slane %v5701, 7
    %v5984 = vrot.slane %v5702, 7
    %v5987 = vmul.f32 %v5947, %v5983
    %v5988 = vmul.f32 %v5962, %v5984
    %v5989 = vadd.f32 %v5979, %v5987
    %v5990 = vadd.f32 %v5980, %v5988
    %v5991 = vpack.c.bf16 %v5989, %v5989
    %v5992 = vpack.c.bf16 %v5990, %v5990
    %v5995 = vrot.slane %v5991, 3
    %v5996 = vrot.slane %v5992, 3
    %5999 = vmatpush.bf16.msra.mxu0 %v3876
    %6000 = vmatpush.bf16.msra.mxu0 %v3870
    %6001 = vmatpush.bf16.msra.mxu0 %v3864
    %6002 = vmatpush.bf16.msra.mxu0 %v3858
    %6003 = vmatpush.bf16.msra.mxu0 %v3852
    %6004 = vmatpush.bf16.msra.mxu0 %v3846
    %6005 = vmatpush.bf16.msra.mxu0 %v3840
    %6006 = vmatpush.bf16.msra.mxu0 %v3834
    %6007 = vmatmul.bf16.gmra.mxu0 %v5995
    %v6008 = vpop.f32.mrf.mxu0
    %v6009 = vadd.f32 0.0, %v6008
    %v6010 = vpop.f32.mrf.mxu0
    %6011 = vdwg.mxu0
    %6012 = vmatpush.bf16.msra.mxu0 %v3924
    %6013 = vmatpush.bf16.msra.mxu0 %v3918
    %6014 = vmatpush.bf16.msra.mxu0 %v3912
    %6015 = vmatpush.bf16.msra.mxu0 %v3906
    %6016 = vmatpush.bf16.msra.mxu0 %v3900
    %6017 = vmatpush.bf16.msra.mxu0 %v3894
    %6018 = vmatpush.bf16.msra.mxu0 %v3888
    %6019 = vmatpush.bf16.msra.mxu0 %v3882
    %6020 = vmatmul.bf16.gmra.mxu0 %v5996
    %v6021 = vpop.f32.mrf.mxu0
    %v6022 = vadd.f32 %v6009, %v6021
    %v6023 = vpop.f32.mrf.mxu0
    %6024 = vdwg.mxu0
    %6025 = vmatpush.bf16.msra.mxu0 %v3877
    %6026 = vmatpush.bf16.msra.mxu0 %v3871
    %6027 = vmatpush.bf16.msra.mxu0 %v3865
    %6028 = vmatpush.bf16.msra.mxu0 %v3859
    %6029 = vmatpush.bf16.msra.mxu0 %v3853
    %6030 = vmatpush.bf16.msra.mxu0 %v3847
    %6031 = vmatpush.bf16.msra.mxu0 %v3841
    %6032 = vmatpush.bf16.msra.mxu0 %v3835
    %6033 = vmatmul.bf16.gmra.mxu0 %v5995
    %v6034 = vpop.f32.mrf.mxu0
    %v6035 = vadd.f32 0.0, %v6034
    %v6036 = vpop.f32.mrf.mxu0
    %6037 = vdwg.mxu0
    %6038 = vmatpush.bf16.msra.mxu0 %v3925
    %6039 = vmatpush.bf16.msra.mxu0 %v3919
    %6040 = vmatpush.bf16.msra.mxu0 %v3913
    %6041 = vmatpush.bf16.msra.mxu0 %v3907
    %6042 = vmatpush.bf16.msra.mxu0 %v3901
    %6043 = vmatpush.bf16.msra.mxu0 %v3895
    %6044 = vmatpush.bf16.msra.mxu0 %v3889
    %6045 = vmatpush.bf16.msra.mxu0 %v3883
    %6046 = vmatmul.bf16.gmra.mxu0 %v5996
    %v6047 = vpop.f32.mrf.mxu0
    %v6048 = vadd.f32 %v6035, %v6047
    %v6049 = vpop.f32.mrf.mxu0
    %6050 = vdwg.mxu0
    %6051 = vmatpush.bf16.msra.mxu0 %v3878
    %6052 = vmatpush.bf16.msra.mxu0 %v3872
    %6053 = vmatpush.bf16.msra.mxu0 %v3866
    %6054 = vmatpush.bf16.msra.mxu0 %v3860
    %6055 = vmatpush.bf16.msra.mxu0 %v3854
    %6056 = vmatpush.bf16.msra.mxu0 %v3848
    %6057 = vmatpush.bf16.msra.mxu0 %v3842
    %6058 = vmatpush.bf16.msra.mxu0 %v3836
    %6059 = vmatmul.bf16.gmra.mxu0 %v5995
    %v6060 = vpop.f32.mrf.mxu0
    %v6061 = vadd.f32 0.0, %v6060
    %v6062 = vpop.f32.mrf.mxu0
    %6063 = vdwg.mxu0
    %6064 = vmatpush.bf16.msra.mxu0 %v3926
    %6065 = vmatpush.bf16.msra.mxu0 %v3920
    %6066 = vmatpush.bf16.msra.mxu0 %v3914
    %6067 = vmatpush.bf16.msra.mxu0 %v3908
    %6068 = vmatpush.bf16.msra.mxu0 %v3902
    %6069 = vmatpush.bf16.msra.mxu0 %v3896
    %6070 = vmatpush.bf16.msra.mxu0 %v3890
    %6071 = vmatpush.bf16.msra.mxu0 %v3884
    %6072 = vmatmul.bf16.gmra.mxu0 %v5996
    %v6073 = vpop.f32.mrf.mxu0
    %v6074 = vadd.f32 %v6061, %v6073
    %v6075 = vpop.f32.mrf.mxu0
    %6076 = vdwg.mxu0
    %6077 = vmatpush.bf16.msra.mxu0 %v3879
    %6078 = vmatpush.bf16.msra.mxu0 %v3873
    %6079 = vmatpush.bf16.msra.mxu0 %v3867
    %6080 = vmatpush.bf16.msra.mxu0 %v3861
    %6081 = vmatpush.bf16.msra.mxu0 %v3855
    %6082 = vmatpush.bf16.msra.mxu0 %v3849
    %6083 = vmatpush.bf16.msra.mxu0 %v3843
    %6084 = vmatpush.bf16.msra.mxu0 %v3837
    %6085 = vmatmul.bf16.gmra.mxu0 %v5995
    %v6086 = vpop.f32.mrf.mxu0
    %v6087 = vadd.f32 0.0, %v6086
    %v6088 = vpop.f32.mrf.mxu0
    %6089 = vdwg.mxu0
    %6090 = vmatpush.bf16.msra.mxu0 %v3927
    %6091 = vmatpush.bf16.msra.mxu0 %v3921
    %6092 = vmatpush.bf16.msra.mxu0 %v3915
    %6093 = vmatpush.bf16.msra.mxu0 %v3909
    %6094 = vmatpush.bf16.msra.mxu0 %v3903
    %6095 = vmatpush.bf16.msra.mxu0 %v3897
    %6096 = vmatpush.bf16.msra.mxu0 %v3891
    %6097 = vmatpush.bf16.msra.mxu0 %v3885
    %6098 = vmatmul.bf16.gmra.mxu0 %v5996
    %v6099 = vpop.f32.mrf.mxu0
    %v6100 = vadd.f32 %v6087, %v6099
    %v6101 = vpop.f32.mrf.mxu0
    %6102 = vdwg.mxu0
    %6103 = vmatpush.bf16.msra.mxu0 %v3880
    %6104 = vmatpush.bf16.msra.mxu0 %v3874
    %6105 = vmatpush.bf16.msra.mxu0 %v3868
    %6106 = vmatpush.bf16.msra.mxu0 %v3862
    %6107 = vmatpush.bf16.msra.mxu0 %v3856
    %6108 = vmatpush.bf16.msra.mxu0 %v3850
    %6109 = vmatpush.bf16.msra.mxu0 %v3844
    %6110 = vmatpush.bf16.msra.mxu0 %v3838
    %6111 = vmatmul.bf16.gmra.mxu0 %v5995
    %v6112 = vpop.f32.mrf.mxu0
    %v6113 = vadd.f32 0.0, %v6112
    %v6114 = vpop.f32.mrf.mxu0
    %6115 = vdwg.mxu0
    %6116 = vmatpush.bf16.msra.mxu0 %v3928
    %6117 = vmatpush.bf16.msra.mxu0 %v3922
    %6118 = vmatpush.bf16.msra.mxu0 %v3916
    %6119 = vmatpush.bf16.msra.mxu0 %v3910
    %6120 = vmatpush.bf16.msra.mxu0 %v3904
    %6121 = vmatpush.bf16.msra.mxu0 %v3898
    %6122 = vmatpush.bf16.msra.mxu0 %v3892
    %6123 = vmatpush.bf16.msra.mxu0 %v3886
    %6124 = vmatmul.bf16.gmra.mxu0 %v5996
    %v6125 = vpop.f32.mrf.mxu0
    %v6126 = vadd.f32 %v6113, %v6125
    %v6127 = vpop.f32.mrf.mxu0
    %6128 = vdwg.mxu0
    %6129 = vmatpush.bf16.msra.mxu0 %v3881
    %6130 = vmatpush.bf16.msra.mxu0 %v3875
    %6131 = vmatpush.bf16.msra.mxu0 %v3869
    %6132 = vmatpush.bf16.msra.mxu0 %v3863
    %6133 = vmatpush.bf16.msra.mxu0 %v3857
    %6134 = vmatpush.bf16.msra.mxu0 %v3851
    %6135 = vmatpush.bf16.msra.mxu0 %v3845
    %6136 = vmatpush.bf16.msra.mxu0 %v3839
    %6137 = vmatmul.bf16.gmra.mxu0 %v5995
    %v6138 = vpop.f32.mrf.mxu0
    %v6139 = vadd.f32 0.0, %v6138
    %v6140 = vpop.f32.mrf.mxu0
    %6141 = vdwg.mxu0
    %6142 = vmatpush.bf16.msra.mxu0 %v3929
    %6143 = vmatpush.bf16.msra.mxu0 %v3923
    %6144 = vmatpush.bf16.msra.mxu0 %v3917
    %6145 = vmatpush.bf16.msra.mxu0 %v3911
    %6146 = vmatpush.bf16.msra.mxu0 %v3905
    %6147 = vmatpush.bf16.msra.mxu0 %v3899
    %6148 = vmatpush.bf16.msra.mxu0 %v3893
    %6149 = vmatpush.bf16.msra.mxu0 %v3887
    %6150 = vmatmul.bf16.gmra.mxu0 %v5996
    %v6151 = vpop.f32.mrf.mxu0
    %v6152 = vadd.f32 %v6139, %v6151
    %v6153 = vpop.f32.mrf.mxu0
    %6154 = vdwg.mxu0
    %v6157 = vrot.slane %v6022, 1
    %v6158 = vrot.slane %v6048, 1
    %v6161 = vadd.f32 %v3305, %v6157
    %v6162 = vadd.f32 %v3331, %v6158
    %v6163 = vxor.u32 %v6161, 2147483648
    %v6164 = vxor.u32 %v6162, 2147483648
    %v6165 = vmul.f32 %v6163, 1.442695
    %v6166 = vpow.pop %v6165
    %v6167 = vmul.f32 %v6164, 1.442695
    %v6168 = vpow.pop %v6167
    %v6169 = vadd.f32 %v6166, 1.0
    %v6170 = vadd.f32 %v6168, 1.0
    %v6171 = vrcp.pop %v6169
    %v6172 = vmul.f32 %v6169, %v6171
    %v6173 = vsub.f32 1.0, %v6172
    %v6174 = vmul.f32 %v6171, %v6173
    %v6175 = vadd.f32 %v6171, %v6174
    %vm6176 = vweird.f32 %v6169
    %vm6177 = vweird.f32 %v6171
    %vm6178 = vmor %vm6176, %vm6177
    %v6179 = vsel %vm6178, %v6171, %v6175
    %v6180 = vand.u32 2147483647, %v6169
    %vm6181 = vcmp.eq.f32.partialorder %v6180, 8.507059e+37
    %v6182 = vand.u32 %v6169, 2147483648
    %v6183 = vor.u32 1.1754944e-38, %v6182
    %v6184 = vsel %vm6181, %v6183, %v6179
    %v6185 = vmul.f32 1.0, %v6184
    %v6186 = vrcp.pop %v6170
    %v6187 = vmul.f32 %v6170, %v6186
    %v6188 = vsub.f32 1.0, %v6187
    %v6189 = vmul.f32 %v6186, %v6188
    %v6190 = vadd.f32 %v6186, %v6189
    %vm6191 = vweird.f32 %v6170
    %vm6192 = vweird.f32 %v6186
    %vm6193 = vmor %vm6191, %vm6192
    %v6194 = vsel %vm6193, %v6186, %v6190
    %v6195 = vand.u32 2147483647, %v6170
    %vm6196 = vcmp.eq.f32.partialorder %v6195, 8.507059e+37
    %v6197 = vand.u32 %v6170, 2147483648
    %v6198 = vor.u32 1.1754944e-38, %v6197
    %v6199 = vsel %vm6196, %v6198, %v6194
    %v6200 = vmul.f32 1.0, %v6199
    %v6203 = vrot.slane %v6074, 1
    %v6204 = vrot.slane %v6100, 1
    %v6207 = vadd.f32 %v3357, %v6203
    %v6208 = vadd.f32 %v3383, %v6204
    %v6209 = vxor.u32 %v6207, 2147483648
    %v6210 = vxor.u32 %v6208, 2147483648
    %v6211 = vmul.f32 %v6209, 1.442695
    %v6212 = vpow.pop %v6211
    %v6213 = vmul.f32 %v6210, 1.442695
    %v6214 = vpow.pop %v6213
    %v6215 = vadd.f32 %v6212, 1.0
    %v6216 = vadd.f32 %v6214, 1.0
    %v6217 = vrcp.pop %v6215
    %v6218 = vmul.f32 %v6215, %v6217
    %v6219 = vsub.f32 1.0, %v6218
    %v6220 = vmul.f32 %v6217, %v6219
    %v6221 = vadd.f32 %v6217, %v6220
    %vm6222 = vweird.f32 %v6215
    %vm6223 = vweird.f32 %v6217
    %vm6224 = vmor %vm6222, %vm6223
    %v6225 = vsel %vm6224, %v6217, %v6221
    %v6226 = vand.u32 2147483647, %v6215
    %vm6227 = vcmp.eq.f32.partialorder %v6226, 8.507059e+37
    %v6228 = vand.u32 %v6215, 2147483648
    %v6229 = vor.u32 1.1754944e-38, %v6228
    %v6230 = vsel %vm6227, %v6229, %v6225
    %v6231 = vmul.f32 1.0, %v6230
    %v6232 = vrcp.pop %v6216
    %v6233 = vmul.f32 %v6216, %v6232
    %v6234 = vsub.f32 1.0, %v6233
    %v6235 = vmul.f32 %v6232, %v6234
    %v6236 = vadd.f32 %v6232, %v6235
    %vm6237 = vweird.f32 %v6216
    %vm6238 = vweird.f32 %v6232
    %vm6239 = vmor %vm6237, %vm6238
    %v6240 = vsel %vm6239, %v6232, %v6236
    %v6241 = vand.u32 2147483647, %v6216
    %vm6242 = vcmp.eq.f32.partialorder %v6241, 8.507059e+37
    %v6243 = vand.u32 %v6216, 2147483648
    %v6244 = vor.u32 1.1754944e-38, %v6243
    %v6245 = vsel %vm6242, %v6244, %v6240
    %v6246 = vmul.f32 1.0, %v6245
    %v6247 = vadd.f32 %v6126, %v4263
    %v6248 = vadd.f32 %v6152, %v4264
    %v6251 = vrot.slane %v6247, 1
    %v6252 = vrot.slane %v6248, 1
    %v6255 = vmul.f32 %v6185, %v6251
    %v6256 = vmul.f32 %v6200, %v6252
    %v6257 = vadd.f32 %v3409, %v6255
    %v6258 = vadd.f32 %v3435, %v6256
    %v6259 = vtanh.pop %v6257
    %v6260 = vtanh.pop %v6258
    %v6261 = vsub.f32 1.0, %v6231
    %v6262 = vsub.f32 1.0, %v6246
    %v6263 = vmul.f32 %v6261, %v6259
    %v6264 = vmul.f32 %v6262, %v6260
    %v6267 = vrot.slane %v5989, 7
    %v6268 = vrot.slane %v5990, 7
    %v6271 = vmul.f32 %v6231, %v6267
    %v6272 = vmul.f32 %v6246, %v6268
    %v6273 = vadd.f32 %v6263, %v6271
    %v6274 = vadd.f32 %v6264, %v6272
    %v6275 = vsel %vm881, %v4281, %v4559
    %v6276 = vsel %vm881, %v4282, %v4560
    %v6277 = vsel %vm2668, %v6275, %v4845
    %v6278 = vsel %vm2668, %v6276, %v4846
    %v6279 = vsel %vm2671, %v6277, %v5129
    %v6280 = vsel %vm2671, %v6278, %v5130
    %v6281 = vsel %vm2674, %v6279, %v5417
    %v6282 = vsel %vm2674, %v6280, %v5418
    %v6283 = vsel %vm2677, %v6281, %v5701
    %v6284 = vsel %vm2677, %v6282, %v5702
    %v6285 = vsel %vm2680, %v6283, %v5989
    %v6286 = vsel %vm2680, %v6284, %v5990
    %v6287 = vsel %vm2683, %v6285, %v6273
    %v6288 = vsel %vm2683, %v6286, %v6274
    %v6289 = vlaneseq
    %vm6290 = vcmp.ge.s32.totalorder %v6289, 0
    %vm6291 = vcmp.lt.s32.totalorder %v6289, 256
    %vm6292 = vmand %vm6290, %vm6291
    %6293 = vst.msk [vmem:[#allocation14] ss:$2 sm:$0x3] %vm6292, %v2660
    %6296 = vst [vmem:[#allocation1] sm:$0xff] %v6273
    %6297 = vst [vmem:[#allocation1 + $0x9] sm:$0xff] %v6274
    %s6298 = scalar_lea.vmem [#allocation1], 7
    %v6299 = vld [vmem:[%s6298] ss:$9 sm:$0xff]
    %s6301 = scalar_lea.vmem [#allocation14], 1
    %6302 = vst.msk [vmem:[%s6301] ss:$2 sm:$0x3] %vm6292, %v6299
    %v6303 = vld [vmem:[%s9] sm:$0xff]
    %v6304 = vld [vmem:[%s9 + $0x8] sm:$0xff]
    %v6305 = vmul.f32 %v6287, %v6303
    %v6306 = vmul.f32 %v6288, %v6304
    %s6307 = smul.u32 %s2686, 2
    %s6308 = sshll.u32 %s6307, 4
    %6309 = dma.done %s111, %s6308
    %v6310 = vpack.c.bf16 %v6305, %v6305
    %v6311 = vpack.c.bf16 %v6306, %v6306
    %v6312 = vld [vmem:[#allocation4] sm:$0xff]
    %v6313 = vld [vmem:[#allocation4 + $0x8] sm:$0xff]
    %v6314 = vld [vmem:[#allocation4 + $0x10] sm:$0xff]
    %v6315 = vld [vmem:[#allocation4 + $0x18] sm:$0xff]
    %v6316 = vld [vmem:[#allocation4 + $0x20] sm:$0xff]
    %v6317 = vld [vmem:[#allocation4 + $0x28] sm:$0xff]
    %v6318 = vld [vmem:[#allocation4 + $0x30] sm:$0xff]
    %v6319 = vld [vmem:[#allocation4 + $0x38] sm:$0xff]
    %v6320 = vld [vmem:[#allocation4 + $0x40] sm:$0xff]
    %v6321 = vld [vmem:[#allocation4 + $0x48] sm:$0xff]
    %v6322 = vld [vmem:[#allocation4 + $0x50] sm:$0xff]
    %v6323 = vld [vmem:[#allocation4 + $0x58] sm:$0xff]
    %v6324 = vld [vmem:[#allocation4 + $0x60] sm:$0xff]
    %v6325 = vld [vmem:[#allocation4 + $0x68] sm:$0xff]
    %v6326 = vld [vmem:[#allocation4 + $0x70] sm:$0xff]
    %v6327 = vld [vmem:[#allocation4 + $0x78] sm:$0xff]
    %v6328 = vld [vmem:[#allocation4 + $0x80] sm:$0xff]
    %v6329 = vld [vmem:[#allocation4 + $0x88] sm:$0xff]
    %v6330 = vld [vmem:[#allocation4 + $0x90] sm:$0xff]
    %v6331 = vld [vmem:[#allocation4 + $0x98] sm:$0xff]
    %v6332 = vld [vmem:[#allocation4 + $0xa0] sm:$0xff]
    %v6333 = vld [vmem:[#allocation4 + $0xa8] sm:$0xff]
    %v6334 = vld [vmem:[#allocation4 + $0xb0] sm:$0xff]
    %v6335 = vld [vmem:[#allocation4 + $0xb8] sm:$0xff]
    %v6336 = vld [vmem:[#allocation4 + $0xc0] sm:$0xff]
    %v6337 = vld [vmem:[#allocation4 + $0xc8] sm:$0xff]
    %v6338 = vld [vmem:[#allocation4 + $0xd0] sm:$0xff]
    %v6339 = vld [vmem:[#allocation4 + $0xd8] sm:$0xff]
    %v6340 = vld [vmem:[#allocation4 + $0xe0] sm:$0xff]
    %v6341 = vld [vmem:[#allocation4 + $0xe8] sm:$0xff]
    %v6342 = vld [vmem:[#allocation4 + $0xf0] sm:$0xff]
    %v6343 = vld [vmem:[#allocation4 + $0xf8] sm:$0xff]
    %v6344 = vld [vmem:[%s11] sm:$0x3]
    %v6346 = vperm.slane %v6344, 0
    %v6347 = vperm.slane %v6344, 1
    %v6382 = vunpack.c.l.b16 %v6312
    %v6383 = vunpack.c.h.b16 %v6312
    %v6384 = vunpack.c.l.b16 %v6313
    %v6385 = vunpack.c.h.b16 %v6313
    %v6386 = vunpack.c.l.b16 %v6314
    %v6387 = vunpack.c.h.b16 %v6314
    %v6388 = vunpack.c.l.b16 %v6315
    %v6389 = vunpack.c.h.b16 %v6315
    %v6390 = vunpack.c.l.b16 %v6316
    %v6391 = vunpack.c.h.b16 %v6316
    %v6392 = vunpack.c.l.b16 %v6317
    %v6393 = vunpack.c.h.b16 %v6317
    %v6394 = vunpack.c.l.b16 %v6318
    %v6395 = vunpack.c.h.b16 %v6318
    %v6396 = vunpack.c.l.b16 %v6319
    %v6397 = vunpack.c.h.b16 %v6319
    %v6398 = vunpack.c.l.b16 %v6320
    %v6399 = vunpack.c.h.b16 %v6320
    %v6400 = vunpack.c.l.b16 %v6321
    %v6401 = vunpack.c.h.b16 %v6321
    %v6402 = vunpack.c.l.b16 %v6322
    %v6403 = vunpack.c.h.b16 %v6322
    %v6404 = vunpack.c.l.b16 %v6323
    %v6405 = vunpack.c.h.b16 %v6323
    %v6406 = vunpack.c.l.b16 %v6324
    %v6407 = vunpack.c.h.b16 %v6324
    %v6408 = vunpack.c.l.b16 %v6325
    %v6409 = vunpack.c.h.b16 %v6325
    %v6410 = vunpack.c.l.b16 %v6326
    %v6411 = vunpack.c.h.b16 %v6326
    %v6412 = vunpack.c.l.b16 %v6327
    %v6413 = vunpack.c.h.b16 %v6327
    %v6414 = vunpack.c.l.b16 %v6328
    %v6415 = vunpack.c.h.b16 %v6328
    %v6416 = vunpack.c.l.b16 %v6329
    %v6417 = vunpack.c.h.b16 %v6329
    %v6418 = vunpack.c.l.b16 %v6330
    %v6419 = vunpack.c.h.b16 %v6330
    %v6420 = vunpack.c.l.b16 %v6331
    %v6421 = vunpack.c.h.b16 %v6331
    %v6422 = vunpack.c.l.b16 %v6332
    %v6423 = vunpack.c.h.b16 %v6332
    %v6424 = vunpack.c.l.b16 %v6333
    %v6425 = vunpack.c.h.b16 %v6333
    %v6426 = vunpack.c.l.b16 %v6334
    %v6427 = vunpack.c.h.b16 %v6334
    %v6428 = vunpack.c.l.b16 %v6335
    %v6429 = vunpack.c.h.b16 %v6335
    %v6430 = vunpack.c.l.b16 %v6336
    %v6431 = vunpack.c.h.b16 %v6336
    %v6432 = vunpack.c.l.b16 %v6337
    %v6433 = vunpack.c.h.b16 %v6337
    %v6434 = vunpack.c.l.b16 %v6338
    %v6435 = vunpack.c.h.b16 %v6338
    %v6436 = vunpack.c.l.b16 %v6339
    %v6437 = vunpack.c.h.b16 %v6339
    %v6438 = vunpack.c.l.b16 %v6340
    %v6439 = vunpack.c.h.b16 %v6340
    %v6440 = vunpack.c.l.b16 %v6341
    %v6441 = vunpack.c.h.b16 %v6341
    %v6442 = vunpack.c.l.b16 %v6342
    %v6443 = vunpack.c.h.b16 %v6342
    %v6444 = vunpack.c.l.b16 %v6343
    %v6445 = vunpack.c.h.b16 %v6343
    %v6446 = vpack.c.b16 %v6384, %v6382
    %v6447 = vpack.c.b16 %v6385, %v6383
    %v6448 = vpack.c.b16 %v6388, %v6386
    %v6449 = vpack.c.b16 %v6389, %v6387
    %v6450 = vpack.c.b16 %v6392, %v6390
    %v6451 = vpack.c.b16 %v6393, %v6391
    %v6452 = vpack.c.b16 %v6396, %v6394
    %v6453 = vpack.c.b16 %v6397, %v6395
    %v6454 = vpack.c.b16 %v6400, %v6398
    %v6455 = vpack.c.b16 %v6401, %v6399
    %v6456 = vpack.c.b16 %v6404, %v6402
    %v6457 = vpack.c.b16 %v6405, %v6403
    %v6458 = vpack.c.b16 %v6408, %v6406
    %v6459 = vpack.c.b16 %v6409, %v6407
    %v6460 = vpack.c.b16 %v6412, %v6410
    %v6461 = vpack.c.b16 %v6413, %v6411
    %v6462 = vpack.c.b16 %v6416, %v6414
    %v6463 = vpack.c.b16 %v6417, %v6415
    %v6464 = vpack.c.b16 %v6420, %v6418
    %v6465 = vpack.c.b16 %v6421, %v6419
    %v6466 = vpack.c.b16 %v6424, %v6422
    %v6467 = vpack.c.b16 %v6425, %v6423
    %v6468 = vpack.c.b16 %v6428, %v6426
    %v6469 = vpack.c.b16 %v6429, %v6427
    %v6470 = vpack.c.b16 %v6432, %v6430
    %v6471 = vpack.c.b16 %v6433, %v6431
    %v6472 = vpack.c.b16 %v6436, %v6434
    %v6473 = vpack.c.b16 %v6437, %v6435
    %v6474 = vpack.c.b16 %v6440, %v6438
    %v6475 = vpack.c.b16 %v6441, %v6439
    %v6476 = vpack.c.b16 %v6444, %v6442
    %v6477 = vpack.c.b16 %v6445, %v6443
    %6510 = vmatpush.bf16.msra.mxu0 %v6460
    %6511 = vmatpush.bf16.msra.mxu0 %v6458
    %6512 = vmatpush.bf16.msra.mxu0 %v6456
    %6513 = vmatpush.bf16.msra.mxu0 %v6454
    %6514 = vmatpush.bf16.msra.mxu0 %v6452
    %6515 = vmatpush.bf16.msra.mxu0 %v6450
    %6516 = vmatpush.bf16.msra.mxu0 %v6448
    %6517 = vmatpush.bf16.msra.mxu0 %v6446
    %6518 = vmatmul.bf16.gmra.mxu0 %v6310
    %v6519 = vpop.f32.mrf.mxu0
    %v6520 = vadd.f32 %v6346, %v6519
    %v6521 = vpop.f32.mrf.mxu0
    %6522 = vdwg.mxu0
    %6523 = vmatpush.bf16.msra.mxu0 %v6476
    %6524 = vmatpush.bf16.msra.mxu0 %v6474
    %6525 = vmatpush.bf16.msra.mxu0 %v6472
    %6526 = vmatpush.bf16.msra.mxu0 %v6470
    %6527 = vmatpush.bf16.msra.mxu0 %v6468
    %6528 = vmatpush.bf16.msra.mxu0 %v6466
    %6529 = vmatpush.bf16.msra.mxu0 %v6464
    %6530 = vmatpush.bf16.msra.mxu0 %v6462
    %6531 = vmatmul.bf16.gmra.mxu0 %v6311
    %v6532 = vpop.f32.mrf.mxu0
    %v6533 = vadd.f32 %v6520, %v6532
    %v6534 = vpop.f32.mrf.mxu0
    %6535 = vdwg.mxu0
    %6536 = vmatpush.bf16.msra.mxu0 %v6461
    %6537 = vmatpush.bf16.msra.mxu0 %v6459
    %6538 = vmatpush.bf16.msra.mxu0 %v6457
    %6539 = vmatpush.bf16.msra.mxu0 %v6455
    %6540 = vmatpush.bf16.msra.mxu0 %v6453
    %6541 = vmatpush.bf16.msra.mxu0 %v6451
    %6542 = vmatpush.bf16.msra.mxu0 %v6449
    %6543 = vmatpush.bf16.msra.mxu0 %v6447
    %6544 = vmatmul.bf16.gmra.mxu0 %v6310
    %v6545 = vpop.f32.mrf.mxu0
    %v6546 = vadd.f32 %v6347, %v6545
    %v6547 = vpop.f32.mrf.mxu0
    %6548 = vdwg.mxu0
    %6549 = vmatpush.bf16.msra.mxu0 %v6477
    %6550 = vmatpush.bf16.msra.mxu0 %v6475
    %6551 = vmatpush.bf16.msra.mxu0 %v6473
    %6552 = vmatpush.bf16.msra.mxu0 %v6471
    %6553 = vmatpush.bf16.msra.mxu0 %v6469
    %6554 = vmatpush.bf16.msra.mxu0 %v6467
    %6555 = vmatpush.bf16.msra.mxu0 %v6465
    %6556 = vmatpush.bf16.msra.mxu0 %v6463
    %6557 = vmatmul.bf16.gmra.mxu0 %v6311
    %v6558 = vpop.f32.mrf.mxu0
    %v6559 = vadd.f32 %v6546, %v6558
    %v6560 = vpop.f32.mrf.mxu0
    %6561 = vdwg.mxu0
    %6562 = vst [vmem:[#allocation13] sm:$0xff] %v6533
    %6563 = vst [vmem:[#allocation13 + $0x8] sm:$0xff] %v6559
    // Predicated region
    $region62: #{rnn_generation_forward.1} parent=1 // pred_check
      _
    $region63: #{rnn_generation_forward.1} parent=1 // pred_check_branch
      %6565 = sbr.rel (0) target = $region65
    $region64: #{rnn_generation_forward.1} parent=1 // pred_region
      %6567 = vsyncadd [#allocation8], 0
      %s6569 = sshll.u32 [#allocation13], 4
      %s6570 = int_to_ptr.vmem [resolvable:$true] %s6569
      %s6571 = sshll.u32 %s12, 4
      %s6572 = int_to_ptr.hbm [resolvable:$true] %s6571
      %6574 = dma.vmem_to_hbm [thread:$0]  %s6570, 256, %s6572, [#allocation8]
    $region65: #{rnn_generation_forward.1} parent=1 // pred_fallthru
      _
    // Predicated region
    $region66: #{rnn_generation_forward.1} parent=1 // pred_check
      _
    $region67: #{rnn_generation_forward.1} parent=1 // pred_check_branch
      %6576 = sbr.rel (0) target = $region69
    $region68: #{rnn_generation_forward.1} parent=1 // pred_region
      %6578 = vsyncadd [#allocation15], 0
      %s6580 = sshll.u32 [#allocation14], 4
      %s6581 = int_to_ptr.vmem [resolvable:$true] %s6580
      %s6582 = sshll.u32 %s13, 4
      %s6583 = int_to_ptr.hbm [resolvable:$true] %s6582
      %6585 = dma.vmem_to_hbm [thread:$0]  %s6581, 64, %s6583, [#allocation15]
    $region69: #{rnn_generation_forward.1} parent=1 // pred_fallthru
      _
    // Predicated region
    $region70: #{rnn_generation_forward.1} parent=1 // pred_check
      _
    $region71: #{rnn_generation_forward.1} parent=1 // pred_check_branch
      %6587 = sbr.rel (0) target = $region73
    $region72: #{rnn_generation_forward.1} parent=1 // pred_region
      %6589 = dma.done [#allocation8], 256
    $region73: #{rnn_generation_forward.1} parent=1 // pred_fallthru
      _
    // Predicated region
    $region74: #{rnn_generation_forward.1} parent=1 // pred_check
      _
    $region75: #{rnn_generation_forward.1} parent=1 // pred_check_branch
      %6591 = sbr.rel (0) target = $region77
    $region76: #{rnn_generation_forward.1} parent=1 // pred_region
      %6593 = dma.done [#allocation15], 64
    $region77: #{rnn_generation_forward.1} parent=1 // pred_fallthru
      _
    %6594 = vsyncpa [#allocation7], 1
    %6595 = vsyncpa [#allocation12], 1
    %6596 = vsyncpa [#allocation8], 1
    %6597 = vsyncpa [#allocation15], 1
    %6598 = vsyncpa [#allocation9], 1
  %6599 = vsyncmov [#allocation5]
  %s6600 = vpop.sfrf %6599
  %p6601 = scmp.eq.s32.totalorder %s6600, 0
  %p6602 = pneg %p6601
  %6604 = shalt.err (%p6602)
  %s6605 = scalar_lea.sflag [#allocation5], 1
  %6606 = vsyncmov %s6605
  %s6607 = vpop.sfrf %6606
  %p6608 = scmp.eq.s32.totalorder %s6607, 0
  %p6609 = pneg %p6608
  %6611 = shalt.err (%p6609)
  %s6612 = scalar_lea.sflag [#allocation5], 2
  %6613 = vsyncmov %s6612
  %s6614 = vpop.sfrf %6613
  %p6615 = scmp.eq.s32.totalorder %s6614, 0
  %p6616 = pneg %p6615
  %6618 = shalt.err (%p6616)

</llo_original>
